<compile_context>
chip_gen: v5e
topology: v5e:2x2
jax: 0.10.0
libtpu: 0.0.40
codegen_flags: <defaults>
</compile_context>

<pallas_src>
import functools

import jax
import jax.numpy as jnp
from jax.experimental import pallas as pl
from jax.experimental.pallas import tpu as pltpu

HS = 200  # hidden size hard-coded inside PolicyNet.__init__


def _relu(x):
    return jnp.maximum(x, 0.0)


def _dot(a, b):
    # Weights arrive in bf16; cast the activation operand to bf16 too and
    # accumulate in f32 on the MXU.
    return jnp.dot(a.astype(jnp.bfloat16), b,
                   preferred_element_type=jnp.float32)


def _softmax(x):
    m = jnp.max(x, axis=-1, keepdims=True)
    e = jnp.exp(x - m)
    return e * pl.reciprocal(jnp.sum(e, axis=-1, keepdims=True), approx=True)


def policy_net_kernel(S, P, A, B,
                      xr_ref, xc_ref, u_ref, x1_ref,
                      wr_ref, br_ref, wc_ref, bc_ref,
                      w1r_ref, w1c_ref, w1x_ref, b1_ref,
                      fcwh_ref, fcbh_ref,
                      pw1a_ref, pw1b_ref, pb1_ref,
                      pwh_ref, pbh_ref, pwo_ref, pbo_ref,
                      qw1_ref, qb1_ref, qwh_ref, qbh_ref, qwo_ref, qbo_ref,
                      l1_ref, l2_ref):
    # ---- row / col "convs" as dense dots on p-major / a-major activations ---
    zrow = _dot(xr_ref[...], wr_ref[...]) + br_ref[...]        # (P*B, HS)
    zcol = _dot(xc_ref[...], wc_ref[...]) + bc_ref[...]        # (A*B, HS)

    # ---- first fc Linear on ReLU(concat(row_flat, col_flat, x1)) ------------
    # The concat is folded into split weight slabs; per-p / per-a slices of
    # zrow/zcol are 8-sublane aligned (B == 8), so no relayout is needed.
    h = _dot(_relu(x1_ref[...]), w1x_ref[...]) + b1_ref[...]   # (B, HS)
    for p in range(P):
        h = h + _dot(_relu(zrow[p * B:(p + 1) * B]), w1r_ref[p])
    for a in range(A):
        h = h + _dot(_relu(zcol[a * B:(a + 1) * B]), w1c_ref[a])

    # ---- rest of the fc trunk (4 ReLU+Linear blocks, no trailing ReLU) ------
    for j in range(4):
        h = _dot(_relu(h), fcwh_ref[j]) + fcbh_ref[j]
    rfc = _relu(h)                                             # (B, HS)

    # ---- per-subtask policy / prior heads (compact per-head weights) --------
    for i in range(S):
        u = u_ref[i]                                           # (B, P)
        hp = (_dot(rfc, pw1a_ref[i]) + _dot(_relu(u), pw1b_ref[i])
              + pb1_ref[i])                                    # (B, HS)
        hp = _dot(_relu(hp), pwh_ref[2 * i]) + pbh_ref[2 * i]
        hp = _dot(_relu(hp), pwh_ref[2 * i + 1]) + pbh_ref[2 * i + 1]
        w = _dot(_relu(hp), pwo_ref[i]) + pbo_ref[i]           # (B, P)
        pval = pl.reciprocal(-u, approx=False) - 1.0 + w
        l1_ref[i] = _softmax(pval) + 1e-14

        hq = _dot(rfc, qw1_ref[i]) + qb1_ref[i]                # (B, HS)
        hq = _dot(_relu(hq), qwh_ref[2 * i]) + qbh_ref[2 * i]
        hq = _dot(_relu(hq), qwh_ref[2 * i + 1]) + qbh_ref[2 * i + 1]
        o = _dot(_relu(hq), qwo_ref[i]) + qbo_ref[i]           # (B, S)
        l2_ref[i] = _softmax(o)


def init_params(key, P, A, S, hs=HS):
    """Deterministic synthetic parameters (std=0.02 normals), logical layout."""
    ks = iter(jax.random.split(key, 32))

    def w(shape, std=0.02):
        return (std * jax.random.normal(next(ks), shape)).astype(jnp.float32)

    return dict(
        Wr=w((A, hs)), br=w((1, hs)),            # base_row conv (kernel (1,A))
        Wc=w((P, hs)), bc=w((1, hs)),            # base_col conv (kernel (P,1))
        # fc Linear #1 split by the concat layout [row_flat | col_flat | x1]:
        W1r=w((P, hs, hs)),                      # W1r[p][c] == W1.T[c*P+p]
        W1c=w((A, hs, hs)),                      # W1c[a][c] == W1.T[hs*P + c*A+a]
        W1x=w((2 * S, hs)), b1=w((1, hs)),
        fcWh=w((4, hs, hs)), fcbh=w((4, 1, hs)), # fc Linears #2..#5
        pW1a=w((S, hs, hs)), pW1b=w((S, P, hs)), pb1=w((S, 1, hs)),
        pWh=w((S, 2, hs, hs)), pbh=w((S, 2, 1, hs)),
        pWo=w((S, hs, P)), pbo=w((S, 1, P)),
        qW1=w((S, hs, hs)), qb1=w((S, 1, hs)),
        qWh=w((S, 2, hs, hs)), qbh=w((S, 2, 1, hs)),
        qWo=w((S, hs, S)), qbo=w((S, 1, S)),
    )


def pack_params(params, P, A, S, hs=HS):
    """Cast weight matrices to bf16; keep biases f32.  No zero padding."""
    bf16 = jnp.bfloat16

    def c(x):
        return x.astype(bf16)

    return [
        c(params["Wr"]), params["br"],
        c(params["Wc"]), params["bc"],
        c(params["W1r"]), c(params["W1c"]), c(params["W1x"]), params["b1"],
        c(params["fcWh"]), params["fcbh"],
        c(params["pW1a"]), c(params["pW1b"]), params["pb1"],
        c(params["pWh"].reshape(S * 2, hs, hs)),
        params["pbh"].reshape(S * 2, 1, hs),
        c(params["pWo"]), params["pbo"],
        c(params["qW1"]), params["qb1"],
        c(params["qWh"].reshape(S * 2, hs, hs)),
        params["qbh"].reshape(S * 2, 1, hs),
        c(params["qWo"]), params["qbo"],
    ]


def policy_net_forward(params, x0, x1, S):
    """x0: (B, 1, P, A) float32 (NCHW), x1: (B, 2*S) float32."""
    B, _, P, A = x0.shape
    x0s = x0[:, 0]                                              # (B, P, A)
    xr = jnp.transpose(x0s, (1, 0, 2)).reshape(P * B, A)        # p-major rows
    xc = jnp.transpose(x0s, (2, 0, 1)).reshape(A * B, P)        # a-major rows
    u = jnp.transpose(x0s[:, :, A - S:], (2, 0, 1))             # (S, B, P)

    inputs = [xr, xc, u, x1] + pack_params(params, P, A, S)

    vmem = pl.BlockSpec(memory_space=pltpu.MemorySpace.VMEM)
    kernel = functools.partial(policy_net_kernel, S, P, A, B)
    l1, l2 = pl.pallas_call(
        kernel,
        out_shape=(jax.ShapeDtypeStruct((S, B, P), jnp.float32),
                   jax.ShapeDtypeStruct((S, B, S), jnp.float32)),
        in_specs=[vmem] * len(inputs),
        out_specs=(vmem, vmem),
        compiler_params=pltpu.CompilerParams(
            vmem_limit_bytes=32 * 1024 * 1024),  # safe on v5e/v6e/v7x
    )(*inputs)
    return l1, l2


def reference_forward(params, x0, x1, S, hs=HS):
    """Pure-JAX replica of the PyTorch forward, for correctness checking."""
    B, _, P, A = x0.shape
    x0s = x0[:, 0]
    row = jnp.einsum("bpa,ah->bhp", x0s, params["Wr"]) + params["br"][0][:, None]
    col = jnp.einsum("bpa,ph->bha", x0s, params["Wc"]) + params["bc"][0][:, None]
    conv_out = jnp.concatenate(
        [row.reshape(B, hs * P), col.reshape(B, hs * A), x1], axis=1)
    # rebuild the full first fc weight (conv_out_size, hs) from the splits
    W1T = jnp.concatenate([
        params["W1r"].transpose(1, 0, 2).reshape(hs * P, hs),
        params["W1c"].transpose(1, 0, 2).reshape(hs * A, hs),
        params["W1x"]], axis=0)
    h = _relu(conv_out) @ W1T + params["b1"]
    for j in range(4):
        h = _relu(h) @ params["fcWh"][j] + params["fcbh"][j]
    out_fc = h
    l1, l2 = [], []
    for i in range(S):
        u = x0s[:, :, A - S + i]
        v = jnp.concatenate([out_fc, u], axis=1)
        W1p = jnp.concatenate([params["pW1a"][i], params["pW1b"][i]], axis=0)
        hp = _relu(v) @ W1p + params["pb1"][i]
        for j in range(2):
            hp = _relu(hp) @ params["pWh"][i, j] + params["pbh"][i, j]
        w = _relu(hp) @ params["pWo"][i] + params["pbo"][i]
        pval = 1.0 / (-u) - 1.0 + w
        l1.append(jax.nn.softmax(pval, axis=1) + 1e-14)
        hq = _relu(out_fc) @ params["qW1"][i] + params["qb1"][i]
        for j in range(2):
            hq = _relu(hq) @ params["qWh"][i, j] + params["qbh"][i, j]
        o = _relu(hq) @ params["qWo"][i] + params["qbo"][i]
        l2.append(jax.nn.softmax(o, axis=1))
    return jnp.stack(l1), jnp.stack(l2)


if __name__ == "__main__":
    # batch (fills the 8-sublane f32 tile), num_processors, num_attributes,
    # num_subtasks
    B, P, A, S = 8, 4, 8, 3

    key = jax.random.PRNGKey(0)
    k1, k2, k3, kp = jax.random.split(key, 4)
    x0 = jax.random.normal(k1, (B, 1, P, A), jnp.float32)
    # keep the per-subtask columns (used as 1/(-u)) bounded away from zero
    tail = 0.2 + 0.8 * jax.random.uniform(k2, (B, 1, P, S), dtype=jnp.float32)
    x0 = x0.at[:, :, :, A - S:].set(tail)
    x1 = jax.random.normal(k3, (B, 2 * S), jnp.float32)

    params = init_params(kp, P, A, S)

    l1, l2 = policy_net_forward(params, x0, x1, S)
    jax.block_until_ready((l1, l2))

    r1, r2 = reference_forward(params, x0, x1, S)
    err1 = float(jnp.max(jnp.abs(l1 - r1)))
    err2 = float(jnp.max(jnp.abs(l2 - r2)))
    assert l1.shape == (S, B, P) and l2.shape == (S, B, S)
    # bf16 weights + bf16 MXU passes vs. the f32-stored reference: allow 2e-3.
    assert err1 < 2e-3 and err2 < 2e-3, (err1, err2)
    print("KERNEL_OK")
</pallas_src>

<mosaic_0001>
module attributes {stable_mosaic.version = 11 : i64} {
  func.func @policy_net_kernel(%arg0: memref<32x8xf32, #tpu.memory_space<vmem>>, %arg1: memref<64x4xf32, #tpu.memory_space<vmem>>, %arg2: memref<3x8x4xf32, #tpu.memory_space<vmem>>, %arg3: memref<8x6xf32, #tpu.memory_space<vmem>>, %arg4: memref<8x200xbf16, #tpu.memory_space<vmem>>, %arg5: memref<1x200xf32, #tpu.memory_space<vmem>>, %arg6: memref<4x200xbf16, #tpu.memory_space<vmem>>, %arg7: memref<1x200xf32, #tpu.memory_space<vmem>>, %arg8: memref<4x200x200xbf16, #tpu.memory_space<vmem>>, %arg9: memref<8x200x200xbf16, #tpu.memory_space<vmem>>, %arg10: memref<6x200xbf16, #tpu.memory_space<vmem>>, %arg11: memref<1x200xf32, #tpu.memory_space<vmem>>, %arg12: memref<4x200x200xbf16, #tpu.memory_space<vmem>>, %arg13: memref<4x1x200xf32, #tpu.memory_space<vmem>>, %arg14: memref<3x200x200xbf16, #tpu.memory_space<vmem>>, %arg15: memref<3x4x200xbf16, #tpu.memory_space<vmem>>, %arg16: memref<3x1x200xf32, #tpu.memory_space<vmem>>, %arg17: memref<6x200x200xbf16, #tpu.memory_space<vmem>>, %arg18: memref<6x1x200xf32, #tpu.memory_space<vmem>>, %arg19: memref<3x200x4xbf16, #tpu.memory_space<vmem>>, %arg20: memref<3x1x4xf32, #tpu.memory_space<vmem>>, %arg21: memref<3x200x200xbf16, #tpu.memory_space<vmem>>, %arg22: memref<3x1x200xf32, #tpu.memory_space<vmem>>, %arg23: memref<6x200x200xbf16, #tpu.memory_space<vmem>>, %arg24: memref<6x1x200xf32, #tpu.memory_space<vmem>>, %arg25: memref<3x200x3xbf16, #tpu.memory_space<vmem>>, %arg26: memref<3x1x3xf32, #tpu.memory_space<vmem>>, %arg27: memref<3x8x4xf32, #tpu.memory_space<vmem>>, %arg28: memref<3x8x3xf32, #tpu.memory_space<vmem>>) attributes {dimension_semantics = [], scalar_prefetch = 0 : i64, scratch_operands = 0 : i64, tpu.core_type = #tpu.core_type<tc>} {
    %c0 = arith.constant 0 : index
    %c0_0 = arith.constant 0 : index
    %0 = vector.load %arg0[%c0, %c0_0] : memref<32x8xf32, #tpu.memory_space<vmem>>, vector<32x8xf32>
    %c0_1 = arith.constant 0 : index
    %c0_2 = arith.constant 0 : index
    %1 = vector.load %arg4[%c0_1, %c0_2] : memref<8x200xbf16, #tpu.memory_space<vmem>>, vector<8x200xbf16>
    %2 = arith.truncf %0 : vector<32x8xf32> to vector<32x8xbf16>
    %cst = arith.constant dense<0.000000e+00> : vector<32x200xf32>
    %3 = tpu.matmul %2, %1, %cst {dimension_numbers = #tpu.dot_dimension_numbers<[1], [0], [0], [1], [0, 0, 1, 1], [], []>} : vector<32x8xbf16>, vector<8x200xbf16>, vector<32x200xf32> -> vector<32x200xf32>
    %c0_3 = arith.constant 0 : index
    %c0_4 = arith.constant 0 : index
    %4 = vector.load %arg5[%c0_3, %c0_4] : memref<1x200xf32, #tpu.memory_space<vmem>>, vector<1x200xf32>
    %5 = vector.broadcast %4 : vector<1x200xf32> to vector<32x200xf32>
    %6 = arith.addf %3, %5 : vector<32x200xf32>
    %c0_5 = arith.constant 0 : index
    %c0_6 = arith.constant 0 : index
    %7 = vector.load %arg1[%c0_5, %c0_6] : memref<64x4xf32, #tpu.memory_space<vmem>>, vector<64x4xf32>
    %c0_7 = arith.constant 0 : index
    %c0_8 = arith.constant 0 : index
    %8 = vector.load %arg6[%c0_7, %c0_8] : memref<4x200xbf16, #tpu.memory_space<vmem>>, vector<4x200xbf16>
    %9 = arith.truncf %7 : vector<64x4xf32> to vector<64x4xbf16>
    %cst_9 = arith.constant dense<0.000000e+00> : vector<64x200xf32>
    %10 = tpu.matmul %9, %8, %cst_9 {dimension_numbers = #tpu.dot_dimension_numbers<[1], [0], [0], [1], [0, 0, 1, 1], [], []>} : vector<64x4xbf16>, vector<4x200xbf16>, vector<64x200xf32> -> vector<64x200xf32>
    %c0_10 = arith.constant 0 : index
    %c0_11 = arith.constant 0 : index
    %11 = vector.load %arg7[%c0_10, %c0_11] : memref<1x200xf32, #tpu.memory_space<vmem>>, vector<1x200xf32>
    %12 = vector.broadcast %11 : vector<1x200xf32> to vector<64x200xf32>
    %13 = arith.addf %10, %12 : vector<64x200xf32>
    %c0_12 = arith.constant 0 : index
    %c0_13 = arith.constant 0 : index
    %14 = vector.load %arg3[%c0_12, %c0_13] : memref<8x6xf32, #tpu.memory_space<vmem>>, vector<8x6xf32>
    %cst_14 = arith.constant 0.000000e+00 : f32
    %15 = vector.broadcast %cst_14 : f32 to vector<8x6xf32>
    %16 = arith.maximumf %14, %15 : vector<8x6xf32>
    %c0_15 = arith.constant 0 : index
    %c0_16 = arith.constant 0 : index
    %17 = vector.load %arg10[%c0_15, %c0_16] : memref<6x200xbf16, #tpu.memory_space<vmem>>, vector<6x200xbf16>
    %18 = arith.truncf %16 : vector<8x6xf32> to vector<8x6xbf16>
    %cst_17 = arith.constant dense<0.000000e+00> : vector<8x200xf32>
    %19 = tpu.matmul %18, %17, %cst_17 {dimension_numbers = #tpu.dot_dimension_numbers<[1], [0], [0], [1], [0, 0, 1, 1], [], []>} : vector<8x6xbf16>, vector<6x200xbf16>, vector<8x200xf32> -> vector<8x200xf32>
    %c0_18 = arith.constant 0 : index
    %c0_19 = arith.constant 0 : index
    %20 = vector.load %arg11[%c0_18, %c0_19] : memref<1x200xf32, #tpu.memory_space<vmem>>, vector<1x200xf32>
    %21 = vector.broadcast %20 : vector<1x200xf32> to vector<8x200xf32>
    %22 = arith.addf %19, %21 : vector<8x200xf32>
    %23 = vector.extract_strided_slice %6 {offsets = [0, 0], sizes = [8, 200], strides = [1, 1]} : vector<32x200xf32> to vector<8x200xf32>
    %cst_20 = arith.constant 0.000000e+00 : f32
    %24 = vector.broadcast %cst_20 : f32 to vector<8x200xf32>
    %25 = arith.maximumf %23, %24 : vector<8x200xf32>
    %c0_21 = arith.constant 0 : index
    %c0_22 = arith.constant 0 : index
    %c0_23 = arith.constant 0 : index
    %26 = vector.load %arg8[%c0_21, %c0_22, %c0_23] : memref<4x200x200xbf16, #tpu.memory_space<vmem>>, vector<1x200x200xbf16>
    %27 = vector.shape_cast %26 : vector<1x200x200xbf16> to vector<200x200xbf16>
    %28 = arith.truncf %25 : vector<8x200xf32> to vector<8x200xbf16>
    %cst_24 = arith.constant dense<0.000000e+00> : vector<8x200xf32>
    %29 = tpu.matmul %28, %27, %cst_24 {dimension_numbers = #tpu.dot_dimension_numbers<[1], [0], [0], [1], [0, 0, 1, 1], [], []>} : vector<8x200xbf16>, vector<200x200xbf16>, vector<8x200xf32> -> vector<8x200xf32>
    %30 = arith.addf %22, %29 : vector<8x200xf32>
    %31 = vector.extract_strided_slice %6 {offsets = [8, 0], sizes = [8, 200], strides = [1, 1]} : vector<32x200xf32> to vector<8x200xf32>
    %cst_25 = arith.constant 0.000000e+00 : f32
    %32 = vector.broadcast %cst_25 : f32 to vector<8x200xf32>
    %33 = arith.maximumf %31, %32 : vector<8x200xf32>
    %c1 = arith.constant 1 : index
    %c0_26 = arith.constant 0 : index
    %c0_27 = arith.constant 0 : index
    %34 = vector.load %arg8[%c1, %c0_26, %c0_27] : memref<4x200x200xbf16, #tpu.memory_space<vmem>>, vector<1x200x200xbf16>
    %35 = vector.shape_cast %34 : vector<1x200x200xbf16> to vector<200x200xbf16>
    %36 = arith.truncf %33 : vector<8x200xf32> to vector<8x200xbf16>
    %cst_28 = arith.constant dense<0.000000e+00> : vector<8x200xf32>
    %37 = tpu.matmul %36, %35, %cst_28 {dimension_numbers = #tpu.dot_dimension_numbers<[1], [0], [0], [1], [0, 0, 1, 1], [], []>} : vector<8x200xbf16>, vector<200x200xbf16>, vector<8x200xf32> -> vector<8x200xf32>
    %38 = arith.addf %30, %37 : vector<8x200xf32>
    %39 = vector.extract_strided_slice %6 {offsets = [16, 0], sizes = [8, 200], strides = [1, 1]} : vector<32x200xf32> to vector<8x200xf32>
    %cst_29 = arith.constant 0.000000e+00 : f32
    %40 = vector.broadcast %cst_29 : f32 to vector<8x200xf32>
    %41 = arith.maximumf %39, %40 : vector<8x200xf32>
    %c2 = arith.constant 2 : index
    %c0_30 = arith.constant 0 : index
    %c0_31 = arith.constant 0 : index
    %42 = vector.load %arg8[%c2, %c0_30, %c0_31] : memref<4x200x200xbf16, #tpu.memory_space<vmem>>, vector<1x200x200xbf16>
    %43 = vector.shape_cast %42 : vector<1x200x200xbf16> to vector<200x200xbf16>
    %44 = arith.truncf %41 : vector<8x200xf32> to vector<8x200xbf16>
    %cst_32 = arith.constant dense<0.000000e+00> : vector<8x200xf32>
    %45 = tpu.matmul %44, %43, %cst_32 {dimension_numbers = #tpu.dot_dimension_numbers<[1], [0], [0], [1], [0, 0, 1, 1], [], []>} : vector<8x200xbf16>, vector<200x200xbf16>, vector<8x200xf32> -> vector<8x200xf32>
    %46 = arith.addf %38, %45 : vector<8x200xf32>
    %47 = vector.extract_strided_slice %6 {offsets = [24, 0], sizes = [8, 200], strides = [1, 1]} : vector<32x200xf32> to vector<8x200xf32>
    %cst_33 = arith.constant 0.000000e+00 : f32
    %48 = vector.broadcast %cst_33 : f32 to vector<8x200xf32>
    %49 = arith.maximumf %47, %48 : vector<8x200xf32>
    %c3 = arith.constant 3 : index
    %c0_34 = arith.constant 0 : index
    %c0_35 = arith.constant 0 : index
    %50 = vector.load %arg8[%c3, %c0_34, %c0_35] : memref<4x200x200xbf16, #tpu.memory_space<vmem>>, vector<1x200x200xbf16>
    %51 = vector.shape_cast %50 : vector<1x200x200xbf16> to vector<200x200xbf16>
    %52 = arith.truncf %49 : vector<8x200xf32> to vector<8x200xbf16>
    %cst_36 = arith.constant dense<0.000000e+00> : vector<8x200xf32>
    %53 = tpu.matmul %52, %51, %cst_36 {dimension_numbers = #tpu.dot_dimension_numbers<[1], [0], [0], [1], [0, 0, 1, 1], [], []>} : vector<8x200xbf16>, vector<200x200xbf16>, vector<8x200xf32> -> vector<8x200xf32>
    %54 = arith.addf %46, %53 : vector<8x200xf32>
    %55 = vector.extract_strided_slice %13 {offsets = [0, 0], sizes = [8, 200], strides = [1, 1]} : vector<64x200xf32> to vector<8x200xf32>
    %cst_37 = arith.constant 0.000000e+00 : f32
    %56 = vector.broadcast %cst_37 : f32 to vector<8x200xf32>
    %57 = arith.maximumf %55, %56 : vector<8x200xf32>
    %c0_38 = arith.constant 0 : index
    %c0_39 = arith.constant 0 : index
    %c0_40 = arith.constant 0 : index
    %58 = vector.load %arg9[%c0_38, %c0_39, %c0_40] : memref<8x200x200xbf16, #tpu.memory_space<vmem>>, vector<1x200x200xbf16>
    %59 = vector.shape_cast %58 : vector<1x200x200xbf16> to vector<200x200xbf16>
    %60 = arith.truncf %57 : vector<8x200xf32> to vector<8x200xbf16>
    %cst_41 = arith.constant dense<0.000000e+00> : vector<8x200xf32>
    %61 = tpu.matmul %60, %59, %cst_41 {dimension_numbers = #tpu.dot_dimension_numbers<[1], [0], [0], [1], [0, 0, 1, 1], [], []>} : vector<8x200xbf16>, vector<200x200xbf16>, vector<8x200xf32> -> vector<8x200xf32>
    %62 = arith.addf %54, %61 : vector<8x200xf32>
    %63 = vector.extract_strided_slice %13 {offsets = [8, 0], sizes = [8, 200], strides = [1, 1]} : vector<64x200xf32> to vector<8x200xf32>
    %cst_42 = arith.constant 0.000000e+00 : f32
    %64 = vector.broadcast %cst_42 : f32 to vector<8x200xf32>
    %65 = arith.maximumf %63, %64 : vector<8x200xf32>
    %c1_43 = arith.constant 1 : index
    %c0_44 = arith.constant 0 : index
    %c0_45 = arith.constant 0 : index
    %66 = vector.load %arg9[%c1_43, %c0_44, %c0_45] : memref<8x200x200xbf16, #tpu.memory_space<vmem>>, vector<1x200x200xbf16>
    %67 = vector.shape_cast %66 : vector<1x200x200xbf16> to vector<200x200xbf16>
    %68 = arith.truncf %65 : vector<8x200xf32> to vector<8x200xbf16>
    %cst_46 = arith.constant dense<0.000000e+00> : vector<8x200xf32>
    %69 = tpu.matmul %68, %67, %cst_46 {dimension_numbers = #tpu.dot_dimension_numbers<[1], [0], [0], [1], [0, 0, 1, 1], [], []>} : vector<8x200xbf16>, vector<200x200xbf16>, vector<8x200xf32> -> vector<8x200xf32>
    %70 = arith.addf %62, %69 : vector<8x200xf32>
    %71 = vector.extract_strided_slice %13 {offsets = [16, 0], sizes = [8, 200], strides = [1, 1]} : vector<64x200xf32> to vector<8x200xf32>
    %cst_47 = arith.constant 0.000000e+00 : f32
    %72 = vector.broadcast %cst_47 : f32 to vector<8x200xf32>
    %73 = arith.maximumf %71, %72 : vector<8x200xf32>
    %c2_48 = arith.constant 2 : index
    %c0_49 = arith.constant 0 : index
    %c0_50 = arith.constant 0 : index
    %74 = vector.load %arg9[%c2_48, %c0_49, %c0_50] : memref<8x200x200xbf16, #tpu.memory_space<vmem>>, vector<1x200x200xbf16>
    %75 = vector.shape_cast %74 : vector<1x200x200xbf16> to vector<200x200xbf16>
    %76 = arith.truncf %73 : vector<8x200xf32> to vector<8x200xbf16>
    %cst_51 = arith.constant dense<0.000000e+00> : vector<8x200xf32>
    %77 = tpu.matmul %76, %75, %cst_51 {dimension_numbers = #tpu.dot_dimension_numbers<[1], [0], [0], [1], [0, 0, 1, 1], [], []>} : vector<8x200xbf16>, vector<200x200xbf16>, vector<8x200xf32> -> vector<8x200xf32>
    %78 = arith.addf %70, %77 : vector<8x200xf32>
    %79 = vector.extract_strided_slice %13 {offsets = [24, 0], sizes = [8, 200], strides = [1, 1]} : vector<64x200xf32> to vector<8x200xf32>
    %cst_52 = arith.constant 0.000000e+00 : f32
    %80 = vector.broadcast %cst_52 : f32 to vector<8x200xf32>
    %81 = arith.maximumf %79, %80 : vector<8x200xf32>
    %c3_53 = arith.constant 3 : index
    %c0_54 = arith.constant 0 : index
    %c0_55 = arith.constant 0 : index
    %82 = vector.load %arg9[%c3_53, %c0_54, %c0_55] : memref<8x200x200xbf16, #tpu.memory_space<vmem>>, vector<1x200x200xbf16>
    %83 = vector.shape_cast %82 : vector<1x200x200xbf16> to vector<200x200xbf16>
    %84 = arith.truncf %81 : vector<8x200xf32> to vector<8x200xbf16>
    %cst_56 = arith.constant dense<0.000000e+00> : vector<8x200xf32>
    %85 = tpu.matmul %84, %83, %cst_56 {dimension_numbers = #tpu.dot_dimension_numbers<[1], [0], [0], [1], [0, 0, 1, 1], [], []>} : vector<8x200xbf16>, vector<200x200xbf16>, vector<8x200xf32> -> vector<8x200xf32>
    %86 = arith.addf %78, %85 : vector<8x200xf32>
    %87 = vector.extract_strided_slice %13 {offsets = [32, 0], sizes = [8, 200], strides = [1, 1]} : vector<64x200xf32> to vector<8x200xf32>
    %cst_57 = arith.constant 0.000000e+00 : f32
    %88 = vector.broadcast %cst_57 : f32 to vector<8x200xf32>
    %89 = arith.maximumf %87, %88 : vector<8x200xf32>
    %c4 = arith.constant 4 : index
    %c0_58 = arith.constant 0 : index
    %c0_59 = arith.constant 0 : index
    %90 = vector.load %arg9[%c4, %c0_58, %c0_59] : memref<8x200x200xbf16, #tpu.memory_space<vmem>>, vector<1x200x200xbf16>
    %91 = vector.shape_cast %90 : vector<1x200x200xbf16> to vector<200x200xbf16>
    %92 = arith.truncf %89 : vector<8x200xf32> to vector<8x200xbf16>
    %cst_60 = arith.constant dense<0.000000e+00> : vector<8x200xf32>
    %93 = tpu.matmul %92, %91, %cst_60 {dimension_numbers = #tpu.dot_dimension_numbers<[1], [0], [0], [1], [0, 0, 1, 1], [], []>} : vector<8x200xbf16>, vector<200x200xbf16>, vector<8x200xf32> -> vector<8x200xf32>
    %94 = arith.addf %86, %93 : vector<8x200xf32>
    %95 = vector.extract_strided_slice %13 {offsets = [40, 0], sizes = [8, 200], strides = [1, 1]} : vector<64x200xf32> to vector<8x200xf32>
    %cst_61 = arith.constant 0.000000e+00 : f32
    %96 = vector.broadcast %cst_61 : f32 to vector<8x200xf32>
    %97 = arith.maximumf %95, %96 : vector<8x200xf32>
    %c5 = arith.constant 5 : index
    %c0_62 = arith.constant 0 : index
    %c0_63 = arith.constant 0 : index
    %98 = vector.load %arg9[%c5, %c0_62, %c0_63] : memref<8x200x200xbf16, #tpu.memory_space<vmem>>, vector<1x200x200xbf16>
    %99 = vector.shape_cast %98 : vector<1x200x200xbf16> to vector<200x200xbf16>
    %100 = arith.truncf %97 : vector<8x200xf32> to vector<8x200xbf16>
    %cst_64 = arith.constant dense<0.000000e+00> : vector<8x200xf32>
    %101 = tpu.matmul %100, %99, %cst_64 {dimension_numbers = #tpu.dot_dimension_numbers<[1], [0], [0], [1], [0, 0, 1, 1], [], []>} : vector<8x200xbf16>, vector<200x200xbf16>, vector<8x200xf32> -> vector<8x200xf32>
    %102 = arith.addf %94, %101 : vector<8x200xf32>
    %103 = vector.extract_strided_slice %13 {offsets = [48, 0], sizes = [8, 200], strides = [1, 1]} : vector<64x200xf32> to vector<8x200xf32>
    %cst_65 = arith.constant 0.000000e+00 : f32
    %104 = vector.broadcast %cst_65 : f32 to vector<8x200xf32>
    %105 = arith.maximumf %103, %104 : vector<8x200xf32>
    %c6 = arith.constant 6 : index
    %c0_66 = arith.constant 0 : index
    %c0_67 = arith.constant 0 : index
    %106 = vector.load %arg9[%c6, %c0_66, %c0_67] : memref<8x200x200xbf16, #tpu.memory_space<vmem>>, vector<1x200x200xbf16>
    %107 = vector.shape_cast %106 : vector<1x200x200xbf16> to vector<200x200xbf16>
    %108 = arith.truncf %105 : vector<8x200xf32> to vector<8x200xbf16>
    %cst_68 = arith.constant dense<0.000000e+00> : vector<8x200xf32>
    %109 = tpu.matmul %108, %107, %cst_68 {dimension_numbers = #tpu.dot_dimension_numbers<[1], [0], [0], [1], [0, 0, 1, 1], [], []>} : vector<8x200xbf16>, vector<200x200xbf16>, vector<8x200xf32> -> vector<8x200xf32>
    %110 = arith.addf %102, %109 : vector<8x200xf32>
    %111 = vector.extract_strided_slice %13 {offsets = [56, 0], sizes = [8, 200], strides = [1, 1]} : vector<64x200xf32> to vector<8x200xf32>
    %cst_69 = arith.constant 0.000000e+00 : f32
    %112 = vector.broadcast %cst_69 : f32 to vector<8x200xf32>
    %113 = arith.maximumf %111, %112 : vector<8x200xf32>
    %c7 = arith.constant 7 : index
    %c0_70 = arith.constant 0 : index
    %c0_71 = arith.constant 0 : index
    %114 = vector.load %arg9[%c7, %c0_70, %c0_71] : memref<8x200x200xbf16, #tpu.memory_space<vmem>>, vector<1x200x200xbf16>
    %115 = vector.shape_cast %114 : vector<1x200x200xbf16> to vector<200x200xbf16>
    %116 = arith.truncf %113 : vector<8x200xf32> to vector<8x200xbf16>
    %cst_72 = arith.constant dense<0.000000e+00> : vector<8x200xf32>
    %117 = tpu.matmul %116, %115, %cst_72 {dimension_numbers = #tpu.dot_dimension_numbers<[1], [0], [0], [1], [0, 0, 1, 1], [], []>} : vector<8x200xbf16>, vector<200x200xbf16>, vector<8x200xf32> -> vector<8x200xf32>
    %118 = arith.addf %110, %117 : vector<8x200xf32>
    %cst_73 = arith.constant 0.000000e+00 : f32
    %119 = vector.broadcast %cst_73 : f32 to vector<8x200xf32>
    %120 = arith.maximumf %118, %119 : vector<8x200xf32>
    %c0_74 = arith.constant 0 : index
    %c0_75 = arith.constant 0 : index
    %c0_76 = arith.constant 0 : index
    %121 = vector.load %arg12[%c0_74, %c0_75, %c0_76] : memref<4x200x200xbf16, #tpu.memory_space<vmem>>, vector<1x200x200xbf16>
    %122 = vector.shape_cast %121 : vector<1x200x200xbf16> to vector<200x200xbf16>
    %123 = arith.truncf %120 : vector<8x200xf32> to vector<8x200xbf16>
    %cst_77 = arith.constant dense<0.000000e+00> : vector<8x200xf32>
    %124 = tpu.matmul %123, %122, %cst_77 {dimension_numbers = #tpu.dot_dimension_numbers<[1], [0], [0], [1], [0, 0, 1, 1], [], []>} : vector<8x200xbf16>, vector<200x200xbf16>, vector<8x200xf32> -> vector<8x200xf32>
    %c0_78 = arith.constant 0 : index
    %c0_79 = arith.constant 0 : index
    %c0_80 = arith.constant 0 : index
    %125 = vector.load %arg13[%c0_78, %c0_79, %c0_80] : memref<4x1x200xf32, #tpu.memory_space<vmem>>, vector<1x1x200xf32>
    %126 = vector.shape_cast %125 : vector<1x1x200xf32> to vector<1x200xf32>
    %127 = vector.broadcast %126 : vector<1x200xf32> to vector<8x200xf32>
    %128 = arith.addf %124, %127 : vector<8x200xf32>
    %cst_81 = arith.constant 0.000000e+00 : f32
    %129 = vector.broadcast %cst_81 : f32 to vector<8x200xf32>
    %130 = arith.maximumf %128, %129 : vector<8x200xf32>
    %c1_82 = arith.constant 1 : index
    %c0_83 = arith.constant 0 : index
    %c0_84 = arith.constant 0 : index
    %131 = vector.load %arg12[%c1_82, %c0_83, %c0_84] : memref<4x200x200xbf16, #tpu.memory_space<vmem>>, vector<1x200x200xbf16>
    %132 = vector.shape_cast %131 : vector<1x200x200xbf16> to vector<200x200xbf16>
    %133 = arith.truncf %130 : vector<8x200xf32> to vector<8x200xbf16>
    %cst_85 = arith.constant dense<0.000000e+00> : vector<8x200xf32>
    %134 = tpu.matmul %133, %132, %cst_85 {dimension_numbers = #tpu.dot_dimension_numbers<[1], [0], [0], [1], [0, 0, 1, 1], [], []>} : vector<8x200xbf16>, vector<200x200xbf16>, vector<8x200xf32> -> vector<8x200xf32>
    %c1_86 = arith.constant 1 : index
    %c0_87 = arith.constant 0 : index
    %c0_88 = arith.constant 0 : index
    %135 = vector.load %arg13[%c1_86, %c0_87, %c0_88] : memref<4x1x200xf32, #tpu.memory_space<vmem>>, vector<1x1x200xf32>
    %136 = vector.shape_cast %135 : vector<1x1x200xf32> to vector<1x200xf32>
    %137 = vector.broadcast %136 : vector<1x200xf32> to vector<8x200xf32>
    %138 = arith.addf %134, %137 : vector<8x200xf32>
    %cst_89 = arith.constant 0.000000e+00 : f32
    %139 = vector.broadcast %cst_89 : f32 to vector<8x200xf32>
    %140 = arith.maximumf %138, %139 : vector<8x200xf32>
    %c2_90 = arith.constant 2 : index
    %c0_91 = arith.constant 0 : index
    %c0_92 = arith.constant 0 : index
    %141 = vector.load %arg12[%c2_90, %c0_91, %c0_92] : memref<4x200x200xbf16, #tpu.memory_space<vmem>>, vector<1x200x200xbf16>
    %142 = vector.shape_cast %141 : vector<1x200x200xbf16> to vector<200x200xbf16>
    %143 = arith.truncf %140 : vector<8x200xf32> to vector<8x200xbf16>
    %cst_93 = arith.constant dense<0.000000e+00> : vector<8x200xf32>
    %144 = tpu.matmul %143, %142, %cst_93 {dimension_numbers = #tpu.dot_dimension_numbers<[1], [0], [0], [1], [0, 0, 1, 1], [], []>} : vector<8x200xbf16>, vector<200x200xbf16>, vector<8x200xf32> -> vector<8x200xf32>
    %c2_94 = arith.constant 2 : index
    %c0_95 = arith.constant 0 : index
    %c0_96 = arith.constant 0 : index
    %145 = vector.load %arg13[%c2_94, %c0_95, %c0_96] : memref<4x1x200xf32, #tpu.memory_space<vmem>>, vector<1x1x200xf32>
    %146 = vector.shape_cast %145 : vector<1x1x200xf32> to vector<1x200xf32>
    %147 = vector.broadcast %146 : vector<1x200xf32> to vector<8x200xf32>
    %148 = arith.addf %144, %147 : vector<8x200xf32>
    %cst_97 = arith.constant 0.000000e+00 : f32
    %149 = vector.broadcast %cst_97 : f32 to vector<8x200xf32>
    %150 = arith.maximumf %148, %149 : vector<8x200xf32>
    %c3_98 = arith.constant 3 : index
    %c0_99 = arith.constant 0 : index
    %c0_100 = arith.constant 0 : index
    %151 = vector.load %arg12[%c3_98, %c0_99, %c0_100] : memref<4x200x200xbf16, #tpu.memory_space<vmem>>, vector<1x200x200xbf16>
    %152 = vector.shape_cast %151 : vector<1x200x200xbf16> to vector<200x200xbf16>
    %153 = arith.truncf %150 : vector<8x200xf32> to vector<8x200xbf16>
    %cst_101 = arith.constant dense<0.000000e+00> : vector<8x200xf32>
    %154 = tpu.matmul %153, %152, %cst_101 {dimension_numbers = #tpu.dot_dimension_numbers<[1], [0], [0], [1], [0, 0, 1, 1], [], []>} : vector<8x200xbf16>, vector<200x200xbf16>, vector<8x200xf32> -> vector<8x200xf32>
    %c3_102 = arith.constant 3 : index
    %c0_103 = arith.constant 0 : index
    %c0_104 = arith.constant 0 : index
    %155 = vector.load %arg13[%c3_102, %c0_103, %c0_104] : memref<4x1x200xf32, #tpu.memory_space<vmem>>, vector<1x1x200xf32>
    %156 = vector.shape_cast %155 : vector<1x1x200xf32> to vector<1x200xf32>
    %157 = vector.broadcast %156 : vector<1x200xf32> to vector<8x200xf32>
    %158 = arith.addf %154, %157 : vector<8x200xf32>
    %cst_105 = arith.constant 0.000000e+00 : f32
    %159 = vector.broadcast %cst_105 : f32 to vector<8x200xf32>
    %160 = arith.maximumf %158, %159 : vector<8x200xf32>
    %c0_106 = arith.constant 0 : index
    %c0_107 = arith.constant 0 : index
    %c0_108 = arith.constant 0 : index
    %161 = vector.load %arg2[%c0_106, %c0_107, %c0_108] : memref<3x8x4xf32, #tpu.memory_space<vmem>>, vector<1x8x4xf32>
    %162 = vector.shape_cast %161 : vector<1x8x4xf32> to vector<8x4xf32>
    %c0_109 = arith.constant 0 : index
    %c0_110 = arith.constant 0 : index
    %c0_111 = arith.constant 0 : index
    %163 = vector.load %arg14[%c0_109, %c0_110, %c0_111] : memref<3x200x200xbf16, #tpu.memory_space<vmem>>, vector<1x200x200xbf16>
    %164 = vector.shape_cast %163 : vector<1x200x200xbf16> to vector<200x200xbf16>
    %165 = arith.truncf %160 : vector<8x200xf32> to vector<8x200xbf16>
    %cst_112 = arith.constant dense<0.000000e+00> : vector<8x200xf32>
    %166 = tpu.matmul %165, %164, %cst_112 {dimension_numbers = #tpu.dot_dimension_numbers<[1], [0], [0], [1], [0, 0, 1, 1], [], []>} : vector<8x200xbf16>, vector<200x200xbf16>, vector<8x200xf32> -> vector<8x200xf32>
    %cst_113 = arith.constant 0.000000e+00 : f32
    %167 = vector.broadcast %cst_113 : f32 to vector<8x4xf32>
    %168 = arith.maximumf %162, %167 : vector<8x4xf32>
    %c0_114 = arith.constant 0 : index
    %c0_115 = arith.constant 0 : index
    %c0_116 = arith.constant 0 : index
    %169 = vector.load %arg15[%c0_114, %c0_115, %c0_116] : memref<3x4x200xbf16, #tpu.memory_space<vmem>>, vector<1x4x200xbf16>
    %170 = vector.shape_cast %169 : vector<1x4x200xbf16> to vector<4x200xbf16>
    %171 = arith.truncf %168 : vector<8x4xf32> to vector<8x4xbf16>
    %cst_117 = arith.constant dense<0.000000e+00> : vector<8x200xf32>
    %172 = tpu.matmul %171, %170, %cst_117 {dimension_numbers = #tpu.dot_dimension_numbers<[1], [0], [0], [1], [0, 0, 1, 1], [], []>} : vector<8x4xbf16>, vector<4x200xbf16>, vector<8x200xf32> -> vector<8x200xf32>
    %173 = arith.addf %166, %172 : vector<8x200xf32>
    %c0_118 = arith.constant 0 : index
    %c0_119 = arith.constant 0 : index
    %c0_120 = arith.constant 0 : index
    %174 = vector.load %arg16[%c0_118, %c0_119, %c0_120] : memref<3x1x200xf32, #tpu.memory_space<vmem>>, vector<1x1x200xf32>
    %175 = vector.shape_cast %174 : vector<1x1x200xf32> to vector<1x200xf32>
    %176 = vector.broadcast %175 : vector<1x200xf32> to vector<8x200xf32>
    %177 = arith.addf %173, %176 : vector<8x200xf32>
    %cst_121 = arith.constant 0.000000e+00 : f32
    %178 = vector.broadcast %cst_121 : f32 to vector<8x200xf32>
    %179 = arith.maximumf %177, %178 : vector<8x200xf32>
    %c0_122 = arith.constant 0 : index
    %c0_123 = arith.constant 0 : index
    %c0_124 = arith.constant 0 : index
    %180 = vector.load %arg17[%c0_122, %c0_123, %c0_124] : memref<6x200x200xbf16, #tpu.memory_space<vmem>>, vector<1x200x200xbf16>
    %181 = vector.shape_cast %180 : vector<1x200x200xbf16> to vector<200x200xbf16>
    %182 = arith.truncf %179 : vector<8x200xf32> to vector<8x200xbf16>
    %cst_125 = arith.constant dense<0.000000e+00> : vector<8x200xf32>
    %183 = tpu.matmul %182, %181, %cst_125 {dimension_numbers = #tpu.dot_dimension_numbers<[1], [0], [0], [1], [0, 0, 1, 1], [], []>} : vector<8x200xbf16>, vector<200x200xbf16>, vector<8x200xf32> -> vector<8x200xf32>
    %c0_126 = arith.constant 0 : index
    %c0_127 = arith.constant 0 : index
    %c0_128 = arith.constant 0 : index
    %184 = vector.load %arg18[%c0_126, %c0_127, %c0_128] : memref<6x1x200xf32, #tpu.memory_space<vmem>>, vector<1x1x200xf32>
    %185 = vector.shape_cast %184 : vector<1x1x200xf32> to vector<1x200xf32>
    %186 = vector.broadcast %185 : vector<1x200xf32> to vector<8x200xf32>
    %187 = arith.addf %183, %186 : vector<8x200xf32>
    %cst_129 = arith.constant 0.000000e+00 : f32
    %188 = vector.broadcast %cst_129 : f32 to vector<8x200xf32>
    %189 = arith.maximumf %187, %188 : vector<8x200xf32>
    %c1_130 = arith.constant 1 : index
    %c0_131 = arith.constant 0 : index
    %c0_132 = arith.constant 0 : index
    %190 = vector.load %arg17[%c1_130, %c0_131, %c0_132] : memref<6x200x200xbf16, #tpu.memory_space<vmem>>, vector<1x200x200xbf16>
    %191 = vector.shape_cast %190 : vector<1x200x200xbf16> to vector<200x200xbf16>
    %192 = arith.truncf %189 : vector<8x200xf32> to vector<8x200xbf16>
    %cst_133 = arith.constant dense<0.000000e+00> : vector<8x200xf32>
    %193 = tpu.matmul %192, %191, %cst_133 {dimension_numbers = #tpu.dot_dimension_numbers<[1], [0], [0], [1], [0, 0, 1, 1], [], []>} : vector<8x200xbf16>, vector<200x200xbf16>, vector<8x200xf32> -> vector<8x200xf32>
    %c1_134 = arith.constant 1 : index
    %c0_135 = arith.constant 0 : index
    %c0_136 = arith.constant 0 : index
    %194 = vector.load %arg18[%c1_134, %c0_135, %c0_136] : memref<6x1x200xf32, #tpu.memory_space<vmem>>, vector<1x1x200xf32>
    %195 = vector.shape_cast %194 : vector<1x1x200xf32> to vector<1x200xf32>
    %196 = vector.broadcast %195 : vector<1x200xf32> to vector<8x200xf32>
    %197 = arith.addf %193, %196 : vector<8x200xf32>
    %cst_137 = arith.constant 0.000000e+00 : f32
    %198 = vector.broadcast %cst_137 : f32 to vector<8x200xf32>
    %199 = arith.maximumf %197, %198 : vector<8x200xf32>
    %c0_138 = arith.constant 0 : index
    %c0_139 = arith.constant 0 : index
    %c0_140 = arith.constant 0 : index
    %200 = vector.load %arg19[%c0_138, %c0_139, %c0_140] : memref<3x200x4xbf16, #tpu.memory_space<vmem>>, vector<1x200x4xbf16>
    %201 = vector.shape_cast %200 : vector<1x200x4xbf16> to vector<200x4xbf16>
    %202 = arith.truncf %199 : vector<8x200xf32> to vector<8x200xbf16>
    %cst_141 = arith.constant dense<0.000000e+00> : vector<8x4xf32>
    %203 = tpu.matmul %202, %201, %cst_141 {dimension_numbers = #tpu.dot_dimension_numbers<[1], [0], [0], [1], [0, 0, 1, 1], [], []>} : vector<8x200xbf16>, vector<200x4xbf16>, vector<8x4xf32> -> vector<8x4xf32>
    %c0_142 = arith.constant 0 : index
    %c0_143 = arith.constant 0 : index
    %c0_144 = arith.constant 0 : index
    %204 = vector.load %arg20[%c0_142, %c0_143, %c0_144] : memref<3x1x4xf32, #tpu.memory_space<vmem>>, vector<1x1x4xf32>
    %205 = vector.shape_cast %204 : vector<1x1x4xf32> to vector<1x4xf32>
    %206 = vector.broadcast %205 : vector<1x4xf32> to vector<8x4xf32>
    %207 = arith.addf %203, %206 : vector<8x4xf32>
    %cst_145 = arith.constant 0.000000e+00 : f32
    %208 = vector.broadcast %cst_145 : f32 to vector<8x4xf32>
    %209 = arith.subf %208, %162 : vector<8x4xf32>
    %210 = tpu.reciprocal %209 : vector<8x4xf32> -> vector<8x4xf32>
    %cst_146 = arith.constant 1.000000e+00 : f32
    %211 = vector.broadcast %cst_146 : f32 to vector<8x4xf32>
    %212 = arith.subf %210, %211 : vector<8x4xf32>
    %213 = arith.addf %212, %207 : vector<8x4xf32>
    %cst_147 = arith.constant dense<0xFF800000> : vector<8xf32>
    %214 = vector.multi_reduction <maximumf>, %213, %cst_147 [1] : vector<8x4xf32> to vector<8xf32>
    %215 = vector.shape_cast %214 : vector<8xf32> to vector<8x1xf32>
    %216 = vector.broadcast %215 : vector<8x1xf32> to vector<8x4xf32>
    %217 = arith.subf %213, %216 : vector<8x4xf32>
    %218 = math.exp %217 : vector<8x4xf32>
    %cst_148 = arith.constant dense<0.000000e+00> : vector<8xf32>
    %219 = vector.multi_reduction <add>, %218, %cst_148 [1] : vector<8x4xf32> to vector<8xf32>
    %220 = vector.shape_cast %219 : vector<8xf32> to vector<8x1xf32>
    %221 = tpu.reciprocal %220 {approx = true} : vector<8x1xf32> -> vector<8x1xf32>
    %222 = vector.broadcast %221 : vector<8x1xf32> to vector<8x4xf32>
    %223 = arith.mulf %218, %222 : vector<8x4xf32>
    %cst_149 = arith.constant 9.99999982E-15 : f32
    %224 = vector.broadcast %cst_149 : f32 to vector<8x4xf32>
    %225 = arith.addf %223, %224 : vector<8x4xf32>
    %c0_150 = arith.constant 0 : index
    %c0_151 = arith.constant 0 : index
    %c0_152 = arith.constant 0 : index
    %226 = vector.load %arg27[%c0_150, %c0_151, %c0_152] : memref<3x8x4xf32, #tpu.memory_space<vmem>>, vector<1x8x4xf32>
    %227 = vector.shape_cast %226 : vector<1x8x4xf32> to vector<8x4xf32>
    %228 = vector.shape_cast %225 : vector<8x4xf32> to vector<1x8x4xf32>
    tpu.vector_store %arg27[%c0_150, %c0_151, %c0_152], %228 {strides = array<i32>} : memref<3x8x4xf32, #tpu.memory_space<vmem>>, vector<1x8x4xf32>,
    %c0_153 = arith.constant 0 : index
    %c0_154 = arith.constant 0 : index
    %c0_155 = arith.constant 0 : index
    %229 = vector.load %arg21[%c0_153, %c0_154, %c0_155] : memref<3x200x200xbf16, #tpu.memory_space<vmem>>, vector<1x200x200xbf16>
    %230 = vector.shape_cast %229 : vector<1x200x200xbf16> to vector<200x200xbf16>
    %231 = arith.truncf %160 : vector<8x200xf32> to vector<8x200xbf16>
    %cst_156 = arith.constant dense<0.000000e+00> : vector<8x200xf32>
    %232 = tpu.matmul %231, %230, %cst_156 {dimension_numbers = #tpu.dot_dimension_numbers<[1], [0], [0], [1], [0, 0, 1, 1], [], []>} : vector<8x200xbf16>, vector<200x200xbf16>, vector<8x200xf32> -> vector<8x200xf32>
    %c0_157 = arith.constant 0 : index
    %c0_158 = arith.constant 0 : index
    %c0_159 = arith.constant 0 : index
    %233 = vector.load %arg22[%c0_157, %c0_158, %c0_159] : memref<3x1x200xf32, #tpu.memory_space<vmem>>, vector<1x1x200xf32>
    %234 = vector.shape_cast %233 : vector<1x1x200xf32> to vector<1x200xf32>
    %235 = vector.broadcast %234 : vector<1x200xf32> to vector<8x200xf32>
    %236 = arith.addf %232, %235 : vector<8x200xf32>
    %cst_160 = arith.constant 0.000000e+00 : f32
    %237 = vector.broadcast %cst_160 : f32 to vector<8x200xf32>
    %238 = arith.maximumf %236, %237 : vector<8x200xf32>
    %c0_161 = arith.constant 0 : index
    %c0_162 = arith.constant 0 : index
    %c0_163 = arith.constant 0 : index
    %239 = vector.load %arg23[%c0_161, %c0_162, %c0_163] : memref<6x200x200xbf16, #tpu.memory_space<vmem>>, vector<1x200x200xbf16>
    %240 = vector.shape_cast %239 : vector<1x200x200xbf16> to vector<200x200xbf16>
    %241 = arith.truncf %238 : vector<8x200xf32> to vector<8x200xbf16>
    %cst_164 = arith.constant dense<0.000000e+00> : vector<8x200xf32>
    %242 = tpu.matmul %241, %240, %cst_164 {dimension_numbers = #tpu.dot_dimension_numbers<[1], [0], [0], [1], [0, 0, 1, 1], [], []>} : vector<8x200xbf16>, vector<200x200xbf16>, vector<8x200xf32> -> vector<8x200xf32>
    %c0_165 = arith.constant 0 : index
    %c0_166 = arith.constant 0 : index
    %c0_167 = arith.constant 0 : index
    %243 = vector.load %arg24[%c0_165, %c0_166, %c0_167] : memref<6x1x200xf32, #tpu.memory_space<vmem>>, vector<1x1x200xf32>
    %244 = vector.shape_cast %243 : vector<1x1x200xf32> to vector<1x200xf32>
    %245 = vector.broadcast %244 : vector<1x200xf32> to vector<8x200xf32>
    %246 = arith.addf %242, %245 : vector<8x200xf32>
    %cst_168 = arith.constant 0.000000e+00 : f32
    %247 = vector.broadcast %cst_168 : f32 to vector<8x200xf32>
    %248 = arith.maximumf %246, %247 : vector<8x200xf32>
    %c1_169 = arith.constant 1 : index
    %c0_170 = arith.constant 0 : index
    %c0_171 = arith.constant 0 : index
    %249 = vector.load %arg23[%c1_169, %c0_170, %c0_171] : memref<6x200x200xbf16, #tpu.memory_space<vmem>>, vector<1x200x200xbf16>
    %250 = vector.shape_cast %249 : vector<1x200x200xbf16> to vector<200x200xbf16>
    %251 = arith.truncf %248 : vector<8x200xf32> to vector<8x200xbf16>
    %cst_172 = arith.constant dense<0.000000e+00> : vector<8x200xf32>
    %252 = tpu.matmul %251, %250, %cst_172 {dimension_numbers = #tpu.dot_dimension_numbers<[1], [0], [0], [1], [0, 0, 1, 1], [], []>} : vector<8x200xbf16>, vector<200x200xbf16>, vector<8x200xf32> -> vector<8x200xf32>
    %c1_173 = arith.constant 1 : index
    %c0_174 = arith.constant 0 : index
    %c0_175 = arith.constant 0 : index
    %253 = vector.load %arg24[%c1_173, %c0_174, %c0_175] : memref<6x1x200xf32, #tpu.memory_space<vmem>>, vector<1x1x200xf32>
    %254 = vector.shape_cast %253 : vector<1x1x200xf32> to vector<1x200xf32>
    %255 = vector.broadcast %254 : vector<1x200xf32> to vector<8x200xf32>
    %256 = arith.addf %252, %255 : vector<8x200xf32>
    %cst_176 = arith.constant 0.000000e+00 : f32
    %257 = vector.broadcast %cst_176 : f32 to vector<8x200xf32>
    %258 = arith.maximumf %256, %257 : vector<8x200xf32>
    %c0_177 = arith.constant 0 : index
    %c0_178 = arith.constant 0 : index
    %c0_179 = arith.constant 0 : index
    %259 = vector.load %arg25[%c0_177, %c0_178, %c0_179] : memref<3x200x3xbf16, #tpu.memory_space<vmem>>, vector<1x200x3xbf16>
    %260 = vector.shape_cast %259 : vector<1x200x3xbf16> to vector<200x3xbf16>
    %261 = arith.truncf %258 : vector<8x200xf32> to vector<8x200xbf16>
    %cst_180 = arith.constant dense<0.000000e+00> : vector<8x3xf32>
    %262 = tpu.matmul %261, %260, %cst_180 {dimension_numbers = #tpu.dot_dimension_numbers<[1], [0], [0], [1], [0, 0, 1, 1], [], []>} : vector<8x200xbf16>, vector<200x3xbf16>, vector<8x3xf32> -> vector<8x3xf32>
    %c0_181 = arith.constant 0 : index
    %c0_182 = arith.constant 0 : index
    %c0_183 = arith.constant 0 : index
    %263 = vector.load %arg26[%c0_181, %c0_182, %c0_183] : memref<3x1x3xf32, #tpu.memory_space<vmem>>, vector<1x1x3xf32>
    %264 = vector.shape_cast %263 : vector<1x1x3xf32> to vector<1x3xf32>
    %265 = vector.broadcast %264 : vector<1x3xf32> to vector<8x3xf32>
    %266 = arith.addf %262, %265 : vector<8x3xf32>
    %cst_184 = arith.constant dense<0xFF800000> : vector<8xf32>
    %267 = vector.multi_reduction <maximumf>, %266, %cst_184 [1] : vector<8x3xf32> to vector<8xf32>
    %268 = vector.shape_cast %267 : vector<8xf32> to vector<8x1xf32>
    %269 = vector.broadcast %268 : vector<8x1xf32> to vector<8x3xf32>
    %270 = arith.subf %266, %269 : vector<8x3xf32>
    %271 = math.exp %270 : vector<8x3xf32>
    %cst_185 = arith.constant dense<0.000000e+00> : vector<8xf32>
    %272 = vector.multi_reduction <add>, %271, %cst_185 [1] : vector<8x3xf32> to vector<8xf32>
    %273 = vector.shape_cast %272 : vector<8xf32> to vector<8x1xf32>
    %274 = tpu.reciprocal %273 {approx = true} : vector<8x1xf32> -> vector<8x1xf32>
    %275 = vector.broadcast %274 : vector<8x1xf32> to vector<8x3xf32>
    %276 = arith.mulf %271, %275 : vector<8x3xf32>
    %c0_186 = arith.constant 0 : index
    %c0_187 = arith.constant 0 : index
    %c0_188 = arith.constant 0 : index
    %277 = vector.load %arg28[%c0_186, %c0_187, %c0_188] : memref<3x8x3xf32, #tpu.memory_space<vmem>>, vector<1x8x3xf32>
    %278 = vector.shape_cast %277 : vector<1x8x3xf32> to vector<8x3xf32>
    %279 = vector.shape_cast %276 : vector<8x3xf32> to vector<1x8x3xf32>
    tpu.vector_store %arg28[%c0_186, %c0_187, %c0_188], %279 {strides = array<i32>} : memref<3x8x3xf32, #tpu.memory_space<vmem>>, vector<1x8x3xf32>,
    %c1_189 = arith.constant 1 : index
    %c0_190 = arith.constant 0 : index
    %c0_191 = arith.constant 0 : index
    %280 = vector.load %arg2[%c1_189, %c0_190, %c0_191] : memref<3x8x4xf32, #tpu.memory_space<vmem>>, vector<1x8x4xf32>
    %281 = vector.shape_cast %280 : vector<1x8x4xf32> to vector<8x4xf32>
    %c1_192 = arith.constant 1 : index
    %c0_193 = arith.constant 0 : index
    %c0_194 = arith.constant 0 : index
    %282 = vector.load %arg14[%c1_192, %c0_193, %c0_194] : memref<3x200x200xbf16, #tpu.memory_space<vmem>>, vector<1x200x200xbf16>
    %283 = vector.shape_cast %282 : vector<1x200x200xbf16> to vector<200x200xbf16>
    %284 = arith.truncf %160 : vector<8x200xf32> to vector<8x200xbf16>
    %cst_195 = arith.constant dense<0.000000e+00> : vector<8x200xf32>
    %285 = tpu.matmul %284, %283, %cst_195 {dimension_numbers = #tpu.dot_dimension_numbers<[1], [0], [0], [1], [0, 0, 1, 1], [], []>} : vector<8x200xbf16>, vector<200x200xbf16>, vector<8x200xf32> -> vector<8x200xf32>
    %cst_196 = arith.constant 0.000000e+00 : f32
    %286 = vector.broadcast %cst_196 : f32 to vector<8x4xf32>
    %287 = arith.maximumf %281, %286 : vector<8x4xf32>
    %c1_197 = arith.constant 1 : index
    %c0_198 = arith.constant 0 : index
    %c0_199 = arith.constant 0 : index
    %288 = vector.load %arg15[%c1_197, %c0_198, %c0_199] : memref<3x4x200xbf16, #tpu.memory_space<vmem>>, vector<1x4x200xbf16>
    %289 = vector.shape_cast %288 : vector<1x4x200xbf16> to vector<4x200xbf16>
    %290 = arith.truncf %287 : vector<8x4xf32> to vector<8x4xbf16>
    %cst_200 = arith.constant dense<0.000000e+00> : vector<8x200xf32>
    %291 = tpu.matmul %290, %289, %cst_200 {dimension_numbers = #tpu.dot_dimension_numbers<[1], [0], [0], [1], [0, 0, 1, 1], [], []>} : vector<8x4xbf16>, vector<4x200xbf16>, vector<8x200xf32> -> vector<8x200xf32>
    %292 = arith.addf %285, %291 : vector<8x200xf32>
    %c1_201 = arith.constant 1 : index
    %c0_202 = arith.constant 0 : index
    %c0_203 = arith.constant 0 : index
    %293 = vector.load %arg16[%c1_201, %c0_202, %c0_203] : memref<3x1x200xf32, #tpu.memory_space<vmem>>, vector<1x1x200xf32>
    %294 = vector.shape_cast %293 : vector<1x1x200xf32> to vector<1x200xf32>
    %295 = vector.broadcast %294 : vector<1x200xf32> to vector<8x200xf32>
    %296 = arith.addf %292, %295 : vector<8x200xf32>
    %cst_204 = arith.constant 0.000000e+00 : f32
    %297 = vector.broadcast %cst_204 : f32 to vector<8x200xf32>
    %298 = arith.maximumf %296, %297 : vector<8x200xf32>
    %c2_205 = arith.constant 2 : index
    %c0_206 = arith.constant 0 : index
    %c0_207 = arith.constant 0 : index
    %299 = vector.load %arg17[%c2_205, %c0_206, %c0_207] : memref<6x200x200xbf16, #tpu.memory_space<vmem>>, vector<1x200x200xbf16>
    %300 = vector.shape_cast %299 : vector<1x200x200xbf16> to vector<200x200xbf16>
    %301 = arith.truncf %298 : vector<8x200xf32> to vector<8x200xbf16>
    %cst_208 = arith.constant dense<0.000000e+00> : vector<8x200xf32>
    %302 = tpu.matmul %301, %300, %cst_208 {dimension_numbers = #tpu.dot_dimension_numbers<[1], [0], [0], [1], [0, 0, 1, 1], [], []>} : vector<8x200xbf16>, vector<200x200xbf16>, vector<8x200xf32> -> vector<8x200xf32>
    %c2_209 = arith.constant 2 : index
    %c0_210 = arith.constant 0 : index
    %c0_211 = arith.constant 0 : index
    %303 = vector.load %arg18[%c2_209, %c0_210, %c0_211] : memref<6x1x200xf32, #tpu.memory_space<vmem>>, vector<1x1x200xf32>
    %304 = vector.shape_cast %303 : vector<1x1x200xf32> to vector<1x200xf32>
    %305 = vector.broadcast %304 : vector<1x200xf32> to vector<8x200xf32>
    %306 = arith.addf %302, %305 : vector<8x200xf32>
    %cst_212 = arith.constant 0.000000e+00 : f32
    %307 = vector.broadcast %cst_212 : f32 to vector<8x200xf32>
    %308 = arith.maximumf %306, %307 : vector<8x200xf32>
    %c3_213 = arith.constant 3 : index
    %c0_214 = arith.constant 0 : index
    %c0_215 = arith.constant 0 : index
    %309 = vector.load %arg17[%c3_213, %c0_214, %c0_215] : memref<6x200x200xbf16, #tpu.memory_space<vmem>>, vector<1x200x200xbf16>
    %310 = vector.shape_cast %309 : vector<1x200x200xbf16> to vector<200x200xbf16>
    %311 = arith.truncf %308 : vector<8x200xf32> to vector<8x200xbf16>
    %cst_216 = arith.constant dense<0.000000e+00> : vector<8x200xf32>
    %312 = tpu.matmul %311, %310, %cst_216 {dimension_numbers = #tpu.dot_dimension_numbers<[1], [0], [0], [1], [0, 0, 1, 1], [], []>} : vector<8x200xbf16>, vector<200x200xbf16>, vector<8x200xf32> -> vector<8x200xf32>
    %c3_217 = arith.constant 3 : index
    %c0_218 = arith.constant 0 : index
    %c0_219 = arith.constant 0 : index
    %313 = vector.load %arg18[%c3_217, %c0_218, %c0_219] : memref<6x1x200xf32, #tpu.memory_space<vmem>>, vector<1x1x200xf32>
    %314 = vector.shape_cast %313 : vector<1x1x200xf32> to vector<1x200xf32>
    %315 = vector.broadcast %314 : vector<1x200xf32> to vector<8x200xf32>
    %316 = arith.addf %312, %315 : vector<8x200xf32>
    %cst_220 = arith.constant 0.000000e+00 : f32
    %317 = vector.broadcast %cst_220 : f32 to vector<8x200xf32>
    %318 = arith.maximumf %316, %317 : vector<8x200xf32>
    %c1_221 = arith.constant 1 : index
    %c0_222 = arith.constant 0 : index
    %c0_223 = arith.constant 0 : index
    %319 = vector.load %arg19[%c1_221, %c0_222, %c0_223] : memref<3x200x4xbf16, #tpu.memory_space<vmem>>, vector<1x200x4xbf16>
    %320 = vector.shape_cast %319 : vector<1x200x4xbf16> to vector<200x4xbf16>
    %321 = arith.truncf %318 : vector<8x200xf32> to vector<8x200xbf16>
    %cst_224 = arith.constant dense<0.000000e+00> : vector<8x4xf32>
    %322 = tpu.matmul %321, %320, %cst_224 {dimension_numbers = #tpu.dot_dimension_numbers<[1], [0], [0], [1], [0, 0, 1, 1], [], []>} : vector<8x200xbf16>, vector<200x4xbf16>, vector<8x4xf32> -> vector<8x4xf32>
    %c1_225 = arith.constant 1 : index
    %c0_226 = arith.constant 0 : index
    %c0_227 = arith.constant 0 : index
    %323 = vector.load %arg20[%c1_225, %c0_226, %c0_227] : memref<3x1x4xf32, #tpu.memory_space<vmem>>, vector<1x1x4xf32>
    %324 = vector.shape_cast %323 : vector<1x1x4xf32> to vector<1x4xf32>
    %325 = vector.broadcast %324 : vector<1x4xf32> to vector<8x4xf32>
    %326 = arith.addf %322, %325 : vector<8x4xf32>
    %cst_228 = arith.constant 0.000000e+00 : f32
    %327 = vector.broadcast %cst_228 : f32 to vector<8x4xf32>
    %328 = arith.subf %327, %281 : vector<8x4xf32>
    %329 = tpu.reciprocal %328 : vector<8x4xf32> -> vector<8x4xf32>
    %cst_229 = arith.constant 1.000000e+00 : f32
    %330 = vector.broadcast %cst_229 : f32 to vector<8x4xf32>
    %331 = arith.subf %329, %330 : vector<8x4xf32>
    %332 = arith.addf %331, %326 : vector<8x4xf32>
    %cst_230 = arith.constant dense<0xFF800000> : vector<8xf32>
    %333 = vector.multi_reduction <maximumf>, %332, %cst_230 [1] : vector<8x4xf32> to vector<8xf32>
    %334 = vector.shape_cast %333 : vector<8xf32> to vector<8x1xf32>
    %335 = vector.broadcast %334 : vector<8x1xf32> to vector<8x4xf32>
    %336 = arith.subf %332, %335 : vector<8x4xf32>
    %337 = math.exp %336 : vector<8x4xf32>
    %cst_231 = arith.constant dense<0.000000e+00> : vector<8xf32>
    %338 = vector.multi_reduction <add>, %337, %cst_231 [1] : vector<8x4xf32> to vector<8xf32>
    %339 = vector.shape_cast %338 : vector<8xf32> to vector<8x1xf32>
    %340 = tpu.reciprocal %339 {approx = true} : vector<8x1xf32> -> vector<8x1xf32>
    %341 = vector.broadcast %340 : vector<8x1xf32> to vector<8x4xf32>
    %342 = arith.mulf %337, %341 : vector<8x4xf32>
    %cst_232 = arith.constant 9.99999982E-15 : f32
    %343 = vector.broadcast %cst_232 : f32 to vector<8x4xf32>
    %344 = arith.addf %342, %343 : vector<8x4xf32>
    %c1_233 = arith.constant 1 : index
    %c0_234 = arith.constant 0 : index
    %c0_235 = arith.constant 0 : index
    %345 = vector.load %arg27[%c1_233, %c0_234, %c0_235] : memref<3x8x4xf32, #tpu.memory_space<vmem>>, vector<1x8x4xf32>
    %346 = vector.shape_cast %345 : vector<1x8x4xf32> to vector<8x4xf32>
    %347 = vector.shape_cast %344 : vector<8x4xf32> to vector<1x8x4xf32>
    tpu.vector_store %arg27[%c1_233, %c0_234, %c0_235], %347 {strides = array<i32>} : memref<3x8x4xf32, #tpu.memory_space<vmem>>, vector<1x8x4xf32>,
    %c1_236 = arith.constant 1 : index
    %c0_237 = arith.constant 0 : index
    %c0_238 = arith.constant 0 : index
    %348 = vector.load %arg21[%c1_236, %c0_237, %c0_238] : memref<3x200x200xbf16, #tpu.memory_space<vmem>>, vector<1x200x200xbf16>
    %349 = vector.shape_cast %348 : vector<1x200x200xbf16> to vector<200x200xbf16>
    %350 = arith.truncf %160 : vector<8x200xf32> to vector<8x200xbf16>
    %cst_239 = arith.constant dense<0.000000e+00> : vector<8x200xf32>
    %351 = tpu.matmul %350, %349, %cst_239 {dimension_numbers = #tpu.dot_dimension_numbers<[1], [0], [0], [1], [0, 0, 1, 1], [], []>} : vector<8x200xbf16>, vector<200x200xbf16>, vector<8x200xf32> -> vector<8x200xf32>
    %c1_240 = arith.constant 1 : index
    %c0_241 = arith.constant 0 : index
    %c0_242 = arith.constant 0 : index
    %352 = vector.load %arg22[%c1_240, %c0_241, %c0_242] : memref<3x1x200xf32, #tpu.memory_space<vmem>>, vector<1x1x200xf32>
    %353 = vector.shape_cast %352 : vector<1x1x200xf32> to vector<1x200xf32>
    %354 = vector.broadcast %353 : vector<1x200xf32> to vector<8x200xf32>
    %355 = arith.addf %351, %354 : vector<8x200xf32>
    %cst_243 = arith.constant 0.000000e+00 : f32
    %356 = vector.broadcast %cst_243 : f32 to vector<8x200xf32>
    %357 = arith.maximumf %355, %356 : vector<8x200xf32>
    %c2_244 = arith.constant 2 : index
    %c0_245 = arith.constant 0 : index
    %c0_246 = arith.constant 0 : index
    %358 = vector.load %arg23[%c2_244, %c0_245, %c0_246] : memref<6x200x200xbf16, #tpu.memory_space<vmem>>, vector<1x200x200xbf16>
    %359 = vector.shape_cast %358 : vector<1x200x200xbf16> to vector<200x200xbf16>
    %360 = arith.truncf %357 : vector<8x200xf32> to vector<8x200xbf16>
    %cst_247 = arith.constant dense<0.000000e+00> : vector<8x200xf32>
    %361 = tpu.matmul %360, %359, %cst_247 {dimension_numbers = #tpu.dot_dimension_numbers<[1], [0], [0], [1], [0, 0, 1, 1], [], []>} : vector<8x200xbf16>, vector<200x200xbf16>, vector<8x200xf32> -> vector<8x200xf32>
    %c2_248 = arith.constant 2 : index
    %c0_249 = arith.constant 0 : index
    %c0_250 = arith.constant 0 : index
    %362 = vector.load %arg24[%c2_248, %c0_249, %c0_250] : memref<6x1x200xf32, #tpu.memory_space<vmem>>, vector<1x1x200xf32>
    %363 = vector.shape_cast %362 : vector<1x1x200xf32> to vector<1x200xf32>
    %364 = vector.broadcast %363 : vector<1x200xf32> to vector<8x200xf32>
    %365 = arith.addf %361, %364 : vector<8x200xf32>
    %cst_251 = arith.constant 0.000000e+00 : f32
    %366 = vector.broadcast %cst_251 : f32 to vector<8x200xf32>
    %367 = arith.maximumf %365, %366 : vector<8x200xf32>
    %c3_252 = arith.constant 3 : index
    %c0_253 = arith.constant 0 : index
    %c0_254 = arith.constant 0 : index
    %368 = vector.load %arg23[%c3_252, %c0_253, %c0_254] : memref<6x200x200xbf16, #tpu.memory_space<vmem>>, vector<1x200x200xbf16>
    %369 = vector.shape_cast %368 : vector<1x200x200xbf16> to vector<200x200xbf16>
    %370 = arith.truncf %367 : vector<8x200xf32> to vector<8x200xbf16>
    %cst_255 = arith.constant dense<0.000000e+00> : vector<8x200xf32>
    %371 = tpu.matmul %370, %369, %cst_255 {dimension_numbers = #tpu.dot_dimension_numbers<[1], [0], [0], [1], [0, 0, 1, 1], [], []>} : vector<8x200xbf16>, vector<200x200xbf16>, vector<8x200xf32> -> vector<8x200xf32>
    %c3_256 = arith.constant 3 : index
    %c0_257 = arith.constant 0 : index
    %c0_258 = arith.constant 0 : index
    %372 = vector.load %arg24[%c3_256, %c0_257, %c0_258] : memref<6x1x200xf32, #tpu.memory_space<vmem>>, vector<1x1x200xf32>
    %373 = vector.shape_cast %372 : vector<1x1x200xf32> to vector<1x200xf32>
    %374 = vector.broadcast %373 : vector<1x200xf32> to vector<8x200xf32>
    %375 = arith.addf %371, %374 : vector<8x200xf32>
    %cst_259 = arith.constant 0.000000e+00 : f32
    %376 = vector.broadcast %cst_259 : f32 to vector<8x200xf32>
    %377 = arith.maximumf %375, %376 : vector<8x200xf32>
    %c1_260 = arith.constant 1 : index
    %c0_261 = arith.constant 0 : index
    %c0_262 = arith.constant 0 : index
    %378 = vector.load %arg25[%c1_260, %c0_261, %c0_262] : memref<3x200x3xbf16, #tpu.memory_space<vmem>>, vector<1x200x3xbf16>
    %379 = vector.shape_cast %378 : vector<1x200x3xbf16> to vector<200x3xbf16>
    %380 = arith.truncf %377 : vector<8x200xf32> to vector<8x200xbf16>
    %cst_263 = arith.constant dense<0.000000e+00> : vector<8x3xf32>
    %381 = tpu.matmul %380, %379, %cst_263 {dimension_numbers = #tpu.dot_dimension_numbers<[1], [0], [0], [1], [0, 0, 1, 1], [], []>} : vector<8x200xbf16>, vector<200x3xbf16>, vector<8x3xf32> -> vector<8x3xf32>
    %c1_264 = arith.constant 1 : index
    %c0_265 = arith.constant 0 : index
    %c0_266 = arith.constant 0 : index
    %382 = vector.load %arg26[%c1_264, %c0_265, %c0_266] : memref<3x1x3xf32, #tpu.memory_space<vmem>>, vector<1x1x3xf32>
    %383 = vector.shape_cast %382 : vector<1x1x3xf32> to vector<1x3xf32>
    %384 = vector.broadcast %383 : vector<1x3xf32> to vector<8x3xf32>
    %385 = arith.addf %381, %384 : vector<8x3xf32>
    %cst_267 = arith.constant dense<0xFF800000> : vector<8xf32>
    %386 = vector.multi_reduction <maximumf>, %385, %cst_267 [1] : vector<8x3xf32> to vector<8xf32>
    %387 = vector.shape_cast %386 : vector<8xf32> to vector<8x1xf32>
    %388 = vector.broadcast %387 : vector<8x1xf32> to vector<8x3xf32>
    %389 = arith.subf %385, %388 : vector<8x3xf32>
    %390 = math.exp %389 : vector<8x3xf32>
    %cst_268 = arith.constant dense<0.000000e+00> : vector<8xf32>
    %391 = vector.multi_reduction <add>, %390, %cst_268 [1] : vector<8x3xf32> to vector<8xf32>
    %392 = vector.shape_cast %391 : vector<8xf32> to vector<8x1xf32>
    %393 = tpu.reciprocal %392 {approx = true} : vector<8x1xf32> -> vector<8x1xf32>
    %394 = vector.broadcast %393 : vector<8x1xf32> to vector<8x3xf32>
    %395 = arith.mulf %390, %394 : vector<8x3xf32>
    %c1_269 = arith.constant 1 : index
    %c0_270 = arith.constant 0 : index
    %c0_271 = arith.constant 0 : index
    %396 = vector.load %arg28[%c1_269, %c0_270, %c0_271] : memref<3x8x3xf32, #tpu.memory_space<vmem>>, vector<1x8x3xf32>
    %397 = vector.shape_cast %396 : vector<1x8x3xf32> to vector<8x3xf32>
    %398 = vector.shape_cast %395 : vector<8x3xf32> to vector<1x8x3xf32>
    tpu.vector_store %arg28[%c1_269, %c0_270, %c0_271], %398 {strides = array<i32>} : memref<3x8x3xf32, #tpu.memory_space<vmem>>, vector<1x8x3xf32>,
    %c2_272 = arith.constant 2 : index
    %c0_273 = arith.constant 0 : index
    %c0_274 = arith.constant 0 : index
    %399 = vector.load %arg2[%c2_272, %c0_273, %c0_274] : memref<3x8x4xf32, #tpu.memory_space<vmem>>, vector<1x8x4xf32>
    %400 = vector.shape_cast %399 : vector<1x8x4xf32> to vector<8x4xf32>
    %c2_275 = arith.constant 2 : index
    %c0_276 = arith.constant 0 : index
    %c0_277 = arith.constant 0 : index
    %401 = vector.load %arg14[%c2_275, %c0_276, %c0_277] : memref<3x200x200xbf16, #tpu.memory_space<vmem>>, vector<1x200x200xbf16>
    %402 = vector.shape_cast %401 : vector<1x200x200xbf16> to vector<200x200xbf16>
    %403 = arith.truncf %160 : vector<8x200xf32> to vector<8x200xbf16>
    %cst_278 = arith.constant dense<0.000000e+00> : vector<8x200xf32>
    %404 = tpu.matmul %403, %402, %cst_278 {dimension_numbers = #tpu.dot_dimension_numbers<[1], [0], [0], [1], [0, 0, 1, 1], [], []>} : vector<8x200xbf16>, vector<200x200xbf16>, vector<8x200xf32> -> vector<8x200xf32>
    %cst_279 = arith.constant 0.000000e+00 : f32
    %405 = vector.broadcast %cst_279 : f32 to vector<8x4xf32>
    %406 = arith.maximumf %400, %405 : vector<8x4xf32>
    %c2_280 = arith.constant 2 : index
    %c0_281 = arith.constant 0 : index
    %c0_282 = arith.constant 0 : index
    %407 = vector.load %arg15[%c2_280, %c0_281, %c0_282] : memref<3x4x200xbf16, #tpu.memory_space<vmem>>, vector<1x4x200xbf16>
    %408 = vector.shape_cast %407 : vector<1x4x200xbf16> to vector<4x200xbf16>
    %409 = arith.truncf %406 : vector<8x4xf32> to vector<8x4xbf16>
    %cst_283 = arith.constant dense<0.000000e+00> : vector<8x200xf32>
    %410 = tpu.matmul %409, %408, %cst_283 {dimension_numbers = #tpu.dot_dimension_numbers<[1], [0], [0], [1], [0, 0, 1, 1], [], []>} : vector<8x4xbf16>, vector<4x200xbf16>, vector<8x200xf32> -> vector<8x200xf32>
    %411 = arith.addf %404, %410 : vector<8x200xf32>
    %c2_284 = arith.constant 2 : index
    %c0_285 = arith.constant 0 : index
    %c0_286 = arith.constant 0 : index
    %412 = vector.load %arg16[%c2_284, %c0_285, %c0_286] : memref<3x1x200xf32, #tpu.memory_space<vmem>>, vector<1x1x200xf32>
    %413 = vector.shape_cast %412 : vector<1x1x200xf32> to vector<1x200xf32>
    %414 = vector.broadcast %413 : vector<1x200xf32> to vector<8x200xf32>
    %415 = arith.addf %411, %414 : vector<8x200xf32>
    %cst_287 = arith.constant 0.000000e+00 : f32
    %416 = vector.broadcast %cst_287 : f32 to vector<8x200xf32>
    %417 = arith.maximumf %415, %416 : vector<8x200xf32>
    %c4_288 = arith.constant 4 : index
    %c0_289 = arith.constant 0 : index
    %c0_290 = arith.constant 0 : index
    %418 = vector.load %arg17[%c4_288, %c0_289, %c0_290] : memref<6x200x200xbf16, #tpu.memory_space<vmem>>, vector<1x200x200xbf16>
    %419 = vector.shape_cast %418 : vector<1x200x200xbf16> to vector<200x200xbf16>
    %420 = arith.truncf %417 : vector<8x200xf32> to vector<8x200xbf16>
    %cst_291 = arith.constant dense<0.000000e+00> : vector<8x200xf32>
    %421 = tpu.matmul %420, %419, %cst_291 {dimension_numbers = #tpu.dot_dimension_numbers<[1], [0], [0], [1], [0, 0, 1, 1], [], []>} : vector<8x200xbf16>, vector<200x200xbf16>, vector<8x200xf32> -> vector<8x200xf32>
    %c4_292 = arith.constant 4 : index
    %c0_293 = arith.constant 0 : index
    %c0_294 = arith.constant 0 : index
    %422 = vector.load %arg18[%c4_292, %c0_293, %c0_294] : memref<6x1x200xf32, #tpu.memory_space<vmem>>, vector<1x1x200xf32>
    %423 = vector.shape_cast %422 : vector<1x1x200xf32> to vector<1x200xf32>
    %424 = vector.broadcast %423 : vector<1x200xf32> to vector<8x200xf32>
    %425 = arith.addf %421, %424 : vector<8x200xf32>
    %cst_295 = arith.constant 0.000000e+00 : f32
    %426 = vector.broadcast %cst_295 : f32 to vector<8x200xf32>
    %427 = arith.maximumf %425, %426 : vector<8x200xf32>
    %c5_296 = arith.constant 5 : index
    %c0_297 = arith.constant 0 : index
    %c0_298 = arith.constant 0 : index
    %428 = vector.load %arg17[%c5_296, %c0_297, %c0_298] : memref<6x200x200xbf16, #tpu.memory_space<vmem>>, vector<1x200x200xbf16>
    %429 = vector.shape_cast %428 : vector<1x200x200xbf16> to vector<200x200xbf16>
    %430 = arith.truncf %427 : vector<8x200xf32> to vector<8x200xbf16>
    %cst_299 = arith.constant dense<0.000000e+00> : vector<8x200xf32>
    %431 = tpu.matmul %430, %429, %cst_299 {dimension_numbers = #tpu.dot_dimension_numbers<[1], [0], [0], [1], [0, 0, 1, 1], [], []>} : vector<8x200xbf16>, vector<200x200xbf16>, vector<8x200xf32> -> vector<8x200xf32>
    %c5_300 = arith.constant 5 : index
    %c0_301 = arith.constant 0 : index
    %c0_302 = arith.constant 0 : index
    %432 = vector.load %arg18[%c5_300, %c0_301, %c0_302] : memref<6x1x200xf32, #tpu.memory_space<vmem>>, vector<1x1x200xf32>
    %433 = vector.shape_cast %432 : vector<1x1x200xf32> to vector<1x200xf32>
    %434 = vector.broadcast %433 : vector<1x200xf32> to vector<8x200xf32>
    %435 = arith.addf %431, %434 : vector<8x200xf32>
    %cst_303 = arith.constant 0.000000e+00 : f32
    %436 = vector.broadcast %cst_303 : f32 to vector<8x200xf32>
    %437 = arith.maximumf %435, %436 : vector<8x200xf32>
    %c2_304 = arith.constant 2 : index
    %c0_305 = arith.constant 0 : index
    %c0_306 = arith.constant 0 : index
    %438 = vector.load %arg19[%c2_304, %c0_305, %c0_306] : memref<3x200x4xbf16, #tpu.memory_space<vmem>>, vector<1x200x4xbf16>
    %439 = vector.shape_cast %438 : vector<1x200x4xbf16> to vector<200x4xbf16>
    %440 = arith.truncf %437 : vector<8x200xf32> to vector<8x200xbf16>
    %cst_307 = arith.constant dense<0.000000e+00> : vector<8x4xf32>
    %441 = tpu.matmul %440, %439, %cst_307 {dimension_numbers = #tpu.dot_dimension_numbers<[1], [0], [0], [1], [0, 0, 1, 1], [], []>} : vector<8x200xbf16>, vector<200x4xbf16>, vector<8x4xf32> -> vector<8x4xf32>
    %c2_308 = arith.constant 2 : index
    %c0_309 = arith.constant 0 : index
    %c0_310 = arith.constant 0 : index
    %442 = vector.load %arg20[%c2_308, %c0_309, %c0_310] : memref<3x1x4xf32, #tpu.memory_space<vmem>>, vector<1x1x4xf32>
    %443 = vector.shape_cast %442 : vector<1x1x4xf32> to vector<1x4xf32>
    %444 = vector.broadcast %443 : vector<1x4xf32> to vector<8x4xf32>
    %445 = arith.addf %441, %444 : vector<8x4xf32>
    %cst_311 = arith.constant 0.000000e+00 : f32
    %446 = vector.broadcast %cst_311 : f32 to vector<8x4xf32>
    %447 = arith.subf %446, %400 : vector<8x4xf32>
    %448 = tpu.reciprocal %447 : vector<8x4xf32> -> vector<8x4xf32>
    %cst_312 = arith.constant 1.000000e+00 : f32
    %449 = vector.broadcast %cst_312 : f32 to vector<8x4xf32>
    %450 = arith.subf %448, %449 : vector<8x4xf32>
    %451 = arith.addf %450, %445 : vector<8x4xf32>
    %cst_313 = arith.constant dense<0xFF800000> : vector<8xf32>
    %452 = vector.multi_reduction <maximumf>, %451, %cst_313 [1] : vector<8x4xf32> to vector<8xf32>
    %453 = vector.shape_cast %452 : vector<8xf32> to vector<8x1xf32>
    %454 = vector.broadcast %453 : vector<8x1xf32> to vector<8x4xf32>
    %455 = arith.subf %451, %454 : vector<8x4xf32>
    %456 = math.exp %455 : vector<8x4xf32>
    %cst_314 = arith.constant dense<0.000000e+00> : vector<8xf32>
    %457 = vector.multi_reduction <add>, %456, %cst_314 [1] : vector<8x4xf32> to vector<8xf32>
    %458 = vector.shape_cast %457 : vector<8xf32> to vector<8x1xf32>
    %459 = tpu.reciprocal %458 {approx = true} : vector<8x1xf32> -> vector<8x1xf32>
    %460 = vector.broadcast %459 : vector<8x1xf32> to vector<8x4xf32>
    %461 = arith.mulf %456, %460 : vector<8x4xf32>
    %cst_315 = arith.constant 9.99999982E-15 : f32
    %462 = vector.broadcast %cst_315 : f32 to vector<8x4xf32>
    %463 = arith.addf %461, %462 : vector<8x4xf32>
    %c2_316 = arith.constant 2 : index
    %c0_317 = arith.constant 0 : index
    %c0_318 = arith.constant 0 : index
    %464 = vector.load %arg27[%c2_316, %c0_317, %c0_318] : memref<3x8x4xf32, #tpu.memory_space<vmem>>, vector<1x8x4xf32>
    %465 = vector.shape_cast %464 : vector<1x8x4xf32> to vector<8x4xf32>
    %466 = vector.shape_cast %463 : vector<8x4xf32> to vector<1x8x4xf32>
    tpu.vector_store %arg27[%c2_316, %c0_317, %c0_318], %466 {strides = array<i32>} : memref<3x8x4xf32, #tpu.memory_space<vmem>>, vector<1x8x4xf32>,
    %c2_319 = arith.constant 2 : index
    %c0_320 = arith.constant 0 : index
    %c0_321 = arith.constant 0 : index
    %467 = vector.load %arg21[%c2_319, %c0_320, %c0_321] : memref<3x200x200xbf16, #tpu.memory_space<vmem>>, vector<1x200x200xbf16>
    %468 = vector.shape_cast %467 : vector<1x200x200xbf16> to vector<200x200xbf16>
    %469 = arith.truncf %160 : vector<8x200xf32> to vector<8x200xbf16>
    %cst_322 = arith.constant dense<0.000000e+00> : vector<8x200xf32>
    %470 = tpu.matmul %469, %468, %cst_322 {dimension_numbers = #tpu.dot_dimension_numbers<[1], [0], [0], [1], [0, 0, 1, 1], [], []>} : vector<8x200xbf16>, vector<200x200xbf16>, vector<8x200xf32> -> vector<8x200xf32>
    %c2_323 = arith.constant 2 : index
    %c0_324 = arith.constant 0 : index
    %c0_325 = arith.constant 0 : index
    %471 = vector.load %arg22[%c2_323, %c0_324, %c0_325] : memref<3x1x200xf32, #tpu.memory_space<vmem>>, vector<1x1x200xf32>
    %472 = vector.shape_cast %471 : vector<1x1x200xf32> to vector<1x200xf32>
    %473 = vector.broadcast %472 : vector<1x200xf32> to vector<8x200xf32>
    %474 = arith.addf %470, %473 : vector<8x200xf32>
    %cst_326 = arith.constant 0.000000e+00 : f32
    %475 = vector.broadcast %cst_326 : f32 to vector<8x200xf32>
    %476 = arith.maximumf %474, %475 : vector<8x200xf32>
    %c4_327 = arith.constant 4 : index
    %c0_328 = arith.constant 0 : index
    %c0_329 = arith.constant 0 : index
    %477 = vector.load %arg23[%c4_327, %c0_328, %c0_329] : memref<6x200x200xbf16, #tpu.memory_space<vmem>>, vector<1x200x200xbf16>
    %478 = vector.shape_cast %477 : vector<1x200x200xbf16> to vector<200x200xbf16>
    %479 = arith.truncf %476 : vector<8x200xf32> to vector<8x200xbf16>
    %cst_330 = arith.constant dense<0.000000e+00> : vector<8x200xf32>
    %480 = tpu.matmul %479, %478, %cst_330 {dimension_numbers = #tpu.dot_dimension_numbers<[1], [0], [0], [1], [0, 0, 1, 1], [], []>} : vector<8x200xbf16>, vector<200x200xbf16>, vector<8x200xf32> -> vector<8x200xf32>
    %c4_331 = arith.constant 4 : index
    %c0_332 = arith.constant 0 : index
    %c0_333 = arith.constant 0 : index
    %481 = vector.load %arg24[%c4_331, %c0_332, %c0_333] : memref<6x1x200xf32, #tpu.memory_space<vmem>>, vector<1x1x200xf32>
    %482 = vector.shape_cast %481 : vector<1x1x200xf32> to vector<1x200xf32>
    %483 = vector.broadcast %482 : vector<1x200xf32> to vector<8x200xf32>
    %484 = arith.addf %480, %483 : vector<8x200xf32>
    %cst_334 = arith.constant 0.000000e+00 : f32
    %485 = vector.broadcast %cst_334 : f32 to vector<8x200xf32>
    %486 = arith.maximumf %484, %485 : vector<8x200xf32>
    %c5_335 = arith.constant 5 : index
    %c0_336 = arith.constant 0 : index
    %c0_337 = arith.constant 0 : index
    %487 = vector.load %arg23[%c5_335, %c0_336, %c0_337] : memref<6x200x200xbf16, #tpu.memory_space<vmem>>, vector<1x200x200xbf16>
    %488 = vector.shape_cast %487 : vector<1x200x200xbf16> to vector<200x200xbf16>
    %489 = arith.truncf %486 : vector<8x200xf32> to vector<8x200xbf16>
    %cst_338 = arith.constant dense<0.000000e+00> : vector<8x200xf32>
    %490 = tpu.matmul %489, %488, %cst_338 {dimension_numbers = #tpu.dot_dimension_numbers<[1], [0], [0], [1], [0, 0, 1, 1], [], []>} : vector<8x200xbf16>, vector<200x200xbf16>, vector<8x200xf32> -> vector<8x200xf32>
    %c5_339 = arith.constant 5 : index
    %c0_340 = arith.constant 0 : index
    %c0_341 = arith.constant 0 : index
    %491 = vector.load %arg24[%c5_339, %c0_340, %c0_341] : memref<6x1x200xf32, #tpu.memory_space<vmem>>, vector<1x1x200xf32>
    %492 = vector.shape_cast %491 : vector<1x1x200xf32> to vector<1x200xf32>
    %493 = vector.broadcast %492 : vector<1x200xf32> to vector<8x200xf32>
    %494 = arith.addf %490, %493 : vector<8x200xf32>
    %cst_342 = arith.constant 0.000000e+00 : f32
    %495 = vector.broadcast %cst_342 : f32 to vector<8x200xf32>
    %496 = arith.maximumf %494, %495 : vector<8x200xf32>
    %c2_343 = arith.constant 2 : index
    %c0_344 = arith.constant 0 : index
    %c0_345 = arith.constant 0 : index
    %497 = vector.load %arg25[%c2_343, %c0_344, %c0_345] : memref<3x200x3xbf16, #tpu.memory_space<vmem>>, vector<1x200x3xbf16>
    %498 = vector.shape_cast %497 : vector<1x200x3xbf16> to vector<200x3xbf16>
    %499 = arith.truncf %496 : vector<8x200xf32> to vector<8x200xbf16>
    %cst_346 = arith.constant dense<0.000000e+00> : vector<8x3xf32>
    %500 = tpu.matmul %499, %498, %cst_346 {dimension_numbers = #tpu.dot_dimension_numbers<[1], [0], [0], [1], [0, 0, 1, 1], [], []>} : vector<8x200xbf16>, vector<200x3xbf16>, vector<8x3xf32> -> vector<8x3xf32>
    %c2_347 = arith.constant 2 : index
    %c0_348 = arith.constant 0 : index
    %c0_349 = arith.constant 0 : index
    %501 = vector.load %arg26[%c2_347, %c0_348, %c0_349] : memref<3x1x3xf32, #tpu.memory_space<vmem>>, vector<1x1x3xf32>
    %502 = vector.shape_cast %501 : vector<1x1x3xf32> to vector<1x3xf32>
    %503 = vector.broadcast %502 : vector<1x3xf32> to vector<8x3xf32>
    %504 = arith.addf %500, %503 : vector<8x3xf32>
    %cst_350 = arith.constant dense<0xFF800000> : vector<8xf32>
    %505 = vector.multi_reduction <maximumf>, %504, %cst_350 [1] : vector<8x3xf32> to vector<8xf32>
    %506 = vector.shape_cast %505 : vector<8xf32> to vector<8x1xf32>
    %507 = vector.broadcast %506 : vector<8x1xf32> to vector<8x3xf32>
    %508 = arith.subf %504, %507 : vector<8x3xf32>
    %509 = math.exp %508 : vector<8x3xf32>
    %cst_351 = arith.constant dense<0.000000e+00> : vector<8xf32>
    %510 = vector.multi_reduction <add>, %509, %cst_351 [1] : vector<8x3xf32> to vector<8xf32>
    %511 = vector.shape_cast %510 : vector<8xf32> to vector<8x1xf32>
    %512 = tpu.reciprocal %511 {approx = true} : vector<8x1xf32> -> vector<8x1xf32>
    %513 = vector.broadcast %512 : vector<8x1xf32> to vector<8x3xf32>
    %514 = arith.mulf %509, %513 : vector<8x3xf32>
    %c2_352 = arith.constant 2 : index
    %c0_353 = arith.constant 0 : index
    %c0_354 = arith.constant 0 : index
    %515 = vector.load %arg28[%c2_352, %c0_353, %c0_354] : memref<3x8x3xf32, #tpu.memory_space<vmem>>, vector<1x8x3xf32>
    %516 = vector.shape_cast %515 : vector<1x8x3xf32> to vector<8x3xf32>
    %517 = vector.shape_cast %514 : vector<8x3xf32> to vector<1x8x3xf32>
    tpu.vector_store %arg28[%c2_352, %c0_353, %c0_354], %517 {strides = array<i32>} : memref<3x8x3xf32, #tpu.memory_space<vmem>>, vector<1x8x3xf32>,
    return
  }
}

</mosaic_0001>

<llo_original>
// kernel: tpu_custom_call.1
$region0: #{tpu_custom_call.1}
  #allocation0 [shape = 'u32[]', space=smem, size = 0x4, offset = 0x4, fixed_abs, tag = 'smem constant byte address 0x4 - core index']
  #allocation1 [shape = 'u32[72,128]{1,0:T(1,128)}', space=vmem, size = 0x9000, scoped, tag = 'internal scratch']
  %s0 = inlined_call_operand.vmem [shape: f32[32,8], index: 0, kind: input, shape index: {}]
  %s1 = inlined_call_operand.vmem [shape: f32[64,4], index: 1, kind: input, shape index: {}]
  %s2 = inlined_call_operand.vmem [shape: f32[3,8,4], index: 2, kind: input, shape index: {}]
  %s3 = inlined_call_operand.vmem [shape: f32[8,6], index: 3, kind: input, shape index: {}]
  %s4 = inlined_call_operand.vmem [shape: bf16[8,200], index: 4, kind: input, shape index: {}]
  %s5 = inlined_call_operand.vmem [shape: f32[1,200], index: 5, kind: input, shape index: {}]
  %s6 = inlined_call_operand.vmem [shape: bf16[4,200], index: 6, kind: input, shape index: {}]
  %s7 = inlined_call_operand.vmem [shape: f32[1,200], index: 7, kind: input, shape index: {}]
  %s8 = inlined_call_operand.hbm [shape: bf16[4,200,200], index: 8, kind: input, shape index: {}]
  %s9 = inlined_call_operand.hbm [shape: bf16[8,200,200], index: 9, kind: input, shape index: {}]
  %s10 = inlined_call_operand.vmem [shape: bf16[6,200], index: 10, kind: input, shape index: {}]
  %s11 = inlined_call_operand.vmem [shape: f32[1,200], index: 11, kind: input, shape index: {}]
  %s12 = inlined_call_operand.hbm [shape: bf16[4,200,200], index: 12, kind: input, shape index: {}]
  %s13 = inlined_call_operand.vmem [shape: f32[4,1,200], index: 13, kind: input, shape index: {}]
  %s14 = inlined_call_operand.vmem [shape: bf16[3,200,200], index: 14, kind: input, shape index: {}]
  %s15 = inlined_call_operand.vmem [shape: bf16[3,4,200], index: 15, kind: input, shape index: {}]
  %s16 = inlined_call_operand.vmem [shape: f32[3,1,200], index: 16, kind: input, shape index: {}]
  %s17 = inlined_call_operand.hbm [shape: bf16[6,200,200], index: 17, kind: input, shape index: {}]
  %s18 = inlined_call_operand.vmem [shape: f32[6,1,200], index: 18, kind: input, shape index: {}]
  %s19 = inlined_call_operand.vmem [shape: bf16[3,200,4], index: 19, kind: input, shape index: {}]
  %s20 = inlined_call_operand.vmem [shape: f32[3,1,4], index: 20, kind: input, shape index: {}]
  %s21 = inlined_call_operand.hbm [shape: bf16[3,200,200], index: 21, kind: input, shape index: {}]
  %s22 = inlined_call_operand.vmem [shape: f32[3,1,200], index: 22, kind: input, shape index: {}]
  %s23 = inlined_call_operand.hbm [shape: bf16[6,200,200], index: 23, kind: input, shape index: {}]
  %s24 = inlined_call_operand.vmem [shape: f32[6,1,200], index: 24, kind: input, shape index: {}]
  %s25 = inlined_call_operand.vmem [shape: bf16[3,200,3], index: 25, kind: input, shape index: {}]
  %s26 = inlined_call_operand.vmem [shape: f32[3,1,3], index: 26, kind: input, shape index: {}]
  %s27 = inlined_call_operand.vmem [shape: f32[3,8,4], index: 27, kind: output, shape index: {0}]
  %s28 = inlined_call_operand.vmem [shape: f32[3,8,3], index: 28, kind: output, shape index: {1}]
  %29 = xla_tuple %s27, %s28
  %s30 = sld [smem:[#allocation0]]
  $region150: #{tpu_custom_call.1} parent=0
    _
  %s32 = ssub.s32 1, %s30
  %s33 = scalar_select 0, %s32, %s30
  $region1: #{tpu_custom_call.1} parent=0
    #allocation2 [shape = 'u8[409600]{0}', space=vmem, size = 0x64000, scoped, tag = 'input window, operand 8, single buffered']
    #allocation3 [shape = 's32[1]{0}', space=sflag, size = 0x4, scoped, tag = 'scoped memory for tpu_custom_call.1']
    #allocation4 [shape = 'u8[819200]{0}', space=vmem, size = 0xc8000, scoped, tag = 'input window, operand 9, single buffered']
    #allocation5 [shape = 's32[1]{0}', space=sflag, size = 0x4, scoped, tag = 'scoped memory for tpu_custom_call.1']
    #allocation6 [shape = 'u8[409600]{0}', space=vmem, size = 0x64000, scoped, tag = 'input window, operand 12, single buffered']
    #allocation7 [shape = 'u8[614400]{0}', space=vmem, size = 0x96000, scoped, tag = 'input window, operand 17, single buffered']
    #allocation8 [shape = 's32[1]{0}', space=sflag, size = 0x4, scoped, tag = 'scoped memory for tpu_custom_call.1']
    #allocation9 [shape = 'u8[307200]{0}', space=vmem, size = 0x4b000, scoped, tag = 'input window, operand 21, single buffered']
    #allocation10 [shape = 'u8[614400]{0}', space=vmem, size = 0x96000, scoped, tag = 'input window, operand 23, single buffered']
    #allocation11 [shape = 's32[1]{0}', space=sflag, size = 0x4, scoped, tag = 'scoped memory for tpu_custom_call.1']
    %34 = vsyncpa [#allocation3], 0
    %35 = vsyncpa [#allocation5], 0
    %36 = vsyncpa [#allocation8], 0
    %37 = vsyncpa [#allocation11], 0
    // Predicated region
    $region2: #{tpu_custom_call.1} parent=1 // pred_check
      _
    $region3: #{tpu_custom_call.1} parent=1 // pred_check_branch
      %39 = sbr.rel (0) target = $region5
    $region4: #{tpu_custom_call.1} parent=1 // pred_region
      _
    $region5: #{tpu_custom_call.1} parent=1 // pred_fallthru
      _
    // Predicated region
    $region6: #{tpu_custom_call.1} parent=1 // pred_check
      _
    $region7: #{tpu_custom_call.1} parent=1 // pred_check_branch
      %41 = sbr.rel (0) target = $region9
    $region8: #{tpu_custom_call.1} parent=1 // pred_region
      _
    $region9: #{tpu_custom_call.1} parent=1 // pred_fallthru
      _
    // Predicated region
    $region10: #{tpu_custom_call.1} parent=1 // pred_check
      _
    $region11: #{tpu_custom_call.1} parent=1 // pred_check_branch
      %43 = sbr.rel (0) target = $region13
    $region12: #{tpu_custom_call.1} parent=1 // pred_region
      _
    $region13: #{tpu_custom_call.1} parent=1 // pred_fallthru
      _
    // Predicated region
    $region14: #{tpu_custom_call.1} parent=1 // pred_check
      _
    $region15: #{tpu_custom_call.1} parent=1 // pred_check_branch
      %45 = sbr.rel (0) target = $region17
    $region16: #{tpu_custom_call.1} parent=1 // pred_region
      _
    $region17: #{tpu_custom_call.1} parent=1 // pred_fallthru
      _
    // Predicated region
    $region18: #{tpu_custom_call.1} parent=1 // pred_check
      _
    $region19: #{tpu_custom_call.1} parent=1 // pred_check_branch
      %47 = sbr.rel (0) target = $region21
    $region20: #{tpu_custom_call.1} parent=1 // pred_region
      _
    $region21: #{tpu_custom_call.1} parent=1 // pred_fallthru
      _
    // Predicated region
    $region22: #{tpu_custom_call.1} parent=1 // pred_check
      _
    $region23: #{tpu_custom_call.1} parent=1 // pred_check_branch
      %49 = sbr.rel (0) target = $region25
    $region24: #{tpu_custom_call.1} parent=1 // pred_region
      _
    $region25: #{tpu_custom_call.1} parent=1 // pred_fallthru
      _
    // Predicated region
    $region26: #{tpu_custom_call.1} parent=1 // pred_check
      _
    $region27: #{tpu_custom_call.1} parent=1 // pred_check_branch
      %51 = sbr.rel (0) target = $region29
    $region28: #{tpu_custom_call.1} parent=1 // pred_region
      _
    $region29: #{tpu_custom_call.1} parent=1 // pred_fallthru
      _
    // Predicated region
    $region30: #{tpu_custom_call.1} parent=1 // pred_check
      _
    $region31: #{tpu_custom_call.1} parent=1 // pred_check_branch
      %53 = sbr.rel (0) target = $region33
    $region32: #{tpu_custom_call.1} parent=1 // pred_region
      _
    $region33: #{tpu_custom_call.1} parent=1 // pred_fallthru
      _
    // Predicated region
    $region34: #{tpu_custom_call.1} parent=1 // pred_check
      _
    $region35: #{tpu_custom_call.1} parent=1 // pred_check_branch
      %55 = sbr.rel (0) target = $region37
    $region36: #{tpu_custom_call.1} parent=1 // pred_region
      %57 = vsyncadd [#allocation3], 0
      %s58 = sshll.u32 %s8, 4
      %s59 = int_to_ptr.hbm [resolvable:$true] %s58
      %s60 = sshll.u32 [#allocation2], 4
      %s61 = int_to_ptr.vmem [resolvable:$true] %s60
      %66 = dma.hbm_to_vmem [thread:$0]  %s59, 12800, %s61, [#allocation3], 128, 128, 8
    $region37: #{tpu_custom_call.1} parent=1 // pred_fallthru
      _
    // Predicated region
    $region38: #{tpu_custom_call.1} parent=1 // pred_check
      _
    $region39: #{tpu_custom_call.1} parent=1 // pred_check_branch
      %68 = sbr.rel (0) target = $region41
    $region40: #{tpu_custom_call.1} parent=1 // pred_region
      %70 = vsyncadd [#allocation5], 0
      %s71 = sshll.u32 %s9, 4
      %s72 = int_to_ptr.hbm [resolvable:$true] %s71
      %s73 = sshll.u32 [#allocation4], 4
      %s74 = int_to_ptr.vmem [resolvable:$true] %s73
      %79 = dma.hbm_to_vmem [thread:$0]  %s72, 25600, %s74, [#allocation5], 128, 128, 8
    $region41: #{tpu_custom_call.1} parent=1 // pred_fallthru
      _
    // Predicated region
    $region42: #{tpu_custom_call.1} parent=1 // pred_check
      _
    $region43: #{tpu_custom_call.1} parent=1 // pred_check_branch
      %81 = sbr.rel (0) target = $region45
    $region44: #{tpu_custom_call.1} parent=1 // pred_region
      _
    $region45: #{tpu_custom_call.1} parent=1 // pred_fallthru
      _
    // Predicated region
    $region46: #{tpu_custom_call.1} parent=1 // pred_check
      _
    $region47: #{tpu_custom_call.1} parent=1 // pred_check_branch
      %83 = sbr.rel (0) target = $region49
    $region48: #{tpu_custom_call.1} parent=1 // pred_region
      _
    $region49: #{tpu_custom_call.1} parent=1 // pred_fallthru
      _
    // Predicated region
    $region50: #{tpu_custom_call.1} parent=1 // pred_check
      _
    $region51: #{tpu_custom_call.1} parent=1 // pred_check_branch
      %85 = sbr.rel (0) target = $region53
    $region52: #{tpu_custom_call.1} parent=1 // pred_region
      %87 = vsyncadd [#allocation5], 0
      %s88 = sshll.u32 %s12, 4
      %s89 = int_to_ptr.hbm [resolvable:$true] %s88
      %s90 = sshll.u32 [#allocation6], 4
      %s91 = int_to_ptr.vmem [resolvable:$true] %s90
      %96 = dma.hbm_to_vmem [thread:$0]  %s89, 12800, %s91, [#allocation5], 128, 128, 8
    $region53: #{tpu_custom_call.1} parent=1 // pred_fallthru
      _
    // Predicated region
    $region54: #{tpu_custom_call.1} parent=1 // pred_check
      _
    $region55: #{tpu_custom_call.1} parent=1 // pred_check_branch
      %98 = sbr.rel (0) target = $region57
    $region56: #{tpu_custom_call.1} parent=1 // pred_region
      _
    $region57: #{tpu_custom_call.1} parent=1 // pred_fallthru
      _
    // Predicated region
    $region58: #{tpu_custom_call.1} parent=1 // pred_check
      _
    $region59: #{tpu_custom_call.1} parent=1 // pred_check_branch
      %100 = sbr.rel (0) target = $region61
    $region60: #{tpu_custom_call.1} parent=1 // pred_region
      _
    $region61: #{tpu_custom_call.1} parent=1 // pred_fallthru
      _
    // Predicated region
    $region62: #{tpu_custom_call.1} parent=1 // pred_check
      _
    $region63: #{tpu_custom_call.1} parent=1 // pred_check_branch
      %102 = sbr.rel (0) target = $region65
    $region64: #{tpu_custom_call.1} parent=1 // pred_region
      _
    $region65: #{tpu_custom_call.1} parent=1 // pred_fallthru
      _
    // Predicated region
    $region66: #{tpu_custom_call.1} parent=1 // pred_check
      _
    $region67: #{tpu_custom_call.1} parent=1 // pred_check_branch
      %104 = sbr.rel (0) target = $region69
    $region68: #{tpu_custom_call.1} parent=1 // pred_region
      _
    $region69: #{tpu_custom_call.1} parent=1 // pred_fallthru
      _
    // Predicated region
    $region70: #{tpu_custom_call.1} parent=1 // pred_check
      _
    $region71: #{tpu_custom_call.1} parent=1 // pred_check_branch
      %106 = sbr.rel (0) target = $region73
    $region72: #{tpu_custom_call.1} parent=1 // pred_region
      %108 = vsyncadd [#allocation8], 0
      %s109 = sshll.u32 %s17, 4
      %s110 = int_to_ptr.hbm [resolvable:$true] %s109
      %s111 = sshll.u32 [#allocation7], 4
      %s112 = int_to_ptr.vmem [resolvable:$true] %s111
      %117 = dma.hbm_to_vmem [thread:$0]  %s110, 19200, %s112, [#allocation8], 128, 128, 8
    $region73: #{tpu_custom_call.1} parent=1 // pred_fallthru
      _
    // Predicated region
    $region74: #{tpu_custom_call.1} parent=1 // pred_check
      _
    $region75: #{tpu_custom_call.1} parent=1 // pred_check_branch
      %119 = sbr.rel (0) target = $region77
    $region76: #{tpu_custom_call.1} parent=1 // pred_region
      _
    $region77: #{tpu_custom_call.1} parent=1 // pred_fallthru
      _
    // Predicated region
    $region78: #{tpu_custom_call.1} parent=1 // pred_check
      _
    $region79: #{tpu_custom_call.1} parent=1 // pred_check_branch
      %121 = sbr.rel (0) target = $region81
    $region80: #{tpu_custom_call.1} parent=1 // pred_region
      _
    $region81: #{tpu_custom_call.1} parent=1 // pred_fallthru
      _
    // Predicated region
    $region82: #{tpu_custom_call.1} parent=1 // pred_check
      _
    $region83: #{tpu_custom_call.1} parent=1 // pred_check_branch
      %123 = sbr.rel (0) target = $region85
    $region84: #{tpu_custom_call.1} parent=1 // pred_region
      _
    $region85: #{tpu_custom_call.1} parent=1 // pred_fallthru
      _
    // Predicated region
    $region86: #{tpu_custom_call.1} parent=1 // pred_check
      _
    $region87: #{tpu_custom_call.1} parent=1 // pred_check_branch
      %125 = sbr.rel (0) target = $region89
    $region88: #{tpu_custom_call.1} parent=1 // pred_region
      %127 = vsyncadd [#allocation8], 0
      %s128 = sshll.u32 %s21, 4
      %s129 = int_to_ptr.hbm [resolvable:$true] %s128
      %s130 = sshll.u32 [#allocation9], 4
      %s131 = int_to_ptr.vmem [resolvable:$true] %s130
      %136 = dma.hbm_to_vmem [thread:$0]  %s129, 9600, %s131, [#allocation8], 128, 128, 8
    $region89: #{tpu_custom_call.1} parent=1 // pred_fallthru
      _
    // Predicated region
    $region90: #{tpu_custom_call.1} parent=1 // pred_check
      _
    $region91: #{tpu_custom_call.1} parent=1 // pred_check_branch
      %138 = sbr.rel (0) target = $region93
    $region92: #{tpu_custom_call.1} parent=1 // pred_region
      _
    $region93: #{tpu_custom_call.1} parent=1 // pred_fallthru
      _
    // Predicated region
    $region94: #{tpu_custom_call.1} parent=1 // pred_check
      _
    $region95: #{tpu_custom_call.1} parent=1 // pred_check_branch
      %140 = sbr.rel (0) target = $region97
    $region96: #{tpu_custom_call.1} parent=1 // pred_region
      %142 = vsyncadd [#allocation11], 0
      %s143 = sshll.u32 %s23, 4
      %s144 = int_to_ptr.hbm [resolvable:$true] %s143
      %s145 = sshll.u32 [#allocation10], 4
      %s146 = int_to_ptr.vmem [resolvable:$true] %s145
      %151 = dma.hbm_to_vmem [thread:$0]  %s144, 19200, %s146, [#allocation11], 128, 128, 8
    $region97: #{tpu_custom_call.1} parent=1 // pred_fallthru
      _
    // Predicated region
    $region98: #{tpu_custom_call.1} parent=1 // pred_check
      _
    $region99: #{tpu_custom_call.1} parent=1 // pred_check_branch
      %153 = sbr.rel (0) target = $region101
    $region100: #{tpu_custom_call.1} parent=1 // pred_region
      _
    $region101: #{tpu_custom_call.1} parent=1 // pred_fallthru
      _
    // Predicated region
    $region102: #{tpu_custom_call.1} parent=1 // pred_check
      _
    $region103: #{tpu_custom_call.1} parent=1 // pred_check_branch
      %155 = sbr.rel (0) target = $region105
    $region104: #{tpu_custom_call.1} parent=1 // pred_region
      _
    $region105: #{tpu_custom_call.1} parent=1 // pred_fallthru
      _
    // Predicated region
    $region106: #{tpu_custom_call.1} parent=1 // pred_check
      _
    $region107: #{tpu_custom_call.1} parent=1 // pred_check_branch
      %157 = sbr.rel (0) target = $region109
    $region108: #{tpu_custom_call.1} parent=1 // pred_region
      _
    $region109: #{tpu_custom_call.1} parent=1 // pred_fallthru
      _
    // Predicated region
    $region110: #{tpu_custom_call.1} parent=1 // pred_check
      _
    $region111: #{tpu_custom_call.1} parent=1 // pred_check_branch
      %159 = sbr.rel (0) target = $region113
    $region112: #{tpu_custom_call.1} parent=1 // pred_region
      %161 = dma.done [#allocation3], 12800
    $region113: #{tpu_custom_call.1} parent=1 // pred_fallthru
      _
    // Predicated region
    $region114: #{tpu_custom_call.1} parent=1 // pred_check
      _
    $region115: #{tpu_custom_call.1} parent=1 // pred_check_branch
      %163 = sbr.rel (0) target = $region117
    $region116: #{tpu_custom_call.1} parent=1 // pred_region
      %165 = dma.done [#allocation5], 25600
    $region117: #{tpu_custom_call.1} parent=1 // pred_fallthru
      _
    // Predicated region
    $region118: #{tpu_custom_call.1} parent=1 // pred_check
      _
    $region119: #{tpu_custom_call.1} parent=1 // pred_check_branch
      %167 = sbr.rel (0) target = $region121
    $region120: #{tpu_custom_call.1} parent=1 // pred_region
      %169 = dma.done [#allocation5], 12800
    $region121: #{tpu_custom_call.1} parent=1 // pred_fallthru
      _
    // Predicated region
    $region122: #{tpu_custom_call.1} parent=1 // pred_check
      _
    $region123: #{tpu_custom_call.1} parent=1 // pred_check_branch
      %171 = sbr.rel (0) target = $region125
    $region124: #{tpu_custom_call.1} parent=1 // pred_region
      %173 = dma.done [#allocation8], 19200
    $region125: #{tpu_custom_call.1} parent=1 // pred_fallthru
      _
    // Predicated region
    $region126: #{tpu_custom_call.1} parent=1 // pred_check
      _
    $region127: #{tpu_custom_call.1} parent=1 // pred_check_branch
      %175 = sbr.rel (0) target = $region129
    $region128: #{tpu_custom_call.1} parent=1 // pred_region
      %177 = dma.done [#allocation8], 9600
    $region129: #{tpu_custom_call.1} parent=1 // pred_fallthru
      _
    // Predicated region
    $region130: #{tpu_custom_call.1} parent=1 // pred_check
      _
    $region131: #{tpu_custom_call.1} parent=1 // pred_check_branch
      %179 = sbr.rel (0) target = $region133
    $region132: #{tpu_custom_call.1} parent=1 // pred_region
      %181 = dma.done [#allocation11], 19200
    $region133: #{tpu_custom_call.1} parent=1 // pred_fallthru
      _
    %v183 = vld [vmem:[%s0] sm:$0xff]
    %v184 = vld [vmem:[%s0 + $0x8] sm:$0xff]
    %v185 = vld [vmem:[%s0 + $0x10] sm:$0xff]
    %v186 = vld [vmem:[%s0 + $0x18] sm:$0xff]
    %v187 = vld [vmem:[%s4] sm:$0xff]
    %v188 = vpack.c.bf16 %v184, %v183
    %v189 = vpack.c.bf16 %v186, %v185
    %v190 = vld [vmem:[%s5] sm:$0x3]
    %v192 = vperm.slane %v190, 0
    %v193 = vperm.slane %v190, 1
    %v197 = vunpack.c.l.b16 %v187
    %v198 = vunpack.c.h.b16 %v187
    %v199 = vpack.c.b16 %v197, %v197
    %v200 = vpack.c.b16 %v198, %v198
    %vm201 = vcmask 64512
    %v203 = vsel %vm201, %v188, 0
    %v206 = vsel %vm201, %v189, 0
    %vm208 = vcmask 1043456
    %v210 = vsel %vm208, %v199, 0
    %v213 = vsel %vm208, %v200, 0
    %215 = vmatpush.bf16.msra.mxu0 0
    %216 = vmatpush.bf16.msra.mxu0 0
    %217 = vmatpush.bf16.msra.mxu0 0
    %218 = vmatpush.bf16.msra.mxu0 0
    %219 = vmatpush.bf16.msra.mxu0 0
    %220 = vmatpush.bf16.msra.mxu0 0
    %221 = vmatpush.bf16.msra.mxu0 0
    %222 = vmatpush.bf16.msra.mxu0 %v210
    %223 = vmatmul.bf16.gmra.mxu0 %v203
    %v224 = vpop.f32.mrf.mxu0
    %v225 = vadd.f32 %v192, %v224
    %v226 = vpop.f32.mrf.mxu0
    %v227 = vadd.f32 %v192, %v226
    %228 = vmatmul.bf16.gmra.mxu0 %v206
    %v229 = vpop.f32.mrf.mxu0
    %v230 = vadd.f32 %v192, %v229
    %v231 = vpop.f32.mrf.mxu0
    %v232 = vadd.f32 %v192, %v231
    %233 = vdwg.mxu0
    %234 = vmatpush.bf16.msra.mxu0 0
    %235 = vmatpush.bf16.msra.mxu0 0
    %236 = vmatpush.bf16.msra.mxu0 0
    %237 = vmatpush.bf16.msra.mxu0 0
    %238 = vmatpush.bf16.msra.mxu0 0
    %239 = vmatpush.bf16.msra.mxu0 0
    %240 = vmatpush.bf16.msra.mxu0 0
    %241 = vmatpush.bf16.msra.mxu0 %v213
    %242 = vmatmul.bf16.gmra.mxu0 %v203
    %v243 = vpop.f32.mrf.mxu0
    %v244 = vadd.f32 %v193, %v243
    %v245 = vpop.f32.mrf.mxu0
    %v246 = vadd.f32 %v193, %v245
    %247 = vmatmul.bf16.gmra.mxu0 %v206
    %v248 = vpop.f32.mrf.mxu0
    %v249 = vadd.f32 %v193, %v248
    %v250 = vpop.f32.mrf.mxu0
    %v251 = vadd.f32 %v193, %v250
    %252 = vdwg.mxu0
    %v253 = vld [vmem:[%s1] sm:$0xff]
    %v254 = vld [vmem:[%s1 + $0x8] sm:$0xff]
    %v255 = vld [vmem:[%s1 + $0x10] sm:$0xff]
    %v256 = vld [vmem:[%s1 + $0x18] sm:$0xff]
    %v257 = vld [vmem:[%s1 + $0x20] sm:$0xff]
    %v258 = vld [vmem:[%s1 + $0x28] sm:$0xff]
    %v259 = vld [vmem:[%s1 + $0x30] sm:$0xff]
    %v260 = vld [vmem:[%s1 + $0x38] sm:$0xff]
    %v261 = vld [vmem:[%s6] sm:$0xf]
    %v262 = vpack.c.bf16 %v254, %v253
    %v263 = vpack.c.bf16 %v256, %v255
    %v264 = vpack.c.bf16 %v258, %v257
    %v265 = vpack.c.bf16 %v260, %v259
    %v266 = vld [vmem:[%s7] sm:$0x3]
    %v268 = vperm.slane %v266, 0
    %v269 = vperm.slane %v266, 1
    %273 = vst [vmem:[#allocation1] ss:$4 sm:$0xff] %v261
    %v274 = vld.sshfl [vmem:[#allocation1] sm:$0xff pattern:$0x73625140]
    %v275 = vld.sshfl [vmem:[#allocation1 + $0x8] sm:$0xff pattern:$0x73625140]
    %vm276 = vcmask 31744
    %v278 = vsel %vm276, %v262, 0
    %v281 = vsel %vm276, %v263, 0
    %v284 = vsel %vm276, %v264, 0
    %v287 = vsel %vm276, %v265, 0
    %vm289 = vcmask 1041408
    %v290 = vsel %vm289, %v274, 0
    %v292 = vsel %vm289, %v275, 0
    %294 = vmatpush.bf16.msra.mxu0 0
    %295 = vmatpush.bf16.msra.mxu0 0
    %296 = vmatpush.bf16.msra.mxu0 0
    %297 = vmatpush.bf16.msra.mxu0 0
    %298 = vmatpush.bf16.msra.mxu0 0
    %299 = vmatpush.bf16.msra.mxu0 0
    %300 = vmatpush.bf16.msra.mxu0 0
    %301 = vmatpush.bf16.msra.mxu0 %v290
    %302 = vmatmul.bf16.gmra.mxu0 %v278
    %v303 = vpop.f32.mrf.mxu0
    %v304 = vadd.f32 %v268, %v303
    %v305 = vpop.f32.mrf.mxu0
    %v306 = vadd.f32 %v268, %v305
    %307 = vmatmul.bf16.gmra.mxu0 %v281
    %v308 = vpop.f32.mrf.mxu0
    %v309 = vadd.f32 %v268, %v308
    %v310 = vpop.f32.mrf.mxu0
    %v311 = vadd.f32 %v268, %v310
    %312 = vmatmul.bf16.gmra.mxu0 %v284
    %v313 = vpop.f32.mrf.mxu0
    %v314 = vadd.f32 %v268, %v313
    %v315 = vpop.f32.mrf.mxu0
    %v316 = vadd.f32 %v268, %v315
    %317 = vmatmul.bf16.gmra.mxu0 %v287
    %v318 = vpop.f32.mrf.mxu0
    %v319 = vadd.f32 %v268, %v318
    %v320 = vpop.f32.mrf.mxu0
    %v321 = vadd.f32 %v268, %v320
    %322 = vdwg.mxu0
    %323 = vmatpush.bf16.msra.mxu0 0
    %324 = vmatpush.bf16.msra.mxu0 0
    %325 = vmatpush.bf16.msra.mxu0 0
    %326 = vmatpush.bf16.msra.mxu0 0
    %327 = vmatpush.bf16.msra.mxu0 0
    %328 = vmatpush.bf16.msra.mxu0 0
    %329 = vmatpush.bf16.msra.mxu0 0
    %330 = vmatpush.bf16.msra.mxu0 %v292
    %331 = vmatmul.bf16.gmra.mxu0 %v278
    %v332 = vpop.f32.mrf.mxu0
    %v333 = vadd.f32 %v269, %v332
    %v334 = vpop.f32.mrf.mxu0
    %v335 = vadd.f32 %v269, %v334
    %336 = vmatmul.bf16.gmra.mxu0 %v281
    %v337 = vpop.f32.mrf.mxu0
    %v338 = vadd.f32 %v269, %v337
    %v339 = vpop.f32.mrf.mxu0
    %v340 = vadd.f32 %v269, %v339
    %341 = vmatmul.bf16.gmra.mxu0 %v284
    %v342 = vpop.f32.mrf.mxu0
    %v343 = vadd.f32 %v269, %v342
    %v344 = vpop.f32.mrf.mxu0
    %v345 = vadd.f32 %v269, %v344
    %346 = vmatmul.bf16.gmra.mxu0 %v287
    %v347 = vpop.f32.mrf.mxu0
    %v348 = vadd.f32 %v269, %v347
    %v349 = vpop.f32.mrf.mxu0
    %v350 = vadd.f32 %v269, %v349
    %351 = vdwg.mxu0
    %v352 = vld [vmem:[%s3] sm:$0xff]
    %v353 = vmax.f32 %v352, 0.0
    %v354 = vld [vmem:[%s10] sm:$0x77]
    %v355 = vpack.c.bf16 %v353, %v353
    %v356 = vld [vmem:[%s11] sm:$0x3]
    %v358 = vperm.slane %v356, 0
    %v359 = vperm.slane %v356, 1
    %v363 = vunpack.c.l.b16 %v354
    %v364 = vunpack.c.h.b16 %v354
    %v365 = vpack.c.b16 %v363, %v363
    %v366 = vpack.c.b16 %v364, %v364
    %vm367 = vcmask 48128
    %v369 = vsel %vm367, %v355, 0
    %vm371 = vcmask 1042432
    %v373 = vsel %vm371, %v365, 0
    %v376 = vsel %vm371, %v366, 0
    %378 = vmatpush.bf16.msra.mxu0 0
    %379 = vmatpush.bf16.msra.mxu0 0
    %380 = vmatpush.bf16.msra.mxu0 0
    %381 = vmatpush.bf16.msra.mxu0 0
    %382 = vmatpush.bf16.msra.mxu0 0
    %383 = vmatpush.bf16.msra.mxu0 0
    %384 = vmatpush.bf16.msra.mxu0 0
    %385 = vmatpush.bf16.msra.mxu0 %v373
    %386 = vmatmul.bf16.gmra.mxu0 %v369
    %v387 = vpop.f32.mrf.mxu0
    %v388 = vadd.f32 %v358, %v387
    %v389 = vpop.f32.mrf.mxu0
    %390 = vdwg.mxu0
    %391 = vmatpush.bf16.msra.mxu0 0
    %392 = vmatpush.bf16.msra.mxu0 0
    %393 = vmatpush.bf16.msra.mxu0 0
    %394 = vmatpush.bf16.msra.mxu0 0
    %395 = vmatpush.bf16.msra.mxu0 0
    %396 = vmatpush.bf16.msra.mxu0 0
    %397 = vmatpush.bf16.msra.mxu0 0
    %398 = vmatpush.bf16.msra.mxu0 %v376
    %399 = vmatmul.bf16.gmra.mxu0 %v369
    %v400 = vpop.f32.mrf.mxu0
    %v401 = vadd.f32 %v359, %v400
    %v402 = vpop.f32.mrf.mxu0
    %403 = vdwg.mxu0
    %v404 = vmax.f32 %v225, 0.0
    %v405 = vmax.f32 %v244, 0.0
    %v406 = vld [vmem:[#allocation2] sm:$0xff]
    %v407 = vld [vmem:[#allocation2 + $0x8] sm:$0xff]
    %v408 = vld [vmem:[#allocation2 + $0x10] sm:$0xff]
    %v409 = vld [vmem:[#allocation2 + $0x18] sm:$0xff]
    %v410 = vld [vmem:[#allocation2 + $0x20] sm:$0xff]
    %v411 = vld [vmem:[#allocation2 + $0x28] sm:$0xff]
    %v412 = vld [vmem:[#allocation2 + $0x30] sm:$0xff]
    %v413 = vld [vmem:[#allocation2 + $0x38] sm:$0xff]
    %v414 = vld [vmem:[#allocation2 + $0x40] sm:$0xff]
    %v415 = vld [vmem:[#allocation2 + $0x48] sm:$0xff]
    %v416 = vld [vmem:[#allocation2 + $0x50] sm:$0xff]
    %v417 = vld [vmem:[#allocation2 + $0x58] sm:$0xff]
    %v418 = vld [vmem:[#allocation2 + $0x60] sm:$0xff]
    %v419 = vld [vmem:[#allocation2 + $0x68] sm:$0xff]
    %v420 = vld [vmem:[#allocation2 + $0x70] sm:$0xff]
    %v421 = vld [vmem:[#allocation2 + $0x78] sm:$0xff]
    %v422 = vld [vmem:[#allocation2 + $0x80] sm:$0xff]
    %v423 = vld [vmem:[#allocation2 + $0x88] sm:$0xff]
    %v424 = vld [vmem:[#allocation2 + $0x90] sm:$0xff]
    %v425 = vld [vmem:[#allocation2 + $0x98] sm:$0xff]
    %v426 = vld [vmem:[#allocation2 + $0xa0] sm:$0xff]
    %v427 = vld [vmem:[#allocation2 + $0xa8] sm:$0xff]
    %v428 = vld [vmem:[#allocation2 + $0xb0] sm:$0xff]
    %v429 = vld [vmem:[#allocation2 + $0xb8] sm:$0xff]
    %v430 = vld [vmem:[#allocation2 + $0xc0] sm:$0xff]
    %v431 = vpack.c.bf16 %v404, %v404
    %v432 = vpack.c.bf16 %v405, %v405
    %v458 = vunpack.c.l.b16 %v406
    %v459 = vunpack.c.h.b16 %v406
    %v460 = vunpack.c.l.b16 %v407
    %v461 = vunpack.c.h.b16 %v407
    %v462 = vunpack.c.l.b16 %v408
    %v463 = vunpack.c.h.b16 %v408
    %v464 = vunpack.c.l.b16 %v409
    %v465 = vunpack.c.h.b16 %v409
    %v466 = vunpack.c.l.b16 %v410
    %v467 = vunpack.c.h.b16 %v410
    %v468 = vunpack.c.l.b16 %v411
    %v469 = vunpack.c.h.b16 %v411
    %v470 = vunpack.c.l.b16 %v412
    %v471 = vunpack.c.h.b16 %v412
    %v472 = vunpack.c.l.b16 %v413
    %v473 = vunpack.c.h.b16 %v413
    %v474 = vunpack.c.l.b16 %v414
    %v475 = vunpack.c.h.b16 %v414
    %v476 = vunpack.c.l.b16 %v415
    %v477 = vunpack.c.h.b16 %v415
    %v478 = vunpack.c.l.b16 %v416
    %v479 = vunpack.c.h.b16 %v416
    %v480 = vunpack.c.l.b16 %v417
    %v481 = vunpack.c.h.b16 %v417
    %v482 = vunpack.c.l.b16 %v418
    %v483 = vunpack.c.h.b16 %v418
    %v484 = vunpack.c.l.b16 %v419
    %v485 = vunpack.c.h.b16 %v419
    %v486 = vunpack.c.l.b16 %v420
    %v487 = vunpack.c.h.b16 %v420
    %v488 = vunpack.c.l.b16 %v421
    %v489 = vunpack.c.h.b16 %v421
    %v490 = vunpack.c.l.b16 %v422
    %v491 = vunpack.c.h.b16 %v422
    %v492 = vunpack.c.l.b16 %v423
    %v493 = vunpack.c.h.b16 %v423
    %v494 = vunpack.c.l.b16 %v424
    %v495 = vunpack.c.h.b16 %v424
    %v496 = vunpack.c.l.b16 %v425
    %v497 = vunpack.c.h.b16 %v425
    %v498 = vunpack.c.l.b16 %v426
    %v499 = vunpack.c.h.b16 %v426
    %v500 = vunpack.c.l.b16 %v427
    %v501 = vunpack.c.h.b16 %v427
    %v502 = vunpack.c.l.b16 %v428
    %v503 = vunpack.c.h.b16 %v428
    %v504 = vunpack.c.l.b16 %v429
    %v505 = vunpack.c.h.b16 %v429
    %v506 = vunpack.c.l.b16 %v430
    %v507 = vunpack.c.h.b16 %v430
    %v508 = vpack.c.b16 %v460, %v458
    %v509 = vpack.c.b16 %v461, %v459
    %v510 = vpack.c.b16 %v464, %v462
    %v511 = vpack.c.b16 %v465, %v463
    %v512 = vpack.c.b16 %v468, %v466
    %v513 = vpack.c.b16 %v469, %v467
    %v514 = vpack.c.b16 %v472, %v470
    %v515 = vpack.c.b16 %v473, %v471
    %v516 = vpack.c.b16 %v476, %v474
    %v517 = vpack.c.b16 %v477, %v475
    %v518 = vpack.c.b16 %v480, %v478
    %v519 = vpack.c.b16 %v481, %v479
    %v520 = vpack.c.b16 %v484, %v482
    %v521 = vpack.c.b16 %v485, %v483
    %v522 = vpack.c.b16 %v488, %v486
    %v523 = vpack.c.b16 %v489, %v487
    %v524 = vpack.c.b16 %v492, %v490
    %v525 = vpack.c.b16 %v493, %v491
    %v526 = vpack.c.b16 %v496, %v494
    %v527 = vpack.c.b16 %v497, %v495
    %v528 = vpack.c.b16 %v500, %v498
    %v529 = vpack.c.b16 %v501, %v499
    %v530 = vpack.c.b16 %v504, %v502
    %v531 = vpack.c.b16 %v505, %v503
    %v532 = vpack.c.b16 %v506, %v506
    %v533 = vpack.c.b16 %v507, %v507
    %vm558 = vcmask 588800
    %v560 = vsel %vm558, %v432, 0
    %v563 = vsel %vm208, %v532, 0
    %v566 = vsel %vm208, %v533, 0
    %568 = vmatpush.bf16.msra.mxu0 %v522
    %569 = vmatpush.bf16.msra.mxu0 %v520
    %570 = vmatpush.bf16.msra.mxu0 %v518
    %571 = vmatpush.bf16.msra.mxu0 %v516
    %572 = vmatpush.bf16.msra.mxu0 %v514
    %573 = vmatpush.bf16.msra.mxu0 %v512
    %574 = vmatpush.bf16.msra.mxu0 %v510
    %575 = vmatpush.bf16.msra.mxu0 %v508
    %576 = vmatmul.bf16.gmra.mxu0 %v431
    %v577 = vpop.f32.mrf.mxu0
    %v578 = vadd.f32 0.0, %v577
    %v579 = vpop.f32.mrf.mxu0
    %580 = vdwg.mxu0
    %581 = vmatpush.bf16.msra.mxu0 0
    %582 = vmatpush.bf16.msra.mxu0 0
    %583 = vmatpush.bf16.msra.mxu0 0
    %584 = vmatpush.bf16.msra.mxu0 %v563
    %585 = vmatpush.bf16.msra.mxu0 %v530
    %586 = vmatpush.bf16.msra.mxu0 %v528
    %587 = vmatpush.bf16.msra.mxu0 %v526
    %588 = vmatpush.bf16.msra.mxu0 %v524
    %589 = vmatmul.bf16.gmra.mxu0 %v560
    %v590 = vpop.f32.mrf.mxu0
    %v591 = vadd.f32 %v578, %v590
    %v592 = vpop.f32.mrf.mxu0
    %593 = vdwg.mxu0
    %594 = vmatpush.bf16.msra.mxu0 %v523
    %595 = vmatpush.bf16.msra.mxu0 %v521
    %596 = vmatpush.bf16.msra.mxu0 %v519
    %597 = vmatpush.bf16.msra.mxu0 %v517
    %598 = vmatpush.bf16.msra.mxu0 %v515
    %599 = vmatpush.bf16.msra.mxu0 %v513
    %600 = vmatpush.bf16.msra.mxu0 %v511
    %601 = vmatpush.bf16.msra.mxu0 %v509
    %602 = vmatmul.bf16.gmra.mxu0 %v431
    %v603 = vpop.f32.mrf.mxu0
    %v604 = vadd.f32 0.0, %v603
    %v605 = vpop.f32.mrf.mxu0
    %606 = vdwg.mxu0
    %607 = vmatpush.bf16.msra.mxu0 0
    %608 = vmatpush.bf16.msra.mxu0 0
    %609 = vmatpush.bf16.msra.mxu0 0
    %610 = vmatpush.bf16.msra.mxu0 %v566
    %611 = vmatpush.bf16.msra.mxu0 %v531
    %612 = vmatpush.bf16.msra.mxu0 %v529
    %613 = vmatpush.bf16.msra.mxu0 %v527
    %614 = vmatpush.bf16.msra.mxu0 %v525
    %615 = vmatmul.bf16.gmra.mxu0 %v560
    %v616 = vpop.f32.mrf.mxu0
    %v617 = vadd.f32 %v604, %v616
    %v618 = vpop.f32.mrf.mxu0
    %619 = vdwg.mxu0
    %v620 = vadd.f32 %v388, %v591
    %v621 = vadd.f32 %v401, %v617
    %v622 = vmax.f32 %v227, 0.0
    %v623 = vmax.f32 %v246, 0.0
    %s624 = scalar_lea.vmem [#allocation2], 200
    %v625 = vld [vmem:[%s624] sm:$0xff]
    %v626 = vld [vmem:[%s624 + $0x8] sm:$0xff]
    %v627 = vld [vmem:[%s624 + $0x10] sm:$0xff]
    %v628 = vld [vmem:[%s624 + $0x18] sm:$0xff]
    %v629 = vld [vmem:[%s624 + $0x20] sm:$0xff]
    %v630 = vld [vmem:[%s624 + $0x28] sm:$0xff]
    %v631 = vld [vmem:[%s624 + $0x30] sm:$0xff]
    %v632 = vld [vmem:[%s624 + $0x38] sm:$0xff]
    %v633 = vld [vmem:[%s624 + $0x40] sm:$0xff]
    %v634 = vld [vmem:[%s624 + $0x48] sm:$0xff]
    %v635 = vld [vmem:[%s624 + $0x50] sm:$0xff]
    %v636 = vld [vmem:[%s624 + $0x58] sm:$0xff]
    %v637 = vld [vmem:[%s624 + $0x60] sm:$0xff]
    %v638 = vld [vmem:[%s624 + $0x68] sm:$0xff]
    %v639 = vld [vmem:[%s624 + $0x70] sm:$0xff]
    %v640 = vld [vmem:[%s624 + $0x78] sm:$0xff]
    %v641 = vld [vmem:[%s624 + $0x80] sm:$0xff]
    %v642 = vld [vmem:[%s624 + $0x88] sm:$0xff]
    %v643 = vld [vmem:[%s624 + $0x90] sm:$0xff]
    %v644 = vld [vmem:[%s624 + $0x98] sm:$0xff]
    %v645 = vld [vmem:[%s624 + $0xa0] sm:$0xff]
    %v646 = vld [vmem:[%s624 + $0xa8] sm:$0xff]
    %v647 = vld [vmem:[%s624 + $0xb0] sm:$0xff]
    %v648 = vld [vmem:[%s624 + $0xb8] sm:$0xff]
    %v649 = vld [vmem:[%s624 + $0xc0] sm:$0xff]
    %v650 = vpack.c.bf16 %v622, %v622
    %v651 = vpack.c.bf16 %v623, %v623
    %v677 = vunpack.c.l.b16 %v625
    %v678 = vunpack.c.h.b16 %v625
    %v679 = vunpack.c.l.b16 %v626
    %v680 = vunpack.c.h.b16 %v626
    %v681 = vunpack.c.l.b16 %v627
    %v682 = vunpack.c.h.b16 %v627
    %v683 = vunpack.c.l.b16 %v628
    %v684 = vunpack.c.h.b16 %v628
    %v685 = vunpack.c.l.b16 %v629
    %v686 = vunpack.c.h.b16 %v629
    %v687 = vunpack.c.l.b16 %v630
    %v688 = vunpack.c.h.b16 %v630
    %v689 = vunpack.c.l.b16 %v631
    %v690 = vunpack.c.h.b16 %v631
    %v691 = vunpack.c.l.b16 %v632
    %v692 = vunpack.c.h.b16 %v632
    %v693 = vunpack.c.l.b16 %v633
    %v694 = vunpack.c.h.b16 %v633
    %v695 = vunpack.c.l.b16 %v634
    %v696 = vunpack.c.h.b16 %v634
    %v697 = vunpack.c.l.b16 %v635
    %v698 = vunpack.c.h.b16 %v635
    %v699 = vunpack.c.l.b16 %v636
    %v700 = vunpack.c.h.b16 %v636
    %v701 = vunpack.c.l.b16 %v637
    %v702 = vunpack.c.h.b16 %v637
    %v703 = vunpack.c.l.b16 %v638
    %v704 = vunpack.c.h.b16 %v638
    %v705 = vunpack.c.l.b16 %v639
    %v706 = vunpack.c.h.b16 %v639
    %v707 = vunpack.c.l.b16 %v640
    %v708 = vunpack.c.h.b16 %v640
    %v709 = vunpack.c.l.b16 %v641
    %v710 = vunpack.c.h.b16 %v641
    %v711 = vunpack.c.l.b16 %v642
    %v712 = vunpack.c.h.b16 %v642
    %v713 = vunpack.c.l.b16 %v643
    %v714 = vunpack.c.h.b16 %v643
    %v715 = vunpack.c.l.b16 %v644
    %v716 = vunpack.c.h.b16 %v644
    %v717 = vunpack.c.l.b16 %v645
    %v718 = vunpack.c.h.b16 %v645
    %v719 = vunpack.c.l.b16 %v646
    %v720 = vunpack.c.h.b16 %v646
    %v721 = vunpack.c.l.b16 %v647
    %v722 = vunpack.c.h.b16 %v647
    %v723 = vunpack.c.l.b16 %v648
    %v724 = vunpack.c.h.b16 %v648
    %v725 = vunpack.c.l.b16 %v649
    %v726 = vunpack.c.h.b16 %v649
    %v727 = vpack.c.b16 %v679, %v677
    %v728 = vpack.c.b16 %v680, %v678
    %v729 = vpack.c.b16 %v683, %v681
    %v730 = vpack.c.b16 %v684, %v682
    %v731 = vpack.c.b16 %v687, %v685
    %v732 = vpack.c.b16 %v688, %v686
    %v733 = vpack.c.b16 %v691, %v689
    %v734 = vpack.c.b16 %v692, %v690
    %v735 = vpack.c.b16 %v695, %v693
    %v736 = vpack.c.b16 %v696, %v694
    %v737 = vpack.c.b16 %v699, %v697
    %v738 = vpack.c.b16 %v700, %v698
    %v739 = vpack.c.b16 %v703, %v701
    %v740 = vpack.c.b16 %v704, %v702
    %v741 = vpack.c.b16 %v707, %v705
    %v742 = vpack.c.b16 %v708, %v706
    %v743 = vpack.c.b16 %v711, %v709
    %v744 = vpack.c.b16 %v712, %v710
    %v745 = vpack.c.b16 %v715, %v713
    %v746 = vpack.c.b16 %v716, %v714
    %v747 = vpack.c.b16 %v719, %v717
    %v748 = vpack.c.b16 %v720, %v718
    %v749 = vpack.c.b16 %v723, %v721
    %v750 = vpack.c.b16 %v724, %v722
    %v751 = vpack.c.b16 %v725, %v725
    %v752 = vpack.c.b16 %v726, %v726
    %v778 = vsel %vm558, %v651, 0
    %v781 = vsel %vm208, %v751, 0
    %v784 = vsel %vm208, %v752, 0
    %786 = vmatpush.bf16.msra.mxu0 %v741
    %787 = vmatpush.bf16.msra.mxu0 %v739
    %788 = vmatpush.bf16.msra.mxu0 %v737
    %789 = vmatpush.bf16.msra.mxu0 %v735
    %790 = vmatpush.bf16.msra.mxu0 %v733
    %791 = vmatpush.bf16.msra.mxu0 %v731
    %792 = vmatpush.bf16.msra.mxu0 %v729
    %793 = vmatpush.bf16.msra.mxu0 %v727
    %794 = vmatmul.bf16.gmra.mxu0 %v650
    %v795 = vpop.f32.mrf.mxu0
    %v796 = vadd.f32 0.0, %v795
    %v797 = vpop.f32.mrf.mxu0
    %798 = vdwg.mxu0
    %799 = vmatpush.bf16.msra.mxu0 0
    %800 = vmatpush.bf16.msra.mxu0 0
    %801 = vmatpush.bf16.msra.mxu0 0
    %802 = vmatpush.bf16.msra.mxu0 %v781
    %803 = vmatpush.bf16.msra.mxu0 %v749
    %804 = vmatpush.bf16.msra.mxu0 %v747
    %805 = vmatpush.bf16.msra.mxu0 %v745
    %806 = vmatpush.bf16.msra.mxu0 %v743
    %807 = vmatmul.bf16.gmra.mxu0 %v778
    %v808 = vpop.f32.mrf.mxu0
    %v809 = vadd.f32 %v796, %v808
    %v810 = vpop.f32.mrf.mxu0
    %811 = vdwg.mxu0
    %812 = vmatpush.bf16.msra.mxu0 %v742
    %813 = vmatpush.bf16.msra.mxu0 %v740
    %814 = vmatpush.bf16.msra.mxu0 %v738
    %815 = vmatpush.bf16.msra.mxu0 %v736
    %816 = vmatpush.bf16.msra.mxu0 %v734
    %817 = vmatpush.bf16.msra.mxu0 %v732
    %818 = vmatpush.bf16.msra.mxu0 %v730
    %819 = vmatpush.bf16.msra.mxu0 %v728
    %820 = vmatmul.bf16.gmra.mxu0 %v650
    %v821 = vpop.f32.mrf.mxu0
    %v822 = vadd.f32 0.0, %v821
    %v823 = vpop.f32.mrf.mxu0
    %824 = vdwg.mxu0
    %825 = vmatpush.bf16.msra.mxu0 0
    %826 = vmatpush.bf16.msra.mxu0 0
    %827 = vmatpush.bf16.msra.mxu0 0
    %828 = vmatpush.bf16.msra.mxu0 %v784
    %829 = vmatpush.bf16.msra.mxu0 %v750
    %830 = vmatpush.bf16.msra.mxu0 %v748
    %831 = vmatpush.bf16.msra.mxu0 %v746
    %832 = vmatpush.bf16.msra.mxu0 %v744
    %833 = vmatmul.bf16.gmra.mxu0 %v778
    %v834 = vpop.f32.mrf.mxu0
    %v835 = vadd.f32 %v822, %v834
    %v836 = vpop.f32.mrf.mxu0
    %837 = vdwg.mxu0
    %v838 = vadd.f32 %v620, %v809
    %v839 = vadd.f32 %v621, %v835
    %v840 = vmax.f32 %v230, 0.0
    %v841 = vmax.f32 %v249, 0.0
    %s842 = scalar_lea.vmem [#allocation2], 400
    %v843 = vld [vmem:[%s842] sm:$0xff]
    %v844 = vld [vmem:[%s842 + $0x8] sm:$0xff]
    %v845 = vld [vmem:[%s842 + $0x10] sm:$0xff]
    %v846 = vld [vmem:[%s842 + $0x18] sm:$0xff]
    %v847 = vld [vmem:[%s842 + $0x20] sm:$0xff]
    %v848 = vld [vmem:[%s842 + $0x28] sm:$0xff]
    %v849 = vld [vmem:[%s842 + $0x30] sm:$0xff]
    %v850 = vld [vmem:[%s842 + $0x38] sm:$0xff]
    %v851 = vld [vmem:[%s842 + $0x40] sm:$0xff]
    %v852 = vld [vmem:[%s842 + $0x48] sm:$0xff]
    %v853 = vld [vmem:[%s842 + $0x50] sm:$0xff]
    %v854 = vld [vmem:[%s842 + $0x58] sm:$0xff]
    %v855 = vld [vmem:[%s842 + $0x60] sm:$0xff]
    %v856 = vld [vmem:[%s842 + $0x68] sm:$0xff]
    %v857 = vld [vmem:[%s842 + $0x70] sm:$0xff]
    %v858 = vld [vmem:[%s842 + $0x78] sm:$0xff]
    %v859 = vld [vmem:[%s842 + $0x80] sm:$0xff]
    %v860 = vld [vmem:[%s842 + $0x88] sm:$0xff]
    %v861 = vld [vmem:[%s842 + $0x90] sm:$0xff]
    %v862 = vld [vmem:[%s842 + $0x98] sm:$0xff]
    %v863 = vld [vmem:[%s842 + $0xa0] sm:$0xff]
    %v864 = vld [vmem:[%s842 + $0xa8] sm:$0xff]
    %v865 = vld [vmem:[%s842 + $0xb0] sm:$0xff]
    %v866 = vld [vmem:[%s842 + $0xb8] sm:$0xff]
    %v867 = vld [vmem:[%s842 + $0xc0] sm:$0xff]
    %v868 = vpack.c.bf16 %v840, %v840
    %v869 = vpack.c.bf16 %v841, %v841
    %v895 = vunpack.c.l.b16 %v843
    %v896 = vunpack.c.h.b16 %v843
    %v897 = vunpack.c.l.b16 %v844
    %v898 = vunpack.c.h.b16 %v844
    %v899 = vunpack.c.l.b16 %v845
    %v900 = vunpack.c.h.b16 %v845
    %v901 = vunpack.c.l.b16 %v846
    %v902 = vunpack.c.h.b16 %v846
    %v903 = vunpack.c.l.b16 %v847
    %v904 = vunpack.c.h.b16 %v847
    %v905 = vunpack.c.l.b16 %v848
    %v906 = vunpack.c.h.b16 %v848
    %v907 = vunpack.c.l.b16 %v849
    %v908 = vunpack.c.h.b16 %v849
    %v909 = vunpack.c.l.b16 %v850
    %v910 = vunpack.c.h.b16 %v850
    %v911 = vunpack.c.l.b16 %v851
    %v912 = vunpack.c.h.b16 %v851
    %v913 = vunpack.c.l.b16 %v852
    %v914 = vunpack.c.h.b16 %v852
    %v915 = vunpack.c.l.b16 %v853
    %v916 = vunpack.c.h.b16 %v853
    %v917 = vunpack.c.l.b16 %v854
    %v918 = vunpack.c.h.b16 %v854
    %v919 = vunpack.c.l.b16 %v855
    %v920 = vunpack.c.h.b16 %v855
    %v921 = vunpack.c.l.b16 %v856
    %v922 = vunpack.c.h.b16 %v856
    %v923 = vunpack.c.l.b16 %v857
    %v924 = vunpack.c.h.b16 %v857
    %v925 = vunpack.c.l.b16 %v858
    %v926 = vunpack.c.h.b16 %v858
    %v927 = vunpack.c.l.b16 %v859
    %v928 = vunpack.c.h.b16 %v859
    %v929 = vunpack.c.l.b16 %v860
    %v930 = vunpack.c.h.b16 %v860
    %v931 = vunpack.c.l.b16 %v861
    %v932 = vunpack.c.h.b16 %v861
    %v933 = vunpack.c.l.b16 %v862
    %v934 = vunpack.c.h.b16 %v862
    %v935 = vunpack.c.l.b16 %v863
    %v936 = vunpack.c.h.b16 %v863
    %v937 = vunpack.c.l.b16 %v864
    %v938 = vunpack.c.h.b16 %v864
    %v939 = vunpack.c.l.b16 %v865
    %v940 = vunpack.c.h.b16 %v865
    %v941 = vunpack.c.l.b16 %v866
    %v942 = vunpack.c.h.b16 %v866
    %v943 = vunpack.c.l.b16 %v867
    %v944 = vunpack.c.h.b16 %v867
    %v945 = vpack.c.b16 %v897, %v895
    %v946 = vpack.c.b16 %v898, %v896
    %v947 = vpack.c.b16 %v901, %v899
    %v948 = vpack.c.b16 %v902, %v900
    %v949 = vpack.c.b16 %v905, %v903
    %v950 = vpack.c.b16 %v906, %v904
    %v951 = vpack.c.b16 %v909, %v907
    %v952 = vpack.c.b16 %v910, %v908
    %v953 = vpack.c.b16 %v913, %v911
    %v954 = vpack.c.b16 %v914, %v912
    %v955 = vpack.c.b16 %v917, %v915
    %v956 = vpack.c.b16 %v918, %v916
    %v957 = vpack.c.b16 %v921, %v919
    %v958 = vpack.c.b16 %v922, %v920
    %v959 = vpack.c.b16 %v925, %v923
    %v960 = vpack.c.b16 %v926, %v924
    %v961 = vpack.c.b16 %v929, %v927
    %v962 = vpack.c.b16 %v930, %v928
    %v963 = vpack.c.b16 %v933, %v931
    %v964 = vpack.c.b16 %v934, %v932
    %v965 = vpack.c.b16 %v937, %v935
    %v966 = vpack.c.b16 %v938, %v936
    %v967 = vpack.c.b16 %v941, %v939
    %v968 = vpack.c.b16 %v942, %v940
    %v969 = vpack.c.b16 %v943, %v943
    %v970 = vpack.c.b16 %v944, %v944
    %v996 = vsel %vm558, %v869, 0
    %v999 = vsel %vm208, %v969, 0
    %v1002 = vsel %vm208, %v970, 0
    %1004 = vmatpush.bf16.msra.mxu0 %v959
    %1005 = vmatpush.bf16.msra.mxu0 %v957
    %1006 = vmatpush.bf16.msra.mxu0 %v955
    %1007 = vmatpush.bf16.msra.mxu0 %v953
    %1008 = vmatpush.bf16.msra.mxu0 %v951
    %1009 = vmatpush.bf16.msra.mxu0 %v949
    %1010 = vmatpush.bf16.msra.mxu0 %v947
    %1011 = vmatpush.bf16.msra.mxu0 %v945
    %1012 = vmatmul.bf16.gmra.mxu0 %v868
    %v1013 = vpop.f32.mrf.mxu0
    %v1014 = vadd.f32 0.0, %v1013
    %v1015 = vpop.f32.mrf.mxu0
    %1016 = vdwg.mxu0
    %1017 = vmatpush.bf16.msra.mxu0 0
    %1018 = vmatpush.bf16.msra.mxu0 0
    %1019 = vmatpush.bf16.msra.mxu0 0
    %1020 = vmatpush.bf16.msra.mxu0 %v999
    %1021 = vmatpush.bf16.msra.mxu0 %v967
    %1022 = vmatpush.bf16.msra.mxu0 %v965
    %1023 = vmatpush.bf16.msra.mxu0 %v963
    %1024 = vmatpush.bf16.msra.mxu0 %v961
    %1025 = vmatmul.bf16.gmra.mxu0 %v996
    %v1026 = vpop.f32.mrf.mxu0
    %v1027 = vadd.f32 %v1014, %v1026
    %v1028 = vpop.f32.mrf.mxu0
    %1029 = vdwg.mxu0
    %1030 = vmatpush.bf16.msra.mxu0 %v960
    %1031 = vmatpush.bf16.msra.mxu0 %v958
    %1032 = vmatpush.bf16.msra.mxu0 %v956
    %1033 = vmatpush.bf16.msra.mxu0 %v954
    %1034 = vmatpush.bf16.msra.mxu0 %v952
    %1035 = vmatpush.bf16.msra.mxu0 %v950
    %1036 = vmatpush.bf16.msra.mxu0 %v948
    %1037 = vmatpush.bf16.msra.mxu0 %v946
    %1038 = vmatmul.bf16.gmra.mxu0 %v868
    %v1039 = vpop.f32.mrf.mxu0
    %v1040 = vadd.f32 0.0, %v1039
    %v1041 = vpop.f32.mrf.mxu0
    %1042 = vdwg.mxu0
    %1043 = vmatpush.bf16.msra.mxu0 0
    %1044 = vmatpush.bf16.msra.mxu0 0
    %1045 = vmatpush.bf16.msra.mxu0 0
    %1046 = vmatpush.bf16.msra.mxu0 %v1002
    %1047 = vmatpush.bf16.msra.mxu0 %v968
    %1048 = vmatpush.bf16.msra.mxu0 %v966
    %1049 = vmatpush.bf16.msra.mxu0 %v964
    %1050 = vmatpush.bf16.msra.mxu0 %v962
    %1051 = vmatmul.bf16.gmra.mxu0 %v996
    %v1052 = vpop.f32.mrf.mxu0
    %v1053 = vadd.f32 %v1040, %v1052
    %v1054 = vpop.f32.mrf.mxu0
    %1055 = vdwg.mxu0
    %v1056 = vadd.f32 %v838, %v1027
    %v1057 = vadd.f32 %v839, %v1053
    %v1058 = vmax.f32 %v232, 0.0
    %v1059 = vmax.f32 %v251, 0.0
    %s1060 = scalar_lea.vmem [#allocation2], 600
    %v1061 = vld [vmem:[%s1060] sm:$0xff]
    %v1062 = vld [vmem:[%s1060 + $0x8] sm:$0xff]
    %v1063 = vld [vmem:[%s1060 + $0x10] sm:$0xff]
    %v1064 = vld [vmem:[%s1060 + $0x18] sm:$0xff]
    %v1065 = vld [vmem:[%s1060 + $0x20] sm:$0xff]
    %v1066 = vld [vmem:[%s1060 + $0x28] sm:$0xff]
    %v1067 = vld [vmem:[%s1060 + $0x30] sm:$0xff]
    %v1068 = vld [vmem:[%s1060 + $0x38] sm:$0xff]
    %v1069 = vld [vmem:[%s1060 + $0x40] sm:$0xff]
    %v1070 = vld [vmem:[%s1060 + $0x48] sm:$0xff]
    %v1071 = vld [vmem:[%s1060 + $0x50] sm:$0xff]
    %v1072 = vld [vmem:[%s1060 + $0x58] sm:$0xff]
    %v1073 = vld [vmem:[%s1060 + $0x60] sm:$0xff]
    %v1074 = vld [vmem:[%s1060 + $0x68] sm:$0xff]
    %v1075 = vld [vmem:[%s1060 + $0x70] sm:$0xff]
    %v1076 = vld [vmem:[%s1060 + $0x78] sm:$0xff]
    %v1077 = vld [vmem:[%s1060 + $0x80] sm:$0xff]
    %v1078 = vld [vmem:[%s1060 + $0x88] sm:$0xff]
    %v1079 = vld [vmem:[%s1060 + $0x90] sm:$0xff]
    %v1080 = vld [vmem:[%s1060 + $0x98] sm:$0xff]
    %v1081 = vld [vmem:[%s1060 + $0xa0] sm:$0xff]
    %v1082 = vld [vmem:[%s1060 + $0xa8] sm:$0xff]
    %v1083 = vld [vmem:[%s1060 + $0xb0] sm:$0xff]
    %v1084 = vld [vmem:[%s1060 + $0xb8] sm:$0xff]
    %v1085 = vld [vmem:[%s1060 + $0xc0] sm:$0xff]
    %v1086 = vpack.c.bf16 %v1058, %v1058
    %v1087 = vpack.c.bf16 %v1059, %v1059
    %v1113 = vunpack.c.l.b16 %v1061
    %v1114 = vunpack.c.h.b16 %v1061
    %v1115 = vunpack.c.l.b16 %v1062
    %v1116 = vunpack.c.h.b16 %v1062
    %v1117 = vunpack.c.l.b16 %v1063
    %v1118 = vunpack.c.h.b16 %v1063
    %v1119 = vunpack.c.l.b16 %v1064
    %v1120 = vunpack.c.h.b16 %v1064
    %v1121 = vunpack.c.l.b16 %v1065
    %v1122 = vunpack.c.h.b16 %v1065
    %v1123 = vunpack.c.l.b16 %v1066
    %v1124 = vunpack.c.h.b16 %v1066
    %v1125 = vunpack.c.l.b16 %v1067
    %v1126 = vunpack.c.h.b16 %v1067
    %v1127 = vunpack.c.l.b16 %v1068
    %v1128 = vunpack.c.h.b16 %v1068
    %v1129 = vunpack.c.l.b16 %v1069
    %v1130 = vunpack.c.h.b16 %v1069
    %v1131 = vunpack.c.l.b16 %v1070
    %v1132 = vunpack.c.h.b16 %v1070
    %v1133 = vunpack.c.l.b16 %v1071
    %v1134 = vunpack.c.h.b16 %v1071
    %v1135 = vunpack.c.l.b16 %v1072
    %v1136 = vunpack.c.h.b16 %v1072
    %v1137 = vunpack.c.l.b16 %v1073
    %v1138 = vunpack.c.h.b16 %v1073
    %v1139 = vunpack.c.l.b16 %v1074
    %v1140 = vunpack.c.h.b16 %v1074
    %v1141 = vunpack.c.l.b16 %v1075
    %v1142 = vunpack.c.h.b16 %v1075
    %v1143 = vunpack.c.l.b16 %v1076
    %v1144 = vunpack.c.h.b16 %v1076
    %v1145 = vunpack.c.l.b16 %v1077
    %v1146 = vunpack.c.h.b16 %v1077
    %v1147 = vunpack.c.l.b16 %v1078
    %v1148 = vunpack.c.h.b16 %v1078
    %v1149 = vunpack.c.l.b16 %v1079
    %v1150 = vunpack.c.h.b16 %v1079
    %v1151 = vunpack.c.l.b16 %v1080
    %v1152 = vunpack.c.h.b16 %v1080
    %v1153 = vunpack.c.l.b16 %v1081
    %v1154 = vunpack.c.h.b16 %v1081
    %v1155 = vunpack.c.l.b16 %v1082
    %v1156 = vunpack.c.h.b16 %v1082
    %v1157 = vunpack.c.l.b16 %v1083
    %v1158 = vunpack.c.h.b16 %v1083
    %v1159 = vunpack.c.l.b16 %v1084
    %v1160 = vunpack.c.h.b16 %v1084
    %v1161 = vunpack.c.l.b16 %v1085
    %v1162 = vunpack.c.h.b16 %v1085
    %v1163 = vpack.c.b16 %v1115, %v1113
    %v1164 = vpack.c.b16 %v1116, %v1114
    %v1165 = vpack.c.b16 %v1119, %v1117
    %v1166 = vpack.c.b16 %v1120, %v1118
    %v1167 = vpack.c.b16 %v1123, %v1121
    %v1168 = vpack.c.b16 %v1124, %v1122
    %v1169 = vpack.c.b16 %v1127, %v1125
    %v1170 = vpack.c.b16 %v1128, %v1126
    %v1171 = vpack.c.b16 %v1131, %v1129
    %v1172 = vpack.c.b16 %v1132, %v1130
    %v1173 = vpack.c.b16 %v1135, %v1133
    %v1174 = vpack.c.b16 %v1136, %v1134
    %v1175 = vpack.c.b16 %v1139, %v1137
    %v1176 = vpack.c.b16 %v1140, %v1138
    %v1177 = vpack.c.b16 %v1143, %v1141
    %v1178 = vpack.c.b16 %v1144, %v1142
    %v1179 = vpack.c.b16 %v1147, %v1145
    %v1180 = vpack.c.b16 %v1148, %v1146
    %v1181 = vpack.c.b16 %v1151, %v1149
    %v1182 = vpack.c.b16 %v1152, %v1150
    %v1183 = vpack.c.b16 %v1155, %v1153
    %v1184 = vpack.c.b16 %v1156, %v1154
    %v1185 = vpack.c.b16 %v1159, %v1157
    %v1186 = vpack.c.b16 %v1160, %v1158
    %v1187 = vpack.c.b16 %v1161, %v1161
    %v1188 = vpack.c.b16 %v1162, %v1162
    %v1214 = vsel %vm558, %v1087, 0
    %v1217 = vsel %vm208, %v1187, 0
    %v1220 = vsel %vm208, %v1188, 0
    %1222 = vmatpush.bf16.msra.mxu0 %v1177
    %1223 = vmatpush.bf16.msra.mxu0 %v1175
    %1224 = vmatpush.bf16.msra.mxu0 %v1173
    %1225 = vmatpush.bf16.msra.mxu0 %v1171
    %1226 = vmatpush.bf16.msra.mxu0 %v1169
    %1227 = vmatpush.bf16.msra.mxu0 %v1167
    %1228 = vmatpush.bf16.msra.mxu0 %v1165
    %1229 = vmatpush.bf16.msra.mxu0 %v1163
    %1230 = vmatmul.bf16.gmra.mxu0 %v1086
    %v1231 = vpop.f32.mrf.mxu0
    %v1232 = vadd.f32 0.0, %v1231
    %v1233 = vpop.f32.mrf.mxu0
    %1234 = vdwg.mxu0
    %1235 = vmatpush.bf16.msra.mxu0 0
    %1236 = vmatpush.bf16.msra.mxu0 0
    %1237 = vmatpush.bf16.msra.mxu0 0
    %1238 = vmatpush.bf16.msra.mxu0 %v1217
    %1239 = vmatpush.bf16.msra.mxu0 %v1185
    %1240 = vmatpush.bf16.msra.mxu0 %v1183
    %1241 = vmatpush.bf16.msra.mxu0 %v1181
    %1242 = vmatpush.bf16.msra.mxu0 %v1179
    %1243 = vmatmul.bf16.gmra.mxu0 %v1214
    %v1244 = vpop.f32.mrf.mxu0
    %v1245 = vadd.f32 %v1232, %v1244
    %v1246 = vpop.f32.mrf.mxu0
    %1247 = vdwg.mxu0
    %1248 = vmatpush.bf16.msra.mxu0 %v1178
    %1249 = vmatpush.bf16.msra.mxu0 %v1176
    %1250 = vmatpush.bf16.msra.mxu0 %v1174
    %1251 = vmatpush.bf16.msra.mxu0 %v1172
    %1252 = vmatpush.bf16.msra.mxu0 %v1170
    %1253 = vmatpush.bf16.msra.mxu0 %v1168
    %1254 = vmatpush.bf16.msra.mxu0 %v1166
    %1255 = vmatpush.bf16.msra.mxu0 %v1164
    %1256 = vmatmul.bf16.gmra.mxu0 %v1086
    %v1257 = vpop.f32.mrf.mxu0
    %v1258 = vadd.f32 0.0, %v1257
    %v1259 = vpop.f32.mrf.mxu0
    %1260 = vdwg.mxu0
    %1261 = vmatpush.bf16.msra.mxu0 0
    %1262 = vmatpush.bf16.msra.mxu0 0
    %1263 = vmatpush.bf16.msra.mxu0 0
    %1264 = vmatpush.bf16.msra.mxu0 %v1220
    %1265 = vmatpush.bf16.msra.mxu0 %v1186
    %1266 = vmatpush.bf16.msra.mxu0 %v1184
    %1267 = vmatpush.bf16.msra.mxu0 %v1182
    %1268 = vmatpush.bf16.msra.mxu0 %v1180
    %1269 = vmatmul.bf16.gmra.mxu0 %v1214
    %v1270 = vpop.f32.mrf.mxu0
    %v1271 = vadd.f32 %v1258, %v1270
    %v1272 = vpop.f32.mrf.mxu0
    %1273 = vdwg.mxu0
    %v1274 = vadd.f32 %v1056, %v1245
    %v1275 = vadd.f32 %v1057, %v1271
    %v1276 = vmax.f32 %v304, 0.0
    %v1277 = vmax.f32 %v333, 0.0
    %v1278 = vld [vmem:[#allocation4] sm:$0xff]
    %v1279 = vld [vmem:[#allocation4 + $0x8] sm:$0xff]
    %v1280 = vld [vmem:[#allocation4 + $0x10] sm:$0xff]
    %v1281 = vld [vmem:[#allocation4 + $0x18] sm:$0xff]
    %v1282 = vld [vmem:[#allocation4 + $0x20] sm:$0xff]
    %v1283 = vld [vmem:[#allocation4 + $0x28] sm:$0xff]
    %v1284 = vld [vmem:[#allocation4 + $0x30] sm:$0xff]
    %v1285 = vld [vmem:[#allocation4 + $0x38] sm:$0xff]
    %v1286 = vld [vmem:[#allocation4 + $0x40] sm:$0xff]
    %v1287 = vld [vmem:[#allocation4 + $0x48] sm:$0xff]
    %v1288 = vld [vmem:[#allocation4 + $0x50] sm:$0xff]
    %v1289 = vld [vmem:[#allocation4 + $0x58] sm:$0xff]
    %v1290 = vld [vmem:[#allocation4 + $0x60] sm:$0xff]
    %v1291 = vld [vmem:[#allocation4 + $0x68] sm:$0xff]
    %v1292 = vld [vmem:[#allocation4 + $0x70] sm:$0xff]
    %v1293 = vld [vmem:[#allocation4 + $0x78] sm:$0xff]
    %v1294 = vld [vmem:[#allocation4 + $0x80] sm:$0xff]
    %v1295 = vld [vmem:[#allocation4 + $0x88] sm:$0xff]
    %v1296 = vld [vmem:[#allocation4 + $0x90] sm:$0xff]
    %v1297 = vld [vmem:[#allocation4 + $0x98] sm:$0xff]
    %v1298 = vld [vmem:[#allocation4 + $0xa0] sm:$0xff]
    %v1299 = vld [vmem:[#allocation4 + $0xa8] sm:$0xff]
    %v1300 = vld [vmem:[#allocation4 + $0xb0] sm:$0xff]
    %v1301 = vld [vmem:[#allocation4 + $0xb8] sm:$0xff]
    %v1302 = vld [vmem:[#allocation4 + $0xc0] sm:$0xff]
    %v1303 = vpack.c.bf16 %v1276, %v1276
    %v1304 = vpack.c.bf16 %v1277, %v1277
    %v1330 = vunpack.c.l.b16 %v1278
    %v1331 = vunpack.c.h.b16 %v1278
    %v1332 = vunpack.c.l.b16 %v1279
    %v1333 = vunpack.c.h.b16 %v1279
    %v1334 = vunpack.c.l.b16 %v1280
    %v1335 = vunpack.c.h.b16 %v1280
    %v1336 = vunpack.c.l.b16 %v1281
    %v1337 = vunpack.c.h.b16 %v1281
    %v1338 = vunpack.c.l.b16 %v1282
    %v1339 = vunpack.c.h.b16 %v1282
    %v1340 = vunpack.c.l.b16 %v1283
    %v1341 = vunpack.c.h.b16 %v1283
    %v1342 = vunpack.c.l.b16 %v1284
    %v1343 = vunpack.c.h.b16 %v1284
    %v1344 = vunpack.c.l.b16 %v1285
    %v1345 = vunpack.c.h.b16 %v1285
    %v1346 = vunpack.c.l.b16 %v1286
    %v1347 = vunpack.c.h.b16 %v1286
    %v1348 = vunpack.c.l.b16 %v1287
    %v1349 = vunpack.c.h.b16 %v1287
    %v1350 = vunpack.c.l.b16 %v1288
    %v1351 = vunpack.c.h.b16 %v1288
    %v1352 = vunpack.c.l.b16 %v1289
    %v1353 = vunpack.c.h.b16 %v1289
    %v1354 = vunpack.c.l.b16 %v1290
    %v1355 = vunpack.c.h.b16 %v1290
    %v1356 = vunpack.c.l.b16 %v1291
    %v1357 = vunpack.c.h.b16 %v1291
    %v1358 = vunpack.c.l.b16 %v1292
    %v1359 = vunpack.c.h.b16 %v1292
    %v1360 = vunpack.c.l.b16 %v1293
    %v1361 = vunpack.c.h.b16 %v1293
    %v1362 = vunpack.c.l.b16 %v1294
    %v1363 = vunpack.c.h.b16 %v1294
    %v1364 = vunpack.c.l.b16 %v1295
    %v1365 = vunpack.c.h.b16 %v1295
    %v1366 = vunpack.c.l.b16 %v1296
    %v1367 = vunpack.c.h.b16 %v1296
    %v1368 = vunpack.c.l.b16 %v1297
    %v1369 = vunpack.c.h.b16 %v1297
    %v1370 = vunpack.c.l.b16 %v1298
    %v1371 = vunpack.c.h.b16 %v1298
    %v1372 = vunpack.c.l.b16 %v1299
    %v1373 = vunpack.c.h.b16 %v1299
    %v1374 = vunpack.c.l.b16 %v1300
    %v1375 = vunpack.c.h.b16 %v1300
    %v1376 = vunpack.c.l.b16 %v1301
    %v1377 = vunpack.c.h.b16 %v1301
    %v1378 = vunpack.c.l.b16 %v1302
    %v1379 = vunpack.c.h.b16 %v1302
    %v1380 = vpack.c.b16 %v1332, %v1330
    %v1381 = vpack.c.b16 %v1333, %v1331
    %v1382 = vpack.c.b16 %v1336, %v1334
    %v1383 = vpack.c.b16 %v1337, %v1335
    %v1384 = vpack.c.b16 %v1340, %v1338
    %v1385 = vpack.c.b16 %v1341, %v1339
    %v1386 = vpack.c.b16 %v1344, %v1342
    %v1387 = vpack.c.b16 %v1345, %v1343
    %v1388 = vpack.c.b16 %v1348, %v1346
    %v1389 = vpack.c.b16 %v1349, %v1347
    %v1390 = vpack.c.b16 %v1352, %v1350
    %v1391 = vpack.c.b16 %v1353, %v1351
    %v1392 = vpack.c.b16 %v1356, %v1354
    %v1393 = vpack.c.b16 %v1357, %v1355
    %v1394 = vpack.c.b16 %v1360, %v1358
    %v1395 = vpack.c.b16 %v1361, %v1359
    %v1396 = vpack.c.b16 %v1364, %v1362
    %v1397 = vpack.c.b16 %v1365, %v1363
    %v1398 = vpack.c.b16 %v1368, %v1366
    %v1399 = vpack.c.b16 %v1369, %v1367
    %v1400 = vpack.c.b16 %v1372, %v1370
    %v1401 = vpack.c.b16 %v1373, %v1371
    %v1402 = vpack.c.b16 %v1376, %v1374
    %v1403 = vpack.c.b16 %v1377, %v1375
    %v1404 = vpack.c.b16 %v1378, %v1378
    %v1405 = vpack.c.b16 %v1379, %v1379
    %v1431 = vsel %vm558, %v1304, 0
    %v1434 = vsel %vm208, %v1404, 0
    %v1437 = vsel %vm208, %v1405, 0
    %1439 = vmatpush.bf16.msra.mxu0 %v1394
    %1440 = vmatpush.bf16.msra.mxu0 %v1392
    %1441 = vmatpush.bf16.msra.mxu0 %v1390
    %1442 = vmatpush.bf16.msra.mxu0 %v1388
    %1443 = vmatpush.bf16.msra.mxu0 %v1386
    %1444 = vmatpush.bf16.msra.mxu0 %v1384
    %1445 = vmatpush.bf16.msra.mxu0 %v1382
    %1446 = vmatpush.bf16.msra.mxu0 %v1380
    %1447 = vmatmul.bf16.gmra.mxu0 %v1303
    %v1448 = vpop.f32.mrf.mxu0
    %v1449 = vadd.f32 0.0, %v1448
    %v1450 = vpop.f32.mrf.mxu0
    %1451 = vdwg.mxu0
    %1452 = vmatpush.bf16.msra.mxu0 0
    %1453 = vmatpush.bf16.msra.mxu0 0
    %1454 = vmatpush.bf16.msra.mxu0 0
    %1455 = vmatpush.bf16.msra.mxu0 %v1434
    %1456 = vmatpush.bf16.msra.mxu0 %v1402
    %1457 = vmatpush.bf16.msra.mxu0 %v1400
    %1458 = vmatpush.bf16.msra.mxu0 %v1398
    %1459 = vmatpush.bf16.msra.mxu0 %v1396
    %1460 = vmatmul.bf16.gmra.mxu0 %v1431
    %v1461 = vpop.f32.mrf.mxu0
    %v1462 = vadd.f32 %v1449, %v1461
    %v1463 = vpop.f32.mrf.mxu0
    %1464 = vdwg.mxu0
    %1465 = vmatpush.bf16.msra.mxu0 %v1395
    %1466 = vmatpush.bf16.msra.mxu0 %v1393
    %1467 = vmatpush.bf16.msra.mxu0 %v1391
    %1468 = vmatpush.bf16.msra.mxu0 %v1389
    %1469 = vmatpush.bf16.msra.mxu0 %v1387
    %1470 = vmatpush.bf16.msra.mxu0 %v1385
    %1471 = vmatpush.bf16.msra.mxu0 %v1383
    %1472 = vmatpush.bf16.msra.mxu0 %v1381
    %1473 = vmatmul.bf16.gmra.mxu0 %v1303
    %v1474 = vpop.f32.mrf.mxu0
    %v1475 = vadd.f32 0.0, %v1474
    %v1476 = vpop.f32.mrf.mxu0
    %1477 = vdwg.mxu0
    %1478 = vmatpush.bf16.msra.mxu0 0
    %1479 = vmatpush.bf16.msra.mxu0 0
    %1480 = vmatpush.bf16.msra.mxu0 0
    %1481 = vmatpush.bf16.msra.mxu0 %v1437
    %1482 = vmatpush.bf16.msra.mxu0 %v1403
    %1483 = vmatpush.bf16.msra.mxu0 %v1401
    %1484 = vmatpush.bf16.msra.mxu0 %v1399
    %1485 = vmatpush.bf16.msra.mxu0 %v1397
    %1486 = vmatmul.bf16.gmra.mxu0 %v1431
    %v1487 = vpop.f32.mrf.mxu0
    %v1488 = vadd.f32 %v1475, %v1487
    %v1489 = vpop.f32.mrf.mxu0
    %1490 = vdwg.mxu0
    %v1491 = vadd.f32 %v1274, %v1462
    %v1492 = vadd.f32 %v1275, %v1488
    %v1493 = vmax.f32 %v306, 0.0
    %v1494 = vmax.f32 %v335, 0.0
    %s1495 = scalar_lea.vmem [#allocation4], 200
    %v1496 = vld [vmem:[%s1495] sm:$0xff]
    %v1497 = vld [vmem:[%s1495 + $0x8] sm:$0xff]
    %v1498 = vld [vmem:[%s1495 + $0x10] sm:$0xff]
    %v1499 = vld [vmem:[%s1495 + $0x18] sm:$0xff]
    %v1500 = vld [vmem:[%s1495 + $0x20] sm:$0xff]
    %v1501 = vld [vmem:[%s1495 + $0x28] sm:$0xff]
    %v1502 = vld [vmem:[%s1495 + $0x30] sm:$0xff]
    %v1503 = vld [vmem:[%s1495 + $0x38] sm:$0xff]
    %v1504 = vld [vmem:[%s1495 + $0x40] sm:$0xff]
    %v1505 = vld [vmem:[%s1495 + $0x48] sm:$0xff]
    %v1506 = vld [vmem:[%s1495 + $0x50] sm:$0xff]
    %v1507 = vld [vmem:[%s1495 + $0x58] sm:$0xff]
    %v1508 = vld [vmem:[%s1495 + $0x60] sm:$0xff]
    %v1509 = vld [vmem:[%s1495 + $0x68] sm:$0xff]
    %v1510 = vld [vmem:[%s1495 + $0x70] sm:$0xff]
    %v1511 = vld [vmem:[%s1495 + $0x78] sm:$0xff]
    %v1512 = vld [vmem:[%s1495 + $0x80] sm:$0xff]
    %v1513 = vld [vmem:[%s1495 + $0x88] sm:$0xff]
    %v1514 = vld [vmem:[%s1495 + $0x90] sm:$0xff]
    %v1515 = vld [vmem:[%s1495 + $0x98] sm:$0xff]
    %v1516 = vld [vmem:[%s1495 + $0xa0] sm:$0xff]
    %v1517 = vld [vmem:[%s1495 + $0xa8] sm:$0xff]
    %v1518 = vld [vmem:[%s1495 + $0xb0] sm:$0xff]
    %v1519 = vld [vmem:[%s1495 + $0xb8] sm:$0xff]
    %v1520 = vld [vmem:[%s1495 + $0xc0] sm:$0xff]
    %v1521 = vpack.c.bf16 %v1493, %v1493
    %v1522 = vpack.c.bf16 %v1494, %v1494
    %v1548 = vunpack.c.l.b16 %v1496
    %v1549 = vunpack.c.h.b16 %v1496
    %v1550 = vunpack.c.l.b16 %v1497
    %v1551 = vunpack.c.h.b16 %v1497
    %v1552 = vunpack.c.l.b16 %v1498
    %v1553 = vunpack.c.h.b16 %v1498
    %v1554 = vunpack.c.l.b16 %v1499
    %v1555 = vunpack.c.h.b16 %v1499
    %v1556 = vunpack.c.l.b16 %v1500
    %v1557 = vunpack.c.h.b16 %v1500
    %v1558 = vunpack.c.l.b16 %v1501
    %v1559 = vunpack.c.h.b16 %v1501
    %v1560 = vunpack.c.l.b16 %v1502
    %v1561 = vunpack.c.h.b16 %v1502
    %v1562 = vunpack.c.l.b16 %v1503
    %v1563 = vunpack.c.h.b16 %v1503
    %v1564 = vunpack.c.l.b16 %v1504
    %v1565 = vunpack.c.h.b16 %v1504
    %v1566 = vunpack.c.l.b16 %v1505
    %v1567 = vunpack.c.h.b16 %v1505
    %v1568 = vunpack.c.l.b16 %v1506
    %v1569 = vunpack.c.h.b16 %v1506
    %v1570 = vunpack.c.l.b16 %v1507
    %v1571 = vunpack.c.h.b16 %v1507
    %v1572 = vunpack.c.l.b16 %v1508
    %v1573 = vunpack.c.h.b16 %v1508
    %v1574 = vunpack.c.l.b16 %v1509
    %v1575 = vunpack.c.h.b16 %v1509
    %v1576 = vunpack.c.l.b16 %v1510
    %v1577 = vunpack.c.h.b16 %v1510
    %v1578 = vunpack.c.l.b16 %v1511
    %v1579 = vunpack.c.h.b16 %v1511
    %v1580 = vunpack.c.l.b16 %v1512
    %v1581 = vunpack.c.h.b16 %v1512
    %v1582 = vunpack.c.l.b16 %v1513
    %v1583 = vunpack.c.h.b16 %v1513
    %v1584 = vunpack.c.l.b16 %v1514
    %v1585 = vunpack.c.h.b16 %v1514
    %v1586 = vunpack.c.l.b16 %v1515
    %v1587 = vunpack.c.h.b16 %v1515
    %v1588 = vunpack.c.l.b16 %v1516
    %v1589 = vunpack.c.h.b16 %v1516
    %v1590 = vunpack.c.l.b16 %v1517
    %v1591 = vunpack.c.h.b16 %v1517
    %v1592 = vunpack.c.l.b16 %v1518
    %v1593 = vunpack.c.h.b16 %v1518
    %v1594 = vunpack.c.l.b16 %v1519
    %v1595 = vunpack.c.h.b16 %v1519
    %v1596 = vunpack.c.l.b16 %v1520
    %v1597 = vunpack.c.h.b16 %v1520
    %v1598 = vpack.c.b16 %v1550, %v1548
    %v1599 = vpack.c.b16 %v1551, %v1549
    %v1600 = vpack.c.b16 %v1554, %v1552
    %v1601 = vpack.c.b16 %v1555, %v1553
    %v1602 = vpack.c.b16 %v1558, %v1556
    %v1603 = vpack.c.b16 %v1559, %v1557
    %v1604 = vpack.c.b16 %v1562, %v1560
    %v1605 = vpack.c.b16 %v1563, %v1561
    %v1606 = vpack.c.b16 %v1566, %v1564
    %v1607 = vpack.c.b16 %v1567, %v1565
    %v1608 = vpack.c.b16 %v1570, %v1568
    %v1609 = vpack.c.b16 %v1571, %v1569
    %v1610 = vpack.c.b16 %v1574, %v1572
    %v1611 = vpack.c.b16 %v1575, %v1573
    %v1612 = vpack.c.b16 %v1578, %v1576
    %v1613 = vpack.c.b16 %v1579, %v1577
    %v1614 = vpack.c.b16 %v1582, %v1580
    %v1615 = vpack.c.b16 %v1583, %v1581
    %v1616 = vpack.c.b16 %v1586, %v1584
    %v1617 = vpack.c.b16 %v1587, %v1585
    %v1618 = vpack.c.b16 %v1590, %v1588
    %v1619 = vpack.c.b16 %v1591, %v1589
    %v1620 = vpack.c.b16 %v1594, %v1592
    %v1621 = vpack.c.b16 %v1595, %v1593
    %v1622 = vpack.c.b16 %v1596, %v1596
    %v1623 = vpack.c.b16 %v1597, %v1597
    %v1649 = vsel %vm558, %v1522, 0
    %v1652 = vsel %vm208, %v1622, 0
    %v1655 = vsel %vm208, %v1623, 0
    %1657 = vmatpush.bf16.msra.mxu0 %v1612
    %1658 = vmatpush.bf16.msra.mxu0 %v1610
    %1659 = vmatpush.bf16.msra.mxu0 %v1608
    %1660 = vmatpush.bf16.msra.mxu0 %v1606
    %1661 = vmatpush.bf16.msra.mxu0 %v1604
    %1662 = vmatpush.bf16.msra.mxu0 %v1602
    %1663 = vmatpush.bf16.msra.mxu0 %v1600
    %1664 = vmatpush.bf16.msra.mxu0 %v1598
    %1665 = vmatmul.bf16.gmra.mxu0 %v1521
    %v1666 = vpop.f32.mrf.mxu0
    %v1667 = vadd.f32 0.0, %v1666
    %v1668 = vpop.f32.mrf.mxu0
    %1669 = vdwg.mxu0
    %1670 = vmatpush.bf16.msra.mxu0 0
    %1671 = vmatpush.bf16.msra.mxu0 0
    %1672 = vmatpush.bf16.msra.mxu0 0
    %1673 = vmatpush.bf16.msra.mxu0 %v1652
    %1674 = vmatpush.bf16.msra.mxu0 %v1620
    %1675 = vmatpush.bf16.msra.mxu0 %v1618
    %1676 = vmatpush.bf16.msra.mxu0 %v1616
    %1677 = vmatpush.bf16.msra.mxu0 %v1614
    %1678 = vmatmul.bf16.gmra.mxu0 %v1649
    %v1679 = vpop.f32.mrf.mxu0
    %v1680 = vadd.f32 %v1667, %v1679
    %v1681 = vpop.f32.mrf.mxu0
    %1682 = vdwg.mxu0
    %1683 = vmatpush.bf16.msra.mxu0 %v1613
    %1684 = vmatpush.bf16.msra.mxu0 %v1611
    %1685 = vmatpush.bf16.msra.mxu0 %v1609
    %1686 = vmatpush.bf16.msra.mxu0 %v1607
    %1687 = vmatpush.bf16.msra.mxu0 %v1605
    %1688 = vmatpush.bf16.msra.mxu0 %v1603
    %1689 = vmatpush.bf16.msra.mxu0 %v1601
    %1690 = vmatpush.bf16.msra.mxu0 %v1599
    %1691 = vmatmul.bf16.gmra.mxu0 %v1521
    %v1692 = vpop.f32.mrf.mxu0
    %v1693 = vadd.f32 0.0, %v1692
    %v1694 = vpop.f32.mrf.mxu0
    %1695 = vdwg.mxu0
    %1696 = vmatpush.bf16.msra.mxu0 0
    %1697 = vmatpush.bf16.msra.mxu0 0
    %1698 = vmatpush.bf16.msra.mxu0 0
    %1699 = vmatpush.bf16.msra.mxu0 %v1655
    %1700 = vmatpush.bf16.msra.mxu0 %v1621
    %1701 = vmatpush.bf16.msra.mxu0 %v1619
    %1702 = vmatpush.bf16.msra.mxu0 %v1617
    %1703 = vmatpush.bf16.msra.mxu0 %v1615
    %1704 = vmatmul.bf16.gmra.mxu0 %v1649
    %v1705 = vpop.f32.mrf.mxu0
    %v1706 = vadd.f32 %v1693, %v1705
    %v1707 = vpop.f32.mrf.mxu0
    %1708 = vdwg.mxu0
    %v1709 = vadd.f32 %v1491, %v1680
    %v1710 = vadd.f32 %v1492, %v1706
    %v1711 = vmax.f32 %v309, 0.0
    %v1712 = vmax.f32 %v338, 0.0
    %s1713 = scalar_lea.vmem [#allocation4], 400
    %v1714 = vld [vmem:[%s1713] sm:$0xff]
    %v1715 = vld [vmem:[%s1713 + $0x8] sm:$0xff]
    %v1716 = vld [vmem:[%s1713 + $0x10] sm:$0xff]
    %v1717 = vld [vmem:[%s1713 + $0x18] sm:$0xff]
    %v1718 = vld [vmem:[%s1713 + $0x20] sm:$0xff]
    %v1719 = vld [vmem:[%s1713 + $0x28] sm:$0xff]
    %v1720 = vld [vmem:[%s1713 + $0x30] sm:$0xff]
    %v1721 = vld [vmem:[%s1713 + $0x38] sm:$0xff]
    %v1722 = vld [vmem:[%s1713 + $0x40] sm:$0xff]
    %v1723 = vld [vmem:[%s1713 + $0x48] sm:$0xff]
    %v1724 = vld [vmem:[%s1713 + $0x50] sm:$0xff]
    %v1725 = vld [vmem:[%s1713 + $0x58] sm:$0xff]
    %v1726 = vld [vmem:[%s1713 + $0x60] sm:$0xff]
    %v1727 = vld [vmem:[%s1713 + $0x68] sm:$0xff]
    %v1728 = vld [vmem:[%s1713 + $0x70] sm:$0xff]
    %v1729 = vld [vmem:[%s1713 + $0x78] sm:$0xff]
    %v1730 = vld [vmem:[%s1713 + $0x80] sm:$0xff]
    %v1731 = vld [vmem:[%s1713 + $0x88] sm:$0xff]
    %v1732 = vld [vmem:[%s1713 + $0x90] sm:$0xff]
    %v1733 = vld [vmem:[%s1713 + $0x98] sm:$0xff]
    %v1734 = vld [vmem:[%s1713 + $0xa0] sm:$0xff]
    %v1735 = vld [vmem:[%s1713 + $0xa8] sm:$0xff]
    %v1736 = vld [vmem:[%s1713 + $0xb0] sm:$0xff]
    %v1737 = vld [vmem:[%s1713 + $0xb8] sm:$0xff]
    %v1738 = vld [vmem:[%s1713 + $0xc0] sm:$0xff]
    %v1739 = vpack.c.bf16 %v1711, %v1711
    %v1740 = vpack.c.bf16 %v1712, %v1712
    %v1766 = vunpack.c.l.b16 %v1714
    %v1767 = vunpack.c.h.b16 %v1714
    %v1768 = vunpack.c.l.b16 %v1715
    %v1769 = vunpack.c.h.b16 %v1715
    %v1770 = vunpack.c.l.b16 %v1716
    %v1771 = vunpack.c.h.b16 %v1716
    %v1772 = vunpack.c.l.b16 %v1717
    %v1773 = vunpack.c.h.b16 %v1717
    %v1774 = vunpack.c.l.b16 %v1718
    %v1775 = vunpack.c.h.b16 %v1718
    %v1776 = vunpack.c.l.b16 %v1719
    %v1777 = vunpack.c.h.b16 %v1719
    %v1778 = vunpack.c.l.b16 %v1720
    %v1779 = vunpack.c.h.b16 %v1720
    %v1780 = vunpack.c.l.b16 %v1721
    %v1781 = vunpack.c.h.b16 %v1721
    %v1782 = vunpack.c.l.b16 %v1722
    %v1783 = vunpack.c.h.b16 %v1722
    %v1784 = vunpack.c.l.b16 %v1723
    %v1785 = vunpack.c.h.b16 %v1723
    %v1786 = vunpack.c.l.b16 %v1724
    %v1787 = vunpack.c.h.b16 %v1724
    %v1788 = vunpack.c.l.b16 %v1725
    %v1789 = vunpack.c.h.b16 %v1725
    %v1790 = vunpack.c.l.b16 %v1726
    %v1791 = vunpack.c.h.b16 %v1726
    %v1792 = vunpack.c.l.b16 %v1727
    %v1793 = vunpack.c.h.b16 %v1727
    %v1794 = vunpack.c.l.b16 %v1728
    %v1795 = vunpack.c.h.b16 %v1728
    %v1796 = vunpack.c.l.b16 %v1729
    %v1797 = vunpack.c.h.b16 %v1729
    %v1798 = vunpack.c.l.b16 %v1730
    %v1799 = vunpack.c.h.b16 %v1730
    %v1800 = vunpack.c.l.b16 %v1731
    %v1801 = vunpack.c.h.b16 %v1731
    %v1802 = vunpack.c.l.b16 %v1732
    %v1803 = vunpack.c.h.b16 %v1732
    %v1804 = vunpack.c.l.b16 %v1733
    %v1805 = vunpack.c.h.b16 %v1733
    %v1806 = vunpack.c.l.b16 %v1734
    %v1807 = vunpack.c.h.b16 %v1734
    %v1808 = vunpack.c.l.b16 %v1735
    %v1809 = vunpack.c.h.b16 %v1735
    %v1810 = vunpack.c.l.b16 %v1736
    %v1811 = vunpack.c.h.b16 %v1736
    %v1812 = vunpack.c.l.b16 %v1737
    %v1813 = vunpack.c.h.b16 %v1737
    %v1814 = vunpack.c.l.b16 %v1738
    %v1815 = vunpack.c.h.b16 %v1738
    %v1816 = vpack.c.b16 %v1768, %v1766
    %v1817 = vpack.c.b16 %v1769, %v1767
    %v1818 = vpack.c.b16 %v1772, %v1770
    %v1819 = vpack.c.b16 %v1773, %v1771
    %v1820 = vpack.c.b16 %v1776, %v1774
    %v1821 = vpack.c.b16 %v1777, %v1775
    %v1822 = vpack.c.b16 %v1780, %v1778
    %v1823 = vpack.c.b16 %v1781, %v1779
    %v1824 = vpack.c.b16 %v1784, %v1782
    %v1825 = vpack.c.b16 %v1785, %v1783
    %v1826 = vpack.c.b16 %v1788, %v1786
    %v1827 = vpack.c.b16 %v1789, %v1787
    %v1828 = vpack.c.b16 %v1792, %v1790
    %v1829 = vpack.c.b16 %v1793, %v1791
    %v1830 = vpack.c.b16 %v1796, %v1794
    %v1831 = vpack.c.b16 %v1797, %v1795
    %v1832 = vpack.c.b16 %v1800, %v1798
    %v1833 = vpack.c.b16 %v1801, %v1799
    %v1834 = vpack.c.b16 %v1804, %v1802
    %v1835 = vpack.c.b16 %v1805, %v1803
    %v1836 = vpack.c.b16 %v1808, %v1806
    %v1837 = vpack.c.b16 %v1809, %v1807
    %v1838 = vpack.c.b16 %v1812, %v1810
    %v1839 = vpack.c.b16 %v1813, %v1811
    %v1840 = vpack.c.b16 %v1814, %v1814
    %v1841 = vpack.c.b16 %v1815, %v1815
    %v1867 = vsel %vm558, %v1740, 0
    %v1870 = vsel %vm208, %v1840, 0
    %v1873 = vsel %vm208, %v1841, 0
    %1875 = vmatpush.bf16.msra.mxu0 %v1830
    %1876 = vmatpush.bf16.msra.mxu0 %v1828
    %1877 = vmatpush.bf16.msra.mxu0 %v1826
    %1878 = vmatpush.bf16.msra.mxu0 %v1824
    %1879 = vmatpush.bf16.msra.mxu0 %v1822
    %1880 = vmatpush.bf16.msra.mxu0 %v1820
    %1881 = vmatpush.bf16.msra.mxu0 %v1818
    %1882 = vmatpush.bf16.msra.mxu0 %v1816
    %1883 = vmatmul.bf16.gmra.mxu0 %v1739
    %v1884 = vpop.f32.mrf.mxu0
    %v1885 = vadd.f32 0.0, %v1884
    %v1886 = vpop.f32.mrf.mxu0
    %1887 = vdwg.mxu0
    %1888 = vmatpush.bf16.msra.mxu0 0
    %1889 = vmatpush.bf16.msra.mxu0 0
    %1890 = vmatpush.bf16.msra.mxu0 0
    %1891 = vmatpush.bf16.msra.mxu0 %v1870
    %1892 = vmatpush.bf16.msra.mxu0 %v1838
    %1893 = vmatpush.bf16.msra.mxu0 %v1836
    %1894 = vmatpush.bf16.msra.mxu0 %v1834
    %1895 = vmatpush.bf16.msra.mxu0 %v1832
    %1896 = vmatmul.bf16.gmra.mxu0 %v1867
    %v1897 = vpop.f32.mrf.mxu0
    %v1898 = vadd.f32 %v1885, %v1897
    %v1899 = vpop.f32.mrf.mxu0
    %1900 = vdwg.mxu0
    %1901 = vmatpush.bf16.msra.mxu0 %v1831
    %1902 = vmatpush.bf16.msra.mxu0 %v1829
    %1903 = vmatpush.bf16.msra.mxu0 %v1827
    %1904 = vmatpush.bf16.msra.mxu0 %v1825
    %1905 = vmatpush.bf16.msra.mxu0 %v1823
    %1906 = vmatpush.bf16.msra.mxu0 %v1821
    %1907 = vmatpush.bf16.msra.mxu0 %v1819
    %1908 = vmatpush.bf16.msra.mxu0 %v1817
    %1909 = vmatmul.bf16.gmra.mxu0 %v1739
    %v1910 = vpop.f32.mrf.mxu0
    %v1911 = vadd.f32 0.0, %v1910
    %v1912 = vpop.f32.mrf.mxu0
    %1913 = vdwg.mxu0
    %1914 = vmatpush.bf16.msra.mxu0 0
    %1915 = vmatpush.bf16.msra.mxu0 0
    %1916 = vmatpush.bf16.msra.mxu0 0
    %1917 = vmatpush.bf16.msra.mxu0 %v1873
    %1918 = vmatpush.bf16.msra.mxu0 %v1839
    %1919 = vmatpush.bf16.msra.mxu0 %v1837
    %1920 = vmatpush.bf16.msra.mxu0 %v1835
    %1921 = vmatpush.bf16.msra.mxu0 %v1833
    %1922 = vmatmul.bf16.gmra.mxu0 %v1867
    %v1923 = vpop.f32.mrf.mxu0
    %v1924 = vadd.f32 %v1911, %v1923
    %v1925 = vpop.f32.mrf.mxu0
    %1926 = vdwg.mxu0
    %v1927 = vadd.f32 %v1709, %v1898
    %v1928 = vadd.f32 %v1710, %v1924
    %v1929 = vmax.f32 %v311, 0.0
    %v1930 = vmax.f32 %v340, 0.0
    %s1931 = scalar_lea.vmem [#allocation4], 600
    %v1932 = vld [vmem:[%s1931] sm:$0xff]
    %v1933 = vld [vmem:[%s1931 + $0x8] sm:$0xff]
    %v1934 = vld [vmem:[%s1931 + $0x10] sm:$0xff]
    %v1935 = vld [vmem:[%s1931 + $0x18] sm:$0xff]
    %v1936 = vld [vmem:[%s1931 + $0x20] sm:$0xff]
    %v1937 = vld [vmem:[%s1931 + $0x28] sm:$0xff]
    %v1938 = vld [vmem:[%s1931 + $0x30] sm:$0xff]
    %v1939 = vld [vmem:[%s1931 + $0x38] sm:$0xff]
    %v1940 = vld [vmem:[%s1931 + $0x40] sm:$0xff]
    %v1941 = vld [vmem:[%s1931 + $0x48] sm:$0xff]
    %v1942 = vld [vmem:[%s1931 + $0x50] sm:$0xff]
    %v1943 = vld [vmem:[%s1931 + $0x58] sm:$0xff]
    %v1944 = vld [vmem:[%s1931 + $0x60] sm:$0xff]
    %v1945 = vld [vmem:[%s1931 + $0x68] sm:$0xff]
    %v1946 = vld [vmem:[%s1931 + $0x70] sm:$0xff]
    %v1947 = vld [vmem:[%s1931 + $0x78] sm:$0xff]
    %v1948 = vld [vmem:[%s1931 + $0x80] sm:$0xff]
    %v1949 = vld [vmem:[%s1931 + $0x88] sm:$0xff]
    %v1950 = vld [vmem:[%s1931 + $0x90] sm:$0xff]
    %v1951 = vld [vmem:[%s1931 + $0x98] sm:$0xff]
    %v1952 = vld [vmem:[%s1931 + $0xa0] sm:$0xff]
    %v1953 = vld [vmem:[%s1931 + $0xa8] sm:$0xff]
    %v1954 = vld [vmem:[%s1931 + $0xb0] sm:$0xff]
    %v1955 = vld [vmem:[%s1931 + $0xb8] sm:$0xff]
    %v1956 = vld [vmem:[%s1931 + $0xc0] sm:$0xff]
    %v1957 = vpack.c.bf16 %v1929, %v1929
    %v1958 = vpack.c.bf16 %v1930, %v1930
    %v1984 = vunpack.c.l.b16 %v1932
    %v1985 = vunpack.c.h.b16 %v1932
    %v1986 = vunpack.c.l.b16 %v1933
    %v1987 = vunpack.c.h.b16 %v1933
    %v1988 = vunpack.c.l.b16 %v1934
    %v1989 = vunpack.c.h.b16 %v1934
    %v1990 = vunpack.c.l.b16 %v1935
    %v1991 = vunpack.c.h.b16 %v1935
    %v1992 = vunpack.c.l.b16 %v1936
    %v1993 = vunpack.c.h.b16 %v1936
    %v1994 = vunpack.c.l.b16 %v1937
    %v1995 = vunpack.c.h.b16 %v1937
    %v1996 = vunpack.c.l.b16 %v1938
    %v1997 = vunpack.c.h.b16 %v1938
    %v1998 = vunpack.c.l.b16 %v1939
    %v1999 = vunpack.c.h.b16 %v1939
    %v2000 = vunpack.c.l.b16 %v1940
    %v2001 = vunpack.c.h.b16 %v1940
    %v2002 = vunpack.c.l.b16 %v1941
    %v2003 = vunpack.c.h.b16 %v1941
    %v2004 = vunpack.c.l.b16 %v1942
    %v2005 = vunpack.c.h.b16 %v1942
    %v2006 = vunpack.c.l.b16 %v1943
    %v2007 = vunpack.c.h.b16 %v1943
    %v2008 = vunpack.c.l.b16 %v1944
    %v2009 = vunpack.c.h.b16 %v1944
    %v2010 = vunpack.c.l.b16 %v1945
    %v2011 = vunpack.c.h.b16 %v1945
    %v2012 = vunpack.c.l.b16 %v1946
    %v2013 = vunpack.c.h.b16 %v1946
    %v2014 = vunpack.c.l.b16 %v1947
    %v2015 = vunpack.c.h.b16 %v1947
    %v2016 = vunpack.c.l.b16 %v1948
    %v2017 = vunpack.c.h.b16 %v1948
    %v2018 = vunpack.c.l.b16 %v1949
    %v2019 = vunpack.c.h.b16 %v1949
    %v2020 = vunpack.c.l.b16 %v1950
    %v2021 = vunpack.c.h.b16 %v1950
    %v2022 = vunpack.c.l.b16 %v1951
    %v2023 = vunpack.c.h.b16 %v1951
    %v2024 = vunpack.c.l.b16 %v1952
    %v2025 = vunpack.c.h.b16 %v1952
    %v2026 = vunpack.c.l.b16 %v1953
    %v2027 = vunpack.c.h.b16 %v1953
    %v2028 = vunpack.c.l.b16 %v1954
    %v2029 = vunpack.c.h.b16 %v1954
    %v2030 = vunpack.c.l.b16 %v1955
    %v2031 = vunpack.c.h.b16 %v1955
    %v2032 = vunpack.c.l.b16 %v1956
    %v2033 = vunpack.c.h.b16 %v1956
    %v2034 = vpack.c.b16 %v1986, %v1984
    %v2035 = vpack.c.b16 %v1987, %v1985
    %v2036 = vpack.c.b16 %v1990, %v1988
    %v2037 = vpack.c.b16 %v1991, %v1989
    %v2038 = vpack.c.b16 %v1994, %v1992
    %v2039 = vpack.c.b16 %v1995, %v1993
    %v2040 = vpack.c.b16 %v1998, %v1996
    %v2041 = vpack.c.b16 %v1999, %v1997
    %v2042 = vpack.c.b16 %v2002, %v2000
    %v2043 = vpack.c.b16 %v2003, %v2001
    %v2044 = vpack.c.b16 %v2006, %v2004
    %v2045 = vpack.c.b16 %v2007, %v2005
    %v2046 = vpack.c.b16 %v2010, %v2008
    %v2047 = vpack.c.b16 %v2011, %v2009
    %v2048 = vpack.c.b16 %v2014, %v2012
    %v2049 = vpack.c.b16 %v2015, %v2013
    %v2050 = vpack.c.b16 %v2018, %v2016
    %v2051 = vpack.c.b16 %v2019, %v2017
    %v2052 = vpack.c.b16 %v2022, %v2020
    %v2053 = vpack.c.b16 %v2023, %v2021
    %v2054 = vpack.c.b16 %v2026, %v2024
    %v2055 = vpack.c.b16 %v2027, %v2025
    %v2056 = vpack.c.b16 %v2030, %v2028
    %v2057 = vpack.c.b16 %v2031, %v2029
    %v2058 = vpack.c.b16 %v2032, %v2032
    %v2059 = vpack.c.b16 %v2033, %v2033
    %v2085 = vsel %vm558, %v1958, 0
    %v2088 = vsel %vm208, %v2058, 0
    %v2091 = vsel %vm208, %v2059, 0
    %2093 = vmatpush.bf16.msra.mxu0 %v2048
    %2094 = vmatpush.bf16.msra.mxu0 %v2046
    %2095 = vmatpush.bf16.msra.mxu0 %v2044
    %2096 = vmatpush.bf16.msra.mxu0 %v2042
    %2097 = vmatpush.bf16.msra.mxu0 %v2040
    %2098 = vmatpush.bf16.msra.mxu0 %v2038
    %2099 = vmatpush.bf16.msra.mxu0 %v2036
    %2100 = vmatpush.bf16.msra.mxu0 %v2034
    %2101 = vmatmul.bf16.gmra.mxu0 %v1957
    %v2102 = vpop.f32.mrf.mxu0
    %v2103 = vadd.f32 0.0, %v2102
    %v2104 = vpop.f32.mrf.mxu0
    %2105 = vdwg.mxu0
    %2106 = vmatpush.bf16.msra.mxu0 0
    %2107 = vmatpush.bf16.msra.mxu0 0
    %2108 = vmatpush.bf16.msra.mxu0 0
    %2109 = vmatpush.bf16.msra.mxu0 %v2088
    %2110 = vmatpush.bf16.msra.mxu0 %v2056
    %2111 = vmatpush.bf16.msra.mxu0 %v2054
    %2112 = vmatpush.bf16.msra.mxu0 %v2052
    %2113 = vmatpush.bf16.msra.mxu0 %v2050
    %2114 = vmatmul.bf16.gmra.mxu0 %v2085
    %v2115 = vpop.f32.mrf.mxu0
    %v2116 = vadd.f32 %v2103, %v2115
    %v2117 = vpop.f32.mrf.mxu0
    %2118 = vdwg.mxu0
    %2119 = vmatpush.bf16.msra.mxu0 %v2049
    %2120 = vmatpush.bf16.msra.mxu0 %v2047
    %2121 = vmatpush.bf16.msra.mxu0 %v2045
    %2122 = vmatpush.bf16.msra.mxu0 %v2043
    %2123 = vmatpush.bf16.msra.mxu0 %v2041
    %2124 = vmatpush.bf16.msra.mxu0 %v2039
    %2125 = vmatpush.bf16.msra.mxu0 %v2037
    %2126 = vmatpush.bf16.msra.mxu0 %v2035
    %2127 = vmatmul.bf16.gmra.mxu0 %v1957
    %v2128 = vpop.f32.mrf.mxu0
    %v2129 = vadd.f32 0.0, %v2128
    %v2130 = vpop.f32.mrf.mxu0
    %2131 = vdwg.mxu0
    %2132 = vmatpush.bf16.msra.mxu0 0
    %2133 = vmatpush.bf16.msra.mxu0 0
    %2134 = vmatpush.bf16.msra.mxu0 0
    %2135 = vmatpush.bf16.msra.mxu0 %v2091
    %2136 = vmatpush.bf16.msra.mxu0 %v2057
    %2137 = vmatpush.bf16.msra.mxu0 %v2055
    %2138 = vmatpush.bf16.msra.mxu0 %v2053
    %2139 = vmatpush.bf16.msra.mxu0 %v2051
    %2140 = vmatmul.bf16.gmra.mxu0 %v2085
    %v2141 = vpop.f32.mrf.mxu0
    %v2142 = vadd.f32 %v2129, %v2141
    %v2143 = vpop.f32.mrf.mxu0
    %2144 = vdwg.mxu0
    %v2145 = vadd.f32 %v1927, %v2116
    %v2146 = vadd.f32 %v1928, %v2142
    %v2147 = vmax.f32 %v314, 0.0
    %v2148 = vmax.f32 %v343, 0.0
    %s2149 = scalar_lea.vmem [#allocation4], 800
    %v2150 = vld [vmem:[%s2149] sm:$0xff]
    %v2151 = vld [vmem:[%s2149 + $0x8] sm:$0xff]
    %v2152 = vld [vmem:[%s2149 + $0x10] sm:$0xff]
    %v2153 = vld [vmem:[%s2149 + $0x18] sm:$0xff]
    %v2154 = vld [vmem:[%s2149 + $0x20] sm:$0xff]
    %v2155 = vld [vmem:[%s2149 + $0x28] sm:$0xff]
    %v2156 = vld [vmem:[%s2149 + $0x30] sm:$0xff]
    %v2157 = vld [vmem:[%s2149 + $0x38] sm:$0xff]
    %v2158 = vld [vmem:[%s2149 + $0x40] sm:$0xff]
    %v2159 = vld [vmem:[%s2149 + $0x48] sm:$0xff]
    %v2160 = vld [vmem:[%s2149 + $0x50] sm:$0xff]
    %v2161 = vld [vmem:[%s2149 + $0x58] sm:$0xff]
    %v2162 = vld [vmem:[%s2149 + $0x60] sm:$0xff]
    %v2163 = vld [vmem:[%s2149 + $0x68] sm:$0xff]
    %v2164 = vld [vmem:[%s2149 + $0x70] sm:$0xff]
    %v2165 = vld [vmem:[%s2149 + $0x78] sm:$0xff]
    %v2166 = vld [vmem:[%s2149 + $0x80] sm:$0xff]
    %v2167 = vld [vmem:[%s2149 + $0x88] sm:$0xff]
    %v2168 = vld [vmem:[%s2149 + $0x90] sm:$0xff]
    %v2169 = vld [vmem:[%s2149 + $0x98] sm:$0xff]
    %v2170 = vld [vmem:[%s2149 + $0xa0] sm:$0xff]
    %v2171 = vld [vmem:[%s2149 + $0xa8] sm:$0xff]
    %v2172 = vld [vmem:[%s2149 + $0xb0] sm:$0xff]
    %v2173 = vld [vmem:[%s2149 + $0xb8] sm:$0xff]
    %v2174 = vld [vmem:[%s2149 + $0xc0] sm:$0xff]
    %v2175 = vpack.c.bf16 %v2147, %v2147
    %v2176 = vpack.c.bf16 %v2148, %v2148
    %v2202 = vunpack.c.l.b16 %v2150
    %v2203 = vunpack.c.h.b16 %v2150
    %v2204 = vunpack.c.l.b16 %v2151
    %v2205 = vunpack.c.h.b16 %v2151
    %v2206 = vunpack.c.l.b16 %v2152
    %v2207 = vunpack.c.h.b16 %v2152
    %v2208 = vunpack.c.l.b16 %v2153
    %v2209 = vunpack.c.h.b16 %v2153
    %v2210 = vunpack.c.l.b16 %v2154
    %v2211 = vunpack.c.h.b16 %v2154
    %v2212 = vunpack.c.l.b16 %v2155
    %v2213 = vunpack.c.h.b16 %v2155
    %v2214 = vunpack.c.l.b16 %v2156
    %v2215 = vunpack.c.h.b16 %v2156
    %v2216 = vunpack.c.l.b16 %v2157
    %v2217 = vunpack.c.h.b16 %v2157
    %v2218 = vunpack.c.l.b16 %v2158
    %v2219 = vunpack.c.h.b16 %v2158
    %v2220 = vunpack.c.l.b16 %v2159
    %v2221 = vunpack.c.h.b16 %v2159
    %v2222 = vunpack.c.l.b16 %v2160
    %v2223 = vunpack.c.h.b16 %v2160
    %v2224 = vunpack.c.l.b16 %v2161
    %v2225 = vunpack.c.h.b16 %v2161
    %v2226 = vunpack.c.l.b16 %v2162
    %v2227 = vunpack.c.h.b16 %v2162
    %v2228 = vunpack.c.l.b16 %v2163
    %v2229 = vunpack.c.h.b16 %v2163
    %v2230 = vunpack.c.l.b16 %v2164
    %v2231 = vunpack.c.h.b16 %v2164
    %v2232 = vunpack.c.l.b16 %v2165
    %v2233 = vunpack.c.h.b16 %v2165
    %v2234 = vunpack.c.l.b16 %v2166
    %v2235 = vunpack.c.h.b16 %v2166
    %v2236 = vunpack.c.l.b16 %v2167
    %v2237 = vunpack.c.h.b16 %v2167
    %v2238 = vunpack.c.l.b16 %v2168
    %v2239 = vunpack.c.h.b16 %v2168
    %v2240 = vunpack.c.l.b16 %v2169
    %v2241 = vunpack.c.h.b16 %v2169
    %v2242 = vunpack.c.l.b16 %v2170
    %v2243 = vunpack.c.h.b16 %v2170
    %v2244 = vunpack.c.l.b16 %v2171
    %v2245 = vunpack.c.h.b16 %v2171
    %v2246 = vunpack.c.l.b16 %v2172
    %v2247 = vunpack.c.h.b16 %v2172
    %v2248 = vunpack.c.l.b16 %v2173
    %v2249 = vunpack.c.h.b16 %v2173
    %v2250 = vunpack.c.l.b16 %v2174
    %v2251 = vunpack.c.h.b16 %v2174
    %v2252 = vpack.c.b16 %v2204, %v2202
    %v2253 = vpack.c.b16 %v2205, %v2203
    %v2254 = vpack.c.b16 %v2208, %v2206
    %v2255 = vpack.c.b16 %v2209, %v2207
    %v2256 = vpack.c.b16 %v2212, %v2210
    %v2257 = vpack.c.b16 %v2213, %v2211
    %v2258 = vpack.c.b16 %v2216, %v2214
    %v2259 = vpack.c.b16 %v2217, %v2215
    %v2260 = vpack.c.b16 %v2220, %v2218
    %v2261 = vpack.c.b16 %v2221, %v2219
    %v2262 = vpack.c.b16 %v2224, %v2222
    %v2263 = vpack.c.b16 %v2225, %v2223
    %v2264 = vpack.c.b16 %v2228, %v2226
    %v2265 = vpack.c.b16 %v2229, %v2227
    %v2266 = vpack.c.b16 %v2232, %v2230
    %v2267 = vpack.c.b16 %v2233, %v2231
    %v2268 = vpack.c.b16 %v2236, %v2234
    %v2269 = vpack.c.b16 %v2237, %v2235
    %v2270 = vpack.c.b16 %v2240, %v2238
    %v2271 = vpack.c.b16 %v2241, %v2239
    %v2272 = vpack.c.b16 %v2244, %v2242
    %v2273 = vpack.c.b16 %v2245, %v2243
    %v2274 = vpack.c.b16 %v2248, %v2246
    %v2275 = vpack.c.b16 %v2249, %v2247
    %v2276 = vpack.c.b16 %v2250, %v2250
    %v2277 = vpack.c.b16 %v2251, %v2251
    %v2303 = vsel %vm558, %v2176, 0
    %v2306 = vsel %vm208, %v2276, 0
    %v2309 = vsel %vm208, %v2277, 0
    %2311 = vmatpush.bf16.msra.mxu0 %v2266
    %2312 = vmatpush.bf16.msra.mxu0 %v2264
    %2313 = vmatpush.bf16.msra.mxu0 %v2262
    %2314 = vmatpush.bf16.msra.mxu0 %v2260
    %2315 = vmatpush.bf16.msra.mxu0 %v2258
    %2316 = vmatpush.bf16.msra.mxu0 %v2256
    %2317 = vmatpush.bf16.msra.mxu0 %v2254
    %2318 = vmatpush.bf16.msra.mxu0 %v2252
    %2319 = vmatmul.bf16.gmra.mxu0 %v2175
    %v2320 = vpop.f32.mrf.mxu0
    %v2321 = vadd.f32 0.0, %v2320
    %v2322 = vpop.f32.mrf.mxu0
    %2323 = vdwg.mxu0
    %2324 = vmatpush.bf16.msra.mxu0 0
    %2325 = vmatpush.bf16.msra.mxu0 0
    %2326 = vmatpush.bf16.msra.mxu0 0
    %2327 = vmatpush.bf16.msra.mxu0 %v2306
    %2328 = vmatpush.bf16.msra.mxu0 %v2274
    %2329 = vmatpush.bf16.msra.mxu0 %v2272
    %2330 = vmatpush.bf16.msra.mxu0 %v2270
    %2331 = vmatpush.bf16.msra.mxu0 %v2268
    %2332 = vmatmul.bf16.gmra.mxu0 %v2303
    %v2333 = vpop.f32.mrf.mxu0
    %v2334 = vadd.f32 %v2321, %v2333
    %v2335 = vpop.f32.mrf.mxu0
    %2336 = vdwg.mxu0
    %2337 = vmatpush.bf16.msra.mxu0 %v2267
    %2338 = vmatpush.bf16.msra.mxu0 %v2265
    %2339 = vmatpush.bf16.msra.mxu0 %v2263
    %2340 = vmatpush.bf16.msra.mxu0 %v2261
    %2341 = vmatpush.bf16.msra.mxu0 %v2259
    %2342 = vmatpush.bf16.msra.mxu0 %v2257
    %2343 = vmatpush.bf16.msra.mxu0 %v2255
    %2344 = vmatpush.bf16.msra.mxu0 %v2253
    %2345 = vmatmul.bf16.gmra.mxu0 %v2175
    %v2346 = vpop.f32.mrf.mxu0
    %v2347 = vadd.f32 0.0, %v2346
    %v2348 = vpop.f32.mrf.mxu0
    %2349 = vdwg.mxu0
    %2350 = vmatpush.bf16.msra.mxu0 0
    %2351 = vmatpush.bf16.msra.mxu0 0
    %2352 = vmatpush.bf16.msra.mxu0 0
    %2353 = vmatpush.bf16.msra.mxu0 %v2309
    %2354 = vmatpush.bf16.msra.mxu0 %v2275
    %2355 = vmatpush.bf16.msra.mxu0 %v2273
    %2356 = vmatpush.bf16.msra.mxu0 %v2271
    %2357 = vmatpush.bf16.msra.mxu0 %v2269
    %2358 = vmatmul.bf16.gmra.mxu0 %v2303
    %v2359 = vpop.f32.mrf.mxu0
    %v2360 = vadd.f32 %v2347, %v2359
    %v2361 = vpop.f32.mrf.mxu0
    %2362 = vdwg.mxu0
    %v2363 = vadd.f32 %v2145, %v2334
    %v2364 = vadd.f32 %v2146, %v2360
    %v2365 = vmax.f32 %v316, 0.0
    %v2366 = vmax.f32 %v345, 0.0
    %s2367 = scalar_lea.vmem [#allocation4], 1000
    %v2368 = vld [vmem:[%s2367] sm:$0xff]
    %v2369 = vld [vmem:[%s2367 + $0x8] sm:$0xff]
    %v2370 = vld [vmem:[%s2367 + $0x10] sm:$0xff]
    %v2371 = vld [vmem:[%s2367 + $0x18] sm:$0xff]
    %v2372 = vld [vmem:[%s2367 + $0x20] sm:$0xff]
    %v2373 = vld [vmem:[%s2367 + $0x28] sm:$0xff]
    %v2374 = vld [vmem:[%s2367 + $0x30] sm:$0xff]
    %v2375 = vld [vmem:[%s2367 + $0x38] sm:$0xff]
    %v2376 = vld [vmem:[%s2367 + $0x40] sm:$0xff]
    %v2377 = vld [vmem:[%s2367 + $0x48] sm:$0xff]
    %v2378 = vld [vmem:[%s2367 + $0x50] sm:$0xff]
    %v2379 = vld [vmem:[%s2367 + $0x58] sm:$0xff]
    %v2380 = vld [vmem:[%s2367 + $0x60] sm:$0xff]
    %v2381 = vld [vmem:[%s2367 + $0x68] sm:$0xff]
    %v2382 = vld [vmem:[%s2367 + $0x70] sm:$0xff]
    %v2383 = vld [vmem:[%s2367 + $0x78] sm:$0xff]
    %v2384 = vld [vmem:[%s2367 + $0x80] sm:$0xff]
    %v2385 = vld [vmem:[%s2367 + $0x88] sm:$0xff]
    %v2386 = vld [vmem:[%s2367 + $0x90] sm:$0xff]
    %v2387 = vld [vmem:[%s2367 + $0x98] sm:$0xff]
    %v2388 = vld [vmem:[%s2367 + $0xa0] sm:$0xff]
    %v2389 = vld [vmem:[%s2367 + $0xa8] sm:$0xff]
    %v2390 = vld [vmem:[%s2367 + $0xb0] sm:$0xff]
    %v2391 = vld [vmem:[%s2367 + $0xb8] sm:$0xff]
    %v2392 = vld [vmem:[%s2367 + $0xc0] sm:$0xff]
    %v2393 = vpack.c.bf16 %v2365, %v2365
    %v2394 = vpack.c.bf16 %v2366, %v2366
    %v2420 = vunpack.c.l.b16 %v2368
    %v2421 = vunpack.c.h.b16 %v2368
    %v2422 = vunpack.c.l.b16 %v2369
    %v2423 = vunpack.c.h.b16 %v2369
    %v2424 = vunpack.c.l.b16 %v2370
    %v2425 = vunpack.c.h.b16 %v2370
    %v2426 = vunpack.c.l.b16 %v2371
    %v2427 = vunpack.c.h.b16 %v2371
    %v2428 = vunpack.c.l.b16 %v2372
    %v2429 = vunpack.c.h.b16 %v2372
    %v2430 = vunpack.c.l.b16 %v2373
    %v2431 = vunpack.c.h.b16 %v2373
    %v2432 = vunpack.c.l.b16 %v2374
    %v2433 = vunpack.c.h.b16 %v2374
    %v2434 = vunpack.c.l.b16 %v2375
    %v2435 = vunpack.c.h.b16 %v2375
    %v2436 = vunpack.c.l.b16 %v2376
    %v2437 = vunpack.c.h.b16 %v2376
    %v2438 = vunpack.c.l.b16 %v2377
    %v2439 = vunpack.c.h.b16 %v2377
    %v2440 = vunpack.c.l.b16 %v2378
    %v2441 = vunpack.c.h.b16 %v2378
    %v2442 = vunpack.c.l.b16 %v2379
    %v2443 = vunpack.c.h.b16 %v2379
    %v2444 = vunpack.c.l.b16 %v2380
    %v2445 = vunpack.c.h.b16 %v2380
    %v2446 = vunpack.c.l.b16 %v2381
    %v2447 = vunpack.c.h.b16 %v2381
    %v2448 = vunpack.c.l.b16 %v2382
    %v2449 = vunpack.c.h.b16 %v2382
    %v2450 = vunpack.c.l.b16 %v2383
    %v2451 = vunpack.c.h.b16 %v2383
    %v2452 = vunpack.c.l.b16 %v2384
    %v2453 = vunpack.c.h.b16 %v2384
    %v2454 = vunpack.c.l.b16 %v2385
    %v2455 = vunpack.c.h.b16 %v2385
    %v2456 = vunpack.c.l.b16 %v2386
    %v2457 = vunpack.c.h.b16 %v2386
    %v2458 = vunpack.c.l.b16 %v2387
    %v2459 = vunpack.c.h.b16 %v2387
    %v2460 = vunpack.c.l.b16 %v2388
    %v2461 = vunpack.c.h.b16 %v2388
    %v2462 = vunpack.c.l.b16 %v2389
    %v2463 = vunpack.c.h.b16 %v2389
    %v2464 = vunpack.c.l.b16 %v2390
    %v2465 = vunpack.c.h.b16 %v2390
    %v2466 = vunpack.c.l.b16 %v2391
    %v2467 = vunpack.c.h.b16 %v2391
    %v2468 = vunpack.c.l.b16 %v2392
    %v2469 = vunpack.c.h.b16 %v2392
    %v2470 = vpack.c.b16 %v2422, %v2420
    %v2471 = vpack.c.b16 %v2423, %v2421
    %v2472 = vpack.c.b16 %v2426, %v2424
    %v2473 = vpack.c.b16 %v2427, %v2425
    %v2474 = vpack.c.b16 %v2430, %v2428
    %v2475 = vpack.c.b16 %v2431, %v2429
    %v2476 = vpack.c.b16 %v2434, %v2432
    %v2477 = vpack.c.b16 %v2435, %v2433
    %v2478 = vpack.c.b16 %v2438, %v2436
    %v2479 = vpack.c.b16 %v2439, %v2437
    %v2480 = vpack.c.b16 %v2442, %v2440
    %v2481 = vpack.c.b16 %v2443, %v2441
    %v2482 = vpack.c.b16 %v2446, %v2444
    %v2483 = vpack.c.b16 %v2447, %v2445
    %v2484 = vpack.c.b16 %v2450, %v2448
    %v2485 = vpack.c.b16 %v2451, %v2449
    %v2486 = vpack.c.b16 %v2454, %v2452
    %v2487 = vpack.c.b16 %v2455, %v2453
    %v2488 = vpack.c.b16 %v2458, %v2456
    %v2489 = vpack.c.b16 %v2459, %v2457
    %v2490 = vpack.c.b16 %v2462, %v2460
    %v2491 = vpack.c.b16 %v2463, %v2461
    %v2492 = vpack.c.b16 %v2466, %v2464
    %v2493 = vpack.c.b16 %v2467, %v2465
    %v2494 = vpack.c.b16 %v2468, %v2468
    %v2495 = vpack.c.b16 %v2469, %v2469
    %v2521 = vsel %vm558, %v2394, 0
    %v2524 = vsel %vm208, %v2494, 0
    %v2527 = vsel %vm208, %v2495, 0
    %2529 = vmatpush.bf16.msra.mxu0 %v2484
    %2530 = vmatpush.bf16.msra.mxu0 %v2482
    %2531 = vmatpush.bf16.msra.mxu0 %v2480
    %2532 = vmatpush.bf16.msra.mxu0 %v2478
    %2533 = vmatpush.bf16.msra.mxu0 %v2476
    %2534 = vmatpush.bf16.msra.mxu0 %v2474
    %2535 = vmatpush.bf16.msra.mxu0 %v2472
    %2536 = vmatpush.bf16.msra.mxu0 %v2470
    %2537 = vmatmul.bf16.gmra.mxu0 %v2393
    %v2538 = vpop.f32.mrf.mxu0
    %v2539 = vadd.f32 0.0, %v2538
    %v2540 = vpop.f32.mrf.mxu0
    %2541 = vdwg.mxu0
    %2542 = vmatpush.bf16.msra.mxu0 0
    %2543 = vmatpush.bf16.msra.mxu0 0
    %2544 = vmatpush.bf16.msra.mxu0 0
    %2545 = vmatpush.bf16.msra.mxu0 %v2524
    %2546 = vmatpush.bf16.msra.mxu0 %v2492
    %2547 = vmatpush.bf16.msra.mxu0 %v2490
    %2548 = vmatpush.bf16.msra.mxu0 %v2488
    %2549 = vmatpush.bf16.msra.mxu0 %v2486
    %2550 = vmatmul.bf16.gmra.mxu0 %v2521
    %v2551 = vpop.f32.mrf.mxu0
    %v2552 = vadd.f32 %v2539, %v2551
    %v2553 = vpop.f32.mrf.mxu0
    %2554 = vdwg.mxu0
    %2555 = vmatpush.bf16.msra.mxu0 %v2485
    %2556 = vmatpush.bf16.msra.mxu0 %v2483
    %2557 = vmatpush.bf16.msra.mxu0 %v2481
    %2558 = vmatpush.bf16.msra.mxu0 %v2479
    %2559 = vmatpush.bf16.msra.mxu0 %v2477
    %2560 = vmatpush.bf16.msra.mxu0 %v2475
    %2561 = vmatpush.bf16.msra.mxu0 %v2473
    %2562 = vmatpush.bf16.msra.mxu0 %v2471
    %2563 = vmatmul.bf16.gmra.mxu0 %v2393
    %v2564 = vpop.f32.mrf.mxu0
    %v2565 = vadd.f32 0.0, %v2564
    %v2566 = vpop.f32.mrf.mxu0
    %2567 = vdwg.mxu0
    %2568 = vmatpush.bf16.msra.mxu0 0
    %2569 = vmatpush.bf16.msra.mxu0 0
    %2570 = vmatpush.bf16.msra.mxu0 0
    %2571 = vmatpush.bf16.msra.mxu0 %v2527
    %2572 = vmatpush.bf16.msra.mxu0 %v2493
    %2573 = vmatpush.bf16.msra.mxu0 %v2491
    %2574 = vmatpush.bf16.msra.mxu0 %v2489
    %2575 = vmatpush.bf16.msra.mxu0 %v2487
    %2576 = vmatmul.bf16.gmra.mxu0 %v2521
    %v2577 = vpop.f32.mrf.mxu0
    %v2578 = vadd.f32 %v2565, %v2577
    %v2579 = vpop.f32.mrf.mxu0
    %2580 = vdwg.mxu0
    %v2581 = vadd.f32 %v2363, %v2552
    %v2582 = vadd.f32 %v2364, %v2578
    %v2583 = vmax.f32 %v319, 0.0
    %v2584 = vmax.f32 %v348, 0.0
    %s2585 = scalar_lea.vmem [#allocation4], 1200
    %v2586 = vld [vmem:[%s2585] sm:$0xff]
    %v2587 = vld [vmem:[%s2585 + $0x8] sm:$0xff]
    %v2588 = vld [vmem:[%s2585 + $0x10] sm:$0xff]
    %v2589 = vld [vmem:[%s2585 + $0x18] sm:$0xff]
    %v2590 = vld [vmem:[%s2585 + $0x20] sm:$0xff]
    %v2591 = vld [vmem:[%s2585 + $0x28] sm:$0xff]
    %v2592 = vld [vmem:[%s2585 + $0x30] sm:$0xff]
    %v2593 = vld [vmem:[%s2585 + $0x38] sm:$0xff]
    %v2594 = vld [vmem:[%s2585 + $0x40] sm:$0xff]
    %v2595 = vld [vmem:[%s2585 + $0x48] sm:$0xff]
    %v2596 = vld [vmem:[%s2585 + $0x50] sm:$0xff]
    %v2597 = vld [vmem:[%s2585 + $0x58] sm:$0xff]
    %v2598 = vld [vmem:[%s2585 + $0x60] sm:$0xff]
    %v2599 = vld [vmem:[%s2585 + $0x68] sm:$0xff]
    %v2600 = vld [vmem:[%s2585 + $0x70] sm:$0xff]
    %v2601 = vld [vmem:[%s2585 + $0x78] sm:$0xff]
    %v2602 = vld [vmem:[%s2585 + $0x80] sm:$0xff]
    %v2603 = vld [vmem:[%s2585 + $0x88] sm:$0xff]
    %v2604 = vld [vmem:[%s2585 + $0x90] sm:$0xff]
    %v2605 = vld [vmem:[%s2585 + $0x98] sm:$0xff]
    %v2606 = vld [vmem:[%s2585 + $0xa0] sm:$0xff]
    %v2607 = vld [vmem:[%s2585 + $0xa8] sm:$0xff]
    %v2608 = vld [vmem:[%s2585 + $0xb0] sm:$0xff]
    %v2609 = vld [vmem:[%s2585 + $0xb8] sm:$0xff]
    %v2610 = vld [vmem:[%s2585 + $0xc0] sm:$0xff]
    %v2611 = vpack.c.bf16 %v2583, %v2583
    %v2612 = vpack.c.bf16 %v2584, %v2584
    %v2638 = vunpack.c.l.b16 %v2586
    %v2639 = vunpack.c.h.b16 %v2586
    %v2640 = vunpack.c.l.b16 %v2587
    %v2641 = vunpack.c.h.b16 %v2587
    %v2642 = vunpack.c.l.b16 %v2588
    %v2643 = vunpack.c.h.b16 %v2588
    %v2644 = vunpack.c.l.b16 %v2589
    %v2645 = vunpack.c.h.b16 %v2589
    %v2646 = vunpack.c.l.b16 %v2590
    %v2647 = vunpack.c.h.b16 %v2590
    %v2648 = vunpack.c.l.b16 %v2591
    %v2649 = vunpack.c.h.b16 %v2591
    %v2650 = vunpack.c.l.b16 %v2592
    %v2651 = vunpack.c.h.b16 %v2592
    %v2652 = vunpack.c.l.b16 %v2593
    %v2653 = vunpack.c.h.b16 %v2593
    %v2654 = vunpack.c.l.b16 %v2594
    %v2655 = vunpack.c.h.b16 %v2594
    %v2656 = vunpack.c.l.b16 %v2595
    %v2657 = vunpack.c.h.b16 %v2595
    %v2658 = vunpack.c.l.b16 %v2596
    %v2659 = vunpack.c.h.b16 %v2596
    %v2660 = vunpack.c.l.b16 %v2597
    %v2661 = vunpack.c.h.b16 %v2597
    %v2662 = vunpack.c.l.b16 %v2598
    %v2663 = vunpack.c.h.b16 %v2598
    %v2664 = vunpack.c.l.b16 %v2599
    %v2665 = vunpack.c.h.b16 %v2599
    %v2666 = vunpack.c.l.b16 %v2600
    %v2667 = vunpack.c.h.b16 %v2600
    %v2668 = vunpack.c.l.b16 %v2601
    %v2669 = vunpack.c.h.b16 %v2601
    %v2670 = vunpack.c.l.b16 %v2602
    %v2671 = vunpack.c.h.b16 %v2602
    %v2672 = vunpack.c.l.b16 %v2603
    %v2673 = vunpack.c.h.b16 %v2603
    %v2674 = vunpack.c.l.b16 %v2604
    %v2675 = vunpack.c.h.b16 %v2604
    %v2676 = vunpack.c.l.b16 %v2605
    %v2677 = vunpack.c.h.b16 %v2605
    %v2678 = vunpack.c.l.b16 %v2606
    %v2679 = vunpack.c.h.b16 %v2606
    %v2680 = vunpack.c.l.b16 %v2607
    %v2681 = vunpack.c.h.b16 %v2607
    %v2682 = vunpack.c.l.b16 %v2608
    %v2683 = vunpack.c.h.b16 %v2608
    %v2684 = vunpack.c.l.b16 %v2609
    %v2685 = vunpack.c.h.b16 %v2609
    %v2686 = vunpack.c.l.b16 %v2610
    %v2687 = vunpack.c.h.b16 %v2610
    %v2688 = vpack.c.b16 %v2640, %v2638
    %v2689 = vpack.c.b16 %v2641, %v2639
    %v2690 = vpack.c.b16 %v2644, %v2642
    %v2691 = vpack.c.b16 %v2645, %v2643
    %v2692 = vpack.c.b16 %v2648, %v2646
    %v2693 = vpack.c.b16 %v2649, %v2647
    %v2694 = vpack.c.b16 %v2652, %v2650
    %v2695 = vpack.c.b16 %v2653, %v2651
    %v2696 = vpack.c.b16 %v2656, %v2654
    %v2697 = vpack.c.b16 %v2657, %v2655
    %v2698 = vpack.c.b16 %v2660, %v2658
    %v2699 = vpack.c.b16 %v2661, %v2659
    %v2700 = vpack.c.b16 %v2664, %v2662
    %v2701 = vpack.c.b16 %v2665, %v2663
    %v2702 = vpack.c.b16 %v2668, %v2666
    %v2703 = vpack.c.b16 %v2669, %v2667
    %v2704 = vpack.c.b16 %v2672, %v2670
    %v2705 = vpack.c.b16 %v2673, %v2671
    %v2706 = vpack.c.b16 %v2676, %v2674
    %v2707 = vpack.c.b16 %v2677, %v2675
    %v2708 = vpack.c.b16 %v2680, %v2678
    %v2709 = vpack.c.b16 %v2681, %v2679
    %v2710 = vpack.c.b16 %v2684, %v2682
    %v2711 = vpack.c.b16 %v2685, %v2683
    %v2712 = vpack.c.b16 %v2686, %v2686
    %v2713 = vpack.c.b16 %v2687, %v2687
    %v2739 = vsel %vm558, %v2612, 0
    %v2742 = vsel %vm208, %v2712, 0
    %v2745 = vsel %vm208, %v2713, 0
    %2747 = vmatpush.bf16.msra.mxu0 %v2702
    %2748 = vmatpush.bf16.msra.mxu0 %v2700
    %2749 = vmatpush.bf16.msra.mxu0 %v2698
    %2750 = vmatpush.bf16.msra.mxu0 %v2696
    %2751 = vmatpush.bf16.msra.mxu0 %v2694
    %2752 = vmatpush.bf16.msra.mxu0 %v2692
    %2753 = vmatpush.bf16.msra.mxu0 %v2690
    %2754 = vmatpush.bf16.msra.mxu0 %v2688
    %2755 = vmatmul.bf16.gmra.mxu0 %v2611
    %v2756 = vpop.f32.mrf.mxu0
    %v2757 = vadd.f32 0.0, %v2756
    %v2758 = vpop.f32.mrf.mxu0
    %2759 = vdwg.mxu0
    %2760 = vmatpush.bf16.msra.mxu0 0
    %2761 = vmatpush.bf16.msra.mxu0 0
    %2762 = vmatpush.bf16.msra.mxu0 0
    %2763 = vmatpush.bf16.msra.mxu0 %v2742
    %2764 = vmatpush.bf16.msra.mxu0 %v2710
    %2765 = vmatpush.bf16.msra.mxu0 %v2708
    %2766 = vmatpush.bf16.msra.mxu0 %v2706
    %2767 = vmatpush.bf16.msra.mxu0 %v2704
    %2768 = vmatmul.bf16.gmra.mxu0 %v2739
    %v2769 = vpop.f32.mrf.mxu0
    %v2770 = vadd.f32 %v2757, %v2769
    %v2771 = vpop.f32.mrf.mxu0
    %2772 = vdwg.mxu0
    %2773 = vmatpush.bf16.msra.mxu0 %v2703
    %2774 = vmatpush.bf16.msra.mxu0 %v2701
    %2775 = vmatpush.bf16.msra.mxu0 %v2699
    %2776 = vmatpush.bf16.msra.mxu0 %v2697
    %2777 = vmatpush.bf16.msra.mxu0 %v2695
    %2778 = vmatpush.bf16.msra.mxu0 %v2693
    %2779 = vmatpush.bf16.msra.mxu0 %v2691
    %2780 = vmatpush.bf16.msra.mxu0 %v2689
    %2781 = vmatmul.bf16.gmra.mxu0 %v2611
    %v2782 = vpop.f32.mrf.mxu0
    %v2783 = vadd.f32 0.0, %v2782
    %v2784 = vpop.f32.mrf.mxu0
    %2785 = vdwg.mxu0
    %2786 = vmatpush.bf16.msra.mxu0 0
    %2787 = vmatpush.bf16.msra.mxu0 0
    %2788 = vmatpush.bf16.msra.mxu0 0
    %2789 = vmatpush.bf16.msra.mxu0 %v2745
    %2790 = vmatpush.bf16.msra.mxu0 %v2711
    %2791 = vmatpush.bf16.msra.mxu0 %v2709
    %2792 = vmatpush.bf16.msra.mxu0 %v2707
    %2793 = vmatpush.bf16.msra.mxu0 %v2705
    %2794 = vmatmul.bf16.gmra.mxu0 %v2739
    %v2795 = vpop.f32.mrf.mxu0
    %v2796 = vadd.f32 %v2783, %v2795
    %v2797 = vpop.f32.mrf.mxu0
    %2798 = vdwg.mxu0
    %v2799 = vadd.f32 %v2581, %v2770
    %v2800 = vadd.f32 %v2582, %v2796
    %v2801 = vmax.f32 %v321, 0.0
    %v2802 = vmax.f32 %v350, 0.0
    %s2803 = scalar_lea.vmem [#allocation4], 1400
    %v2804 = vld [vmem:[%s2803] sm:$0xff]
    %v2805 = vld [vmem:[%s2803 + $0x8] sm:$0xff]
    %v2806 = vld [vmem:[%s2803 + $0x10] sm:$0xff]
    %v2807 = vld [vmem:[%s2803 + $0x18] sm:$0xff]
    %v2808 = vld [vmem:[%s2803 + $0x20] sm:$0xff]
    %v2809 = vld [vmem:[%s2803 + $0x28] sm:$0xff]
    %v2810 = vld [vmem:[%s2803 + $0x30] sm:$0xff]
    %v2811 = vld [vmem:[%s2803 + $0x38] sm:$0xff]
    %v2812 = vld [vmem:[%s2803 + $0x40] sm:$0xff]
    %v2813 = vld [vmem:[%s2803 + $0x48] sm:$0xff]
    %v2814 = vld [vmem:[%s2803 + $0x50] sm:$0xff]
    %v2815 = vld [vmem:[%s2803 + $0x58] sm:$0xff]
    %v2816 = vld [vmem:[%s2803 + $0x60] sm:$0xff]
    %v2817 = vld [vmem:[%s2803 + $0x68] sm:$0xff]
    %v2818 = vld [vmem:[%s2803 + $0x70] sm:$0xff]
    %v2819 = vld [vmem:[%s2803 + $0x78] sm:$0xff]
    %v2820 = vld [vmem:[%s2803 + $0x80] sm:$0xff]
    %v2821 = vld [vmem:[%s2803 + $0x88] sm:$0xff]
    %v2822 = vld [vmem:[%s2803 + $0x90] sm:$0xff]
    %v2823 = vld [vmem:[%s2803 + $0x98] sm:$0xff]
    %v2824 = vld [vmem:[%s2803 + $0xa0] sm:$0xff]
    %v2825 = vld [vmem:[%s2803 + $0xa8] sm:$0xff]
    %v2826 = vld [vmem:[%s2803 + $0xb0] sm:$0xff]
    %v2827 = vld [vmem:[%s2803 + $0xb8] sm:$0xff]
    %v2828 = vld [vmem:[%s2803 + $0xc0] sm:$0xff]
    %v2829 = vpack.c.bf16 %v2801, %v2801
    %v2830 = vpack.c.bf16 %v2802, %v2802
    %v2856 = vunpack.c.l.b16 %v2804
    %v2857 = vunpack.c.h.b16 %v2804
    %v2858 = vunpack.c.l.b16 %v2805
    %v2859 = vunpack.c.h.b16 %v2805
    %v2860 = vunpack.c.l.b16 %v2806
    %v2861 = vunpack.c.h.b16 %v2806
    %v2862 = vunpack.c.l.b16 %v2807
    %v2863 = vunpack.c.h.b16 %v2807
    %v2864 = vunpack.c.l.b16 %v2808
    %v2865 = vunpack.c.h.b16 %v2808
    %v2866 = vunpack.c.l.b16 %v2809
    %v2867 = vunpack.c.h.b16 %v2809
    %v2868 = vunpack.c.l.b16 %v2810
    %v2869 = vunpack.c.h.b16 %v2810
    %v2870 = vunpack.c.l.b16 %v2811
    %v2871 = vunpack.c.h.b16 %v2811
    %v2872 = vunpack.c.l.b16 %v2812
    %v2873 = vunpack.c.h.b16 %v2812
    %v2874 = vunpack.c.l.b16 %v2813
    %v2875 = vunpack.c.h.b16 %v2813
    %v2876 = vunpack.c.l.b16 %v2814
    %v2877 = vunpack.c.h.b16 %v2814
    %v2878 = vunpack.c.l.b16 %v2815
    %v2879 = vunpack.c.h.b16 %v2815
    %v2880 = vunpack.c.l.b16 %v2816
    %v2881 = vunpack.c.h.b16 %v2816
    %v2882 = vunpack.c.l.b16 %v2817
    %v2883 = vunpack.c.h.b16 %v2817
    %v2884 = vunpack.c.l.b16 %v2818
    %v2885 = vunpack.c.h.b16 %v2818
    %v2886 = vunpack.c.l.b16 %v2819
    %v2887 = vunpack.c.h.b16 %v2819
    %v2888 = vunpack.c.l.b16 %v2820
    %v2889 = vunpack.c.h.b16 %v2820
    %v2890 = vunpack.c.l.b16 %v2821
    %v2891 = vunpack.c.h.b16 %v2821
    %v2892 = vunpack.c.l.b16 %v2822
    %v2893 = vunpack.c.h.b16 %v2822
    %v2894 = vunpack.c.l.b16 %v2823
    %v2895 = vunpack.c.h.b16 %v2823
    %v2896 = vunpack.c.l.b16 %v2824
    %v2897 = vunpack.c.h.b16 %v2824
    %v2898 = vunpack.c.l.b16 %v2825
    %v2899 = vunpack.c.h.b16 %v2825
    %v2900 = vunpack.c.l.b16 %v2826
    %v2901 = vunpack.c.h.b16 %v2826
    %v2902 = vunpack.c.l.b16 %v2827
    %v2903 = vunpack.c.h.b16 %v2827
    %v2904 = vunpack.c.l.b16 %v2828
    %v2905 = vunpack.c.h.b16 %v2828
    %v2906 = vpack.c.b16 %v2858, %v2856
    %v2907 = vpack.c.b16 %v2859, %v2857
    %v2908 = vpack.c.b16 %v2862, %v2860
    %v2909 = vpack.c.b16 %v2863, %v2861
    %v2910 = vpack.c.b16 %v2866, %v2864
    %v2911 = vpack.c.b16 %v2867, %v2865
    %v2912 = vpack.c.b16 %v2870, %v2868
    %v2913 = vpack.c.b16 %v2871, %v2869
    %v2914 = vpack.c.b16 %v2874, %v2872
    %v2915 = vpack.c.b16 %v2875, %v2873
    %v2916 = vpack.c.b16 %v2878, %v2876
    %v2917 = vpack.c.b16 %v2879, %v2877
    %v2918 = vpack.c.b16 %v2882, %v2880
    %v2919 = vpack.c.b16 %v2883, %v2881
    %v2920 = vpack.c.b16 %v2886, %v2884
    %v2921 = vpack.c.b16 %v2887, %v2885
    %v2922 = vpack.c.b16 %v2890, %v2888
    %v2923 = vpack.c.b16 %v2891, %v2889
    %v2924 = vpack.c.b16 %v2894, %v2892
    %v2925 = vpack.c.b16 %v2895, %v2893
    %v2926 = vpack.c.b16 %v2898, %v2896
    %v2927 = vpack.c.b16 %v2899, %v2897
    %v2928 = vpack.c.b16 %v2902, %v2900
    %v2929 = vpack.c.b16 %v2903, %v2901
    %v2930 = vpack.c.b16 %v2904, %v2904
    %v2931 = vpack.c.b16 %v2905, %v2905
    %v2957 = vsel %vm558, %v2830, 0
    %v2960 = vsel %vm208, %v2930, 0
    %v2963 = vsel %vm208, %v2931, 0
    %2965 = vmatpush.bf16.msra.mxu0 %v2920
    %2966 = vmatpush.bf16.msra.mxu0 %v2918
    %2967 = vmatpush.bf16.msra.mxu0 %v2916
    %2968 = vmatpush.bf16.msra.mxu0 %v2914
    %2969 = vmatpush.bf16.msra.mxu0 %v2912
    %2970 = vmatpush.bf16.msra.mxu0 %v2910
    %2971 = vmatpush.bf16.msra.mxu0 %v2908
    %2972 = vmatpush.bf16.msra.mxu0 %v2906
    %2973 = vmatmul.bf16.gmra.mxu0 %v2829
    %v2974 = vpop.f32.mrf.mxu0
    %v2975 = vadd.f32 0.0, %v2974
    %v2976 = vpop.f32.mrf.mxu0
    %2977 = vdwg.mxu0
    %2978 = vmatpush.bf16.msra.mxu0 0
    %2979 = vmatpush.bf16.msra.mxu0 0
    %2980 = vmatpush.bf16.msra.mxu0 0
    %2981 = vmatpush.bf16.msra.mxu0 %v2960
    %2982 = vmatpush.bf16.msra.mxu0 %v2928
    %2983 = vmatpush.bf16.msra.mxu0 %v2926
    %2984 = vmatpush.bf16.msra.mxu0 %v2924
    %2985 = vmatpush.bf16.msra.mxu0 %v2922
    %2986 = vmatmul.bf16.gmra.mxu0 %v2957
    %v2987 = vpop.f32.mrf.mxu0
    %v2988 = vadd.f32 %v2975, %v2987
    %v2989 = vpop.f32.mrf.mxu0
    %2990 = vdwg.mxu0
    %2991 = vmatpush.bf16.msra.mxu0 %v2921
    %2992 = vmatpush.bf16.msra.mxu0 %v2919
    %2993 = vmatpush.bf16.msra.mxu0 %v2917
    %2994 = vmatpush.bf16.msra.mxu0 %v2915
    %2995 = vmatpush.bf16.msra.mxu0 %v2913
    %2996 = vmatpush.bf16.msra.mxu0 %v2911
    %2997 = vmatpush.bf16.msra.mxu0 %v2909
    %2998 = vmatpush.bf16.msra.mxu0 %v2907
    %2999 = vmatmul.bf16.gmra.mxu0 %v2829
    %v3000 = vpop.f32.mrf.mxu0
    %v3001 = vadd.f32 0.0, %v3000
    %v3002 = vpop.f32.mrf.mxu0
    %3003 = vdwg.mxu0
    %3004 = vmatpush.bf16.msra.mxu0 0
    %3005 = vmatpush.bf16.msra.mxu0 0
    %3006 = vmatpush.bf16.msra.mxu0 0
    %3007 = vmatpush.bf16.msra.mxu0 %v2963
    %3008 = vmatpush.bf16.msra.mxu0 %v2929
    %3009 = vmatpush.bf16.msra.mxu0 %v2927
    %3010 = vmatpush.bf16.msra.mxu0 %v2925
    %3011 = vmatpush.bf16.msra.mxu0 %v2923
    %3012 = vmatmul.bf16.gmra.mxu0 %v2957
    %v3013 = vpop.f32.mrf.mxu0
    %v3014 = vadd.f32 %v3001, %v3013
    %v3015 = vpop.f32.mrf.mxu0
    %3016 = vdwg.mxu0
    %v3017 = vadd.f32 %v2799, %v2988
    %v3018 = vadd.f32 %v2800, %v3014
    %v3019 = vmax.f32 %v3017, 0.0
    %v3020 = vmax.f32 %v3018, 0.0
    %v3021 = vld [vmem:[#allocation6] sm:$0xff]
    %v3022 = vld [vmem:[#allocation6 + $0x8] sm:$0xff]
    %v3023 = vld [vmem:[#allocation6 + $0x10] sm:$0xff]
    %v3024 = vld [vmem:[#allocation6 + $0x18] sm:$0xff]
    %v3025 = vld [vmem:[#allocation6 + $0x20] sm:$0xff]
    %v3026 = vld [vmem:[#allocation6 + $0x28] sm:$0xff]
    %v3027 = vld [vmem:[#allocation6 + $0x30] sm:$0xff]
    %v3028 = vld [vmem:[#allocation6 + $0x38] sm:$0xff]
    %v3029 = vld [vmem:[#allocation6 + $0x40] sm:$0xff]
    %v3030 = vld [vmem:[#allocation6 + $0x48] sm:$0xff]
    %v3031 = vld [vmem:[#allocation6 + $0x50] sm:$0xff]
    %v3032 = vld [vmem:[#allocation6 + $0x58] sm:$0xff]
    %v3033 = vld [vmem:[#allocation6 + $0x60] sm:$0xff]
    %v3034 = vld [vmem:[#allocation6 + $0x68] sm:$0xff]
    %v3035 = vld [vmem:[#allocation6 + $0x70] sm:$0xff]
    %v3036 = vld [vmem:[#allocation6 + $0x78] sm:$0xff]
    %v3037 = vld [vmem:[#allocation6 + $0x80] sm:$0xff]
    %v3038 = vld [vmem:[#allocation6 + $0x88] sm:$0xff]
    %v3039 = vld [vmem:[#allocation6 + $0x90] sm:$0xff]
    %v3040 = vld [vmem:[#allocation6 + $0x98] sm:$0xff]
    %v3041 = vld [vmem:[#allocation6 + $0xa0] sm:$0xff]
    %v3042 = vld [vmem:[#allocation6 + $0xa8] sm:$0xff]
    %v3043 = vld [vmem:[#allocation6 + $0xb0] sm:$0xff]
    %v3044 = vld [vmem:[#allocation6 + $0xb8] sm:$0xff]
    %v3045 = vld [vmem:[#allocation6 + $0xc0] sm:$0xff]
    %v3046 = vpack.c.bf16 %v3019, %v3019
    %v3047 = vpack.c.bf16 %v3020, %v3020
    %v3048 = vld [vmem:[%s13] sm:$0x3]
    %v3050 = vperm.slane %v3048, 0
    %v3051 = vperm.slane %v3048, 1
    %v3079 = vunpack.c.l.b16 %v3021
    %v3080 = vunpack.c.h.b16 %v3021
    %v3081 = vunpack.c.l.b16 %v3022
    %v3082 = vunpack.c.h.b16 %v3022
    %v3083 = vunpack.c.l.b16 %v3023
    %v3084 = vunpack.c.h.b16 %v3023
    %v3085 = vunpack.c.l.b16 %v3024
    %v3086 = vunpack.c.h.b16 %v3024
    %v3087 = vunpack.c.l.b16 %v3025
    %v3088 = vunpack.c.h.b16 %v3025
    %v3089 = vunpack.c.l.b16 %v3026
    %v3090 = vunpack.c.h.b16 %v3026
    %v3091 = vunpack.c.l.b16 %v3027
    %v3092 = vunpack.c.h.b16 %v3027
    %v3093 = vunpack.c.l.b16 %v3028
    %v3094 = vunpack.c.h.b16 %v3028
    %v3095 = vunpack.c.l.b16 %v3029
    %v3096 = vunpack.c.h.b16 %v3029
    %v3097 = vunpack.c.l.b16 %v3030
    %v3098 = vunpack.c.h.b16 %v3030
    %v3099 = vunpack.c.l.b16 %v3031
    %v3100 = vunpack.c.h.b16 %v3031
    %v3101 = vunpack.c.l.b16 %v3032
    %v3102 = vunpack.c.h.b16 %v3032
    %v3103 = vunpack.c.l.b16 %v3033
    %v3104 = vunpack.c.h.b16 %v3033
    %v3105 = vunpack.c.l.b16 %v3034
    %v3106 = vunpack.c.h.b16 %v3034
    %v3107 = vunpack.c.l.b16 %v3035
    %v3108 = vunpack.c.h.b16 %v3035
    %v3109 = vunpack.c.l.b16 %v3036
    %v3110 = vunpack.c.h.b16 %v3036
    %v3111 = vunpack.c.l.b16 %v3037
    %v3112 = vunpack.c.h.b16 %v3037
    %v3113 = vunpack.c.l.b16 %v3038
    %v3114 = vunpack.c.h.b16 %v3038
    %v3115 = vunpack.c.l.b16 %v3039
    %v3116 = vunpack.c.h.b16 %v3039
    %v3117 = vunpack.c.l.b16 %v3040
    %v3118 = vunpack.c.h.b16 %v3040
    %v3119 = vunpack.c.l.b16 %v3041
    %v3120 = vunpack.c.h.b16 %v3041
    %v3121 = vunpack.c.l.b16 %v3042
    %v3122 = vunpack.c.h.b16 %v3042
    %v3123 = vunpack.c.l.b16 %v3043
    %v3124 = vunpack.c.h.b16 %v3043
    %v3125 = vunpack.c.l.b16 %v3044
    %v3126 = vunpack.c.h.b16 %v3044
    %v3127 = vunpack.c.l.b16 %v3045
    %v3128 = vunpack.c.h.b16 %v3045
    %v3129 = vpack.c.b16 %v3081, %v3079
    %v3130 = vpack.c.b16 %v3082, %v3080
    %v3131 = vpack.c.b16 %v3085, %v3083
    %v3132 = vpack.c.b16 %v3086, %v3084
    %v3133 = vpack.c.b16 %v3089, %v3087
    %v3134 = vpack.c.b16 %v3090, %v3088
    %v3135 = vpack.c.b16 %v3093, %v3091
    %v3136 = vpack.c.b16 %v3094, %v3092
    %v3137 = vpack.c.b16 %v3097, %v3095
    %v3138 = vpack.c.b16 %v3098, %v3096
    %v3139 = vpack.c.b16 %v3101, %v3099
    %v3140 = vpack.c.b16 %v3102, %v3100
    %v3141 = vpack.c.b16 %v3105, %v3103
    %v3142 = vpack.c.b16 %v3106, %v3104
    %v3143 = vpack.c.b16 %v3109, %v3107
    %v3144 = vpack.c.b16 %v3110, %v3108
    %v3145 = vpack.c.b16 %v3113, %v3111
    %v3146 = vpack.c.b16 %v3114, %v3112
    %v3147 = vpack.c.b16 %v3117, %v3115
    %v3148 = vpack.c.b16 %v3118, %v3116
    %v3149 = vpack.c.b16 %v3121, %v3119
    %v3150 = vpack.c.b16 %v3122, %v3120
    %v3151 = vpack.c.b16 %v3125, %v3123
    %v3152 = vpack.c.b16 %v3126, %v3124
    %v3153 = vpack.c.b16 %v3127, %v3127
    %v3154 = vpack.c.b16 %v3128, %v3128
    %v3180 = vsel %vm558, %v3047, 0
    %v3183 = vsel %vm208, %v3153, 0
    %v3186 = vsel %vm208, %v3154, 0
    %3188 = vmatpush.bf16.msra.mxu0 %v3143
    %3189 = vmatpush.bf16.msra.mxu0 %v3141
    %3190 = vmatpush.bf16.msra.mxu0 %v3139
    %3191 = vmatpush.bf16.msra.mxu0 %v3137
    %3192 = vmatpush.bf16.msra.mxu0 %v3135
    %3193 = vmatpush.bf16.msra.mxu0 %v3133
    %3194 = vmatpush.bf16.msra.mxu0 %v3131
    %3195 = vmatpush.bf16.msra.mxu0 %v3129
    %3196 = vmatmul.bf16.gmra.mxu0 %v3046
    %v3197 = vpop.f32.mrf.mxu0
    %v3198 = vadd.f32 %v3050, %v3197
    %v3199 = vpop.f32.mrf.mxu0
    %3200 = vdwg.mxu0
    %3201 = vmatpush.bf16.msra.mxu0 0
    %3202 = vmatpush.bf16.msra.mxu0 0
    %3203 = vmatpush.bf16.msra.mxu0 0
    %3204 = vmatpush.bf16.msra.mxu0 %v3183
    %3205 = vmatpush.bf16.msra.mxu0 %v3151
    %3206 = vmatpush.bf16.msra.mxu0 %v3149
    %3207 = vmatpush.bf16.msra.mxu0 %v3147
    %3208 = vmatpush.bf16.msra.mxu0 %v3145
    %3209 = vmatmul.bf16.gmra.mxu0 %v3180
    %v3210 = vpop.f32.mrf.mxu0
    %v3211 = vadd.f32 %v3198, %v3210
    %v3212 = vpop.f32.mrf.mxu0
    %3213 = vdwg.mxu0
    %3214 = vmatpush.bf16.msra.mxu0 %v3144
    %3215 = vmatpush.bf16.msra.mxu0 %v3142
    %3216 = vmatpush.bf16.msra.mxu0 %v3140
    %3217 = vmatpush.bf16.msra.mxu0 %v3138
    %3218 = vmatpush.bf16.msra.mxu0 %v3136
    %3219 = vmatpush.bf16.msra.mxu0 %v3134
    %3220 = vmatpush.bf16.msra.mxu0 %v3132
    %3221 = vmatpush.bf16.msra.mxu0 %v3130
    %3222 = vmatmul.bf16.gmra.mxu0 %v3046
    %v3223 = vpop.f32.mrf.mxu0
    %v3224 = vadd.f32 %v3051, %v3223
    %v3225 = vpop.f32.mrf.mxu0
    %3226 = vdwg.mxu0
    %3227 = vmatpush.bf16.msra.mxu0 0
    %3228 = vmatpush.bf16.msra.mxu0 0
    %3229 = vmatpush.bf16.msra.mxu0 0
    %3230 = vmatpush.bf16.msra.mxu0 %v3186
    %3231 = vmatpush.bf16.msra.mxu0 %v3152
    %3232 = vmatpush.bf16.msra.mxu0 %v3150
    %3233 = vmatpush.bf16.msra.mxu0 %v3148
    %3234 = vmatpush.bf16.msra.mxu0 %v3146
    %3235 = vmatmul.bf16.gmra.mxu0 %v3180
    %v3236 = vpop.f32.mrf.mxu0
    %v3237 = vadd.f32 %v3224, %v3236
    %v3238 = vpop.f32.mrf.mxu0
    %3239 = vdwg.mxu0
    %v3240 = vmax.f32 %v3211, 0.0
    %v3241 = vmax.f32 %v3237, 0.0
    %s3242 = scalar_lea.vmem [#allocation6], 200
    %v3243 = vld [vmem:[%s3242] sm:$0xff]
    %v3244 = vld [vmem:[%s3242 + $0x8] sm:$0xff]
    %v3245 = vld [vmem:[%s3242 + $0x10] sm:$0xff]
    %v3246 = vld [vmem:[%s3242 + $0x18] sm:$0xff]
    %v3247 = vld [vmem:[%s3242 + $0x20] sm:$0xff]
    %v3248 = vld [vmem:[%s3242 + $0x28] sm:$0xff]
    %v3249 = vld [vmem:[%s3242 + $0x30] sm:$0xff]
    %v3250 = vld [vmem:[%s3242 + $0x38] sm:$0xff]
    %v3251 = vld [vmem:[%s3242 + $0x40] sm:$0xff]
    %v3252 = vld [vmem:[%s3242 + $0x48] sm:$0xff]
    %v3253 = vld [vmem:[%s3242 + $0x50] sm:$0xff]
    %v3254 = vld [vmem:[%s3242 + $0x58] sm:$0xff]
    %v3255 = vld [vmem:[%s3242 + $0x60] sm:$0xff]
    %v3256 = vld [vmem:[%s3242 + $0x68] sm:$0xff]
    %v3257 = vld [vmem:[%s3242 + $0x70] sm:$0xff]
    %v3258 = vld [vmem:[%s3242 + $0x78] sm:$0xff]
    %v3259 = vld [vmem:[%s3242 + $0x80] sm:$0xff]
    %v3260 = vld [vmem:[%s3242 + $0x88] sm:$0xff]
    %v3261 = vld [vmem:[%s3242 + $0x90] sm:$0xff]
    %v3262 = vld [vmem:[%s3242 + $0x98] sm:$0xff]
    %v3263 = vld [vmem:[%s3242 + $0xa0] sm:$0xff]
    %v3264 = vld [vmem:[%s3242 + $0xa8] sm:$0xff]
    %v3265 = vld [vmem:[%s3242 + $0xb0] sm:$0xff]
    %v3266 = vld [vmem:[%s3242 + $0xb8] sm:$0xff]
    %v3267 = vld [vmem:[%s3242 + $0xc0] sm:$0xff]
    %v3268 = vpack.c.bf16 %v3240, %v3240
    %v3269 = vpack.c.bf16 %v3241, %v3241
    %s3270 = scalar_lea.vmem %s13, 2
    %v3271 = vld [vmem:[%s3270] sm:$0x3]
    %v3273 = vperm.slane %v3271, 0
    %v3274 = vperm.slane %v3271, 1
    %v3302 = vunpack.c.l.b16 %v3243
    %v3303 = vunpack.c.h.b16 %v3243
    %v3304 = vunpack.c.l.b16 %v3244
    %v3305 = vunpack.c.h.b16 %v3244
    %v3306 = vunpack.c.l.b16 %v3245
    %v3307 = vunpack.c.h.b16 %v3245
    %v3308 = vunpack.c.l.b16 %v3246
    %v3309 = vunpack.c.h.b16 %v3246
    %v3310 = vunpack.c.l.b16 %v3247
    %v3311 = vunpack.c.h.b16 %v3247
    %v3312 = vunpack.c.l.b16 %v3248
    %v3313 = vunpack.c.h.b16 %v3248
    %v3314 = vunpack.c.l.b16 %v3249
    %v3315 = vunpack.c.h.b16 %v3249
    %v3316 = vunpack.c.l.b16 %v3250
    %v3317 = vunpack.c.h.b16 %v3250
    %v3318 = vunpack.c.l.b16 %v3251
    %v3319 = vunpack.c.h.b16 %v3251
    %v3320 = vunpack.c.l.b16 %v3252
    %v3321 = vunpack.c.h.b16 %v3252
    %v3322 = vunpack.c.l.b16 %v3253
    %v3323 = vunpack.c.h.b16 %v3253
    %v3324 = vunpack.c.l.b16 %v3254
    %v3325 = vunpack.c.h.b16 %v3254
    %v3326 = vunpack.c.l.b16 %v3255
    %v3327 = vunpack.c.h.b16 %v3255
    %v3328 = vunpack.c.l.b16 %v3256
    %v3329 = vunpack.c.h.b16 %v3256
    %v3330 = vunpack.c.l.b16 %v3257
    %v3331 = vunpack.c.h.b16 %v3257
    %v3332 = vunpack.c.l.b16 %v3258
    %v3333 = vunpack.c.h.b16 %v3258
    %v3334 = vunpack.c.l.b16 %v3259
    %v3335 = vunpack.c.h.b16 %v3259
    %v3336 = vunpack.c.l.b16 %v3260
    %v3337 = vunpack.c.h.b16 %v3260
    %v3338 = vunpack.c.l.b16 %v3261
    %v3339 = vunpack.c.h.b16 %v3261
    %v3340 = vunpack.c.l.b16 %v3262
    %v3341 = vunpack.c.h.b16 %v3262
    %v3342 = vunpack.c.l.b16 %v3263
    %v3343 = vunpack.c.h.b16 %v3263
    %v3344 = vunpack.c.l.b16 %v3264
    %v3345 = vunpack.c.h.b16 %v3264
    %v3346 = vunpack.c.l.b16 %v3265
    %v3347 = vunpack.c.h.b16 %v3265
    %v3348 = vunpack.c.l.b16 %v3266
    %v3349 = vunpack.c.h.b16 %v3266
    %v3350 = vunpack.c.l.b16 %v3267
    %v3351 = vunpack.c.h.b16 %v3267
    %v3352 = vpack.c.b16 %v3304, %v3302
    %v3353 = vpack.c.b16 %v3305, %v3303
    %v3354 = vpack.c.b16 %v3308, %v3306
    %v3355 = vpack.c.b16 %v3309, %v3307
    %v3356 = vpack.c.b16 %v3312, %v3310
    %v3357 = vpack.c.b16 %v3313, %v3311
    %v3358 = vpack.c.b16 %v3316, %v3314
    %v3359 = vpack.c.b16 %v3317, %v3315
    %v3360 = vpack.c.b16 %v3320, %v3318
    %v3361 = vpack.c.b16 %v3321, %v3319
    %v3362 = vpack.c.b16 %v3324, %v3322
    %v3363 = vpack.c.b16 %v3325, %v3323
    %v3364 = vpack.c.b16 %v3328, %v3326
    %v3365 = vpack.c.b16 %v3329, %v3327
    %v3366 = vpack.c.b16 %v3332, %v3330
    %v3367 = vpack.c.b16 %v3333, %v3331
    %v3368 = vpack.c.b16 %v3336, %v3334
    %v3369 = vpack.c.b16 %v3337, %v3335
    %v3370 = vpack.c.b16 %v3340, %v3338
    %v3371 = vpack.c.b16 %v3341, %v3339
    %v3372 = vpack.c.b16 %v3344, %v3342
    %v3373 = vpack.c.b16 %v3345, %v3343
    %v3374 = vpack.c.b16 %v3348, %v3346
    %v3375 = vpack.c.b16 %v3349, %v3347
    %v3376 = vpack.c.b16 %v3350, %v3350
    %v3377 = vpack.c.b16 %v3351, %v3351
    %v3403 = vsel %vm558, %v3269, 0
    %v3406 = vsel %vm208, %v3376, 0
    %v3409 = vsel %vm208, %v3377, 0
    %3411 = vmatpush.bf16.msra.mxu0 %v3366
    %3412 = vmatpush.bf16.msra.mxu0 %v3364
    %3413 = vmatpush.bf16.msra.mxu0 %v3362
    %3414 = vmatpush.bf16.msra.mxu0 %v3360
    %3415 = vmatpush.bf16.msra.mxu0 %v3358
    %3416 = vmatpush.bf16.msra.mxu0 %v3356
    %3417 = vmatpush.bf16.msra.mxu0 %v3354
    %3418 = vmatpush.bf16.msra.mxu0 %v3352
    %3419 = vmatmul.bf16.gmra.mxu0 %v3268
    %v3420 = vpop.f32.mrf.mxu0
    %v3421 = vadd.f32 %v3273, %v3420
    %v3422 = vpop.f32.mrf.mxu0
    %3423 = vdwg.mxu0
    %3424 = vmatpush.bf16.msra.mxu0 0
    %3425 = vmatpush.bf16.msra.mxu0 0
    %3426 = vmatpush.bf16.msra.mxu0 0
    %3427 = vmatpush.bf16.msra.mxu0 %v3406
    %3428 = vmatpush.bf16.msra.mxu0 %v3374
    %3429 = vmatpush.bf16.msra.mxu0 %v3372
    %3430 = vmatpush.bf16.msra.mxu0 %v3370
    %3431 = vmatpush.bf16.msra.mxu0 %v3368
    %3432 = vmatmul.bf16.gmra.mxu0 %v3403
    %v3433 = vpop.f32.mrf.mxu0
    %v3434 = vadd.f32 %v3421, %v3433
    %v3435 = vpop.f32.mrf.mxu0
    %3436 = vdwg.mxu0
    %3437 = vmatpush.bf16.msra.mxu0 %v3367
    %3438 = vmatpush.bf16.msra.mxu0 %v3365
    %3439 = vmatpush.bf16.msra.mxu0 %v3363
    %3440 = vmatpush.bf16.msra.mxu0 %v3361
    %3441 = vmatpush.bf16.msra.mxu0 %v3359
    %3442 = vmatpush.bf16.msra.mxu0 %v3357
    %3443 = vmatpush.bf16.msra.mxu0 %v3355
    %3444 = vmatpush.bf16.msra.mxu0 %v3353
    %3445 = vmatmul.bf16.gmra.mxu0 %v3268
    %v3446 = vpop.f32.mrf.mxu0
    %v3447 = vadd.f32 %v3274, %v3446
    %v3448 = vpop.f32.mrf.mxu0
    %3449 = vdwg.mxu0
    %3450 = vmatpush.bf16.msra.mxu0 0
    %3451 = vmatpush.bf16.msra.mxu0 0
    %3452 = vmatpush.bf16.msra.mxu0 0
    %3453 = vmatpush.bf16.msra.mxu0 %v3409
    %3454 = vmatpush.bf16.msra.mxu0 %v3375
    %3455 = vmatpush.bf16.msra.mxu0 %v3373
    %3456 = vmatpush.bf16.msra.mxu0 %v3371
    %3457 = vmatpush.bf16.msra.mxu0 %v3369
    %3458 = vmatmul.bf16.gmra.mxu0 %v3403
    %v3459 = vpop.f32.mrf.mxu0
    %v3460 = vadd.f32 %v3447, %v3459
    %v3461 = vpop.f32.mrf.mxu0
    %3462 = vdwg.mxu0
    %v3463 = vmax.f32 %v3434, 0.0
    %v3464 = vmax.f32 %v3460, 0.0
    %s3465 = scalar_lea.vmem [#allocation6], 400
    %v3466 = vld [vmem:[%s3465] sm:$0xff]
    %v3467 = vld [vmem:[%s3465 + $0x8] sm:$0xff]
    %v3468 = vld [vmem:[%s3465 + $0x10] sm:$0xff]
    %v3469 = vld [vmem:[%s3465 + $0x18] sm:$0xff]
    %v3470 = vld [vmem:[%s3465 + $0x20] sm:$0xff]
    %v3471 = vld [vmem:[%s3465 + $0x28] sm:$0xff]
    %v3472 = vld [vmem:[%s3465 + $0x30] sm:$0xff]
    %v3473 = vld [vmem:[%s3465 + $0x38] sm:$0xff]
    %v3474 = vld [vmem:[%s3465 + $0x40] sm:$0xff]
    %v3475 = vld [vmem:[%s3465 + $0x48] sm:$0xff]
    %v3476 = vld [vmem:[%s3465 + $0x50] sm:$0xff]
    %v3477 = vld [vmem:[%s3465 + $0x58] sm:$0xff]
    %v3478 = vld [vmem:[%s3465 + $0x60] sm:$0xff]
    %v3479 = vld [vmem:[%s3465 + $0x68] sm:$0xff]
    %v3480 = vld [vmem:[%s3465 + $0x70] sm:$0xff]
    %v3481 = vld [vmem:[%s3465 + $0x78] sm:$0xff]
    %v3482 = vld [vmem:[%s3465 + $0x80] sm:$0xff]
    %v3483 = vld [vmem:[%s3465 + $0x88] sm:$0xff]
    %v3484 = vld [vmem:[%s3465 + $0x90] sm:$0xff]
    %v3485 = vld [vmem:[%s3465 + $0x98] sm:$0xff]
    %v3486 = vld [vmem:[%s3465 + $0xa0] sm:$0xff]
    %v3487 = vld [vmem:[%s3465 + $0xa8] sm:$0xff]
    %v3488 = vld [vmem:[%s3465 + $0xb0] sm:$0xff]
    %v3489 = vld [vmem:[%s3465 + $0xb8] sm:$0xff]
    %v3490 = vld [vmem:[%s3465 + $0xc0] sm:$0xff]
    %v3491 = vpack.c.bf16 %v3463, %v3463
    %v3492 = vpack.c.bf16 %v3464, %v3464
    %s3493 = scalar_lea.vmem %s13, 4
    %v3494 = vld [vmem:[%s3493] sm:$0x3]
    %v3496 = vperm.slane %v3494, 0
    %v3497 = vperm.slane %v3494, 1
    %v3525 = vunpack.c.l.b16 %v3466
    %v3526 = vunpack.c.h.b16 %v3466
    %v3527 = vunpack.c.l.b16 %v3467
    %v3528 = vunpack.c.h.b16 %v3467
    %v3529 = vunpack.c.l.b16 %v3468
    %v3530 = vunpack.c.h.b16 %v3468
    %v3531 = vunpack.c.l.b16 %v3469
    %v3532 = vunpack.c.h.b16 %v3469
    %v3533 = vunpack.c.l.b16 %v3470
    %v3534 = vunpack.c.h.b16 %v3470
    %v3535 = vunpack.c.l.b16 %v3471
    %v3536 = vunpack.c.h.b16 %v3471
    %v3537 = vunpack.c.l.b16 %v3472
    %v3538 = vunpack.c.h.b16 %v3472
    %v3539 = vunpack.c.l.b16 %v3473
    %v3540 = vunpack.c.h.b16 %v3473
    %v3541 = vunpack.c.l.b16 %v3474
    %v3542 = vunpack.c.h.b16 %v3474
    %v3543 = vunpack.c.l.b16 %v3475
    %v3544 = vunpack.c.h.b16 %v3475
    %v3545 = vunpack.c.l.b16 %v3476
    %v3546 = vunpack.c.h.b16 %v3476
    %v3547 = vunpack.c.l.b16 %v3477
    %v3548 = vunpack.c.h.b16 %v3477
    %v3549 = vunpack.c.l.b16 %v3478
    %v3550 = vunpack.c.h.b16 %v3478
    %v3551 = vunpack.c.l.b16 %v3479
    %v3552 = vunpack.c.h.b16 %v3479
    %v3553 = vunpack.c.l.b16 %v3480
    %v3554 = vunpack.c.h.b16 %v3480
    %v3555 = vunpack.c.l.b16 %v3481
    %v3556 = vunpack.c.h.b16 %v3481
    %v3557 = vunpack.c.l.b16 %v3482
    %v3558 = vunpack.c.h.b16 %v3482
    %v3559 = vunpack.c.l.b16 %v3483
    %v3560 = vunpack.c.h.b16 %v3483
    %v3561 = vunpack.c.l.b16 %v3484
    %v3562 = vunpack.c.h.b16 %v3484
    %v3563 = vunpack.c.l.b16 %v3485
    %v3564 = vunpack.c.h.b16 %v3485
    %v3565 = vunpack.c.l.b16 %v3486
    %v3566 = vunpack.c.h.b16 %v3486
    %v3567 = vunpack.c.l.b16 %v3487
    %v3568 = vunpack.c.h.b16 %v3487
    %v3569 = vunpack.c.l.b16 %v3488
    %v3570 = vunpack.c.h.b16 %v3488
    %v3571 = vunpack.c.l.b16 %v3489
    %v3572 = vunpack.c.h.b16 %v3489
    %v3573 = vunpack.c.l.b16 %v3490
    %v3574 = vunpack.c.h.b16 %v3490
    %v3575 = vpack.c.b16 %v3527, %v3525
    %v3576 = vpack.c.b16 %v3528, %v3526
    %v3577 = vpack.c.b16 %v3531, %v3529
    %v3578 = vpack.c.b16 %v3532, %v3530
    %v3579 = vpack.c.b16 %v3535, %v3533
    %v3580 = vpack.c.b16 %v3536, %v3534
    %v3581 = vpack.c.b16 %v3539, %v3537
    %v3582 = vpack.c.b16 %v3540, %v3538
    %v3583 = vpack.c.b16 %v3543, %v3541
    %v3584 = vpack.c.b16 %v3544, %v3542
    %v3585 = vpack.c.b16 %v3547, %v3545
    %v3586 = vpack.c.b16 %v3548, %v3546
    %v3587 = vpack.c.b16 %v3551, %v3549
    %v3588 = vpack.c.b16 %v3552, %v3550
    %v3589 = vpack.c.b16 %v3555, %v3553
    %v3590 = vpack.c.b16 %v3556, %v3554
    %v3591 = vpack.c.b16 %v3559, %v3557
    %v3592 = vpack.c.b16 %v3560, %v3558
    %v3593 = vpack.c.b16 %v3563, %v3561
    %v3594 = vpack.c.b16 %v3564, %v3562
    %v3595 = vpack.c.b16 %v3567, %v3565
    %v3596 = vpack.c.b16 %v3568, %v3566
    %v3597 = vpack.c.b16 %v3571, %v3569
    %v3598 = vpack.c.b16 %v3572, %v3570
    %v3599 = vpack.c.b16 %v3573, %v3573
    %v3600 = vpack.c.b16 %v3574, %v3574
    %v3626 = vsel %vm558, %v3492, 0
    %v3629 = vsel %vm208, %v3599, 0
    %v3632 = vsel %vm208, %v3600, 0
    %3634 = vmatpush.bf16.msra.mxu0 %v3589
    %3635 = vmatpush.bf16.msra.mxu0 %v3587
    %3636 = vmatpush.bf16.msra.mxu0 %v3585
    %3637 = vmatpush.bf16.msra.mxu0 %v3583
    %3638 = vmatpush.bf16.msra.mxu0 %v3581
    %3639 = vmatpush.bf16.msra.mxu0 %v3579
    %3640 = vmatpush.bf16.msra.mxu0 %v3577
    %3641 = vmatpush.bf16.msra.mxu0 %v3575
    %3642 = vmatmul.bf16.gmra.mxu0 %v3491
    %v3643 = vpop.f32.mrf.mxu0
    %v3644 = vadd.f32 %v3496, %v3643
    %v3645 = vpop.f32.mrf.mxu0
    %3646 = vdwg.mxu0
    %3647 = vmatpush.bf16.msra.mxu0 0
    %3648 = vmatpush.bf16.msra.mxu0 0
    %3649 = vmatpush.bf16.msra.mxu0 0
    %3650 = vmatpush.bf16.msra.mxu0 %v3629
    %3651 = vmatpush.bf16.msra.mxu0 %v3597
    %3652 = vmatpush.bf16.msra.mxu0 %v3595
    %3653 = vmatpush.bf16.msra.mxu0 %v3593
    %3654 = vmatpush.bf16.msra.mxu0 %v3591
    %3655 = vmatmul.bf16.gmra.mxu0 %v3626
    %v3656 = vpop.f32.mrf.mxu0
    %v3657 = vadd.f32 %v3644, %v3656
    %v3658 = vpop.f32.mrf.mxu0
    %3659 = vdwg.mxu0
    %3660 = vmatpush.bf16.msra.mxu0 %v3590
    %3661 = vmatpush.bf16.msra.mxu0 %v3588
    %3662 = vmatpush.bf16.msra.mxu0 %v3586
    %3663 = vmatpush.bf16.msra.mxu0 %v3584
    %3664 = vmatpush.bf16.msra.mxu0 %v3582
    %3665 = vmatpush.bf16.msra.mxu0 %v3580
    %3666 = vmatpush.bf16.msra.mxu0 %v3578
    %3667 = vmatpush.bf16.msra.mxu0 %v3576
    %3668 = vmatmul.bf16.gmra.mxu0 %v3491
    %v3669 = vpop.f32.mrf.mxu0
    %v3670 = vadd.f32 %v3497, %v3669
    %v3671 = vpop.f32.mrf.mxu0
    %3672 = vdwg.mxu0
    %3673 = vmatpush.bf16.msra.mxu0 0
    %3674 = vmatpush.bf16.msra.mxu0 0
    %3675 = vmatpush.bf16.msra.mxu0 0
    %3676 = vmatpush.bf16.msra.mxu0 %v3632
    %3677 = vmatpush.bf16.msra.mxu0 %v3598
    %3678 = vmatpush.bf16.msra.mxu0 %v3596
    %3679 = vmatpush.bf16.msra.mxu0 %v3594
    %3680 = vmatpush.bf16.msra.mxu0 %v3592
    %3681 = vmatmul.bf16.gmra.mxu0 %v3626
    %v3682 = vpop.f32.mrf.mxu0
    %v3683 = vadd.f32 %v3670, %v3682
    %v3684 = vpop.f32.mrf.mxu0
    %3685 = vdwg.mxu0
    %v3686 = vmax.f32 %v3657, 0.0
    %v3687 = vmax.f32 %v3683, 0.0
    %s3688 = scalar_lea.vmem [#allocation6], 600
    %v3689 = vld [vmem:[%s3688] sm:$0xff]
    %v3690 = vld [vmem:[%s3688 + $0x8] sm:$0xff]
    %v3691 = vld [vmem:[%s3688 + $0x10] sm:$0xff]
    %v3692 = vld [vmem:[%s3688 + $0x18] sm:$0xff]
    %v3693 = vld [vmem:[%s3688 + $0x20] sm:$0xff]
    %v3694 = vld [vmem:[%s3688 + $0x28] sm:$0xff]
    %v3695 = vld [vmem:[%s3688 + $0x30] sm:$0xff]
    %v3696 = vld [vmem:[%s3688 + $0x38] sm:$0xff]
    %v3697 = vld [vmem:[%s3688 + $0x40] sm:$0xff]
    %v3698 = vld [vmem:[%s3688 + $0x48] sm:$0xff]
    %v3699 = vld [vmem:[%s3688 + $0x50] sm:$0xff]
    %v3700 = vld [vmem:[%s3688 + $0x58] sm:$0xff]
    %v3701 = vld [vmem:[%s3688 + $0x60] sm:$0xff]
    %v3702 = vld [vmem:[%s3688 + $0x68] sm:$0xff]
    %v3703 = vld [vmem:[%s3688 + $0x70] sm:$0xff]
    %v3704 = vld [vmem:[%s3688 + $0x78] sm:$0xff]
    %v3705 = vld [vmem:[%s3688 + $0x80] sm:$0xff]
    %v3706 = vld [vmem:[%s3688 + $0x88] sm:$0xff]
    %v3707 = vld [vmem:[%s3688 + $0x90] sm:$0xff]
    %v3708 = vld [vmem:[%s3688 + $0x98] sm:$0xff]
    %v3709 = vld [vmem:[%s3688 + $0xa0] sm:$0xff]
    %v3710 = vld [vmem:[%s3688 + $0xa8] sm:$0xff]
    %v3711 = vld [vmem:[%s3688 + $0xb0] sm:$0xff]
    %v3712 = vld [vmem:[%s3688 + $0xb8] sm:$0xff]
    %v3713 = vld [vmem:[%s3688 + $0xc0] sm:$0xff]
    %v3714 = vpack.c.bf16 %v3686, %v3686
    %v3715 = vpack.c.bf16 %v3687, %v3687
    %s3716 = scalar_lea.vmem %s13, 6
    %v3717 = vld [vmem:[%s3716] sm:$0x3]
    %v3719 = vperm.slane %v3717, 0
    %v3720 = vperm.slane %v3717, 1
    %v3748 = vunpack.c.l.b16 %v3689
    %v3749 = vunpack.c.h.b16 %v3689
    %v3750 = vunpack.c.l.b16 %v3690
    %v3751 = vunpack.c.h.b16 %v3690
    %v3752 = vunpack.c.l.b16 %v3691
    %v3753 = vunpack.c.h.b16 %v3691
    %v3754 = vunpack.c.l.b16 %v3692
    %v3755 = vunpack.c.h.b16 %v3692
    %v3756 = vunpack.c.l.b16 %v3693
    %v3757 = vunpack.c.h.b16 %v3693
    %v3758 = vunpack.c.l.b16 %v3694
    %v3759 = vunpack.c.h.b16 %v3694
    %v3760 = vunpack.c.l.b16 %v3695
    %v3761 = vunpack.c.h.b16 %v3695
    %v3762 = vunpack.c.l.b16 %v3696
    %v3763 = vunpack.c.h.b16 %v3696
    %v3764 = vunpack.c.l.b16 %v3697
    %v3765 = vunpack.c.h.b16 %v3697
    %v3766 = vunpack.c.l.b16 %v3698
    %v3767 = vunpack.c.h.b16 %v3698
    %v3768 = vunpack.c.l.b16 %v3699
    %v3769 = vunpack.c.h.b16 %v3699
    %v3770 = vunpack.c.l.b16 %v3700
    %v3771 = vunpack.c.h.b16 %v3700
    %v3772 = vunpack.c.l.b16 %v3701
    %v3773 = vunpack.c.h.b16 %v3701
    %v3774 = vunpack.c.l.b16 %v3702
    %v3775 = vunpack.c.h.b16 %v3702
    %v3776 = vunpack.c.l.b16 %v3703
    %v3777 = vunpack.c.h.b16 %v3703
    %v3778 = vunpack.c.l.b16 %v3704
    %v3779 = vunpack.c.h.b16 %v3704
    %v3780 = vunpack.c.l.b16 %v3705
    %v3781 = vunpack.c.h.b16 %v3705
    %v3782 = vunpack.c.l.b16 %v3706
    %v3783 = vunpack.c.h.b16 %v3706
    %v3784 = vunpack.c.l.b16 %v3707
    %v3785 = vunpack.c.h.b16 %v3707
    %v3786 = vunpack.c.l.b16 %v3708
    %v3787 = vunpack.c.h.b16 %v3708
    %v3788 = vunpack.c.l.b16 %v3709
    %v3789 = vunpack.c.h.b16 %v3709
    %v3790 = vunpack.c.l.b16 %v3710
    %v3791 = vunpack.c.h.b16 %v3710
    %v3792 = vunpack.c.l.b16 %v3711
    %v3793 = vunpack.c.h.b16 %v3711
    %v3794 = vunpack.c.l.b16 %v3712
    %v3795 = vunpack.c.h.b16 %v3712
    %v3796 = vunpack.c.l.b16 %v3713
    %v3797 = vunpack.c.h.b16 %v3713
    %v3798 = vpack.c.b16 %v3750, %v3748
    %v3799 = vpack.c.b16 %v3751, %v3749
    %v3800 = vpack.c.b16 %v3754, %v3752
    %v3801 = vpack.c.b16 %v3755, %v3753
    %v3802 = vpack.c.b16 %v3758, %v3756
    %v3803 = vpack.c.b16 %v3759, %v3757
    %v3804 = vpack.c.b16 %v3762, %v3760
    %v3805 = vpack.c.b16 %v3763, %v3761
    %v3806 = vpack.c.b16 %v3766, %v3764
    %v3807 = vpack.c.b16 %v3767, %v3765
    %v3808 = vpack.c.b16 %v3770, %v3768
    %v3809 = vpack.c.b16 %v3771, %v3769
    %v3810 = vpack.c.b16 %v3774, %v3772
    %v3811 = vpack.c.b16 %v3775, %v3773
    %v3812 = vpack.c.b16 %v3778, %v3776
    %v3813 = vpack.c.b16 %v3779, %v3777
    %v3814 = vpack.c.b16 %v3782, %v3780
    %v3815 = vpack.c.b16 %v3783, %v3781
    %v3816 = vpack.c.b16 %v3786, %v3784
    %v3817 = vpack.c.b16 %v3787, %v3785
    %v3818 = vpack.c.b16 %v3790, %v3788
    %v3819 = vpack.c.b16 %v3791, %v3789
    %v3820 = vpack.c.b16 %v3794, %v3792
    %v3821 = vpack.c.b16 %v3795, %v3793
    %v3822 = vpack.c.b16 %v3796, %v3796
    %v3823 = vpack.c.b16 %v3797, %v3797
    %v3849 = vsel %vm558, %v3715, 0
    %v3852 = vsel %vm208, %v3822, 0
    %v3855 = vsel %vm208, %v3823, 0
    %3857 = vmatpush.bf16.msra.mxu0 %v3812
    %3858 = vmatpush.bf16.msra.mxu0 %v3810
    %3859 = vmatpush.bf16.msra.mxu0 %v3808
    %3860 = vmatpush.bf16.msra.mxu0 %v3806
    %3861 = vmatpush.bf16.msra.mxu0 %v3804
    %3862 = vmatpush.bf16.msra.mxu0 %v3802
    %3863 = vmatpush.bf16.msra.mxu0 %v3800
    %3864 = vmatpush.bf16.msra.mxu0 %v3798
    %3865 = vmatmul.bf16.gmra.mxu0 %v3714
    %v3866 = vpop.f32.mrf.mxu0
    %v3867 = vadd.f32 %v3719, %v3866
    %v3868 = vpop.f32.mrf.mxu0
    %3869 = vdwg.mxu0
    %3870 = vmatpush.bf16.msra.mxu0 0
    %3871 = vmatpush.bf16.msra.mxu0 0
    %3872 = vmatpush.bf16.msra.mxu0 0
    %3873 = vmatpush.bf16.msra.mxu0 %v3852
    %3874 = vmatpush.bf16.msra.mxu0 %v3820
    %3875 = vmatpush.bf16.msra.mxu0 %v3818
    %3876 = vmatpush.bf16.msra.mxu0 %v3816
    %3877 = vmatpush.bf16.msra.mxu0 %v3814
    %3878 = vmatmul.bf16.gmra.mxu0 %v3849
    %v3879 = vpop.f32.mrf.mxu0
    %v3880 = vadd.f32 %v3867, %v3879
    %v3881 = vpop.f32.mrf.mxu0
    %3882 = vdwg.mxu0
    %3883 = vmatpush.bf16.msra.mxu0 %v3813
    %3884 = vmatpush.bf16.msra.mxu0 %v3811
    %3885 = vmatpush.bf16.msra.mxu0 %v3809
    %3886 = vmatpush.bf16.msra.mxu0 %v3807
    %3887 = vmatpush.bf16.msra.mxu0 %v3805
    %3888 = vmatpush.bf16.msra.mxu0 %v3803
    %3889 = vmatpush.bf16.msra.mxu0 %v3801
    %3890 = vmatpush.bf16.msra.mxu0 %v3799
    %3891 = vmatmul.bf16.gmra.mxu0 %v3714
    %v3892 = vpop.f32.mrf.mxu0
    %v3893 = vadd.f32 %v3720, %v3892
    %v3894 = vpop.f32.mrf.mxu0
    %3895 = vdwg.mxu0
    %3896 = vmatpush.bf16.msra.mxu0 0
    %3897 = vmatpush.bf16.msra.mxu0 0
    %3898 = vmatpush.bf16.msra.mxu0 0
    %3899 = vmatpush.bf16.msra.mxu0 %v3855
    %3900 = vmatpush.bf16.msra.mxu0 %v3821
    %3901 = vmatpush.bf16.msra.mxu0 %v3819
    %3902 = vmatpush.bf16.msra.mxu0 %v3817
    %3903 = vmatpush.bf16.msra.mxu0 %v3815
    %3904 = vmatmul.bf16.gmra.mxu0 %v3849
    %v3905 = vpop.f32.mrf.mxu0
    %v3906 = vadd.f32 %v3893, %v3905
    %v3907 = vpop.f32.mrf.mxu0
    %3908 = vdwg.mxu0
    %v3909 = vmax.f32 %v3880, 0.0
    %v3910 = vmax.f32 %v3906, 0.0
    %v3911 = vld [vmem:[%s2] sm:$0xff]
    %v3912 = vld [vmem:[%s14] sm:$0xff]
    %v3913 = vld [vmem:[%s14 + $0x8] sm:$0xff]
    %v3914 = vld [vmem:[%s14 + $0x10] sm:$0xff]
    %v3915 = vld [vmem:[%s14 + $0x18] sm:$0xff]
    %v3916 = vld [vmem:[%s14 + $0x20] sm:$0xff]
    %v3917 = vld [vmem:[%s14 + $0x28] sm:$0xff]
    %v3918 = vld [vmem:[%s14 + $0x30] sm:$0xff]
    %v3919 = vld [vmem:[%s14 + $0x38] sm:$0xff]
    %v3920 = vld [vmem:[%s14 + $0x40] sm:$0xff]
    %v3921 = vld [vmem:[%s14 + $0x48] sm:$0xff]
    %v3922 = vld [vmem:[%s14 + $0x50] sm:$0xff]
    %v3923 = vld [vmem:[%s14 + $0x58] sm:$0xff]
    %v3924 = vld [vmem:[%s14 + $0x60] sm:$0xff]
    %v3925 = vld [vmem:[%s14 + $0x68] sm:$0xff]
    %v3926 = vld [vmem:[%s14 + $0x70] sm:$0xff]
    %v3927 = vld [vmem:[%s14 + $0x78] sm:$0xff]
    %v3928 = vld [vmem:[%s14 + $0x80] sm:$0xff]
    %v3929 = vld [vmem:[%s14 + $0x88] sm:$0xff]
    %v3930 = vld [vmem:[%s14 + $0x90] sm:$0xff]
    %v3931 = vld [vmem:[%s14 + $0x98] sm:$0xff]
    %v3932 = vld [vmem:[%s14 + $0xa0] sm:$0xff]
    %v3933 = vld [vmem:[%s14 + $0xa8] sm:$0xff]
    %v3934 = vld [vmem:[%s14 + $0xb0] sm:$0xff]
    %v3935 = vld [vmem:[%s14 + $0xb8] sm:$0xff]
    %v3936 = vld [vmem:[%s14 + $0xc0] sm:$0xff]
    %v3937 = vpack.c.bf16 %v3909, %v3909
    %v3938 = vpack.c.bf16 %v3910, %v3910
    %v3939 = vmax.f32 %v3911, 0.0
    %v3940 = vld [vmem:[%s15] sm:$0xf]
    %v3941 = vpack.c.bf16 %v3939, %v3939
    %3943 = vst [vmem:[#allocation1] ss:$4 sm:$0xff] %v3940
    %v3944 = vld.sshfl [vmem:[#allocation1] sm:$0xff pattern:$0x73625140]
    %v3945 = vld.sshfl [vmem:[#allocation1 + $0x8] sm:$0xff pattern:$0x73625140]
    %v3947 = vsel %vm276, %v3941, 0
    %v3949 = vsel %vm289, %v3944, 0
    %v3951 = vsel %vm289, %v3945, 0
    %3953 = vmatpush.bf16.msra.mxu0 0
    %3954 = vmatpush.bf16.msra.mxu0 0
    %3955 = vmatpush.bf16.msra.mxu0 0
    %3956 = vmatpush.bf16.msra.mxu0 0
    %3957 = vmatpush.bf16.msra.mxu0 0
    %3958 = vmatpush.bf16.msra.mxu0 0
    %3959 = vmatpush.bf16.msra.mxu0 0
    %3960 = vmatpush.bf16.msra.mxu0 %v3949
    %3961 = vmatmul.bf16.gmra.mxu0 %v3947
    %v3962 = vpop.f32.mrf.mxu0
    %v3963 = vadd.f32 0.0, %v3962
    %v3964 = vpop.f32.mrf.mxu0
    %3965 = vdwg.mxu0
    %3966 = vmatpush.bf16.msra.mxu0 0
    %3967 = vmatpush.bf16.msra.mxu0 0
    %3968 = vmatpush.bf16.msra.mxu0 0
    %3969 = vmatpush.bf16.msra.mxu0 0
    %3970 = vmatpush.bf16.msra.mxu0 0
    %3971 = vmatpush.bf16.msra.mxu0 0
    %3972 = vmatpush.bf16.msra.mxu0 0
    %3973 = vmatpush.bf16.msra.mxu0 %v3951
    %3974 = vmatmul.bf16.gmra.mxu0 %v3947
    %v3975 = vpop.f32.mrf.mxu0
    %v3976 = vadd.f32 0.0, %v3975
    %v3977 = vpop.f32.mrf.mxu0
    %3978 = vdwg.mxu0
    %v4004 = vunpack.c.l.b16 %v3912
    %v4005 = vunpack.c.h.b16 %v3912
    %v4006 = vunpack.c.l.b16 %v3913
    %v4007 = vunpack.c.h.b16 %v3913
    %v4008 = vunpack.c.l.b16 %v3914
    %v4009 = vunpack.c.h.b16 %v3914
    %v4010 = vunpack.c.l.b16 %v3915
    %v4011 = vunpack.c.h.b16 %v3915
    %v4012 = vunpack.c.l.b16 %v3916
    %v4013 = vunpack.c.h.b16 %v3916
    %v4014 = vunpack.c.l.b16 %v3917
    %v4015 = vunpack.c.h.b16 %v3917
    %v4016 = vunpack.c.l.b16 %v3918
    %v4017 = vunpack.c.h.b16 %v3918
    %v4018 = vunpack.c.l.b16 %v3919
    %v4019 = vunpack.c.h.b16 %v3919
    %v4020 = vunpack.c.l.b16 %v3920
    %v4021 = vunpack.c.h.b16 %v3920
    %v4022 = vunpack.c.l.b16 %v3921
    %v4023 = vunpack.c.h.b16 %v3921
    %v4024 = vunpack.c.l.b16 %v3922
    %v4025 = vunpack.c.h.b16 %v3922
    %v4026 = vunpack.c.l.b16 %v3923
    %v4027 = vunpack.c.h.b16 %v3923
    %v4028 = vunpack.c.l.b16 %v3924
    %v4029 = vunpack.c.h.b16 %v3924
    %v4030 = vunpack.c.l.b16 %v3925
    %v4031 = vunpack.c.h.b16 %v3925
    %v4032 = vunpack.c.l.b16 %v3926
    %v4033 = vunpack.c.h.b16 %v3926
    %v4034 = vunpack.c.l.b16 %v3927
    %v4035 = vunpack.c.h.b16 %v3927
    %v4036 = vunpack.c.l.b16 %v3928
    %v4037 = vunpack.c.h.b16 %v3928
    %v4038 = vunpack.c.l.b16 %v3929
    %v4039 = vunpack.c.h.b16 %v3929
    %v4040 = vunpack.c.l.b16 %v3930
    %v4041 = vunpack.c.h.b16 %v3930
    %v4042 = vunpack.c.l.b16 %v3931
    %v4043 = vunpack.c.h.b16 %v3931
    %v4044 = vunpack.c.l.b16 %v3932
    %v4045 = vunpack.c.h.b16 %v3932
    %v4046 = vunpack.c.l.b16 %v3933
    %v4047 = vunpack.c.h.b16 %v3933
    %v4048 = vunpack.c.l.b16 %v3934
    %v4049 = vunpack.c.h.b16 %v3934
    %v4050 = vunpack.c.l.b16 %v3935
    %v4051 = vunpack.c.h.b16 %v3935
    %v4052 = vunpack.c.l.b16 %v3936
    %v4053 = vunpack.c.h.b16 %v3936
    %v4054 = vpack.c.b16 %v4006, %v4004
    %v4055 = vpack.c.b16 %v4007, %v4005
    %v4056 = vpack.c.b16 %v4010, %v4008
    %v4057 = vpack.c.b16 %v4011, %v4009
    %v4058 = vpack.c.b16 %v4014, %v4012
    %v4059 = vpack.c.b16 %v4015, %v4013
    %v4060 = vpack.c.b16 %v4018, %v4016
    %v4061 = vpack.c.b16 %v4019, %v4017
    %v4062 = vpack.c.b16 %v4022, %v4020
    %v4063 = vpack.c.b16 %v4023, %v4021
    %v4064 = vpack.c.b16 %v4026, %v4024
    %v4065 = vpack.c.b16 %v4027, %v4025
    %v4066 = vpack.c.b16 %v4030, %v4028
    %v4067 = vpack.c.b16 %v4031, %v4029
    %v4068 = vpack.c.b16 %v4034, %v4032
    %v4069 = vpack.c.b16 %v4035, %v4033
    %v4070 = vpack.c.b16 %v4038, %v4036
    %v4071 = vpack.c.b16 %v4039, %v4037
    %v4072 = vpack.c.b16 %v4042, %v4040
    %v4073 = vpack.c.b16 %v4043, %v4041
    %v4074 = vpack.c.b16 %v4046, %v4044
    %v4075 = vpack.c.b16 %v4047, %v4045
    %v4076 = vpack.c.b16 %v4050, %v4048
    %v4077 = vpack.c.b16 %v4051, %v4049
    %v4078 = vpack.c.b16 %v4052, %v4052
    %v4079 = vpack.c.b16 %v4053, %v4053
    %v4105 = vsel %vm558, %v3938, 0
    %v4108 = vsel %vm208, %v4078, 0
    %v4111 = vsel %vm208, %v4079, 0
    %4113 = vmatpush.bf16.msra.mxu0 %v4068
    %4114 = vmatpush.bf16.msra.mxu0 %v4066
    %4115 = vmatpush.bf16.msra.mxu0 %v4064
    %4116 = vmatpush.bf16.msra.mxu0 %v4062
    %4117 = vmatpush.bf16.msra.mxu0 %v4060
    %4118 = vmatpush.bf16.msra.mxu0 %v4058
    %4119 = vmatpush.bf16.msra.mxu0 %v4056
    %4120 = vmatpush.bf16.msra.mxu0 %v4054
    %4121 = vmatmul.bf16.gmra.mxu0 %v3937
    %v4122 = vpop.f32.mrf.mxu0
    %v4123 = vadd.f32 %v3963, %v4122
    %v4124 = vpop.f32.mrf.mxu0
    %4125 = vdwg.mxu0
    %4126 = vmatpush.bf16.msra.mxu0 0
    %4127 = vmatpush.bf16.msra.mxu0 0
    %4128 = vmatpush.bf16.msra.mxu0 0
    %4129 = vmatpush.bf16.msra.mxu0 %v4108
    %4130 = vmatpush.bf16.msra.mxu0 %v4076
    %4131 = vmatpush.bf16.msra.mxu0 %v4074
    %4132 = vmatpush.bf16.msra.mxu0 %v4072
    %4133 = vmatpush.bf16.msra.mxu0 %v4070
    %4134 = vmatmul.bf16.gmra.mxu0 %v4105
    %v4135 = vpop.f32.mrf.mxu0
    %v4136 = vadd.f32 %v4123, %v4135
    %v4137 = vpop.f32.mrf.mxu0
    %4138 = vdwg.mxu0
    %4139 = vmatpush.bf16.msra.mxu0 %v4069
    %4140 = vmatpush.bf16.msra.mxu0 %v4067
    %4141 = vmatpush.bf16.msra.mxu0 %v4065
    %4142 = vmatpush.bf16.msra.mxu0 %v4063
    %4143 = vmatpush.bf16.msra.mxu0 %v4061
    %4144 = vmatpush.bf16.msra.mxu0 %v4059
    %4145 = vmatpush.bf16.msra.mxu0 %v4057
    %4146 = vmatpush.bf16.msra.mxu0 %v4055
    %4147 = vmatmul.bf16.gmra.mxu0 %v3937
    %v4148 = vpop.f32.mrf.mxu0
    %v4149 = vadd.f32 %v3976, %v4148
    %v4150 = vpop.f32.mrf.mxu0
    %4151 = vdwg.mxu0
    %4152 = vmatpush.bf16.msra.mxu0 0
    %4153 = vmatpush.bf16.msra.mxu0 0
    %4154 = vmatpush.bf16.msra.mxu0 0
    %4155 = vmatpush.bf16.msra.mxu0 %v4111
    %4156 = vmatpush.bf16.msra.mxu0 %v4077
    %4157 = vmatpush.bf16.msra.mxu0 %v4075
    %4158 = vmatpush.bf16.msra.mxu0 %v4073
    %4159 = vmatpush.bf16.msra.mxu0 %v4071
    %4160 = vmatmul.bf16.gmra.mxu0 %v4105
    %v4161 = vpop.f32.mrf.mxu0
    %v4162 = vadd.f32 %v4149, %v4161
    %v4163 = vpop.f32.mrf.mxu0
    %4164 = vdwg.mxu0
    %v4165 = vld [vmem:[%s16] sm:$0x3]
    %v4167 = vperm.slane %v4165, 0
    %v4168 = vperm.slane %v4165, 1
    %v4171 = vadd.f32 %v4136, %v4167
    %v4172 = vadd.f32 %v4162, %v4168
    %v4173 = vmax.f32 %v4171, 0.0
    %v4174 = vmax.f32 %v4172, 0.0
    %v4175 = vld [vmem:[#allocation7] sm:$0xff]
    %v4176 = vld [vmem:[#allocation7 + $0x8] sm:$0xff]
    %v4177 = vld [vmem:[#allocation7 + $0x10] sm:$0xff]
    %v4178 = vld [vmem:[#allocation7 + $0x18] sm:$0xff]
    %v4179 = vld [vmem:[#allocation7 + $0x20] sm:$0xff]
    %v4180 = vld [vmem:[#allocation7 + $0x28] sm:$0xff]
    %v4181 = vld [vmem:[#allocation7 + $0x30] sm:$0xff]
    %v4182 = vld [vmem:[#allocation7 + $0x38] sm:$0xff]
    %v4183 = vld [vmem:[#allocation7 + $0x40] sm:$0xff]
    %v4184 = vld [vmem:[#allocation7 + $0x48] sm:$0xff]
    %v4185 = vld [vmem:[#allocation7 + $0x50] sm:$0xff]
    %v4186 = vld [vmem:[#allocation7 + $0x58] sm:$0xff]
    %v4187 = vld [vmem:[#allocation7 + $0x60] sm:$0xff]
    %v4188 = vld [vmem:[#allocation7 + $0x68] sm:$0xff]
    %v4189 = vld [vmem:[#allocation7 + $0x70] sm:$0xff]
    %v4190 = vld [vmem:[#allocation7 + $0x78] sm:$0xff]
    %v4191 = vld [vmem:[#allocation7 + $0x80] sm:$0xff]
    %v4192 = vld [vmem:[#allocation7 + $0x88] sm:$0xff]
    %v4193 = vld [vmem:[#allocation7 + $0x90] sm:$0xff]
    %v4194 = vld [vmem:[#allocation7 + $0x98] sm:$0xff]
    %v4195 = vld [vmem:[#allocation7 + $0xa0] sm:$0xff]
    %v4196 = vld [vmem:[#allocation7 + $0xa8] sm:$0xff]
    %v4197 = vld [vmem:[#allocation7 + $0xb0] sm:$0xff]
    %v4198 = vld [vmem:[#allocation7 + $0xb8] sm:$0xff]
    %v4199 = vld [vmem:[#allocation7 + $0xc0] sm:$0xff]
    %v4200 = vpack.c.bf16 %v4173, %v4173
    %v4201 = vpack.c.bf16 %v4174, %v4174
    %v4202 = vld [vmem:[%s18] sm:$0x3]
    %v4204 = vperm.slane %v4202, 0
    %v4205 = vperm.slane %v4202, 1
    %v4233 = vunpack.c.l.b16 %v4175
    %v4234 = vunpack.c.h.b16 %v4175
    %v4235 = vunpack.c.l.b16 %v4176
    %v4236 = vunpack.c.h.b16 %v4176
    %v4237 = vunpack.c.l.b16 %v4177
    %v4238 = vunpack.c.h.b16 %v4177
    %v4239 = vunpack.c.l.b16 %v4178
    %v4240 = vunpack.c.h.b16 %v4178
    %v4241 = vunpack.c.l.b16 %v4179
    %v4242 = vunpack.c.h.b16 %v4179
    %v4243 = vunpack.c.l.b16 %v4180
    %v4244 = vunpack.c.h.b16 %v4180
    %v4245 = vunpack.c.l.b16 %v4181
    %v4246 = vunpack.c.h.b16 %v4181
    %v4247 = vunpack.c.l.b16 %v4182
    %v4248 = vunpack.c.h.b16 %v4182
    %v4249 = vunpack.c.l.b16 %v4183
    %v4250 = vunpack.c.h.b16 %v4183
    %v4251 = vunpack.c.l.b16 %v4184
    %v4252 = vunpack.c.h.b16 %v4184
    %v4253 = vunpack.c.l.b16 %v4185
    %v4254 = vunpack.c.h.b16 %v4185
    %v4255 = vunpack.c.l.b16 %v4186
    %v4256 = vunpack.c.h.b16 %v4186
    %v4257 = vunpack.c.l.b16 %v4187
    %v4258 = vunpack.c.h.b16 %v4187
    %v4259 = vunpack.c.l.b16 %v4188
    %v4260 = vunpack.c.h.b16 %v4188
    %v4261 = vunpack.c.l.b16 %v4189
    %v4262 = vunpack.c.h.b16 %v4189
    %v4263 = vunpack.c.l.b16 %v4190
    %v4264 = vunpack.c.h.b16 %v4190
    %v4265 = vunpack.c.l.b16 %v4191
    %v4266 = vunpack.c.h.b16 %v4191
    %v4267 = vunpack.c.l.b16 %v4192
    %v4268 = vunpack.c.h.b16 %v4192
    %v4269 = vunpack.c.l.b16 %v4193
    %v4270 = vunpack.c.h.b16 %v4193
    %v4271 = vunpack.c.l.b16 %v4194
    %v4272 = vunpack.c.h.b16 %v4194
    %v4273 = vunpack.c.l.b16 %v4195
    %v4274 = vunpack.c.h.b16 %v4195
    %v4275 = vunpack.c.l.b16 %v4196
    %v4276 = vunpack.c.h.b16 %v4196
    %v4277 = vunpack.c.l.b16 %v4197
    %v4278 = vunpack.c.h.b16 %v4197
    %v4279 = vunpack.c.l.b16 %v4198
    %v4280 = vunpack.c.h.b16 %v4198
    %v4281 = vunpack.c.l.b16 %v4199
    %v4282 = vunpack.c.h.b16 %v4199
    %v4283 = vpack.c.b16 %v4235, %v4233
    %v4284 = vpack.c.b16 %v4236, %v4234
    %v4285 = vpack.c.b16 %v4239, %v4237
    %v4286 = vpack.c.b16 %v4240, %v4238
    %v4287 = vpack.c.b16 %v4243, %v4241
    %v4288 = vpack.c.b16 %v4244, %v4242
    %v4289 = vpack.c.b16 %v4247, %v4245
    %v4290 = vpack.c.b16 %v4248, %v4246
    %v4291 = vpack.c.b16 %v4251, %v4249
    %v4292 = vpack.c.b16 %v4252, %v4250
    %v4293 = vpack.c.b16 %v4255, %v4253
    %v4294 = vpack.c.b16 %v4256, %v4254
    %v4295 = vpack.c.b16 %v4259, %v4257
    %v4296 = vpack.c.b16 %v4260, %v4258
    %v4297 = vpack.c.b16 %v4263, %v4261
    %v4298 = vpack.c.b16 %v4264, %v4262
    %v4299 = vpack.c.b16 %v4267, %v4265
    %v4300 = vpack.c.b16 %v4268, %v4266
    %v4301 = vpack.c.b16 %v4271, %v4269
    %v4302 = vpack.c.b16 %v4272, %v4270
    %v4303 = vpack.c.b16 %v4275, %v4273
    %v4304 = vpack.c.b16 %v4276, %v4274
    %v4305 = vpack.c.b16 %v4279, %v4277
    %v4306 = vpack.c.b16 %v4280, %v4278
    %v4307 = vpack.c.b16 %v4281, %v4281
    %v4308 = vpack.c.b16 %v4282, %v4282
    %v4334 = vsel %vm558, %v4201, 0
    %v4337 = vsel %vm208, %v4307, 0
    %v4340 = vsel %vm208, %v4308, 0
    %4342 = vmatpush.bf16.msra.mxu0 %v4297
    %4343 = vmatpush.bf16.msra.mxu0 %v4295
    %4344 = vmatpush.bf16.msra.mxu0 %v4293
    %4345 = vmatpush.bf16.msra.mxu0 %v4291
    %4346 = vmatpush.bf16.msra.mxu0 %v4289
    %4347 = vmatpush.bf16.msra.mxu0 %v4287
    %4348 = vmatpush.bf16.msra.mxu0 %v4285
    %4349 = vmatpush.bf16.msra.mxu0 %v4283
    %4350 = vmatmul.bf16.gmra.mxu0 %v4200
    %v4351 = vpop.f32.mrf.mxu0
    %v4352 = vadd.f32 %v4204, %v4351
    %v4353 = vpop.f32.mrf.mxu0
    %4354 = vdwg.mxu0
    %4355 = vmatpush.bf16.msra.mxu0 0
    %4356 = vmatpush.bf16.msra.mxu0 0
    %4357 = vmatpush.bf16.msra.mxu0 0
    %4358 = vmatpush.bf16.msra.mxu0 %v4337
    %4359 = vmatpush.bf16.msra.mxu0 %v4305
    %4360 = vmatpush.bf16.msra.mxu0 %v4303
    %4361 = vmatpush.bf16.msra.mxu0 %v4301
    %4362 = vmatpush.bf16.msra.mxu0 %v4299
    %4363 = vmatmul.bf16.gmra.mxu0 %v4334
    %v4364 = vpop.f32.mrf.mxu0
    %v4365 = vadd.f32 %v4352, %v4364
    %v4366 = vpop.f32.mrf.mxu0
    %4367 = vdwg.mxu0
    %4368 = vmatpush.bf16.msra.mxu0 %v4298
    %4369 = vmatpush.bf16.msra.mxu0 %v4296
    %4370 = vmatpush.bf16.msra.mxu0 %v4294
    %4371 = vmatpush.bf16.msra.mxu0 %v4292
    %4372 = vmatpush.bf16.msra.mxu0 %v4290
    %4373 = vmatpush.bf16.msra.mxu0 %v4288
    %4374 = vmatpush.bf16.msra.mxu0 %v4286
    %4375 = vmatpush.bf16.msra.mxu0 %v4284
    %4376 = vmatmul.bf16.gmra.mxu0 %v4200
    %v4377 = vpop.f32.mrf.mxu0
    %v4378 = vadd.f32 %v4205, %v4377
    %v4379 = vpop.f32.mrf.mxu0
    %4380 = vdwg.mxu0
    %4381 = vmatpush.bf16.msra.mxu0 0
    %4382 = vmatpush.bf16.msra.mxu0 0
    %4383 = vmatpush.bf16.msra.mxu0 0
    %4384 = vmatpush.bf16.msra.mxu0 %v4340
    %4385 = vmatpush.bf16.msra.mxu0 %v4306
    %4386 = vmatpush.bf16.msra.mxu0 %v4304
    %4387 = vmatpush.bf16.msra.mxu0 %v4302
    %4388 = vmatpush.bf16.msra.mxu0 %v4300
    %4389 = vmatmul.bf16.gmra.mxu0 %v4334
    %v4390 = vpop.f32.mrf.mxu0
    %v4391 = vadd.f32 %v4378, %v4390
    %v4392 = vpop.f32.mrf.mxu0
    %4393 = vdwg.mxu0
    %v4394 = vmax.f32 %v4365, 0.0
    %v4395 = vmax.f32 %v4391, 0.0
    %s4396 = scalar_lea.vmem [#allocation7], 200
    %v4397 = vld [vmem:[%s4396] sm:$0xff]
    %v4398 = vld [vmem:[%s4396 + $0x8] sm:$0xff]
    %v4399 = vld [vmem:[%s4396 + $0x10] sm:$0xff]
    %v4400 = vld [vmem:[%s4396 + $0x18] sm:$0xff]
    %v4401 = vld [vmem:[%s4396 + $0x20] sm:$0xff]
    %v4402 = vld [vmem:[%s4396 + $0x28] sm:$0xff]
    %v4403 = vld [vmem:[%s4396 + $0x30] sm:$0xff]
    %v4404 = vld [vmem:[%s4396 + $0x38] sm:$0xff]
    %v4405 = vld [vmem:[%s4396 + $0x40] sm:$0xff]
    %v4406 = vld [vmem:[%s4396 + $0x48] sm:$0xff]
    %v4407 = vld [vmem:[%s4396 + $0x50] sm:$0xff]
    %v4408 = vld [vmem:[%s4396 + $0x58] sm:$0xff]
    %v4409 = vld [vmem:[%s4396 + $0x60] sm:$0xff]
    %v4410 = vld [vmem:[%s4396 + $0x68] sm:$0xff]
    %v4411 = vld [vmem:[%s4396 + $0x70] sm:$0xff]
    %v4412 = vld [vmem:[%s4396 + $0x78] sm:$0xff]
    %v4413 = vld [vmem:[%s4396 + $0x80] sm:$0xff]
    %v4414 = vld [vmem:[%s4396 + $0x88] sm:$0xff]
    %v4415 = vld [vmem:[%s4396 + $0x90] sm:$0xff]
    %v4416 = vld [vmem:[%s4396 + $0x98] sm:$0xff]
    %v4417 = vld [vmem:[%s4396 + $0xa0] sm:$0xff]
    %v4418 = vld [vmem:[%s4396 + $0xa8] sm:$0xff]
    %v4419 = vld [vmem:[%s4396 + $0xb0] sm:$0xff]
    %v4420 = vld [vmem:[%s4396 + $0xb8] sm:$0xff]
    %v4421 = vld [vmem:[%s4396 + $0xc0] sm:$0xff]
    %v4422 = vpack.c.bf16 %v4394, %v4394
    %v4423 = vpack.c.bf16 %v4395, %v4395
    %s4424 = scalar_lea.vmem %s18, 2
    %v4425 = vld [vmem:[%s4424] sm:$0x3]
    %v4427 = vperm.slane %v4425, 0
    %v4428 = vperm.slane %v4425, 1
    %v4456 = vunpack.c.l.b16 %v4397
    %v4457 = vunpack.c.h.b16 %v4397
    %v4458 = vunpack.c.l.b16 %v4398
    %v4459 = vunpack.c.h.b16 %v4398
    %v4460 = vunpack.c.l.b16 %v4399
    %v4461 = vunpack.c.h.b16 %v4399
    %v4462 = vunpack.c.l.b16 %v4400
    %v4463 = vunpack.c.h.b16 %v4400
    %v4464 = vunpack.c.l.b16 %v4401
    %v4465 = vunpack.c.h.b16 %v4401
    %v4466 = vunpack.c.l.b16 %v4402
    %v4467 = vunpack.c.h.b16 %v4402
    %v4468 = vunpack.c.l.b16 %v4403
    %v4469 = vunpack.c.h.b16 %v4403
    %v4470 = vunpack.c.l.b16 %v4404
    %v4471 = vunpack.c.h.b16 %v4404
    %v4472 = vunpack.c.l.b16 %v4405
    %v4473 = vunpack.c.h.b16 %v4405
    %v4474 = vunpack.c.l.b16 %v4406
    %v4475 = vunpack.c.h.b16 %v4406
    %v4476 = vunpack.c.l.b16 %v4407
    %v4477 = vunpack.c.h.b16 %v4407
    %v4478 = vunpack.c.l.b16 %v4408
    %v4479 = vunpack.c.h.b16 %v4408
    %v4480 = vunpack.c.l.b16 %v4409
    %v4481 = vunpack.c.h.b16 %v4409
    %v4482 = vunpack.c.l.b16 %v4410
    %v4483 = vunpack.c.h.b16 %v4410
    %v4484 = vunpack.c.l.b16 %v4411
    %v4485 = vunpack.c.h.b16 %v4411
    %v4486 = vunpack.c.l.b16 %v4412
    %v4487 = vunpack.c.h.b16 %v4412
    %v4488 = vunpack.c.l.b16 %v4413
    %v4489 = vunpack.c.h.b16 %v4413
    %v4490 = vunpack.c.l.b16 %v4414
    %v4491 = vunpack.c.h.b16 %v4414
    %v4492 = vunpack.c.l.b16 %v4415
    %v4493 = vunpack.c.h.b16 %v4415
    %v4494 = vunpack.c.l.b16 %v4416
    %v4495 = vunpack.c.h.b16 %v4416
    %v4496 = vunpack.c.l.b16 %v4417
    %v4497 = vunpack.c.h.b16 %v4417
    %v4498 = vunpack.c.l.b16 %v4418
    %v4499 = vunpack.c.h.b16 %v4418
    %v4500 = vunpack.c.l.b16 %v4419
    %v4501 = vunpack.c.h.b16 %v4419
    %v4502 = vunpack.c.l.b16 %v4420
    %v4503 = vunpack.c.h.b16 %v4420
    %v4504 = vunpack.c.l.b16 %v4421
    %v4505 = vunpack.c.h.b16 %v4421
    %v4506 = vpack.c.b16 %v4458, %v4456
    %v4507 = vpack.c.b16 %v4459, %v4457
    %v4508 = vpack.c.b16 %v4462, %v4460
    %v4509 = vpack.c.b16 %v4463, %v4461
    %v4510 = vpack.c.b16 %v4466, %v4464
    %v4511 = vpack.c.b16 %v4467, %v4465
    %v4512 = vpack.c.b16 %v4470, %v4468
    %v4513 = vpack.c.b16 %v4471, %v4469
    %v4514 = vpack.c.b16 %v4474, %v4472
    %v4515 = vpack.c.b16 %v4475, %v4473
    %v4516 = vpack.c.b16 %v4478, %v4476
    %v4517 = vpack.c.b16 %v4479, %v4477
    %v4518 = vpack.c.b16 %v4482, %v4480
    %v4519 = vpack.c.b16 %v4483, %v4481
    %v4520 = vpack.c.b16 %v4486, %v4484
    %v4521 = vpack.c.b16 %v4487, %v4485
    %v4522 = vpack.c.b16 %v4490, %v4488
    %v4523 = vpack.c.b16 %v4491, %v4489
    %v4524 = vpack.c.b16 %v4494, %v4492
    %v4525 = vpack.c.b16 %v4495, %v4493
    %v4526 = vpack.c.b16 %v4498, %v4496
    %v4527 = vpack.c.b16 %v4499, %v4497
    %v4528 = vpack.c.b16 %v4502, %v4500
    %v4529 = vpack.c.b16 %v4503, %v4501
    %v4530 = vpack.c.b16 %v4504, %v4504
    %v4531 = vpack.c.b16 %v4505, %v4505
    %v4557 = vsel %vm558, %v4423, 0
    %v4560 = vsel %vm208, %v4530, 0
    %v4563 = vsel %vm208, %v4531, 0
    %4565 = vmatpush.bf16.msra.mxu0 %v4520
    %4566 = vmatpush.bf16.msra.mxu0 %v4518
    %4567 = vmatpush.bf16.msra.mxu0 %v4516
    %4568 = vmatpush.bf16.msra.mxu0 %v4514
    %4569 = vmatpush.bf16.msra.mxu0 %v4512
    %4570 = vmatpush.bf16.msra.mxu0 %v4510
    %4571 = vmatpush.bf16.msra.mxu0 %v4508
    %4572 = vmatpush.bf16.msra.mxu0 %v4506
    %4573 = vmatmul.bf16.gmra.mxu0 %v4422
    %v4574 = vpop.f32.mrf.mxu0
    %v4575 = vadd.f32 %v4427, %v4574
    %v4576 = vpop.f32.mrf.mxu0
    %4577 = vdwg.mxu0
    %4578 = vmatpush.bf16.msra.mxu0 0
    %4579 = vmatpush.bf16.msra.mxu0 0
    %4580 = vmatpush.bf16.msra.mxu0 0
    %4581 = vmatpush.bf16.msra.mxu0 %v4560
    %4582 = vmatpush.bf16.msra.mxu0 %v4528
    %4583 = vmatpush.bf16.msra.mxu0 %v4526
    %4584 = vmatpush.bf16.msra.mxu0 %v4524
    %4585 = vmatpush.bf16.msra.mxu0 %v4522
    %4586 = vmatmul.bf16.gmra.mxu0 %v4557
    %v4587 = vpop.f32.mrf.mxu0
    %v4588 = vadd.f32 %v4575, %v4587
    %v4589 = vpop.f32.mrf.mxu0
    %4590 = vdwg.mxu0
    %4591 = vmatpush.bf16.msra.mxu0 %v4521
    %4592 = vmatpush.bf16.msra.mxu0 %v4519
    %4593 = vmatpush.bf16.msra.mxu0 %v4517
    %4594 = vmatpush.bf16.msra.mxu0 %v4515
    %4595 = vmatpush.bf16.msra.mxu0 %v4513
    %4596 = vmatpush.bf16.msra.mxu0 %v4511
    %4597 = vmatpush.bf16.msra.mxu0 %v4509
    %4598 = vmatpush.bf16.msra.mxu0 %v4507
    %4599 = vmatmul.bf16.gmra.mxu0 %v4422
    %v4600 = vpop.f32.mrf.mxu0
    %v4601 = vadd.f32 %v4428, %v4600
    %v4602 = vpop.f32.mrf.mxu0
    %4603 = vdwg.mxu0
    %4604 = vmatpush.bf16.msra.mxu0 0
    %4605 = vmatpush.bf16.msra.mxu0 0
    %4606 = vmatpush.bf16.msra.mxu0 0
    %4607 = vmatpush.bf16.msra.mxu0 %v4563
    %4608 = vmatpush.bf16.msra.mxu0 %v4529
    %4609 = vmatpush.bf16.msra.mxu0 %v4527
    %4610 = vmatpush.bf16.msra.mxu0 %v4525
    %4611 = vmatpush.bf16.msra.mxu0 %v4523
    %4612 = vmatmul.bf16.gmra.mxu0 %v4557
    %v4613 = vpop.f32.mrf.mxu0
    %v4614 = vadd.f32 %v4601, %v4613
    %v4615 = vpop.f32.mrf.mxu0
    %4616 = vdwg.mxu0
    %v4617 = vmax.f32 %v4588, 0.0
    %v4618 = vmax.f32 %v4614, 0.0
    %v4619 = vld [vmem:[%s19] sm:$0xf]
    %v4620 = vld [vmem:[%s19 + $0x4] sm:$0xf]
    %v4621 = vld [vmem:[%s19 + $0x8] sm:$0xf]
    %v4622 = vld [vmem:[%s19 + $0xc] sm:$0xf]
    %v4623 = vld [vmem:[%s19 + $0x10] sm:$0xf]
    %v4624 = vld [vmem:[%s19 + $0x14] sm:$0xf]
    %v4625 = vld [vmem:[%s19 + $0x18] sm:$0xf]
    %v4626 = vld [vmem:[%s19 + $0x1c] sm:$0xf]
    %v4627 = vld [vmem:[%s19 + $0x20] sm:$0xf]
    %v4628 = vld [vmem:[%s19 + $0x24] sm:$0xf]
    %v4629 = vld [vmem:[%s19 + $0x28] sm:$0xf]
    %v4630 = vld [vmem:[%s19 + $0x2c] sm:$0xf]
    %v4631 = vld [vmem:[%s19 + $0x30] sm:$0xf]
    %v4632 = vld [vmem:[%s19 + $0x34] sm:$0xf]
    %v4633 = vld [vmem:[%s19 + $0x38] sm:$0xf]
    %v4634 = vld [vmem:[%s19 + $0x3c] sm:$0xf]
    %v4635 = vld [vmem:[%s19 + $0x40] sm:$0xf]
    %v4636 = vld [vmem:[%s19 + $0x44] sm:$0xf]
    %v4637 = vld [vmem:[%s19 + $0x48] sm:$0xf]
    %v4638 = vld [vmem:[%s19 + $0x4c] sm:$0xf]
    %v4639 = vld [vmem:[%s19 + $0x50] sm:$0xf]
    %v4640 = vld [vmem:[%s19 + $0x54] sm:$0xf]
    %v4641 = vld [vmem:[%s19 + $0x58] sm:$0xf]
    %v4642 = vld [vmem:[%s19 + $0x5c] sm:$0xf]
    %v4643 = vld [vmem:[%s19 + $0x60] sm:$0xf]
    %v4644 = vpack.c.bf16 %v4617, %v4617
    %v4645 = vpack.c.bf16 %v4618, %v4618
    %v4646 = vld [vmem:[%s20] sm:$0x1]
    %v4648 = vperm.slane %v4646, 0
    %v4675 = vunpack.c.l.b16 %v4619
    %v4676 = vunpack.c.l.b16 %v4620
    %v4677 = vunpack.c.l.b16 %v4621
    %v4678 = vunpack.c.l.b16 %v4622
    %v4679 = vunpack.c.l.b16 %v4623
    %v4680 = vunpack.c.l.b16 %v4624
    %v4681 = vunpack.c.l.b16 %v4625
    %v4682 = vunpack.c.l.b16 %v4626
    %v4683 = vunpack.c.l.b16 %v4627
    %v4684 = vunpack.c.l.b16 %v4628
    %v4685 = vunpack.c.l.b16 %v4629
    %v4686 = vunpack.c.l.b16 %v4630
    %v4687 = vunpack.c.l.b16 %v4631
    %v4688 = vunpack.c.l.b16 %v4632
    %v4689 = vunpack.c.l.b16 %v4633
    %v4690 = vunpack.c.l.b16 %v4634
    %v4691 = vunpack.c.l.b16 %v4635
    %v4692 = vunpack.c.l.b16 %v4636
    %v4693 = vunpack.c.l.b16 %v4637
    %v4694 = vunpack.c.l.b16 %v4638
    %v4695 = vunpack.c.l.b16 %v4639
    %v4696 = vunpack.c.l.b16 %v4640
    %v4697 = vunpack.c.l.b16 %v4641
    %v4698 = vunpack.c.l.b16 %v4642
    %v4699 = vunpack.c.l.b16 %v4643
    %v4700 = vpack.c.b16 %v4676, %v4675
    %v4701 = vpack.c.b16 %v4678, %v4677
    %v4702 = vpack.c.b16 %v4680, %v4679
    %v4703 = vpack.c.b16 %v4682, %v4681
    %v4704 = vpack.c.b16 %v4684, %v4683
    %v4705 = vpack.c.b16 %v4686, %v4685
    %v4706 = vpack.c.b16 %v4688, %v4687
    %v4707 = vpack.c.b16 %v4690, %v4689
    %v4708 = vpack.c.b16 %v4692, %v4691
    %v4709 = vpack.c.b16 %v4694, %v4693
    %v4710 = vpack.c.b16 %v4696, %v4695
    %v4711 = vpack.c.b16 %v4698, %v4697
    %v4712 = vpack.c.b16 %v4699, %v4699
    %v4726 = vsel %vm558, %v4645, 0
    %v4729 = vsel %vm208, %v4712, 0
    %4731 = vmatpush.bf16.msra.mxu0 %v4707
    %4732 = vmatpush.bf16.msra.mxu0 %v4706
    %4733 = vmatpush.bf16.msra.mxu0 %v4705
    %4734 = vmatpush.bf16.msra.mxu0 %v4704
    %4735 = vmatpush.bf16.msra.mxu0 %v4703
    %4736 = vmatpush.bf16.msra.mxu0 %v4702
    %4737 = vmatpush.bf16.msra.mxu0 %v4701
    %4738 = vmatpush.bf16.msra.mxu0 %v4700
    %4739 = vmatmul.bf16.gmra.mxu0 %v4644
    %v4740 = vpop.f32.mrf.mxu0
    %v4741 = vadd.f32 %v4648, %v4740
    %v4742 = vpop.f32.mrf.mxu0
    %4743 = vdwg.mxu0
    %4744 = vmatpush.bf16.msra.mxu0 0
    %4745 = vmatpush.bf16.msra.mxu0 0
    %4746 = vmatpush.bf16.msra.mxu0 0
    %4747 = vmatpush.bf16.msra.mxu0 %v4729
    %4748 = vmatpush.bf16.msra.mxu0 %v4711
    %4749 = vmatpush.bf16.msra.mxu0 %v4710
    %4750 = vmatpush.bf16.msra.mxu0 %v4709
    %4751 = vmatpush.bf16.msra.mxu0 %v4708
    %4752 = vmatmul.bf16.gmra.mxu0 %v4726
    %v4753 = vpop.f32.mrf.mxu0
    %v4754 = vadd.f32 %v4741, %v4753
    %v4755 = vpop.f32.mrf.mxu0
    %4756 = vdwg.mxu0
    %v4757 = vsub.f32 0.0, %v3911
    %v4758 = vrcp.pop %v4757
    %v4759 = vmul.f32 %v4757, %v4758
    %v4760 = vsub.f32 1.0, %v4759
    %v4761 = vmul.f32 %v4758, %v4760
    %v4762 = vadd.f32 %v4758, %v4761
    %vm4763 = vweird.f32 %v4757
    %vm4764 = vweird.f32 %v4758
    %vm4765 = vmor %vm4763, %vm4764
    %v4766 = vsel %vm4765, %v4758, %v4762
    %v4767 = vand.u32 2147483647, %v4757
    %vm4768 = vcmp.eq.f32.partialorder %v4767, 8.507059e+37
    %v4769 = vand.u32 %v4757, 2147483648
    %v4770 = vor.u32 1.1754944e-38, %v4769
    %v4771 = vsel %vm4768, %v4770, %v4766
    %v4772 = vsub.f32 %v4771, 1.0
    %v4773 = vadd.f32 %v4772, %v4754
    %v4774 = vsel %vm276, %v4773, -inf
    %4775 = vmax.xlane.f32.xlu0 %v4774
    %v4776 = vpop.xlane.xlu0 %4775
    %v4777 = vsub.f32 %v4773, %v4776
    %v4778 = vmul.f32 %v4777, 1.442695
    %v4779 = vpow.pop %v4778
    %v4780 = vsel %vm276, %v4779, 0.0
    %4781 = vadd.xlane.f32.xlu0 %v4780
    %v4782 = vpop.xlane.xlu0 %4781
    %v4783 = vrcp.pop %v4782
    %v4784 = vmul.f32 %v4779, %v4783
    %v4785 = vadd.f32 %v4784, 1e-14
    %4786 = vst.msk [vmem:[%s27] sm:$0xff] %vm276, %v4785
    %v4787 = vld [vmem:[#allocation9] sm:$0xff]
    %v4788 = vld [vmem:[#allocation9 + $0x8] sm:$0xff]
    %v4789 = vld [vmem:[#allocation9 + $0x10] sm:$0xff]
    %v4790 = vld [vmem:[#allocation9 + $0x18] sm:$0xff]
    %v4791 = vld [vmem:[#allocation9 + $0x20] sm:$0xff]
    %v4792 = vld [vmem:[#allocation9 + $0x28] sm:$0xff]
    %v4793 = vld [vmem:[#allocation9 + $0x30] sm:$0xff]
    %v4794 = vld [vmem:[#allocation9 + $0x38] sm:$0xff]
    %v4795 = vld [vmem:[#allocation9 + $0x40] sm:$0xff]
    %v4796 = vld [vmem:[#allocation9 + $0x48] sm:$0xff]
    %v4797 = vld [vmem:[#allocation9 + $0x50] sm:$0xff]
    %v4798 = vld [vmem:[#allocation9 + $0x58] sm:$0xff]
    %v4799 = vld [vmem:[#allocation9 + $0x60] sm:$0xff]
    %v4800 = vld [vmem:[#allocation9 + $0x68] sm:$0xff]
    %v4801 = vld [vmem:[#allocation9 + $0x70] sm:$0xff]
    %v4802 = vld [vmem:[#allocation9 + $0x78] sm:$0xff]
    %v4803 = vld [vmem:[#allocation9 + $0x80] sm:$0xff]
    %v4804 = vld [vmem:[#allocation9 + $0x88] sm:$0xff]
    %v4805 = vld [vmem:[#allocation9 + $0x90] sm:$0xff]
    %v4806 = vld [vmem:[#allocation9 + $0x98] sm:$0xff]
    %v4807 = vld [vmem:[#allocation9 + $0xa0] sm:$0xff]
    %v4808 = vld [vmem:[#allocation9 + $0xa8] sm:$0xff]
    %v4809 = vld [vmem:[#allocation9 + $0xb0] sm:$0xff]
    %v4810 = vld [vmem:[#allocation9 + $0xb8] sm:$0xff]
    %v4811 = vld [vmem:[#allocation9 + $0xc0] sm:$0xff]
    %v4812 = vld [vmem:[%s22] sm:$0x3]
    %v4814 = vperm.slane %v4812, 0
    %v4815 = vperm.slane %v4812, 1
    %v4843 = vunpack.c.l.b16 %v4787
    %v4844 = vunpack.c.h.b16 %v4787
    %v4845 = vunpack.c.l.b16 %v4788
    %v4846 = vunpack.c.h.b16 %v4788
    %v4847 = vunpack.c.l.b16 %v4789
    %v4848 = vunpack.c.h.b16 %v4789
    %v4849 = vunpack.c.l.b16 %v4790
    %v4850 = vunpack.c.h.b16 %v4790
    %v4851 = vunpack.c.l.b16 %v4791
    %v4852 = vunpack.c.h.b16 %v4791
    %v4853 = vunpack.c.l.b16 %v4792
    %v4854 = vunpack.c.h.b16 %v4792
    %v4855 = vunpack.c.l.b16 %v4793
    %v4856 = vunpack.c.h.b16 %v4793
    %v4857 = vunpack.c.l.b16 %v4794
    %v4858 = vunpack.c.h.b16 %v4794
    %v4859 = vunpack.c.l.b16 %v4795
    %v4860 = vunpack.c.h.b16 %v4795
    %v4861 = vunpack.c.l.b16 %v4796
    %v4862 = vunpack.c.h.b16 %v4796
    %v4863 = vunpack.c.l.b16 %v4797
    %v4864 = vunpack.c.h.b16 %v4797
    %v4865 = vunpack.c.l.b16 %v4798
    %v4866 = vunpack.c.h.b16 %v4798
    %v4867 = vunpack.c.l.b16 %v4799
    %v4868 = vunpack.c.h.b16 %v4799
    %v4869 = vunpack.c.l.b16 %v4800
    %v4870 = vunpack.c.h.b16 %v4800
    %v4871 = vunpack.c.l.b16 %v4801
    %v4872 = vunpack.c.h.b16 %v4801
    %v4873 = vunpack.c.l.b16 %v4802
    %v4874 = vunpack.c.h.b16 %v4802
    %v4875 = vunpack.c.l.b16 %v4803
    %v4876 = vunpack.c.h.b16 %v4803
    %v4877 = vunpack.c.l.b16 %v4804
    %v4878 = vunpack.c.h.b16 %v4804
    %v4879 = vunpack.c.l.b16 %v4805
    %v4880 = vunpack.c.h.b16 %v4805
    %v4881 = vunpack.c.l.b16 %v4806
    %v4882 = vunpack.c.h.b16 %v4806
    %v4883 = vunpack.c.l.b16 %v4807
    %v4884 = vunpack.c.h.b16 %v4807
    %v4885 = vunpack.c.l.b16 %v4808
    %v4886 = vunpack.c.h.b16 %v4808
    %v4887 = vunpack.c.l.b16 %v4809
    %v4888 = vunpack.c.h.b16 %v4809
    %v4889 = vunpack.c.l.b16 %v4810
    %v4890 = vunpack.c.h.b16 %v4810
    %v4891 = vunpack.c.l.b16 %v4811
    %v4892 = vunpack.c.h.b16 %v4811
    %v4893 = vpack.c.b16 %v4845, %v4843
    %v4894 = vpack.c.b16 %v4846, %v4844
    %v4895 = vpack.c.b16 %v4849, %v4847
    %v4896 = vpack.c.b16 %v4850, %v4848
    %v4897 = vpack.c.b16 %v4853, %v4851
    %v4898 = vpack.c.b16 %v4854, %v4852
    %v4899 = vpack.c.b16 %v4857, %v4855
    %v4900 = vpack.c.b16 %v4858, %v4856
    %v4901 = vpack.c.b16 %v4861, %v4859
    %v4902 = vpack.c.b16 %v4862, %v4860
    %v4903 = vpack.c.b16 %v4865, %v4863
    %v4904 = vpack.c.b16 %v4866, %v4864
    %v4905 = vpack.c.b16 %v4869, %v4867
    %v4906 = vpack.c.b16 %v4870, %v4868
    %v4907 = vpack.c.b16 %v4873, %v4871
    %v4908 = vpack.c.b16 %v4874, %v4872
    %v4909 = vpack.c.b16 %v4877, %v4875
    %v4910 = vpack.c.b16 %v4878, %v4876
    %v4911 = vpack.c.b16 %v4881, %v4879
    %v4912 = vpack.c.b16 %v4882, %v4880
    %v4913 = vpack.c.b16 %v4885, %v4883
    %v4914 = vpack.c.b16 %v4886, %v4884
    %v4915 = vpack.c.b16 %v4889, %v4887
    %v4916 = vpack.c.b16 %v4890, %v4888
    %v4917 = vpack.c.b16 %v4891, %v4891
    %v4918 = vpack.c.b16 %v4892, %v4892
    %v4944 = vsel %vm208, %v4917, 0
    %v4947 = vsel %vm208, %v4918, 0
    %4949 = vmatpush.bf16.msra.mxu0 %v4907
    %4950 = vmatpush.bf16.msra.mxu0 %v4905
    %4951 = vmatpush.bf16.msra.mxu0 %v4903
    %4952 = vmatpush.bf16.msra.mxu0 %v4901
    %4953 = vmatpush.bf16.msra.mxu0 %v4899
    %4954 = vmatpush.bf16.msra.mxu0 %v4897
    %4955 = vmatpush.bf16.msra.mxu0 %v4895
    %4956 = vmatpush.bf16.msra.mxu0 %v4893
    %4957 = vmatmul.bf16.gmra.mxu0 %v3937
    %v4958 = vpop.f32.mrf.mxu0
    %v4959 = vadd.f32 %v4814, %v4958
    %v4960 = vpop.f32.mrf.mxu0
    %4961 = vdwg.mxu0
    %4962 = vmatpush.bf16.msra.mxu0 0
    %4963 = vmatpush.bf16.msra.mxu0 0
    %4964 = vmatpush.bf16.msra.mxu0 0
    %4965 = vmatpush.bf16.msra.mxu0 %v4944
    %4966 = vmatpush.bf16.msra.mxu0 %v4915
    %4967 = vmatpush.bf16.msra.mxu0 %v4913
    %4968 = vmatpush.bf16.msra.mxu0 %v4911
    %4969 = vmatpush.bf16.msra.mxu0 %v4909
    %4970 = vmatmul.bf16.gmra.mxu0 %v4105
    %v4971 = vpop.f32.mrf.mxu0
    %v4972 = vadd.f32 %v4959, %v4971
    %v4973 = vpop.f32.mrf.mxu0
    %4974 = vdwg.mxu0
    %4975 = vmatpush.bf16.msra.mxu0 %v4908
    %4976 = vmatpush.bf16.msra.mxu0 %v4906
    %4977 = vmatpush.bf16.msra.mxu0 %v4904
    %4978 = vmatpush.bf16.msra.mxu0 %v4902
    %4979 = vmatpush.bf16.msra.mxu0 %v4900
    %4980 = vmatpush.bf16.msra.mxu0 %v4898
    %4981 = vmatpush.bf16.msra.mxu0 %v4896
    %4982 = vmatpush.bf16.msra.mxu0 %v4894
    %4983 = vmatmul.bf16.gmra.mxu0 %v3937
    %v4984 = vpop.f32.mrf.mxu0
    %v4985 = vadd.f32 %v4815, %v4984
    %v4986 = vpop.f32.mrf.mxu0
    %4987 = vdwg.mxu0
    %4988 = vmatpush.bf16.msra.mxu0 0
    %4989 = vmatpush.bf16.msra.mxu0 0
    %4990 = vmatpush.bf16.msra.mxu0 0
    %4991 = vmatpush.bf16.msra.mxu0 %v4947
    %4992 = vmatpush.bf16.msra.mxu0 %v4916
    %4993 = vmatpush.bf16.msra.mxu0 %v4914
    %4994 = vmatpush.bf16.msra.mxu0 %v4912
    %4995 = vmatpush.bf16.msra.mxu0 %v4910
    %4996 = vmatmul.bf16.gmra.mxu0 %v4105
    %v4997 = vpop.f32.mrf.mxu0
    %v4998 = vadd.f32 %v4985, %v4997
    %v4999 = vpop.f32.mrf.mxu0
    %5000 = vdwg.mxu0
    %v5001 = vmax.f32 %v4972, 0.0
    %v5002 = vmax.f32 %v4998, 0.0
    %v5003 = vld [vmem:[#allocation10] sm:$0xff]
    %v5004 = vld [vmem:[#allocation10 + $0x8] sm:$0xff]
    %v5005 = vld [vmem:[#allocation10 + $0x10] sm:$0xff]
    %v5006 = vld [vmem:[#allocation10 + $0x18] sm:$0xff]
    %v5007 = vld [vmem:[#allocation10 + $0x20] sm:$0xff]
    %v5008 = vld [vmem:[#allocation10 + $0x28] sm:$0xff]
    %v5009 = vld [vmem:[#allocation10 + $0x30] sm:$0xff]
    %v5010 = vld [vmem:[#allocation10 + $0x38] sm:$0xff]
    %v5011 = vld [vmem:[#allocation10 + $0x40] sm:$0xff]
    %v5012 = vld [vmem:[#allocation10 + $0x48] sm:$0xff]
    %v5013 = vld [vmem:[#allocation10 + $0x50] sm:$0xff]
    %v5014 = vld [vmem:[#allocation10 + $0x58] sm:$0xff]
    %v5015 = vld [vmem:[#allocation10 + $0x60] sm:$0xff]
    %v5016 = vld [vmem:[#allocation10 + $0x68] sm:$0xff]
    %v5017 = vld [vmem:[#allocation10 + $0x70] sm:$0xff]
    %v5018 = vld [vmem:[#allocation10 + $0x78] sm:$0xff]
    %v5019 = vld [vmem:[#allocation10 + $0x80] sm:$0xff]
    %v5020 = vld [vmem:[#allocation10 + $0x88] sm:$0xff]
    %v5021 = vld [vmem:[#allocation10 + $0x90] sm:$0xff]
    %v5022 = vld [vmem:[#allocation10 + $0x98] sm:$0xff]
    %v5023 = vld [vmem:[#allocation10 + $0xa0] sm:$0xff]
    %v5024 = vld [vmem:[#allocation10 + $0xa8] sm:$0xff]
    %v5025 = vld [vmem:[#allocation10 + $0xb0] sm:$0xff]
    %v5026 = vld [vmem:[#allocation10 + $0xb8] sm:$0xff]
    %v5027 = vld [vmem:[#allocation10 + $0xc0] sm:$0xff]
    %v5028 = vpack.c.bf16 %v5001, %v5001
    %v5029 = vpack.c.bf16 %v5002, %v5002
    %v5030 = vld [vmem:[%s24] sm:$0x3]
    %v5032 = vperm.slane %v5030, 0
    %v5033 = vperm.slane %v5030, 1
    %v5061 = vunpack.c.l.b16 %v5003
    %v5062 = vunpack.c.h.b16 %v5003
    %v5063 = vunpack.c.l.b16 %v5004
    %v5064 = vunpack.c.h.b16 %v5004
    %v5065 = vunpack.c.l.b16 %v5005
    %v5066 = vunpack.c.h.b16 %v5005
    %v5067 = vunpack.c.l.b16 %v5006
    %v5068 = vunpack.c.h.b16 %v5006
    %v5069 = vunpack.c.l.b16 %v5007
    %v5070 = vunpack.c.h.b16 %v5007
    %v5071 = vunpack.c.l.b16 %v5008
    %v5072 = vunpack.c.h.b16 %v5008
    %v5073 = vunpack.c.l.b16 %v5009
    %v5074 = vunpack.c.h.b16 %v5009
    %v5075 = vunpack.c.l.b16 %v5010
    %v5076 = vunpack.c.h.b16 %v5010
    %v5077 = vunpack.c.l.b16 %v5011
    %v5078 = vunpack.c.h.b16 %v5011
    %v5079 = vunpack.c.l.b16 %v5012
    %v5080 = vunpack.c.h.b16 %v5012
    %v5081 = vunpack.c.l.b16 %v5013
    %v5082 = vunpack.c.h.b16 %v5013
    %v5083 = vunpack.c.l.b16 %v5014
    %v5084 = vunpack.c.h.b16 %v5014
    %v5085 = vunpack.c.l.b16 %v5015
    %v5086 = vunpack.c.h.b16 %v5015
    %v5087 = vunpack.c.l.b16 %v5016
    %v5088 = vunpack.c.h.b16 %v5016
    %v5089 = vunpack.c.l.b16 %v5017
    %v5090 = vunpack.c.h.b16 %v5017
    %v5091 = vunpack.c.l.b16 %v5018
    %v5092 = vunpack.c.h.b16 %v5018
    %v5093 = vunpack.c.l.b16 %v5019
    %v5094 = vunpack.c.h.b16 %v5019
    %v5095 = vunpack.c.l.b16 %v5020
    %v5096 = vunpack.c.h.b16 %v5020
    %v5097 = vunpack.c.l.b16 %v5021
    %v5098 = vunpack.c.h.b16 %v5021
    %v5099 = vunpack.c.l.b16 %v5022
    %v5100 = vunpack.c.h.b16 %v5022
    %v5101 = vunpack.c.l.b16 %v5023
    %v5102 = vunpack.c.h.b16 %v5023
    %v5103 = vunpack.c.l.b16 %v5024
    %v5104 = vunpack.c.h.b16 %v5024
    %v5105 = vunpack.c.l.b16 %v5025
    %v5106 = vunpack.c.h.b16 %v5025
    %v5107 = vunpack.c.l.b16 %v5026
    %v5108 = vunpack.c.h.b16 %v5026
    %v5109 = vunpack.c.l.b16 %v5027
    %v5110 = vunpack.c.h.b16 %v5027
    %v5111 = vpack.c.b16 %v5063, %v5061
    %v5112 = vpack.c.b16 %v5064, %v5062
    %v5113 = vpack.c.b16 %v5067, %v5065
    %v5114 = vpack.c.b16 %v5068, %v5066
    %v5115 = vpack.c.b16 %v5071, %v5069
    %v5116 = vpack.c.b16 %v5072, %v5070
    %v5117 = vpack.c.b16 %v5075, %v5073
    %v5118 = vpack.c.b16 %v5076, %v5074
    %v5119 = vpack.c.b16 %v5079, %v5077
    %v5120 = vpack.c.b16 %v5080, %v5078
    %v5121 = vpack.c.b16 %v5083, %v5081
    %v5122 = vpack.c.b16 %v5084, %v5082
    %v5123 = vpack.c.b16 %v5087, %v5085
    %v5124 = vpack.c.b16 %v5088, %v5086
    %v5125 = vpack.c.b16 %v5091, %v5089
    %v5126 = vpack.c.b16 %v5092, %v5090
    %v5127 = vpack.c.b16 %v5095, %v5093
    %v5128 = vpack.c.b16 %v5096, %v5094
    %v5129 = vpack.c.b16 %v5099, %v5097
    %v5130 = vpack.c.b16 %v5100, %v5098
    %v5131 = vpack.c.b16 %v5103, %v5101
    %v5132 = vpack.c.b16 %v5104, %v5102
    %v5133 = vpack.c.b16 %v5107, %v5105
    %v5134 = vpack.c.b16 %v5108, %v5106
    %v5135 = vpack.c.b16 %v5109, %v5109
    %v5136 = vpack.c.b16 %v5110, %v5110
    %v5162 = vsel %vm558, %v5029, 0
    %v5165 = vsel %vm208, %v5135, 0
    %v5168 = vsel %vm208, %v5136, 0
    %5170 = vmatpush.bf16.msra.mxu0 %v5125
    %5171 = vmatpush.bf16.msra.mxu0 %v5123
    %5172 = vmatpush.bf16.msra.mxu0 %v5121
    %5173 = vmatpush.bf16.msra.mxu0 %v5119
    %5174 = vmatpush.bf16.msra.mxu0 %v5117
    %5175 = vmatpush.bf16.msra.mxu0 %v5115
    %5176 = vmatpush.bf16.msra.mxu0 %v5113
    %5177 = vmatpush.bf16.msra.mxu0 %v5111
    %5178 = vmatmul.bf16.gmra.mxu0 %v5028
    %v5179 = vpop.f32.mrf.mxu0
    %v5180 = vadd.f32 %v5032, %v5179
    %v5181 = vpop.f32.mrf.mxu0
    %5182 = vdwg.mxu0
    %5183 = vmatpush.bf16.msra.mxu0 0
    %5184 = vmatpush.bf16.msra.mxu0 0
    %5185 = vmatpush.bf16.msra.mxu0 0
    %5186 = vmatpush.bf16.msra.mxu0 %v5165
    %5187 = vmatpush.bf16.msra.mxu0 %v5133
    %5188 = vmatpush.bf16.msra.mxu0 %v5131
    %5189 = vmatpush.bf16.msra.mxu0 %v5129
    %5190 = vmatpush.bf16.msra.mxu0 %v5127
    %5191 = vmatmul.bf16.gmra.mxu0 %v5162
    %v5192 = vpop.f32.mrf.mxu0
    %v5193 = vadd.f32 %v5180, %v5192
    %v5194 = vpop.f32.mrf.mxu0
    %5195 = vdwg.mxu0
    %5196 = vmatpush.bf16.msra.mxu0 %v5126
    %5197 = vmatpush.bf16.msra.mxu0 %v5124
    %5198 = vmatpush.bf16.msra.mxu0 %v5122
    %5199 = vmatpush.bf16.msra.mxu0 %v5120
    %5200 = vmatpush.bf16.msra.mxu0 %v5118
    %5201 = vmatpush.bf16.msra.mxu0 %v5116
    %5202 = vmatpush.bf16.msra.mxu0 %v5114
    %5203 = vmatpush.bf16.msra.mxu0 %v5112
    %5204 = vmatmul.bf16.gmra.mxu0 %v5028
    %v5205 = vpop.f32.mrf.mxu0
    %v5206 = vadd.f32 %v5033, %v5205
    %v5207 = vpop.f32.mrf.mxu0
    %5208 = vdwg.mxu0
    %5209 = vmatpush.bf16.msra.mxu0 0
    %5210 = vmatpush.bf16.msra.mxu0 0
    %5211 = vmatpush.bf16.msra.mxu0 0
    %5212 = vmatpush.bf16.msra.mxu0 %v5168
    %5213 = vmatpush.bf16.msra.mxu0 %v5134
    %5214 = vmatpush.bf16.msra.mxu0 %v5132
    %5215 = vmatpush.bf16.msra.mxu0 %v5130
    %5216 = vmatpush.bf16.msra.mxu0 %v5128
    %5217 = vmatmul.bf16.gmra.mxu0 %v5162
    %v5218 = vpop.f32.mrf.mxu0
    %v5219 = vadd.f32 %v5206, %v5218
    %v5220 = vpop.f32.mrf.mxu0
    %5221 = vdwg.mxu0
    %v5222 = vmax.f32 %v5193, 0.0
    %v5223 = vmax.f32 %v5219, 0.0
    %s5224 = scalar_lea.vmem [#allocation10], 200
    %v5225 = vld [vmem:[%s5224] sm:$0xff]
    %v5226 = vld [vmem:[%s5224 + $0x8] sm:$0xff]
    %v5227 = vld [vmem:[%s5224 + $0x10] sm:$0xff]
    %v5228 = vld [vmem:[%s5224 + $0x18] sm:$0xff]
    %v5229 = vld [vmem:[%s5224 + $0x20] sm:$0xff]
    %v5230 = vld [vmem:[%s5224 + $0x28] sm:$0xff]
    %v5231 = vld [vmem:[%s5224 + $0x30] sm:$0xff]
    %v5232 = vld [vmem:[%s5224 + $0x38] sm:$0xff]
    %v5233 = vld [vmem:[%s5224 + $0x40] sm:$0xff]
    %v5234 = vld [vmem:[%s5224 + $0x48] sm:$0xff]
    %v5235 = vld [vmem:[%s5224 + $0x50] sm:$0xff]
    %v5236 = vld [vmem:[%s5224 + $0x58] sm:$0xff]
    %v5237 = vld [vmem:[%s5224 + $0x60] sm:$0xff]
    %v5238 = vld [vmem:[%s5224 + $0x68] sm:$0xff]
    %v5239 = vld [vmem:[%s5224 + $0x70] sm:$0xff]
    %v5240 = vld [vmem:[%s5224 + $0x78] sm:$0xff]
    %v5241 = vld [vmem:[%s5224 + $0x80] sm:$0xff]
    %v5242 = vld [vmem:[%s5224 + $0x88] sm:$0xff]
    %v5243 = vld [vmem:[%s5224 + $0x90] sm:$0xff]
    %v5244 = vld [vmem:[%s5224 + $0x98] sm:$0xff]
    %v5245 = vld [vmem:[%s5224 + $0xa0] sm:$0xff]
    %v5246 = vld [vmem:[%s5224 + $0xa8] sm:$0xff]
    %v5247 = vld [vmem:[%s5224 + $0xb0] sm:$0xff]
    %v5248 = vld [vmem:[%s5224 + $0xb8] sm:$0xff]
    %v5249 = vld [vmem:[%s5224 + $0xc0] sm:$0xff]
    %v5250 = vpack.c.bf16 %v5222, %v5222
    %v5251 = vpack.c.bf16 %v5223, %v5223
    %s5252 = scalar_lea.vmem %s24, 2
    %v5253 = vld [vmem:[%s5252] sm:$0x3]
    %v5255 = vperm.slane %v5253, 0
    %v5256 = vperm.slane %v5253, 1
    %v5284 = vunpack.c.l.b16 %v5225
    %v5285 = vunpack.c.h.b16 %v5225
    %v5286 = vunpack.c.l.b16 %v5226
    %v5287 = vunpack.c.h.b16 %v5226
    %v5288 = vunpack.c.l.b16 %v5227
    %v5289 = vunpack.c.h.b16 %v5227
    %v5290 = vunpack.c.l.b16 %v5228
    %v5291 = vunpack.c.h.b16 %v5228
    %v5292 = vunpack.c.l.b16 %v5229
    %v5293 = vunpack.c.h.b16 %v5229
    %v5294 = vunpack.c.l.b16 %v5230
    %v5295 = vunpack.c.h.b16 %v5230
    %v5296 = vunpack.c.l.b16 %v5231
    %v5297 = vunpack.c.h.b16 %v5231
    %v5298 = vunpack.c.l.b16 %v5232
    %v5299 = vunpack.c.h.b16 %v5232
    %v5300 = vunpack.c.l.b16 %v5233
    %v5301 = vunpack.c.h.b16 %v5233
    %v5302 = vunpack.c.l.b16 %v5234
    %v5303 = vunpack.c.h.b16 %v5234
    %v5304 = vunpack.c.l.b16 %v5235
    %v5305 = vunpack.c.h.b16 %v5235
    %v5306 = vunpack.c.l.b16 %v5236
    %v5307 = vunpack.c.h.b16 %v5236
    %v5308 = vunpack.c.l.b16 %v5237
    %v5309 = vunpack.c.h.b16 %v5237
    %v5310 = vunpack.c.l.b16 %v5238
    %v5311 = vunpack.c.h.b16 %v5238
    %v5312 = vunpack.c.l.b16 %v5239
    %v5313 = vunpack.c.h.b16 %v5239
    %v5314 = vunpack.c.l.b16 %v5240
    %v5315 = vunpack.c.h.b16 %v5240
    %v5316 = vunpack.c.l.b16 %v5241
    %v5317 = vunpack.c.h.b16 %v5241
    %v5318 = vunpack.c.l.b16 %v5242
    %v5319 = vunpack.c.h.b16 %v5242
    %v5320 = vunpack.c.l.b16 %v5243
    %v5321 = vunpack.c.h.b16 %v5243
    %v5322 = vunpack.c.l.b16 %v5244
    %v5323 = vunpack.c.h.b16 %v5244
    %v5324 = vunpack.c.l.b16 %v5245
    %v5325 = vunpack.c.h.b16 %v5245
    %v5326 = vunpack.c.l.b16 %v5246
    %v5327 = vunpack.c.h.b16 %v5246
    %v5328 = vunpack.c.l.b16 %v5247
    %v5329 = vunpack.c.h.b16 %v5247
    %v5330 = vunpack.c.l.b16 %v5248
    %v5331 = vunpack.c.h.b16 %v5248
    %v5332 = vunpack.c.l.b16 %v5249
    %v5333 = vunpack.c.h.b16 %v5249
    %v5334 = vpack.c.b16 %v5286, %v5284
    %v5335 = vpack.c.b16 %v5287, %v5285
    %v5336 = vpack.c.b16 %v5290, %v5288
    %v5337 = vpack.c.b16 %v5291, %v5289
    %v5338 = vpack.c.b16 %v5294, %v5292
    %v5339 = vpack.c.b16 %v5295, %v5293
    %v5340 = vpack.c.b16 %v5298, %v5296
    %v5341 = vpack.c.b16 %v5299, %v5297
    %v5342 = vpack.c.b16 %v5302, %v5300
    %v5343 = vpack.c.b16 %v5303, %v5301
    %v5344 = vpack.c.b16 %v5306, %v5304
    %v5345 = vpack.c.b16 %v5307, %v5305
    %v5346 = vpack.c.b16 %v5310, %v5308
    %v5347 = vpack.c.b16 %v5311, %v5309
    %v5348 = vpack.c.b16 %v5314, %v5312
    %v5349 = vpack.c.b16 %v5315, %v5313
    %v5350 = vpack.c.b16 %v5318, %v5316
    %v5351 = vpack.c.b16 %v5319, %v5317
    %v5352 = vpack.c.b16 %v5322, %v5320
    %v5353 = vpack.c.b16 %v5323, %v5321
    %v5354 = vpack.c.b16 %v5326, %v5324
    %v5355 = vpack.c.b16 %v5327, %v5325
    %v5356 = vpack.c.b16 %v5330, %v5328
    %v5357 = vpack.c.b16 %v5331, %v5329
    %v5358 = vpack.c.b16 %v5332, %v5332
    %v5359 = vpack.c.b16 %v5333, %v5333
    %v5385 = vsel %vm558, %v5251, 0
    %v5388 = vsel %vm208, %v5358, 0
    %v5391 = vsel %vm208, %v5359, 0
    %5393 = vmatpush.bf16.msra.mxu0 %v5348
    %5394 = vmatpush.bf16.msra.mxu0 %v5346
    %5395 = vmatpush.bf16.msra.mxu0 %v5344
    %5396 = vmatpush.bf16.msra.mxu0 %v5342
    %5397 = vmatpush.bf16.msra.mxu0 %v5340
    %5398 = vmatpush.bf16.msra.mxu0 %v5338
    %5399 = vmatpush.bf16.msra.mxu0 %v5336
    %5400 = vmatpush.bf16.msra.mxu0 %v5334
    %5401 = vmatmul.bf16.gmra.mxu0 %v5250
    %v5402 = vpop.f32.mrf.mxu0
    %v5403 = vadd.f32 %v5255, %v5402
    %v5404 = vpop.f32.mrf.mxu0
    %5405 = vdwg.mxu0
    %5406 = vmatpush.bf16.msra.mxu0 0
    %5407 = vmatpush.bf16.msra.mxu0 0
    %5408 = vmatpush.bf16.msra.mxu0 0
    %5409 = vmatpush.bf16.msra.mxu0 %v5388
    %5410 = vmatpush.bf16.msra.mxu0 %v5356
    %5411 = vmatpush.bf16.msra.mxu0 %v5354
    %5412 = vmatpush.bf16.msra.mxu0 %v5352
    %5413 = vmatpush.bf16.msra.mxu0 %v5350
    %5414 = vmatmul.bf16.gmra.mxu0 %v5385
    %v5415 = vpop.f32.mrf.mxu0
    %v5416 = vadd.f32 %v5403, %v5415
    %v5417 = vpop.f32.mrf.mxu0
    %5418 = vdwg.mxu0
    %5419 = vmatpush.bf16.msra.mxu0 %v5349
    %5420 = vmatpush.bf16.msra.mxu0 %v5347
    %5421 = vmatpush.bf16.msra.mxu0 %v5345
    %5422 = vmatpush.bf16.msra.mxu0 %v5343
    %5423 = vmatpush.bf16.msra.mxu0 %v5341
    %5424 = vmatpush.bf16.msra.mxu0 %v5339
    %5425 = vmatpush.bf16.msra.mxu0 %v5337
    %5426 = vmatpush.bf16.msra.mxu0 %v5335
    %5427 = vmatmul.bf16.gmra.mxu0 %v5250
    %v5428 = vpop.f32.mrf.mxu0
    %v5429 = vadd.f32 %v5256, %v5428
    %v5430 = vpop.f32.mrf.mxu0
    %5431 = vdwg.mxu0
    %5432 = vmatpush.bf16.msra.mxu0 0
    %5433 = vmatpush.bf16.msra.mxu0 0
    %5434 = vmatpush.bf16.msra.mxu0 0
    %5435 = vmatpush.bf16.msra.mxu0 %v5391
    %5436 = vmatpush.bf16.msra.mxu0 %v5357
    %5437 = vmatpush.bf16.msra.mxu0 %v5355
    %5438 = vmatpush.bf16.msra.mxu0 %v5353
    %5439 = vmatpush.bf16.msra.mxu0 %v5351
    %5440 = vmatmul.bf16.gmra.mxu0 %v5385
    %v5441 = vpop.f32.mrf.mxu0
    %v5442 = vadd.f32 %v5429, %v5441
    %v5443 = vpop.f32.mrf.mxu0
    %5444 = vdwg.mxu0
    %v5445 = vmax.f32 %v5416, 0.0
    %v5446 = vmax.f32 %v5442, 0.0
    %v5447 = vld [vmem:[%s25] sm:$0xf]
    %v5448 = vld [vmem:[%s25 + $0x4] sm:$0xf]
    %v5449 = vld [vmem:[%s25 + $0x8] sm:$0xf]
    %v5450 = vld [vmem:[%s25 + $0xc] sm:$0xf]
    %v5451 = vld [vmem:[%s25 + $0x10] sm:$0xf]
    %v5452 = vld [vmem:[%s25 + $0x14] sm:$0xf]
    %v5453 = vld [vmem:[%s25 + $0x18] sm:$0xf]
    %v5454 = vld [vmem:[%s25 + $0x1c] sm:$0xf]
    %v5455 = vld [vmem:[%s25 + $0x20] sm:$0xf]
    %v5456 = vld [vmem:[%s25 + $0x24] sm:$0xf]
    %v5457 = vld [vmem:[%s25 + $0x28] sm:$0xf]
    %v5458 = vld [vmem:[%s25 + $0x2c] sm:$0xf]
    %v5459 = vld [vmem:[%s25 + $0x30] sm:$0xf]
    %v5460 = vld [vmem:[%s25 + $0x34] sm:$0xf]
    %v5461 = vld [vmem:[%s25 + $0x38] sm:$0xf]
    %v5462 = vld [vmem:[%s25 + $0x3c] sm:$0xf]
    %v5463 = vld [vmem:[%s25 + $0x40] sm:$0xf]
    %v5464 = vld [vmem:[%s25 + $0x44] sm:$0xf]
    %v5465 = vld [vmem:[%s25 + $0x48] sm:$0xf]
    %v5466 = vld [vmem:[%s25 + $0x4c] sm:$0xf]
    %v5467 = vld [vmem:[%s25 + $0x50] sm:$0xf]
    %v5468 = vld [vmem:[%s25 + $0x54] sm:$0xf]
    %v5469 = vld [vmem:[%s25 + $0x58] sm:$0xf]
    %v5470 = vld [vmem:[%s25 + $0x5c] sm:$0xf]
    %v5471 = vld [vmem:[%s25 + $0x60] sm:$0xf]
    %v5472 = vpack.c.bf16 %v5445, %v5445
    %v5473 = vpack.c.bf16 %v5446, %v5446
    %v5474 = vld [vmem:[%s26] sm:$0x1]
    %v5476 = vperm.slane %v5474, 0
    %v5503 = vunpack.c.l.b16 %v5447
    %v5504 = vunpack.c.l.b16 %v5448
    %v5505 = vunpack.c.l.b16 %v5449
    %v5506 = vunpack.c.l.b16 %v5450
    %v5507 = vunpack.c.l.b16 %v5451
    %v5508 = vunpack.c.l.b16 %v5452
    %v5509 = vunpack.c.l.b16 %v5453
    %v5510 = vunpack.c.l.b16 %v5454
    %v5511 = vunpack.c.l.b16 %v5455
    %v5512 = vunpack.c.l.b16 %v5456
    %v5513 = vunpack.c.l.b16 %v5457
    %v5514 = vunpack.c.l.b16 %v5458
    %v5515 = vunpack.c.l.b16 %v5459
    %v5516 = vunpack.c.l.b16 %v5460
    %v5517 = vunpack.c.l.b16 %v5461
    %v5518 = vunpack.c.l.b16 %v5462
    %v5519 = vunpack.c.l.b16 %v5463
    %v5520 = vunpack.c.l.b16 %v5464
    %v5521 = vunpack.c.l.b16 %v5465
    %v5522 = vunpack.c.l.b16 %v5466
    %v5523 = vunpack.c.l.b16 %v5467
    %v5524 = vunpack.c.l.b16 %v5468
    %v5525 = vunpack.c.l.b16 %v5469
    %v5526 = vunpack.c.l.b16 %v5470
    %v5527 = vunpack.c.l.b16 %v5471
    %v5528 = vpack.c.b16 %v5504, %v5503
    %v5529 = vpack.c.b16 %v5506, %v5505
    %v5530 = vpack.c.b16 %v5508, %v5507
    %v5531 = vpack.c.b16 %v5510, %v5509
    %v5532 = vpack.c.b16 %v5512, %v5511
    %v5533 = vpack.c.b16 %v5514, %v5513
    %v5534 = vpack.c.b16 %v5516, %v5515
    %v5535 = vpack.c.b16 %v5518, %v5517
    %v5536 = vpack.c.b16 %v5520, %v5519
    %v5537 = vpack.c.b16 %v5522, %v5521
    %v5538 = vpack.c.b16 %v5524, %v5523
    %v5539 = vpack.c.b16 %v5526, %v5525
    %v5540 = vpack.c.b16 %v5527, %v5527
    %v5554 = vsel %vm558, %v5473, 0
    %v5557 = vsel %vm208, %v5540, 0
    %5559 = vmatpush.bf16.msra.mxu0 %v5535
    %5560 = vmatpush.bf16.msra.mxu0 %v5534
    %5561 = vmatpush.bf16.msra.mxu0 %v5533
    %5562 = vmatpush.bf16.msra.mxu0 %v5532
    %5563 = vmatpush.bf16.msra.mxu0 %v5531
    %5564 = vmatpush.bf16.msra.mxu0 %v5530
    %5565 = vmatpush.bf16.msra.mxu0 %v5529
    %5566 = vmatpush.bf16.msra.mxu0 %v5528
    %5567 = vmatmul.bf16.gmra.mxu0 %v5472
    %v5568 = vpop.f32.mrf.mxu0
    %v5569 = vadd.f32 %v5476, %v5568
    %v5570 = vpop.f32.mrf.mxu0
    %5571 = vdwg.mxu0
    %5572 = vmatpush.bf16.msra.mxu0 0
    %5573 = vmatpush.bf16.msra.mxu0 0
    %5574 = vmatpush.bf16.msra.mxu0 0
    %5575 = vmatpush.bf16.msra.mxu0 %v5557
    %5576 = vmatpush.bf16.msra.mxu0 %v5539
    %5577 = vmatpush.bf16.msra.mxu0 %v5538
    %5578 = vmatpush.bf16.msra.mxu0 %v5537
    %5579 = vmatpush.bf16.msra.mxu0 %v5536
    %5580 = vmatmul.bf16.gmra.mxu0 %v5554
    %v5581 = vpop.f32.mrf.mxu0
    %v5582 = vadd.f32 %v5569, %v5581
    %v5583 = vpop.f32.mrf.mxu0
    %5584 = vdwg.mxu0
    %vm5585 = vcmask 23552
    %v5586 = vsel %vm5585, %v5582, -inf
    %5587 = vmax.xlane.f32.xlu0 %v5586
    %v5588 = vpop.xlane.xlu0 %5587
    %v5589 = vsub.f32 %v5582, %v5588
    %v5590 = vmul.f32 %v5589, 1.442695
    %v5591 = vpow.pop %v5590
    %v5592 = vsel %vm5585, %v5591, 0.0
    %5593 = vadd.xlane.f32.xlu0 %v5592
    %v5594 = vpop.xlane.xlu0 %5593
    %v5595 = vrcp.pop %v5594
    %v5596 = vmul.f32 %v5591, %v5595
    %5597 = vst.msk [vmem:[%s28] sm:$0xff] %vm5585, %v5596
    %s5598 = scalar_lea.vmem %s2, 8
    %v5599 = vld [vmem:[%s5598] sm:$0xff]
    %s5600 = scalar_lea.vmem %s14, 200
    %v5601 = vld [vmem:[%s5600] sm:$0xff]
    %v5602 = vld [vmem:[%s5600 + $0x8] sm:$0xff]
    %v5603 = vld [vmem:[%s5600 + $0x10] sm:$0xff]
    %v5604 = vld [vmem:[%s5600 + $0x18] sm:$0xff]
    %v5605 = vld [vmem:[%s5600 + $0x20] sm:$0xff]
    %v5606 = vld [vmem:[%s5600 + $0x28] sm:$0xff]
    %v5607 = vld [vmem:[%s5600 + $0x30] sm:$0xff]
    %v5608 = vld [vmem:[%s5600 + $0x38] sm:$0xff]
    %v5609 = vld [vmem:[%s5600 + $0x40] sm:$0xff]
    %v5610 = vld [vmem:[%s5600 + $0x48] sm:$0xff]
    %v5611 = vld [vmem:[%s5600 + $0x50] sm:$0xff]
    %v5612 = vld [vmem:[%s5600 + $0x58] sm:$0xff]
    %v5613 = vld [vmem:[%s5600 + $0x60] sm:$0xff]
    %v5614 = vld [vmem:[%s5600 + $0x68] sm:$0xff]
    %v5615 = vld [vmem:[%s5600 + $0x70] sm:$0xff]
    %v5616 = vld [vmem:[%s5600 + $0x78] sm:$0xff]
    %v5617 = vld [vmem:[%s5600 + $0x80] sm:$0xff]
    %v5618 = vld [vmem:[%s5600 + $0x88] sm:$0xff]
    %v5619 = vld [vmem:[%s5600 + $0x90] sm:$0xff]
    %v5620 = vld [vmem:[%s5600 + $0x98] sm:$0xff]
    %v5621 = vld [vmem:[%s5600 + $0xa0] sm:$0xff]
    %v5622 = vld [vmem:[%s5600 + $0xa8] sm:$0xff]
    %v5623 = vld [vmem:[%s5600 + $0xb0] sm:$0xff]
    %v5624 = vld [vmem:[%s5600 + $0xb8] sm:$0xff]
    %v5625 = vld [vmem:[%s5600 + $0xc0] sm:$0xff]
    %v5626 = vmax.f32 %v5599, 0.0
    %s5627 = scalar_lea.vmem %s15, 4
    %v5628 = vld [vmem:[%s5627] sm:$0xf]
    %v5629 = vpack.c.bf16 %v5626, %v5626
    %5631 = vst [vmem:[#allocation1] ss:$4 sm:$0xff] %v5628
    %v5632 = vld.sshfl [vmem:[#allocation1] sm:$0xff pattern:$0x73625140]
    %v5633 = vld.sshfl [vmem:[#allocation1 + $0x8] sm:$0xff pattern:$0x73625140]
    %v5635 = vsel %vm276, %v5629, 0
    %v5637 = vsel %vm289, %v5632, 0
    %v5639 = vsel %vm289, %v5633, 0
    %5641 = vmatpush.bf16.msra.mxu0 0
    %5642 = vmatpush.bf16.msra.mxu0 0
    %5643 = vmatpush.bf16.msra.mxu0 0
    %5644 = vmatpush.bf16.msra.mxu0 0
    %5645 = vmatpush.bf16.msra.mxu0 0
    %5646 = vmatpush.bf16.msra.mxu0 0
    %5647 = vmatpush.bf16.msra.mxu0 0
    %5648 = vmatpush.bf16.msra.mxu0 %v5637
    %5649 = vmatmul.bf16.gmra.mxu0 %v5635
    %v5650 = vpop.f32.mrf.mxu0
    %v5651 = vadd.f32 0.0, %v5650
    %v5652 = vpop.f32.mrf.mxu0
    %5653 = vdwg.mxu0
    %5654 = vmatpush.bf16.msra.mxu0 0
    %5655 = vmatpush.bf16.msra.mxu0 0
    %5656 = vmatpush.bf16.msra.mxu0 0
    %5657 = vmatpush.bf16.msra.mxu0 0
    %5658 = vmatpush.bf16.msra.mxu0 0
    %5659 = vmatpush.bf16.msra.mxu0 0
    %5660 = vmatpush.bf16.msra.mxu0 0
    %5661 = vmatpush.bf16.msra.mxu0 %v5639
    %5662 = vmatmul.bf16.gmra.mxu0 %v5635
    %v5663 = vpop.f32.mrf.mxu0
    %v5664 = vadd.f32 0.0, %v5663
    %v5665 = vpop.f32.mrf.mxu0
    %5666 = vdwg.mxu0
    %v5692 = vunpack.c.l.b16 %v5601
    %v5693 = vunpack.c.h.b16 %v5601
    %v5694 = vunpack.c.l.b16 %v5602
    %v5695 = vunpack.c.h.b16 %v5602
    %v5696 = vunpack.c.l.b16 %v5603
    %v5697 = vunpack.c.h.b16 %v5603
    %v5698 = vunpack.c.l.b16 %v5604
    %v5699 = vunpack.c.h.b16 %v5604
    %v5700 = vunpack.c.l.b16 %v5605
    %v5701 = vunpack.c.h.b16 %v5605
    %v5702 = vunpack.c.l.b16 %v5606
    %v5703 = vunpack.c.h.b16 %v5606
    %v5704 = vunpack.c.l.b16 %v5607
    %v5705 = vunpack.c.h.b16 %v5607
    %v5706 = vunpack.c.l.b16 %v5608
    %v5707 = vunpack.c.h.b16 %v5608
    %v5708 = vunpack.c.l.b16 %v5609
    %v5709 = vunpack.c.h.b16 %v5609
    %v5710 = vunpack.c.l.b16 %v5610
    %v5711 = vunpack.c.h.b16 %v5610
    %v5712 = vunpack.c.l.b16 %v5611
    %v5713 = vunpack.c.h.b16 %v5611
    %v5714 = vunpack.c.l.b16 %v5612
    %v5715 = vunpack.c.h.b16 %v5612
    %v5716 = vunpack.c.l.b16 %v5613
    %v5717 = vunpack.c.h.b16 %v5613
    %v5718 = vunpack.c.l.b16 %v5614
    %v5719 = vunpack.c.h.b16 %v5614
    %v5720 = vunpack.c.l.b16 %v5615
    %v5721 = vunpack.c.h.b16 %v5615
    %v5722 = vunpack.c.l.b16 %v5616
    %v5723 = vunpack.c.h.b16 %v5616
    %v5724 = vunpack.c.l.b16 %v5617
    %v5725 = vunpack.c.h.b16 %v5617
    %v5726 = vunpack.c.l.b16 %v5618
    %v5727 = vunpack.c.h.b16 %v5618
    %v5728 = vunpack.c.l.b16 %v5619
    %v5729 = vunpack.c.h.b16 %v5619
    %v5730 = vunpack.c.l.b16 %v5620
    %v5731 = vunpack.c.h.b16 %v5620
    %v5732 = vunpack.c.l.b16 %v5621
    %v5733 = vunpack.c.h.b16 %v5621
    %v5734 = vunpack.c.l.b16 %v5622
    %v5735 = vunpack.c.h.b16 %v5622
    %v5736 = vunpack.c.l.b16 %v5623
    %v5737 = vunpack.c.h.b16 %v5623
    %v5738 = vunpack.c.l.b16 %v5624
    %v5739 = vunpack.c.h.b16 %v5624
    %v5740 = vunpack.c.l.b16 %v5625
    %v5741 = vunpack.c.h.b16 %v5625
    %v5742 = vpack.c.b16 %v5694, %v5692
    %v5743 = vpack.c.b16 %v5695, %v5693
    %v5744 = vpack.c.b16 %v5698, %v5696
    %v5745 = vpack.c.b16 %v5699, %v5697
    %v5746 = vpack.c.b16 %v5702, %v5700
    %v5747 = vpack.c.b16 %v5703, %v5701
    %v5748 = vpack.c.b16 %v5706, %v5704
    %v5749 = vpack.c.b16 %v5707, %v5705
    %v5750 = vpack.c.b16 %v5710, %v5708
    %v5751 = vpack.c.b16 %v5711, %v5709
    %v5752 = vpack.c.b16 %v5714, %v5712
    %v5753 = vpack.c.b16 %v5715, %v5713
    %v5754 = vpack.c.b16 %v5718, %v5716
    %v5755 = vpack.c.b16 %v5719, %v5717
    %v5756 = vpack.c.b16 %v5722, %v5720
    %v5757 = vpack.c.b16 %v5723, %v5721
    %v5758 = vpack.c.b16 %v5726, %v5724
    %v5759 = vpack.c.b16 %v5727, %v5725
    %v5760 = vpack.c.b16 %v5730, %v5728
    %v5761 = vpack.c.b16 %v5731, %v5729
    %v5762 = vpack.c.b16 %v5734, %v5732
    %v5763 = vpack.c.b16 %v5735, %v5733
    %v5764 = vpack.c.b16 %v5738, %v5736
    %v5765 = vpack.c.b16 %v5739, %v5737
    %v5766 = vpack.c.b16 %v5740, %v5740
    %v5767 = vpack.c.b16 %v5741, %v5741
    %v5793 = vsel %vm208, %v5766, 0
    %v5796 = vsel %vm208, %v5767, 0
    %5798 = vmatpush.bf16.msra.mxu0 %v5756
    %5799 = vmatpush.bf16.msra.mxu0 %v5754
    %5800 = vmatpush.bf16.msra.mxu0 %v5752
    %5801 = vmatpush.bf16.msra.mxu0 %v5750
    %5802 = vmatpush.bf16.msra.mxu0 %v5748
    %5803 = vmatpush.bf16.msra.mxu0 %v5746
    %5804 = vmatpush.bf16.msra.mxu0 %v5744
    %5805 = vmatpush.bf16.msra.mxu0 %v5742
    %5806 = vmatmul.bf16.gmra.mxu0 %v3937
    %v5807 = vpop.f32.mrf.mxu0
    %v5808 = vadd.f32 %v5651, %v5807
    %v5809 = vpop.f32.mrf.mxu0
    %5810 = vdwg.mxu0
    %5811 = vmatpush.bf16.msra.mxu0 0
    %5812 = vmatpush.bf16.msra.mxu0 0
    %5813 = vmatpush.bf16.msra.mxu0 0
    %5814 = vmatpush.bf16.msra.mxu0 %v5793
    %5815 = vmatpush.bf16.msra.mxu0 %v5764
    %5816 = vmatpush.bf16.msra.mxu0 %v5762
    %5817 = vmatpush.bf16.msra.mxu0 %v5760
    %5818 = vmatpush.bf16.msra.mxu0 %v5758
    %5819 = vmatmul.bf16.gmra.mxu0 %v4105
    %v5820 = vpop.f32.mrf.mxu0
    %v5821 = vadd.f32 %v5808, %v5820
    %v5822 = vpop.f32.mrf.mxu0
    %5823 = vdwg.mxu0
    %5824 = vmatpush.bf16.msra.mxu0 %v5757
    %5825 = vmatpush.bf16.msra.mxu0 %v5755
    %5826 = vmatpush.bf16.msra.mxu0 %v5753
    %5827 = vmatpush.bf16.msra.mxu0 %v5751
    %5828 = vmatpush.bf16.msra.mxu0 %v5749
    %5829 = vmatpush.bf16.msra.mxu0 %v5747
    %5830 = vmatpush.bf16.msra.mxu0 %v5745
    %5831 = vmatpush.bf16.msra.mxu0 %v5743
    %5832 = vmatmul.bf16.gmra.mxu0 %v3937
    %v5833 = vpop.f32.mrf.mxu0
    %v5834 = vadd.f32 %v5664, %v5833
    %v5835 = vpop.f32.mrf.mxu0
    %5836 = vdwg.mxu0
    %5837 = vmatpush.bf16.msra.mxu0 0
    %5838 = vmatpush.bf16.msra.mxu0 0
    %5839 = vmatpush.bf16.msra.mxu0 0
    %5840 = vmatpush.bf16.msra.mxu0 %v5796
    %5841 = vmatpush.bf16.msra.mxu0 %v5765
    %5842 = vmatpush.bf16.msra.mxu0 %v5763
    %5843 = vmatpush.bf16.msra.mxu0 %v5761
    %5844 = vmatpush.bf16.msra.mxu0 %v5759
    %5845 = vmatmul.bf16.gmra.mxu0 %v4105
    %v5846 = vpop.f32.mrf.mxu0
    %v5847 = vadd.f32 %v5834, %v5846
    %v5848 = vpop.f32.mrf.mxu0
    %5849 = vdwg.mxu0
    %s5850 = scalar_lea.vmem %s16, 2
    %v5851 = vld [vmem:[%s5850] sm:$0x3]
    %v5853 = vperm.slane %v5851, 0
    %v5854 = vperm.slane %v5851, 1
    %v5857 = vadd.f32 %v5821, %v5853
    %v5858 = vadd.f32 %v5847, %v5854
    %v5859 = vmax.f32 %v5857, 0.0
    %v5860 = vmax.f32 %v5858, 0.0
    %s5861 = scalar_lea.vmem [#allocation7], 400
    %v5862 = vld [vmem:[%s5861] sm:$0xff]
    %v5863 = vld [vmem:[%s5861 + $0x8] sm:$0xff]
    %v5864 = vld [vmem:[%s5861 + $0x10] sm:$0xff]
    %v5865 = vld [vmem:[%s5861 + $0x18] sm:$0xff]
    %v5866 = vld [vmem:[%s5861 + $0x20] sm:$0xff]
    %v5867 = vld [vmem:[%s5861 + $0x28] sm:$0xff]
    %v5868 = vld [vmem:[%s5861 + $0x30] sm:$0xff]
    %v5869 = vld [vmem:[%s5861 + $0x38] sm:$0xff]
    %v5870 = vld [vmem:[%s5861 + $0x40] sm:$0xff]
    %v5871 = vld [vmem:[%s5861 + $0x48] sm:$0xff]
    %v5872 = vld [vmem:[%s5861 + $0x50] sm:$0xff]
    %v5873 = vld [vmem:[%s5861 + $0x58] sm:$0xff]
    %v5874 = vld [vmem:[%s5861 + $0x60] sm:$0xff]
    %v5875 = vld [vmem:[%s5861 + $0x68] sm:$0xff]
    %v5876 = vld [vmem:[%s5861 + $0x70] sm:$0xff]
    %v5877 = vld [vmem:[%s5861 + $0x78] sm:$0xff]
    %v5878 = vld [vmem:[%s5861 + $0x80] sm:$0xff]
    %v5879 = vld [vmem:[%s5861 + $0x88] sm:$0xff]
    %v5880 = vld [vmem:[%s5861 + $0x90] sm:$0xff]
    %v5881 = vld [vmem:[%s5861 + $0x98] sm:$0xff]
    %v5882 = vld [vmem:[%s5861 + $0xa0] sm:$0xff]
    %v5883 = vld [vmem:[%s5861 + $0xa8] sm:$0xff]
    %v5884 = vld [vmem:[%s5861 + $0xb0] sm:$0xff]
    %v5885 = vld [vmem:[%s5861 + $0xb8] sm:$0xff]
    %v5886 = vld [vmem:[%s5861 + $0xc0] sm:$0xff]
    %v5887 = vpack.c.bf16 %v5859, %v5859
    %v5888 = vpack.c.bf16 %v5860, %v5860
    %s5889 = scalar_lea.vmem %s18, 4
    %v5890 = vld [vmem:[%s5889] sm:$0x3]
    %v5892 = vperm.slane %v5890, 0
    %v5893 = vperm.slane %v5890, 1
    %v5921 = vunpack.c.l.b16 %v5862
    %v5922 = vunpack.c.h.b16 %v5862
    %v5923 = vunpack.c.l.b16 %v5863
    %v5924 = vunpack.c.h.b16 %v5863
    %v5925 = vunpack.c.l.b16 %v5864
    %v5926 = vunpack.c.h.b16 %v5864
    %v5927 = vunpack.c.l.b16 %v5865
    %v5928 = vunpack.c.h.b16 %v5865
    %v5929 = vunpack.c.l.b16 %v5866
    %v5930 = vunpack.c.h.b16 %v5866
    %v5931 = vunpack.c.l.b16 %v5867
    %v5932 = vunpack.c.h.b16 %v5867
    %v5933 = vunpack.c.l.b16 %v5868
    %v5934 = vunpack.c.h.b16 %v5868
    %v5935 = vunpack.c.l.b16 %v5869
    %v5936 = vunpack.c.h.b16 %v5869
    %v5937 = vunpack.c.l.b16 %v5870
    %v5938 = vunpack.c.h.b16 %v5870
    %v5939 = vunpack.c.l.b16 %v5871
    %v5940 = vunpack.c.h.b16 %v5871
    %v5941 = vunpack.c.l.b16 %v5872
    %v5942 = vunpack.c.h.b16 %v5872
    %v5943 = vunpack.c.l.b16 %v5873
    %v5944 = vunpack.c.h.b16 %v5873
    %v5945 = vunpack.c.l.b16 %v5874
    %v5946 = vunpack.c.h.b16 %v5874
    %v5947 = vunpack.c.l.b16 %v5875
    %v5948 = vunpack.c.h.b16 %v5875
    %v5949 = vunpack.c.l.b16 %v5876
    %v5950 = vunpack.c.h.b16 %v5876
    %v5951 = vunpack.c.l.b16 %v5877
    %v5952 = vunpack.c.h.b16 %v5877
    %v5953 = vunpack.c.l.b16 %v5878
    %v5954 = vunpack.c.h.b16 %v5878
    %v5955 = vunpack.c.l.b16 %v5879
    %v5956 = vunpack.c.h.b16 %v5879
    %v5957 = vunpack.c.l.b16 %v5880
    %v5958 = vunpack.c.h.b16 %v5880
    %v5959 = vunpack.c.l.b16 %v5881
    %v5960 = vunpack.c.h.b16 %v5881
    %v5961 = vunpack.c.l.b16 %v5882
    %v5962 = vunpack.c.h.b16 %v5882
    %v5963 = vunpack.c.l.b16 %v5883
    %v5964 = vunpack.c.h.b16 %v5883
    %v5965 = vunpack.c.l.b16 %v5884
    %v5966 = vunpack.c.h.b16 %v5884
    %v5967 = vunpack.c.l.b16 %v5885
    %v5968 = vunpack.c.h.b16 %v5885
    %v5969 = vunpack.c.l.b16 %v5886
    %v5970 = vunpack.c.h.b16 %v5886
    %v5971 = vpack.c.b16 %v5923, %v5921
    %v5972 = vpack.c.b16 %v5924, %v5922
    %v5973 = vpack.c.b16 %v5927, %v5925
    %v5974 = vpack.c.b16 %v5928, %v5926
    %v5975 = vpack.c.b16 %v5931, %v5929
    %v5976 = vpack.c.b16 %v5932, %v5930
    %v5977 = vpack.c.b16 %v5935, %v5933
    %v5978 = vpack.c.b16 %v5936, %v5934
    %v5979 = vpack.c.b16 %v5939, %v5937
    %v5980 = vpack.c.b16 %v5940, %v5938
    %v5981 = vpack.c.b16 %v5943, %v5941
    %v5982 = vpack.c.b16 %v5944, %v5942
    %v5983 = vpack.c.b16 %v5947, %v5945
    %v5984 = vpack.c.b16 %v5948, %v5946
    %v5985 = vpack.c.b16 %v5951, %v5949
    %v5986 = vpack.c.b16 %v5952, %v5950
    %v5987 = vpack.c.b16 %v5955, %v5953
    %v5988 = vpack.c.b16 %v5956, %v5954
    %v5989 = vpack.c.b16 %v5959, %v5957
    %v5990 = vpack.c.b16 %v5960, %v5958
    %v5991 = vpack.c.b16 %v5963, %v5961
    %v5992 = vpack.c.b16 %v5964, %v5962
    %v5993 = vpack.c.b16 %v5967, %v5965
    %v5994 = vpack.c.b16 %v5968, %v5966
    %v5995 = vpack.c.b16 %v5969, %v5969
    %v5996 = vpack.c.b16 %v5970, %v5970
    %v6022 = vsel %vm558, %v5888, 0
    %v6025 = vsel %vm208, %v5995, 0
    %v6028 = vsel %vm208, %v5996, 0
    %6030 = vmatpush.bf16.msra.mxu0 %v5985
    %6031 = vmatpush.bf16.msra.mxu0 %v5983
    %6032 = vmatpush.bf16.msra.mxu0 %v5981
    %6033 = vmatpush.bf16.msra.mxu0 %v5979
    %6034 = vmatpush.bf16.msra.mxu0 %v5977
    %6035 = vmatpush.bf16.msra.mxu0 %v5975
    %6036 = vmatpush.bf16.msra.mxu0 %v5973
    %6037 = vmatpush.bf16.msra.mxu0 %v5971
    %6038 = vmatmul.bf16.gmra.mxu0 %v5887
    %v6039 = vpop.f32.mrf.mxu0
    %v6040 = vadd.f32 %v5892, %v6039
    %v6041 = vpop.f32.mrf.mxu0
    %6042 = vdwg.mxu0
    %6043 = vmatpush.bf16.msra.mxu0 0
    %6044 = vmatpush.bf16.msra.mxu0 0
    %6045 = vmatpush.bf16.msra.mxu0 0
    %6046 = vmatpush.bf16.msra.mxu0 %v6025
    %6047 = vmatpush.bf16.msra.mxu0 %v5993
    %6048 = vmatpush.bf16.msra.mxu0 %v5991
    %6049 = vmatpush.bf16.msra.mxu0 %v5989
    %6050 = vmatpush.bf16.msra.mxu0 %v5987
    %6051 = vmatmul.bf16.gmra.mxu0 %v6022
    %v6052 = vpop.f32.mrf.mxu0
    %v6053 = vadd.f32 %v6040, %v6052
    %v6054 = vpop.f32.mrf.mxu0
    %6055 = vdwg.mxu0
    %6056 = vmatpush.bf16.msra.mxu0 %v5986
    %6057 = vmatpush.bf16.msra.mxu0 %v5984
    %6058 = vmatpush.bf16.msra.mxu0 %v5982
    %6059 = vmatpush.bf16.msra.mxu0 %v5980
    %6060 = vmatpush.bf16.msra.mxu0 %v5978
    %6061 = vmatpush.bf16.msra.mxu0 %v5976
    %6062 = vmatpush.bf16.msra.mxu0 %v5974
    %6063 = vmatpush.bf16.msra.mxu0 %v5972
    %6064 = vmatmul.bf16.gmra.mxu0 %v5887
    %v6065 = vpop.f32.mrf.mxu0
    %v6066 = vadd.f32 %v5893, %v6065
    %v6067 = vpop.f32.mrf.mxu0
    %6068 = vdwg.mxu0
    %6069 = vmatpush.bf16.msra.mxu0 0
    %6070 = vmatpush.bf16.msra.mxu0 0
    %6071 = vmatpush.bf16.msra.mxu0 0
    %6072 = vmatpush.bf16.msra.mxu0 %v6028
    %6073 = vmatpush.bf16.msra.mxu0 %v5994
    %6074 = vmatpush.bf16.msra.mxu0 %v5992
    %6075 = vmatpush.bf16.msra.mxu0 %v5990
    %6076 = vmatpush.bf16.msra.mxu0 %v5988
    %6077 = vmatmul.bf16.gmra.mxu0 %v6022
    %v6078 = vpop.f32.mrf.mxu0
    %v6079 = vadd.f32 %v6066, %v6078
    %v6080 = vpop.f32.mrf.mxu0
    %6081 = vdwg.mxu0
    %v6082 = vmax.f32 %v6053, 0.0
    %v6083 = vmax.f32 %v6079, 0.0
    %s6084 = scalar_lea.vmem [#allocation7], 600
    %v6085 = vld [vmem:[%s6084] sm:$0xff]
    %v6086 = vld [vmem:[%s6084 + $0x8] sm:$0xff]
    %v6087 = vld [vmem:[%s6084 + $0x10] sm:$0xff]
    %v6088 = vld [vmem:[%s6084 + $0x18] sm:$0xff]
    %v6089 = vld [vmem:[%s6084 + $0x20] sm:$0xff]
    %v6090 = vld [vmem:[%s6084 + $0x28] sm:$0xff]
    %v6091 = vld [vmem:[%s6084 + $0x30] sm:$0xff]
    %v6092 = vld [vmem:[%s6084 + $0x38] sm:$0xff]
    %v6093 = vld [vmem:[%s6084 + $0x40] sm:$0xff]
    %v6094 = vld [vmem:[%s6084 + $0x48] sm:$0xff]
    %v6095 = vld [vmem:[%s6084 + $0x50] sm:$0xff]
    %v6096 = vld [vmem:[%s6084 + $0x58] sm:$0xff]
    %v6097 = vld [vmem:[%s6084 + $0x60] sm:$0xff]
    %v6098 = vld [vmem:[%s6084 + $0x68] sm:$0xff]
    %v6099 = vld [vmem:[%s6084 + $0x70] sm:$0xff]
    %v6100 = vld [vmem:[%s6084 + $0x78] sm:$0xff]
    %v6101 = vld [vmem:[%s6084 + $0x80] sm:$0xff]
    %v6102 = vld [vmem:[%s6084 + $0x88] sm:$0xff]
    %v6103 = vld [vmem:[%s6084 + $0x90] sm:$0xff]
    %v6104 = vld [vmem:[%s6084 + $0x98] sm:$0xff]
    %v6105 = vld [vmem:[%s6084 + $0xa0] sm:$0xff]
    %v6106 = vld [vmem:[%s6084 + $0xa8] sm:$0xff]
    %v6107 = vld [vmem:[%s6084 + $0xb0] sm:$0xff]
    %v6108 = vld [vmem:[%s6084 + $0xb8] sm:$0xff]
    %v6109 = vld [vmem:[%s6084 + $0xc0] sm:$0xff]
    %v6110 = vpack.c.bf16 %v6082, %v6082
    %v6111 = vpack.c.bf16 %v6083, %v6083
    %s6112 = scalar_lea.vmem %s18, 6
    %v6113 = vld [vmem:[%s6112] sm:$0x3]
    %v6115 = vperm.slane %v6113, 0
    %v6116 = vperm.slane %v6113, 1
    %v6144 = vunpack.c.l.b16 %v6085
    %v6145 = vunpack.c.h.b16 %v6085
    %v6146 = vunpack.c.l.b16 %v6086
    %v6147 = vunpack.c.h.b16 %v6086
    %v6148 = vunpack.c.l.b16 %v6087
    %v6149 = vunpack.c.h.b16 %v6087
    %v6150 = vunpack.c.l.b16 %v6088
    %v6151 = vunpack.c.h.b16 %v6088
    %v6152 = vunpack.c.l.b16 %v6089
    %v6153 = vunpack.c.h.b16 %v6089
    %v6154 = vunpack.c.l.b16 %v6090
    %v6155 = vunpack.c.h.b16 %v6090
    %v6156 = vunpack.c.l.b16 %v6091
    %v6157 = vunpack.c.h.b16 %v6091
    %v6158 = vunpack.c.l.b16 %v6092
    %v6159 = vunpack.c.h.b16 %v6092
    %v6160 = vunpack.c.l.b16 %v6093
    %v6161 = vunpack.c.h.b16 %v6093
    %v6162 = vunpack.c.l.b16 %v6094
    %v6163 = vunpack.c.h.b16 %v6094
    %v6164 = vunpack.c.l.b16 %v6095
    %v6165 = vunpack.c.h.b16 %v6095
    %v6166 = vunpack.c.l.b16 %v6096
    %v6167 = vunpack.c.h.b16 %v6096
    %v6168 = vunpack.c.l.b16 %v6097
    %v6169 = vunpack.c.h.b16 %v6097
    %v6170 = vunpack.c.l.b16 %v6098
    %v6171 = vunpack.c.h.b16 %v6098
    %v6172 = vunpack.c.l.b16 %v6099
    %v6173 = vunpack.c.h.b16 %v6099
    %v6174 = vunpack.c.l.b16 %v6100
    %v6175 = vunpack.c.h.b16 %v6100
    %v6176 = vunpack.c.l.b16 %v6101
    %v6177 = vunpack.c.h.b16 %v6101
    %v6178 = vunpack.c.l.b16 %v6102
    %v6179 = vunpack.c.h.b16 %v6102
    %v6180 = vunpack.c.l.b16 %v6103
    %v6181 = vunpack.c.h.b16 %v6103
    %v6182 = vunpack.c.l.b16 %v6104
    %v6183 = vunpack.c.h.b16 %v6104
    %v6184 = vunpack.c.l.b16 %v6105
    %v6185 = vunpack.c.h.b16 %v6105
    %v6186 = vunpack.c.l.b16 %v6106
    %v6187 = vunpack.c.h.b16 %v6106
    %v6188 = vunpack.c.l.b16 %v6107
    %v6189 = vunpack.c.h.b16 %v6107
    %v6190 = vunpack.c.l.b16 %v6108
    %v6191 = vunpack.c.h.b16 %v6108
    %v6192 = vunpack.c.l.b16 %v6109
    %v6193 = vunpack.c.h.b16 %v6109
    %v6194 = vpack.c.b16 %v6146, %v6144
    %v6195 = vpack.c.b16 %v6147, %v6145
    %v6196 = vpack.c.b16 %v6150, %v6148
    %v6197 = vpack.c.b16 %v6151, %v6149
    %v6198 = vpack.c.b16 %v6154, %v6152
    %v6199 = vpack.c.b16 %v6155, %v6153
    %v6200 = vpack.c.b16 %v6158, %v6156
    %v6201 = vpack.c.b16 %v6159, %v6157
    %v6202 = vpack.c.b16 %v6162, %v6160
    %v6203 = vpack.c.b16 %v6163, %v6161
    %v6204 = vpack.c.b16 %v6166, %v6164
    %v6205 = vpack.c.b16 %v6167, %v6165
    %v6206 = vpack.c.b16 %v6170, %v6168
    %v6207 = vpack.c.b16 %v6171, %v6169
    %v6208 = vpack.c.b16 %v6174, %v6172
    %v6209 = vpack.c.b16 %v6175, %v6173
    %v6210 = vpack.c.b16 %v6178, %v6176
    %v6211 = vpack.c.b16 %v6179, %v6177
    %v6212 = vpack.c.b16 %v6182, %v6180
    %v6213 = vpack.c.b16 %v6183, %v6181
    %v6214 = vpack.c.b16 %v6186, %v6184
    %v6215 = vpack.c.b16 %v6187, %v6185
    %v6216 = vpack.c.b16 %v6190, %v6188
    %v6217 = vpack.c.b16 %v6191, %v6189
    %v6218 = vpack.c.b16 %v6192, %v6192
    %v6219 = vpack.c.b16 %v6193, %v6193
    %v6245 = vsel %vm558, %v6111, 0
    %v6248 = vsel %vm208, %v6218, 0
    %v6251 = vsel %vm208, %v6219, 0
    %6253 = vmatpush.bf16.msra.mxu0 %v6208
    %6254 = vmatpush.bf16.msra.mxu0 %v6206
    %6255 = vmatpush.bf16.msra.mxu0 %v6204
    %6256 = vmatpush.bf16.msra.mxu0 %v6202
    %6257 = vmatpush.bf16.msra.mxu0 %v6200
    %6258 = vmatpush.bf16.msra.mxu0 %v6198
    %6259 = vmatpush.bf16.msra.mxu0 %v6196
    %6260 = vmatpush.bf16.msra.mxu0 %v6194
    %6261 = vmatmul.bf16.gmra.mxu0 %v6110
    %v6262 = vpop.f32.mrf.mxu0
    %v6263 = vadd.f32 %v6115, %v6262
    %v6264 = vpop.f32.mrf.mxu0
    %6265 = vdwg.mxu0
    %6266 = vmatpush.bf16.msra.mxu0 0
    %6267 = vmatpush.bf16.msra.mxu0 0
    %6268 = vmatpush.bf16.msra.mxu0 0
    %6269 = vmatpush.bf16.msra.mxu0 %v6248
    %6270 = vmatpush.bf16.msra.mxu0 %v6216
    %6271 = vmatpush.bf16.msra.mxu0 %v6214
    %6272 = vmatpush.bf16.msra.mxu0 %v6212
    %6273 = vmatpush.bf16.msra.mxu0 %v6210
    %6274 = vmatmul.bf16.gmra.mxu0 %v6245
    %v6275 = vpop.f32.mrf.mxu0
    %v6276 = vadd.f32 %v6263, %v6275
    %v6277 = vpop.f32.mrf.mxu0
    %6278 = vdwg.mxu0
    %6279 = vmatpush.bf16.msra.mxu0 %v6209
    %6280 = vmatpush.bf16.msra.mxu0 %v6207
    %6281 = vmatpush.bf16.msra.mxu0 %v6205
    %6282 = vmatpush.bf16.msra.mxu0 %v6203
    %6283 = vmatpush.bf16.msra.mxu0 %v6201
    %6284 = vmatpush.bf16.msra.mxu0 %v6199
    %6285 = vmatpush.bf16.msra.mxu0 %v6197
    %6286 = vmatpush.bf16.msra.mxu0 %v6195
    %6287 = vmatmul.bf16.gmra.mxu0 %v6110
    %v6288 = vpop.f32.mrf.mxu0
    %v6289 = vadd.f32 %v6116, %v6288
    %v6290 = vpop.f32.mrf.mxu0
    %6291 = vdwg.mxu0
    %6292 = vmatpush.bf16.msra.mxu0 0
    %6293 = vmatpush.bf16.msra.mxu0 0
    %6294 = vmatpush.bf16.msra.mxu0 0
    %6295 = vmatpush.bf16.msra.mxu0 %v6251
    %6296 = vmatpush.bf16.msra.mxu0 %v6217
    %6297 = vmatpush.bf16.msra.mxu0 %v6215
    %6298 = vmatpush.bf16.msra.mxu0 %v6213
    %6299 = vmatpush.bf16.msra.mxu0 %v6211
    %6300 = vmatmul.bf16.gmra.mxu0 %v6245
    %v6301 = vpop.f32.mrf.mxu0
    %v6302 = vadd.f32 %v6289, %v6301
    %v6303 = vpop.f32.mrf.mxu0
    %6304 = vdwg.mxu0
    %v6305 = vmax.f32 %v6276, 0.0
    %v6306 = vmax.f32 %v6302, 0.0
    %s6307 = scalar_lea.vmem %s19, 100
    %v6308 = vld [vmem:[%s6307] sm:$0xf]
    %v6309 = vld [vmem:[%s6307 + $0x4] sm:$0xf]
    %v6310 = vld [vmem:[%s6307 + $0x8] sm:$0xf]
    %v6311 = vld [vmem:[%s6307 + $0xc] sm:$0xf]
    %v6312 = vld [vmem:[%s6307 + $0x10] sm:$0xf]
    %v6313 = vld [vmem:[%s6307 + $0x14] sm:$0xf]
    %v6314 = vld [vmem:[%s6307 + $0x18] sm:$0xf]
    %v6315 = vld [vmem:[%s6307 + $0x1c] sm:$0xf]
    %v6316 = vld [vmem:[%s6307 + $0x20] sm:$0xf]
    %v6317 = vld [vmem:[%s6307 + $0x24] sm:$0xf]
    %v6318 = vld [vmem:[%s6307 + $0x28] sm:$0xf]
    %v6319 = vld [vmem:[%s6307 + $0x2c] sm:$0xf]
    %v6320 = vld [vmem:[%s6307 + $0x30] sm:$0xf]
    %v6321 = vld [vmem:[%s6307 + $0x34] sm:$0xf]
    %v6322 = vld [vmem:[%s6307 + $0x38] sm:$0xf]
    %v6323 = vld [vmem:[%s6307 + $0x3c] sm:$0xf]
    %v6324 = vld [vmem:[%s6307 + $0x40] sm:$0xf]
    %v6325 = vld [vmem:[%s6307 + $0x44] sm:$0xf]
    %v6326 = vld [vmem:[%s6307 + $0x48] sm:$0xf]
    %v6327 = vld [vmem:[%s6307 + $0x4c] sm:$0xf]
    %v6328 = vld [vmem:[%s6307 + $0x50] sm:$0xf]
    %v6329 = vld [vmem:[%s6307 + $0x54] sm:$0xf]
    %v6330 = vld [vmem:[%s6307 + $0x58] sm:$0xf]
    %v6331 = vld [vmem:[%s6307 + $0x5c] sm:$0xf]
    %v6332 = vld [vmem:[%s6307 + $0x60] sm:$0xf]
    %v6333 = vpack.c.bf16 %v6305, %v6305
    %v6334 = vpack.c.bf16 %v6306, %v6306
    %s6335 = scalar_lea.vmem %s20, 1
    %v6336 = vld [vmem:[%s6335] sm:$0x1]
    %v6338 = vperm.slane %v6336, 0
    %v6365 = vunpack.c.l.b16 %v6308
    %v6366 = vunpack.c.l.b16 %v6309
    %v6367 = vunpack.c.l.b16 %v6310
    %v6368 = vunpack.c.l.b16 %v6311
    %v6369 = vunpack.c.l.b16 %v6312
    %v6370 = vunpack.c.l.b16 %v6313
    %v6371 = vunpack.c.l.b16 %v6314
    %v6372 = vunpack.c.l.b16 %v6315
    %v6373 = vunpack.c.l.b16 %v6316
    %v6374 = vunpack.c.l.b16 %v6317
    %v6375 = vunpack.c.l.b16 %v6318
    %v6376 = vunpack.c.l.b16 %v6319
    %v6377 = vunpack.c.l.b16 %v6320
    %v6378 = vunpack.c.l.b16 %v6321
    %v6379 = vunpack.c.l.b16 %v6322
    %v6380 = vunpack.c.l.b16 %v6323
    %v6381 = vunpack.c.l.b16 %v6324
    %v6382 = vunpack.c.l.b16 %v6325
    %v6383 = vunpack.c.l.b16 %v6326
    %v6384 = vunpack.c.l.b16 %v6327
    %v6385 = vunpack.c.l.b16 %v6328
    %v6386 = vunpack.c.l.b16 %v6329
    %v6387 = vunpack.c.l.b16 %v6330
    %v6388 = vunpack.c.l.b16 %v6331
    %v6389 = vunpack.c.l.b16 %v6332
    %v6390 = vpack.c.b16 %v6366, %v6365
    %v6391 = vpack.c.b16 %v6368, %v6367
    %v6392 = vpack.c.b16 %v6370, %v6369
    %v6393 = vpack.c.b16 %v6372, %v6371
    %v6394 = vpack.c.b16 %v6374, %v6373
    %v6395 = vpack.c.b16 %v6376, %v6375
    %v6396 = vpack.c.b16 %v6378, %v6377
    %v6397 = vpack.c.b16 %v6380, %v6379
    %v6398 = vpack.c.b16 %v6382, %v6381
    %v6399 = vpack.c.b16 %v6384, %v6383
    %v6400 = vpack.c.b16 %v6386, %v6385
    %v6401 = vpack.c.b16 %v6388, %v6387
    %v6402 = vpack.c.b16 %v6389, %v6389
    %v6416 = vsel %vm558, %v6334, 0
    %v6419 = vsel %vm208, %v6402, 0
    %6421 = vmatpush.bf16.msra.mxu0 %v6397
    %6422 = vmatpush.bf16.msra.mxu0 %v6396
    %6423 = vmatpush.bf16.msra.mxu0 %v6395
    %6424 = vmatpush.bf16.msra.mxu0 %v6394
    %6425 = vmatpush.bf16.msra.mxu0 %v6393
    %6426 = vmatpush.bf16.msra.mxu0 %v6392
    %6427 = vmatpush.bf16.msra.mxu0 %v6391
    %6428 = vmatpush.bf16.msra.mxu0 %v6390
    %6429 = vmatmul.bf16.gmra.mxu0 %v6333
    %v6430 = vpop.f32.mrf.mxu0
    %v6431 = vadd.f32 %v6338, %v6430
    %v6432 = vpop.f32.mrf.mxu0
    %6433 = vdwg.mxu0
    %6434 = vmatpush.bf16.msra.mxu0 0
    %6435 = vmatpush.bf16.msra.mxu0 0
    %6436 = vmatpush.bf16.msra.mxu0 0
    %6437 = vmatpush.bf16.msra.mxu0 %v6419
    %6438 = vmatpush.bf16.msra.mxu0 %v6401
    %6439 = vmatpush.bf16.msra.mxu0 %v6400
    %6440 = vmatpush.bf16.msra.mxu0 %v6399
    %6441 = vmatpush.bf16.msra.mxu0 %v6398
    %6442 = vmatmul.bf16.gmra.mxu0 %v6416
    %v6443 = vpop.f32.mrf.mxu0
    %v6444 = vadd.f32 %v6431, %v6443
    %v6445 = vpop.f32.mrf.mxu0
    %6446 = vdwg.mxu0
    %v6447 = vsub.f32 0.0, %v5599
    %v6448 = vrcp.pop %v6447
    %v6449 = vmul.f32 %v6447, %v6448
    %v6450 = vsub.f32 1.0, %v6449
    %v6451 = vmul.f32 %v6448, %v6450
    %v6452 = vadd.f32 %v6448, %v6451
    %vm6453 = vweird.f32 %v6447
    %vm6454 = vweird.f32 %v6448
    %vm6455 = vmor %vm6453, %vm6454
    %v6456 = vsel %vm6455, %v6448, %v6452
    %v6457 = vand.u32 2147483647, %v6447
    %vm6458 = vcmp.eq.f32.partialorder %v6457, 8.507059e+37
    %v6459 = vand.u32 %v6447, 2147483648
    %v6460 = vor.u32 1.1754944e-38, %v6459
    %v6461 = vsel %vm6458, %v6460, %v6456
    %v6462 = vsub.f32 %v6461, 1.0
    %v6463 = vadd.f32 %v6462, %v6444
    %v6464 = vsel %vm276, %v6463, -inf
    %6465 = vmax.xlane.f32.xlu0 %v6464
    %v6466 = vpop.xlane.xlu0 %6465
    %v6467 = vsub.f32 %v6463, %v6466
    %v6468 = vmul.f32 %v6467, 1.442695
    %v6469 = vpow.pop %v6468
    %v6470 = vsel %vm276, %v6469, 0.0
    %6471 = vadd.xlane.f32.xlu0 %v6470
    %v6472 = vpop.xlane.xlu0 %6471
    %v6473 = vrcp.pop %v6472
    %v6474 = vmul.f32 %v6469, %v6473
    %v6475 = vadd.f32 %v6474, 1e-14
    %s6476 = scalar_lea.vmem %s27, 8
    %6477 = vst.msk [vmem:[%s6476] sm:$0xff] %vm276, %v6475
    %s6478 = scalar_lea.vmem [#allocation9], 200
    %v6479 = vld [vmem:[%s6478] sm:$0xff]
    %v6480 = vld [vmem:[%s6478 + $0x8] sm:$0xff]
    %v6481 = vld [vmem:[%s6478 + $0x10] sm:$0xff]
    %v6482 = vld [vmem:[%s6478 + $0x18] sm:$0xff]
    %v6483 = vld [vmem:[%s6478 + $0x20] sm:$0xff]
    %v6484 = vld [vmem:[%s6478 + $0x28] sm:$0xff]
    %v6485 = vld [vmem:[%s6478 + $0x30] sm:$0xff]
    %v6486 = vld [vmem:[%s6478 + $0x38] sm:$0xff]
    %v6487 = vld [vmem:[%s6478 + $0x40] sm:$0xff]
    %v6488 = vld [vmem:[%s6478 + $0x48] sm:$0xff]
    %v6489 = vld [vmem:[%s6478 + $0x50] sm:$0xff]
    %v6490 = vld [vmem:[%s6478 + $0x58] sm:$0xff]
    %v6491 = vld [vmem:[%s6478 + $0x60] sm:$0xff]
    %v6492 = vld [vmem:[%s6478 + $0x68] sm:$0xff]
    %v6493 = vld [vmem:[%s6478 + $0x70] sm:$0xff]
    %v6494 = vld [vmem:[%s6478 + $0x78] sm:$0xff]
    %v6495 = vld [vmem:[%s6478 + $0x80] sm:$0xff]
    %v6496 = vld [vmem:[%s6478 + $0x88] sm:$0xff]
    %v6497 = vld [vmem:[%s6478 + $0x90] sm:$0xff]
    %v6498 = vld [vmem:[%s6478 + $0x98] sm:$0xff]
    %v6499 = vld [vmem:[%s6478 + $0xa0] sm:$0xff]
    %v6500 = vld [vmem:[%s6478 + $0xa8] sm:$0xff]
    %v6501 = vld [vmem:[%s6478 + $0xb0] sm:$0xff]
    %v6502 = vld [vmem:[%s6478 + $0xb8] sm:$0xff]
    %v6503 = vld [vmem:[%s6478 + $0xc0] sm:$0xff]
    %s6504 = scalar_lea.vmem %s22, 2
    %v6505 = vld [vmem:[%s6504] sm:$0x3]
    %v6507 = vperm.slane %v6505, 0
    %v6508 = vperm.slane %v6505, 1
    %v6536 = vunpack.c.l.b16 %v6479
    %v6537 = vunpack.c.h.b16 %v6479
    %v6538 = vunpack.c.l.b16 %v6480
    %v6539 = vunpack.c.h.b16 %v6480
    %v6540 = vunpack.c.l.b16 %v6481
    %v6541 = vunpack.c.h.b16 %v6481
    %v6542 = vunpack.c.l.b16 %v6482
    %v6543 = vunpack.c.h.b16 %v6482
    %v6544 = vunpack.c.l.b16 %v6483
    %v6545 = vunpack.c.h.b16 %v6483
    %v6546 = vunpack.c.l.b16 %v6484
    %v6547 = vunpack.c.h.b16 %v6484
    %v6548 = vunpack.c.l.b16 %v6485
    %v6549 = vunpack.c.h.b16 %v6485
    %v6550 = vunpack.c.l.b16 %v6486
    %v6551 = vunpack.c.h.b16 %v6486
    %v6552 = vunpack.c.l.b16 %v6487
    %v6553 = vunpack.c.h.b16 %v6487
    %v6554 = vunpack.c.l.b16 %v6488
    %v6555 = vunpack.c.h.b16 %v6488
    %v6556 = vunpack.c.l.b16 %v6489
    %v6557 = vunpack.c.h.b16 %v6489
    %v6558 = vunpack.c.l.b16 %v6490
    %v6559 = vunpack.c.h.b16 %v6490
    %v6560 = vunpack.c.l.b16 %v6491
    %v6561 = vunpack.c.h.b16 %v6491
    %v6562 = vunpack.c.l.b16 %v6492
    %v6563 = vunpack.c.h.b16 %v6492
    %v6564 = vunpack.c.l.b16 %v6493
    %v6565 = vunpack.c.h.b16 %v6493
    %v6566 = vunpack.c.l.b16 %v6494
    %v6567 = vunpack.c.h.b16 %v6494
    %v6568 = vunpack.c.l.b16 %v6495
    %v6569 = vunpack.c.h.b16 %v6495
    %v6570 = vunpack.c.l.b16 %v6496
    %v6571 = vunpack.c.h.b16 %v6496
    %v6572 = vunpack.c.l.b16 %v6497
    %v6573 = vunpack.c.h.b16 %v6497
    %v6574 = vunpack.c.l.b16 %v6498
    %v6575 = vunpack.c.h.b16 %v6498
    %v6576 = vunpack.c.l.b16 %v6499
    %v6577 = vunpack.c.h.b16 %v6499
    %v6578 = vunpack.c.l.b16 %v6500
    %v6579 = vunpack.c.h.b16 %v6500
    %v6580 = vunpack.c.l.b16 %v6501
    %v6581 = vunpack.c.h.b16 %v6501
    %v6582 = vunpack.c.l.b16 %v6502
    %v6583 = vunpack.c.h.b16 %v6502
    %v6584 = vunpack.c.l.b16 %v6503
    %v6585 = vunpack.c.h.b16 %v6503
    %v6586 = vpack.c.b16 %v6538, %v6536
    %v6587 = vpack.c.b16 %v6539, %v6537
    %v6588 = vpack.c.b16 %v6542, %v6540
    %v6589 = vpack.c.b16 %v6543, %v6541
    %v6590 = vpack.c.b16 %v6546, %v6544
    %v6591 = vpack.c.b16 %v6547, %v6545
    %v6592 = vpack.c.b16 %v6550, %v6548
    %v6593 = vpack.c.b16 %v6551, %v6549
    %v6594 = vpack.c.b16 %v6554, %v6552
    %v6595 = vpack.c.b16 %v6555, %v6553
    %v6596 = vpack.c.b16 %v6558, %v6556
    %v6597 = vpack.c.b16 %v6559, %v6557
    %v6598 = vpack.c.b16 %v6562, %v6560
    %v6599 = vpack.c.b16 %v6563, %v6561
    %v6600 = vpack.c.b16 %v6566, %v6564
    %v6601 = vpack.c.b16 %v6567, %v6565
    %v6602 = vpack.c.b16 %v6570, %v6568
    %v6603 = vpack.c.b16 %v6571, %v6569
    %v6604 = vpack.c.b16 %v6574, %v6572
    %v6605 = vpack.c.b16 %v6575, %v6573
    %v6606 = vpack.c.b16 %v6578, %v6576
    %v6607 = vpack.c.b16 %v6579, %v6577
    %v6608 = vpack.c.b16 %v6582, %v6580
    %v6609 = vpack.c.b16 %v6583, %v6581
    %v6610 = vpack.c.b16 %v6584, %v6584
    %v6611 = vpack.c.b16 %v6585, %v6585
    %v6637 = vsel %vm208, %v6610, 0
    %v6640 = vsel %vm208, %v6611, 0
    %6642 = vmatpush.bf16.msra.mxu0 %v6600
    %6643 = vmatpush.bf16.msra.mxu0 %v6598
    %6644 = vmatpush.bf16.msra.mxu0 %v6596
    %6645 = vmatpush.bf16.msra.mxu0 %v6594
    %6646 = vmatpush.bf16.msra.mxu0 %v6592
    %6647 = vmatpush.bf16.msra.mxu0 %v6590
    %6648 = vmatpush.bf16.msra.mxu0 %v6588
    %6649 = vmatpush.bf16.msra.mxu0 %v6586
    %6650 = vmatmul.bf16.gmra.mxu0 %v3937
    %v6651 = vpop.f32.mrf.mxu0
    %v6652 = vadd.f32 %v6507, %v6651
    %v6653 = vpop.f32.mrf.mxu0
    %6654 = vdwg.mxu0
    %6655 = vmatpush.bf16.msra.mxu0 0
    %6656 = vmatpush.bf16.msra.mxu0 0
    %6657 = vmatpush.bf16.msra.mxu0 0
    %6658 = vmatpush.bf16.msra.mxu0 %v6637
    %6659 = vmatpush.bf16.msra.mxu0 %v6608
    %6660 = vmatpush.bf16.msra.mxu0 %v6606
    %6661 = vmatpush.bf16.msra.mxu0 %v6604
    %6662 = vmatpush.bf16.msra.mxu0 %v6602
    %6663 = vmatmul.bf16.gmra.mxu0 %v4105
    %v6664 = vpop.f32.mrf.mxu0
    %v6665 = vadd.f32 %v6652, %v6664
    %v6666 = vpop.f32.mrf.mxu0
    %6667 = vdwg.mxu0
    %6668 = vmatpush.bf16.msra.mxu0 %v6601
    %6669 = vmatpush.bf16.msra.mxu0 %v6599
    %6670 = vmatpush.bf16.msra.mxu0 %v6597
    %6671 = vmatpush.bf16.msra.mxu0 %v6595
    %6672 = vmatpush.bf16.msra.mxu0 %v6593
    %6673 = vmatpush.bf16.msra.mxu0 %v6591
    %6674 = vmatpush.bf16.msra.mxu0 %v6589
    %6675 = vmatpush.bf16.msra.mxu0 %v6587
    %6676 = vmatmul.bf16.gmra.mxu0 %v3937
    %v6677 = vpop.f32.mrf.mxu0
    %v6678 = vadd.f32 %v6508, %v6677
    %v6679 = vpop.f32.mrf.mxu0
    %6680 = vdwg.mxu0
    %6681 = vmatpush.bf16.msra.mxu0 0
    %6682 = vmatpush.bf16.msra.mxu0 0
    %6683 = vmatpush.bf16.msra.mxu0 0
    %6684 = vmatpush.bf16.msra.mxu0 %v6640
    %6685 = vmatpush.bf16.msra.mxu0 %v6609
    %6686 = vmatpush.bf16.msra.mxu0 %v6607
    %6687 = vmatpush.bf16.msra.mxu0 %v6605
    %6688 = vmatpush.bf16.msra.mxu0 %v6603
    %6689 = vmatmul.bf16.gmra.mxu0 %v4105
    %v6690 = vpop.f32.mrf.mxu0
    %v6691 = vadd.f32 %v6678, %v6690
    %v6692 = vpop.f32.mrf.mxu0
    %6693 = vdwg.mxu0
    %v6694 = vmax.f32 %v6665, 0.0
    %v6695 = vmax.f32 %v6691, 0.0
    %s6696 = scalar_lea.vmem [#allocation10], 400
    %v6697 = vld [vmem:[%s6696] sm:$0xff]
    %v6698 = vld [vmem:[%s6696 + $0x8] sm:$0xff]
    %v6699 = vld [vmem:[%s6696 + $0x10] sm:$0xff]
    %v6700 = vld [vmem:[%s6696 + $0x18] sm:$0xff]
    %v6701 = vld [vmem:[%s6696 + $0x20] sm:$0xff]
    %v6702 = vld [vmem:[%s6696 + $0x28] sm:$0xff]
    %v6703 = vld [vmem:[%s6696 + $0x30] sm:$0xff]
    %v6704 = vld [vmem:[%s6696 + $0x38] sm:$0xff]
    %v6705 = vld [vmem:[%s6696 + $0x40] sm:$0xff]
    %v6706 = vld [vmem:[%s6696 + $0x48] sm:$0xff]
    %v6707 = vld [vmem:[%s6696 + $0x50] sm:$0xff]
    %v6708 = vld [vmem:[%s6696 + $0x58] sm:$0xff]
    %v6709 = vld [vmem:[%s6696 + $0x60] sm:$0xff]
    %v6710 = vld [vmem:[%s6696 + $0x68] sm:$0xff]
    %v6711 = vld [vmem:[%s6696 + $0x70] sm:$0xff]
    %v6712 = vld [vmem:[%s6696 + $0x78] sm:$0xff]
    %v6713 = vld [vmem:[%s6696 + $0x80] sm:$0xff]
    %v6714 = vld [vmem:[%s6696 + $0x88] sm:$0xff]
    %v6715 = vld [vmem:[%s6696 + $0x90] sm:$0xff]
    %v6716 = vld [vmem:[%s6696 + $0x98] sm:$0xff]
    %v6717 = vld [vmem:[%s6696 + $0xa0] sm:$0xff]
    %v6718 = vld [vmem:[%s6696 + $0xa8] sm:$0xff]
    %v6719 = vld [vmem:[%s6696 + $0xb0] sm:$0xff]
    %v6720 = vld [vmem:[%s6696 + $0xb8] sm:$0xff]
    %v6721 = vld [vmem:[%s6696 + $0xc0] sm:$0xff]
    %v6722 = vpack.c.bf16 %v6694, %v6694
    %v6723 = vpack.c.bf16 %v6695, %v6695
    %s6724 = scalar_lea.vmem %s24, 4
    %v6725 = vld [vmem:[%s6724] sm:$0x3]
    %v6727 = vperm.slane %v6725, 0
    %v6728 = vperm.slane %v6725, 1
    %v6756 = vunpack.c.l.b16 %v6697
    %v6757 = vunpack.c.h.b16 %v6697
    %v6758 = vunpack.c.l.b16 %v6698
    %v6759 = vunpack.c.h.b16 %v6698
    %v6760 = vunpack.c.l.b16 %v6699
    %v6761 = vunpack.c.h.b16 %v6699
    %v6762 = vunpack.c.l.b16 %v6700
    %v6763 = vunpack.c.h.b16 %v6700
    %v6764 = vunpack.c.l.b16 %v6701
    %v6765 = vunpack.c.h.b16 %v6701
    %v6766 = vunpack.c.l.b16 %v6702
    %v6767 = vunpack.c.h.b16 %v6702
    %v6768 = vunpack.c.l.b16 %v6703
    %v6769 = vunpack.c.h.b16 %v6703
    %v6770 = vunpack.c.l.b16 %v6704
    %v6771 = vunpack.c.h.b16 %v6704
    %v6772 = vunpack.c.l.b16 %v6705
    %v6773 = vunpack.c.h.b16 %v6705
    %v6774 = vunpack.c.l.b16 %v6706
    %v6775 = vunpack.c.h.b16 %v6706
    %v6776 = vunpack.c.l.b16 %v6707
    %v6777 = vunpack.c.h.b16 %v6707
    %v6778 = vunpack.c.l.b16 %v6708
    %v6779 = vunpack.c.h.b16 %v6708
    %v6780 = vunpack.c.l.b16 %v6709
    %v6781 = vunpack.c.h.b16 %v6709
    %v6782 = vunpack.c.l.b16 %v6710
    %v6783 = vunpack.c.h.b16 %v6710
    %v6784 = vunpack.c.l.b16 %v6711
    %v6785 = vunpack.c.h.b16 %v6711
    %v6786 = vunpack.c.l.b16 %v6712
    %v6787 = vunpack.c.h.b16 %v6712
    %v6788 = vunpack.c.l.b16 %v6713
    %v6789 = vunpack.c.h.b16 %v6713
    %v6790 = vunpack.c.l.b16 %v6714
    %v6791 = vunpack.c.h.b16 %v6714
    %v6792 = vunpack.c.l.b16 %v6715
    %v6793 = vunpack.c.h.b16 %v6715
    %v6794 = vunpack.c.l.b16 %v6716
    %v6795 = vunpack.c.h.b16 %v6716
    %v6796 = vunpack.c.l.b16 %v6717
    %v6797 = vunpack.c.h.b16 %v6717
    %v6798 = vunpack.c.l.b16 %v6718
    %v6799 = vunpack.c.h.b16 %v6718
    %v6800 = vunpack.c.l.b16 %v6719
    %v6801 = vunpack.c.h.b16 %v6719
    %v6802 = vunpack.c.l.b16 %v6720
    %v6803 = vunpack.c.h.b16 %v6720
    %v6804 = vunpack.c.l.b16 %v6721
    %v6805 = vunpack.c.h.b16 %v6721
    %v6806 = vpack.c.b16 %v6758, %v6756
    %v6807 = vpack.c.b16 %v6759, %v6757
    %v6808 = vpack.c.b16 %v6762, %v6760
    %v6809 = vpack.c.b16 %v6763, %v6761
    %v6810 = vpack.c.b16 %v6766, %v6764
    %v6811 = vpack.c.b16 %v6767, %v6765
    %v6812 = vpack.c.b16 %v6770, %v6768
    %v6813 = vpack.c.b16 %v6771, %v6769
    %v6814 = vpack.c.b16 %v6774, %v6772
    %v6815 = vpack.c.b16 %v6775, %v6773
    %v6816 = vpack.c.b16 %v6778, %v6776
    %v6817 = vpack.c.b16 %v6779, %v6777
    %v6818 = vpack.c.b16 %v6782, %v6780
    %v6819 = vpack.c.b16 %v6783, %v6781
    %v6820 = vpack.c.b16 %v6786, %v6784
    %v6821 = vpack.c.b16 %v6787, %v6785
    %v6822 = vpack.c.b16 %v6790, %v6788
    %v6823 = vpack.c.b16 %v6791, %v6789
    %v6824 = vpack.c.b16 %v6794, %v6792
    %v6825 = vpack.c.b16 %v6795, %v6793
    %v6826 = vpack.c.b16 %v6798, %v6796
    %v6827 = vpack.c.b16 %v6799, %v6797
    %v6828 = vpack.c.b16 %v6802, %v6800
    %v6829 = vpack.c.b16 %v6803, %v6801
    %v6830 = vpack.c.b16 %v6804, %v6804
    %v6831 = vpack.c.b16 %v6805, %v6805
    %v6857 = vsel %vm558, %v6723, 0
    %v6860 = vsel %vm208, %v6830, 0
    %v6863 = vsel %vm208, %v6831, 0
    %6865 = vmatpush.bf16.msra.mxu0 %v6820
    %6866 = vmatpush.bf16.msra.mxu0 %v6818
    %6867 = vmatpush.bf16.msra.mxu0 %v6816
    %6868 = vmatpush.bf16.msra.mxu0 %v6814
    %6869 = vmatpush.bf16.msra.mxu0 %v6812
    %6870 = vmatpush.bf16.msra.mxu0 %v6810
    %6871 = vmatpush.bf16.msra.mxu0 %v6808
    %6872 = vmatpush.bf16.msra.mxu0 %v6806
    %6873 = vmatmul.bf16.gmra.mxu0 %v6722
    %v6874 = vpop.f32.mrf.mxu0
    %v6875 = vadd.f32 %v6727, %v6874
    %v6876 = vpop.f32.mrf.mxu0
    %6877 = vdwg.mxu0
    %6878 = vmatpush.bf16.msra.mxu0 0
    %6879 = vmatpush.bf16.msra.mxu0 0
    %6880 = vmatpush.bf16.msra.mxu0 0
    %6881 = vmatpush.bf16.msra.mxu0 %v6860
    %6882 = vmatpush.bf16.msra.mxu0 %v6828
    %6883 = vmatpush.bf16.msra.mxu0 %v6826
    %6884 = vmatpush.bf16.msra.mxu0 %v6824
    %6885 = vmatpush.bf16.msra.mxu0 %v6822
    %6886 = vmatmul.bf16.gmra.mxu0 %v6857
    %v6887 = vpop.f32.mrf.mxu0
    %v6888 = vadd.f32 %v6875, %v6887
    %v6889 = vpop.f32.mrf.mxu0
    %6890 = vdwg.mxu0
    %6891 = vmatpush.bf16.msra.mxu0 %v6821
    %6892 = vmatpush.bf16.msra.mxu0 %v6819
    %6893 = vmatpush.bf16.msra.mxu0 %v6817
    %6894 = vmatpush.bf16.msra.mxu0 %v6815
    %6895 = vmatpush.bf16.msra.mxu0 %v6813
    %6896 = vmatpush.bf16.msra.mxu0 %v6811
    %6897 = vmatpush.bf16.msra.mxu0 %v6809
    %6898 = vmatpush.bf16.msra.mxu0 %v6807
    %6899 = vmatmul.bf16.gmra.mxu0 %v6722
    %v6900 = vpop.f32.mrf.mxu0
    %v6901 = vadd.f32 %v6728, %v6900
    %v6902 = vpop.f32.mrf.mxu0
    %6903 = vdwg.mxu0
    %6904 = vmatpush.bf16.msra.mxu0 0
    %6905 = vmatpush.bf16.msra.mxu0 0
    %6906 = vmatpush.bf16.msra.mxu0 0
    %6907 = vmatpush.bf16.msra.mxu0 %v6863
    %6908 = vmatpush.bf16.msra.mxu0 %v6829
    %6909 = vmatpush.bf16.msra.mxu0 %v6827
    %6910 = vmatpush.bf16.msra.mxu0 %v6825
    %6911 = vmatpush.bf16.msra.mxu0 %v6823
    %6912 = vmatmul.bf16.gmra.mxu0 %v6857
    %v6913 = vpop.f32.mrf.mxu0
    %v6914 = vadd.f32 %v6901, %v6913
    %v6915 = vpop.f32.mrf.mxu0
    %6916 = vdwg.mxu0
    %v6917 = vmax.f32 %v6888, 0.0
    %v6918 = vmax.f32 %v6914, 0.0
    %s6919 = scalar_lea.vmem [#allocation10], 600
    %v6920 = vld [vmem:[%s6919] sm:$0xff]
    %v6921 = vld [vmem:[%s6919 + $0x8] sm:$0xff]
    %v6922 = vld [vmem:[%s6919 + $0x10] sm:$0xff]
    %v6923 = vld [vmem:[%s6919 + $0x18] sm:$0xff]
    %v6924 = vld [vmem:[%s6919 + $0x20] sm:$0xff]
    %v6925 = vld [vmem:[%s6919 + $0x28] sm:$0xff]
    %v6926 = vld [vmem:[%s6919 + $0x30] sm:$0xff]
    %v6927 = vld [vmem:[%s6919 + $0x38] sm:$0xff]
    %v6928 = vld [vmem:[%s6919 + $0x40] sm:$0xff]
    %v6929 = vld [vmem:[%s6919 + $0x48] sm:$0xff]
    %v6930 = vld [vmem:[%s6919 + $0x50] sm:$0xff]
    %v6931 = vld [vmem:[%s6919 + $0x58] sm:$0xff]
    %v6932 = vld [vmem:[%s6919 + $0x60] sm:$0xff]
    %v6933 = vld [vmem:[%s6919 + $0x68] sm:$0xff]
    %v6934 = vld [vmem:[%s6919 + $0x70] sm:$0xff]
    %v6935 = vld [vmem:[%s6919 + $0x78] sm:$0xff]
    %v6936 = vld [vmem:[%s6919 + $0x80] sm:$0xff]
    %v6937 = vld [vmem:[%s6919 + $0x88] sm:$0xff]
    %v6938 = vld [vmem:[%s6919 + $0x90] sm:$0xff]
    %v6939 = vld [vmem:[%s6919 + $0x98] sm:$0xff]
    %v6940 = vld [vmem:[%s6919 + $0xa0] sm:$0xff]
    %v6941 = vld [vmem:[%s6919 + $0xa8] sm:$0xff]
    %v6942 = vld [vmem:[%s6919 + $0xb0] sm:$0xff]
    %v6943 = vld [vmem:[%s6919 + $0xb8] sm:$0xff]
    %v6944 = vld [vmem:[%s6919 + $0xc0] sm:$0xff]
    %v6945 = vpack.c.bf16 %v6917, %v6917
    %v6946 = vpack.c.bf16 %v6918, %v6918
    %s6947 = scalar_lea.vmem %s24, 6
    %v6948 = vld [vmem:[%s6947] sm:$0x3]
    %v6950 = vperm.slane %v6948, 0
    %v6951 = vperm.slane %v6948, 1
    %v6979 = vunpack.c.l.b16 %v6920
    %v6980 = vunpack.c.h.b16 %v6920
    %v6981 = vunpack.c.l.b16 %v6921
    %v6982 = vunpack.c.h.b16 %v6921
    %v6983 = vunpack.c.l.b16 %v6922
    %v6984 = vunpack.c.h.b16 %v6922
    %v6985 = vunpack.c.l.b16 %v6923
    %v6986 = vunpack.c.h.b16 %v6923
    %v6987 = vunpack.c.l.b16 %v6924
    %v6988 = vunpack.c.h.b16 %v6924
    %v6989 = vunpack.c.l.b16 %v6925
    %v6990 = vunpack.c.h.b16 %v6925
    %v6991 = vunpack.c.l.b16 %v6926
    %v6992 = vunpack.c.h.b16 %v6926
    %v6993 = vunpack.c.l.b16 %v6927
    %v6994 = vunpack.c.h.b16 %v6927
    %v6995 = vunpack.c.l.b16 %v6928
    %v6996 = vunpack.c.h.b16 %v6928
    %v6997 = vunpack.c.l.b16 %v6929
    %v6998 = vunpack.c.h.b16 %v6929
    %v6999 = vunpack.c.l.b16 %v6930
    %v7000 = vunpack.c.h.b16 %v6930
    %v7001 = vunpack.c.l.b16 %v6931
    %v7002 = vunpack.c.h.b16 %v6931
    %v7003 = vunpack.c.l.b16 %v6932
    %v7004 = vunpack.c.h.b16 %v6932
    %v7005 = vunpack.c.l.b16 %v6933
    %v7006 = vunpack.c.h.b16 %v6933
    %v7007 = vunpack.c.l.b16 %v6934
    %v7008 = vunpack.c.h.b16 %v6934
    %v7009 = vunpack.c.l.b16 %v6935
    %v7010 = vunpack.c.h.b16 %v6935
    %v7011 = vunpack.c.l.b16 %v6936
    %v7012 = vunpack.c.h.b16 %v6936
    %v7013 = vunpack.c.l.b16 %v6937
    %v7014 = vunpack.c.h.b16 %v6937
    %v7015 = vunpack.c.l.b16 %v6938
    %v7016 = vunpack.c.h.b16 %v6938
    %v7017 = vunpack.c.l.b16 %v6939
    %v7018 = vunpack.c.h.b16 %v6939
    %v7019 = vunpack.c.l.b16 %v6940
    %v7020 = vunpack.c.h.b16 %v6940
    %v7021 = vunpack.c.l.b16 %v6941
    %v7022 = vunpack.c.h.b16 %v6941
    %v7023 = vunpack.c.l.b16 %v6942
    %v7024 = vunpack.c.h.b16 %v6942
    %v7025 = vunpack.c.l.b16 %v6943
    %v7026 = vunpack.c.h.b16 %v6943
    %v7027 = vunpack.c.l.b16 %v6944
    %v7028 = vunpack.c.h.b16 %v6944
    %v7029 = vpack.c.b16 %v6981, %v6979
    %v7030 = vpack.c.b16 %v6982, %v6980
    %v7031 = vpack.c.b16 %v6985, %v6983
    %v7032 = vpack.c.b16 %v6986, %v6984
    %v7033 = vpack.c.b16 %v6989, %v6987
    %v7034 = vpack.c.b16 %v6990, %v6988
    %v7035 = vpack.c.b16 %v6993, %v6991
    %v7036 = vpack.c.b16 %v6994, %v6992
    %v7037 = vpack.c.b16 %v6997, %v6995
    %v7038 = vpack.c.b16 %v6998, %v6996
    %v7039 = vpack.c.b16 %v7001, %v6999
    %v7040 = vpack.c.b16 %v7002, %v7000
    %v7041 = vpack.c.b16 %v7005, %v7003
    %v7042 = vpack.c.b16 %v7006, %v7004
    %v7043 = vpack.c.b16 %v7009, %v7007
    %v7044 = vpack.c.b16 %v7010, %v7008
    %v7045 = vpack.c.b16 %v7013, %v7011
    %v7046 = vpack.c.b16 %v7014, %v7012
    %v7047 = vpack.c.b16 %v7017, %v7015
    %v7048 = vpack.c.b16 %v7018, %v7016
    %v7049 = vpack.c.b16 %v7021, %v7019
    %v7050 = vpack.c.b16 %v7022, %v7020
    %v7051 = vpack.c.b16 %v7025, %v7023
    %v7052 = vpack.c.b16 %v7026, %v7024
    %v7053 = vpack.c.b16 %v7027, %v7027
    %v7054 = vpack.c.b16 %v7028, %v7028
    %v7080 = vsel %vm558, %v6946, 0
    %v7083 = vsel %vm208, %v7053, 0
    %v7086 = vsel %vm208, %v7054, 0
    %7088 = vmatpush.bf16.msra.mxu0 %v7043
    %7089 = vmatpush.bf16.msra.mxu0 %v7041
    %7090 = vmatpush.bf16.msra.mxu0 %v7039
    %7091 = vmatpush.bf16.msra.mxu0 %v7037
    %7092 = vmatpush.bf16.msra.mxu0 %v7035
    %7093 = vmatpush.bf16.msra.mxu0 %v7033
    %7094 = vmatpush.bf16.msra.mxu0 %v7031
    %7095 = vmatpush.bf16.msra.mxu0 %v7029
    %7096 = vmatmul.bf16.gmra.mxu0 %v6945
    %v7097 = vpop.f32.mrf.mxu0
    %v7098 = vadd.f32 %v6950, %v7097
    %v7099 = vpop.f32.mrf.mxu0
    %7100 = vdwg.mxu0
    %7101 = vmatpush.bf16.msra.mxu0 0
    %7102 = vmatpush.bf16.msra.mxu0 0
    %7103 = vmatpush.bf16.msra.mxu0 0
    %7104 = vmatpush.bf16.msra.mxu0 %v7083
    %7105 = vmatpush.bf16.msra.mxu0 %v7051
    %7106 = vmatpush.bf16.msra.mxu0 %v7049
    %7107 = vmatpush.bf16.msra.mxu0 %v7047
    %7108 = vmatpush.bf16.msra.mxu0 %v7045
    %7109 = vmatmul.bf16.gmra.mxu0 %v7080
    %v7110 = vpop.f32.mrf.mxu0
    %v7111 = vadd.f32 %v7098, %v7110
    %v7112 = vpop.f32.mrf.mxu0
    %7113 = vdwg.mxu0
    %7114 = vmatpush.bf16.msra.mxu0 %v7044
    %7115 = vmatpush.bf16.msra.mxu0 %v7042
    %7116 = vmatpush.bf16.msra.mxu0 %v7040
    %7117 = vmatpush.bf16.msra.mxu0 %v7038
    %7118 = vmatpush.bf16.msra.mxu0 %v7036
    %7119 = vmatpush.bf16.msra.mxu0 %v7034
    %7120 = vmatpush.bf16.msra.mxu0 %v7032
    %7121 = vmatpush.bf16.msra.mxu0 %v7030
    %7122 = vmatmul.bf16.gmra.mxu0 %v6945
    %v7123 = vpop.f32.mrf.mxu0
    %v7124 = vadd.f32 %v6951, %v7123
    %v7125 = vpop.f32.mrf.mxu0
    %7126 = vdwg.mxu0
    %7127 = vmatpush.bf16.msra.mxu0 0
    %7128 = vmatpush.bf16.msra.mxu0 0
    %7129 = vmatpush.bf16.msra.mxu0 0
    %7130 = vmatpush.bf16.msra.mxu0 %v7086
    %7131 = vmatpush.bf16.msra.mxu0 %v7052
    %7132 = vmatpush.bf16.msra.mxu0 %v7050
    %7133 = vmatpush.bf16.msra.mxu0 %v7048
    %7134 = vmatpush.bf16.msra.mxu0 %v7046
    %7135 = vmatmul.bf16.gmra.mxu0 %v7080
    %v7136 = vpop.f32.mrf.mxu0
    %v7137 = vadd.f32 %v7124, %v7136
    %v7138 = vpop.f32.mrf.mxu0
    %7139 = vdwg.mxu0
    %v7140 = vmax.f32 %v7111, 0.0
    %v7141 = vmax.f32 %v7137, 0.0
    %s7142 = scalar_lea.vmem %s25, 100
    %v7143 = vld [vmem:[%s7142] sm:$0xf]
    %v7144 = vld [vmem:[%s7142 + $0x4] sm:$0xf]
    %v7145 = vld [vmem:[%s7142 + $0x8] sm:$0xf]
    %v7146 = vld [vmem:[%s7142 + $0xc] sm:$0xf]
    %v7147 = vld [vmem:[%s7142 + $0x10] sm:$0xf]
    %v7148 = vld [vmem:[%s7142 + $0x14] sm:$0xf]
    %v7149 = vld [vmem:[%s7142 + $0x18] sm:$0xf]
    %v7150 = vld [vmem:[%s7142 + $0x1c] sm:$0xf]
    %v7151 = vld [vmem:[%s7142 + $0x20] sm:$0xf]
    %v7152 = vld [vmem:[%s7142 + $0x24] sm:$0xf]
    %v7153 = vld [vmem:[%s7142 + $0x28] sm:$0xf]
    %v7154 = vld [vmem:[%s7142 + $0x2c] sm:$0xf]
    %v7155 = vld [vmem:[%s7142 + $0x30] sm:$0xf]
    %v7156 = vld [vmem:[%s7142 + $0x34] sm:$0xf]
    %v7157 = vld [vmem:[%s7142 + $0x38] sm:$0xf]
    %v7158 = vld [vmem:[%s7142 + $0x3c] sm:$0xf]
    %v7159 = vld [vmem:[%s7142 + $0x40] sm:$0xf]
    %v7160 = vld [vmem:[%s7142 + $0x44] sm:$0xf]
    %v7161 = vld [vmem:[%s7142 + $0x48] sm:$0xf]
    %v7162 = vld [vmem:[%s7142 + $0x4c] sm:$0xf]
    %v7163 = vld [vmem:[%s7142 + $0x50] sm:$0xf]
    %v7164 = vld [vmem:[%s7142 + $0x54] sm:$0xf]
    %v7165 = vld [vmem:[%s7142 + $0x58] sm:$0xf]
    %v7166 = vld [vmem:[%s7142 + $0x5c] sm:$0xf]
    %v7167 = vld [vmem:[%s7142 + $0x60] sm:$0xf]
    %v7168 = vpack.c.bf16 %v7140, %v7140
    %v7169 = vpack.c.bf16 %v7141, %v7141
    %s7170 = scalar_lea.vmem %s26, 1
    %v7171 = vld [vmem:[%s7170] sm:$0x1]
    %v7173 = vperm.slane %v7171, 0
    %v7200 = vunpack.c.l.b16 %v7143
    %v7201 = vunpack.c.l.b16 %v7144
    %v7202 = vunpack.c.l.b16 %v7145
    %v7203 = vunpack.c.l.b16 %v7146
    %v7204 = vunpack.c.l.b16 %v7147
    %v7205 = vunpack.c.l.b16 %v7148
    %v7206 = vunpack.c.l.b16 %v7149
    %v7207 = vunpack.c.l.b16 %v7150
    %v7208 = vunpack.c.l.b16 %v7151
    %v7209 = vunpack.c.l.b16 %v7152
    %v7210 = vunpack.c.l.b16 %v7153
    %v7211 = vunpack.c.l.b16 %v7154
    %v7212 = vunpack.c.l.b16 %v7155
    %v7213 = vunpack.c.l.b16 %v7156
    %v7214 = vunpack.c.l.b16 %v7157
    %v7215 = vunpack.c.l.b16 %v7158
    %v7216 = vunpack.c.l.b16 %v7159
    %v7217 = vunpack.c.l.b16 %v7160
    %v7218 = vunpack.c.l.b16 %v7161
    %v7219 = vunpack.c.l.b16 %v7162
    %v7220 = vunpack.c.l.b16 %v7163
    %v7221 = vunpack.c.l.b16 %v7164
    %v7222 = vunpack.c.l.b16 %v7165
    %v7223 = vunpack.c.l.b16 %v7166
    %v7224 = vunpack.c.l.b16 %v7167
    %v7225 = vpack.c.b16 %v7201, %v7200
    %v7226 = vpack.c.b16 %v7203, %v7202
    %v7227 = vpack.c.b16 %v7205, %v7204
    %v7228 = vpack.c.b16 %v7207, %v7206
    %v7229 = vpack.c.b16 %v7209, %v7208
    %v7230 = vpack.c.b16 %v7211, %v7210
    %v7231 = vpack.c.b16 %v7213, %v7212
    %v7232 = vpack.c.b16 %v7215, %v7214
    %v7233 = vpack.c.b16 %v7217, %v7216
    %v7234 = vpack.c.b16 %v7219, %v7218
    %v7235 = vpack.c.b16 %v7221, %v7220
    %v7236 = vpack.c.b16 %v7223, %v7222
    %v7237 = vpack.c.b16 %v7224, %v7224
    %v7251 = vsel %vm558, %v7169, 0
    %v7254 = vsel %vm208, %v7237, 0
    %7256 = vmatpush.bf16.msra.mxu0 %v7232
    %7257 = vmatpush.bf16.msra.mxu0 %v7231
    %7258 = vmatpush.bf16.msra.mxu0 %v7230
    %7259 = vmatpush.bf16.msra.mxu0 %v7229
    %7260 = vmatpush.bf16.msra.mxu0 %v7228
    %7261 = vmatpush.bf16.msra.mxu0 %v7227
    %7262 = vmatpush.bf16.msra.mxu0 %v7226
    %7263 = vmatpush.bf16.msra.mxu0 %v7225
    %7264 = vmatmul.bf16.gmra.mxu0 %v7168
    %v7265 = vpop.f32.mrf.mxu0
    %v7266 = vadd.f32 %v7173, %v7265
    %v7267 = vpop.f32.mrf.mxu0
    %7268 = vdwg.mxu0
    %7269 = vmatpush.bf16.msra.mxu0 0
    %7270 = vmatpush.bf16.msra.mxu0 0
    %7271 = vmatpush.bf16.msra.mxu0 0
    %7272 = vmatpush.bf16.msra.mxu0 %v7254
    %7273 = vmatpush.bf16.msra.mxu0 %v7236
    %7274 = vmatpush.bf16.msra.mxu0 %v7235
    %7275 = vmatpush.bf16.msra.mxu0 %v7234
    %7276 = vmatpush.bf16.msra.mxu0 %v7233
    %7277 = vmatmul.bf16.gmra.mxu0 %v7251
    %v7278 = vpop.f32.mrf.mxu0
    %v7279 = vadd.f32 %v7266, %v7278
    %v7280 = vpop.f32.mrf.mxu0
    %7281 = vdwg.mxu0
    %v7282 = vsel %vm5585, %v7279, -inf
    %7283 = vmax.xlane.f32.xlu0 %v7282
    %v7284 = vpop.xlane.xlu0 %7283
    %v7285 = vsub.f32 %v7279, %v7284
    %v7286 = vmul.f32 %v7285, 1.442695
    %v7287 = vpow.pop %v7286
    %v7288 = vsel %vm5585, %v7287, 0.0
    %7289 = vadd.xlane.f32.xlu0 %v7288
    %v7290 = vpop.xlane.xlu0 %7289
    %v7291 = vrcp.pop %v7290
    %v7292 = vmul.f32 %v7287, %v7291
    %s7293 = scalar_lea.vmem %s28, 8
    %7294 = vst.msk [vmem:[%s7293] sm:$0xff] %vm5585, %v7292
    %s7295 = scalar_lea.vmem %s2, 16
    %v7296 = vld [vmem:[%s7295] sm:$0xff]
    %s7297 = scalar_lea.vmem %s14, 400
    %v7298 = vld [vmem:[%s7297] sm:$0xff]
    %v7299 = vld [vmem:[%s7297 + $0x8] sm:$0xff]
    %v7300 = vld [vmem:[%s7297 + $0x10] sm:$0xff]
    %v7301 = vld [vmem:[%s7297 + $0x18] sm:$0xff]
    %v7302 = vld [vmem:[%s7297 + $0x20] sm:$0xff]
    %v7303 = vld [vmem:[%s7297 + $0x28] sm:$0xff]
    %v7304 = vld [vmem:[%s7297 + $0x30] sm:$0xff]
    %v7305 = vld [vmem:[%s7297 + $0x38] sm:$0xff]
    %v7306 = vld [vmem:[%s7297 + $0x40] sm:$0xff]
    %v7307 = vld [vmem:[%s7297 + $0x48] sm:$0xff]
    %v7308 = vld [vmem:[%s7297 + $0x50] sm:$0xff]
    %v7309 = vld [vmem:[%s7297 + $0x58] sm:$0xff]
    %v7310 = vld [vmem:[%s7297 + $0x60] sm:$0xff]
    %v7311 = vld [vmem:[%s7297 + $0x68] sm:$0xff]
    %v7312 = vld [vmem:[%s7297 + $0x70] sm:$0xff]
    %v7313 = vld [vmem:[%s7297 + $0x78] sm:$0xff]
    %v7314 = vld [vmem:[%s7297 + $0x80] sm:$0xff]
    %v7315 = vld [vmem:[%s7297 + $0x88] sm:$0xff]
    %v7316 = vld [vmem:[%s7297 + $0x90] sm:$0xff]
    %v7317 = vld [vmem:[%s7297 + $0x98] sm:$0xff]
    %v7318 = vld [vmem:[%s7297 + $0xa0] sm:$0xff]
    %v7319 = vld [vmem:[%s7297 + $0xa8] sm:$0xff]
    %v7320 = vld [vmem:[%s7297 + $0xb0] sm:$0xff]
    %v7321 = vld [vmem:[%s7297 + $0xb8] sm:$0xff]
    %v7322 = vld [vmem:[%s7297 + $0xc0] sm:$0xff]
    %v7323 = vmax.f32 %v7296, 0.0
    %s7324 = scalar_lea.vmem %s15, 8
    %v7325 = vld [vmem:[%s7324] sm:$0xf]
    %v7326 = vpack.c.bf16 %v7323, %v7323
    %7328 = vst [vmem:[#allocation1] ss:$4 sm:$0xff] %v7325
    %v7329 = vld.sshfl [vmem:[#allocation1] sm:$0xff pattern:$0x73625140]
    %v7330 = vld.sshfl [vmem:[#allocation1 + $0x8] sm:$0xff pattern:$0x73625140]
    %v7332 = vsel %vm276, %v7326, 0
    %v7334 = vsel %vm289, %v7329, 0
    %v7336 = vsel %vm289, %v7330, 0
    %7338 = vmatpush.bf16.msra.mxu0 0
    %7339 = vmatpush.bf16.msra.mxu0 0
    %7340 = vmatpush.bf16.msra.mxu0 0
    %7341 = vmatpush.bf16.msra.mxu0 0
    %7342 = vmatpush.bf16.msra.mxu0 0
    %7343 = vmatpush.bf16.msra.mxu0 0
    %7344 = vmatpush.bf16.msra.mxu0 0
    %7345 = vmatpush.bf16.msra.mxu0 %v7334
    %7346 = vmatmul.bf16.gmra.mxu0 %v7332
    %v7347 = vpop.f32.mrf.mxu0
    %v7348 = vadd.f32 0.0, %v7347
    %v7349 = vpop.f32.mrf.mxu0
    %7350 = vdwg.mxu0
    %7351 = vmatpush.bf16.msra.mxu0 0
    %7352 = vmatpush.bf16.msra.mxu0 0
    %7353 = vmatpush.bf16.msra.mxu0 0
    %7354 = vmatpush.bf16.msra.mxu0 0
    %7355 = vmatpush.bf16.msra.mxu0 0
    %7356 = vmatpush.bf16.msra.mxu0 0
    %7357 = vmatpush.bf16.msra.mxu0 0
    %7358 = vmatpush.bf16.msra.mxu0 %v7336
    %7359 = vmatmul.bf16.gmra.mxu0 %v7332
    %v7360 = vpop.f32.mrf.mxu0
    %v7361 = vadd.f32 0.0, %v7360
    %v7362 = vpop.f32.mrf.mxu0
    %7363 = vdwg.mxu0
    %v7389 = vunpack.c.l.b16 %v7298
    %v7390 = vunpack.c.h.b16 %v7298
    %v7391 = vunpack.c.l.b16 %v7299
    %v7392 = vunpack.c.h.b16 %v7299
    %v7393 = vunpack.c.l.b16 %v7300
    %v7394 = vunpack.c.h.b16 %v7300
    %v7395 = vunpack.c.l.b16 %v7301
    %v7396 = vunpack.c.h.b16 %v7301
    %v7397 = vunpack.c.l.b16 %v7302
    %v7398 = vunpack.c.h.b16 %v7302
    %v7399 = vunpack.c.l.b16 %v7303
    %v7400 = vunpack.c.h.b16 %v7303
    %v7401 = vunpack.c.l.b16 %v7304
    %v7402 = vunpack.c.h.b16 %v7304
    %v7403 = vunpack.c.l.b16 %v7305
    %v7404 = vunpack.c.h.b16 %v7305
    %v7405 = vunpack.c.l.b16 %v7306
    %v7406 = vunpack.c.h.b16 %v7306
    %v7407 = vunpack.c.l.b16 %v7307
    %v7408 = vunpack.c.h.b16 %v7307
    %v7409 = vunpack.c.l.b16 %v7308
    %v7410 = vunpack.c.h.b16 %v7308
    %v7411 = vunpack.c.l.b16 %v7309
    %v7412 = vunpack.c.h.b16 %v7309
    %v7413 = vunpack.c.l.b16 %v7310
    %v7414 = vunpack.c.h.b16 %v7310
    %v7415 = vunpack.c.l.b16 %v7311
    %v7416 = vunpack.c.h.b16 %v7311
    %v7417 = vunpack.c.l.b16 %v7312
    %v7418 = vunpack.c.h.b16 %v7312
    %v7419 = vunpack.c.l.b16 %v7313
    %v7420 = vunpack.c.h.b16 %v7313
    %v7421 = vunpack.c.l.b16 %v7314
    %v7422 = vunpack.c.h.b16 %v7314
    %v7423 = vunpack.c.l.b16 %v7315
    %v7424 = vunpack.c.h.b16 %v7315
    %v7425 = vunpack.c.l.b16 %v7316
    %v7426 = vunpack.c.h.b16 %v7316
    %v7427 = vunpack.c.l.b16 %v7317
    %v7428 = vunpack.c.h.b16 %v7317
    %v7429 = vunpack.c.l.b16 %v7318
    %v7430 = vunpack.c.h.b16 %v7318
    %v7431 = vunpack.c.l.b16 %v7319
    %v7432 = vunpack.c.h.b16 %v7319
    %v7433 = vunpack.c.l.b16 %v7320
    %v7434 = vunpack.c.h.b16 %v7320
    %v7435 = vunpack.c.l.b16 %v7321
    %v7436 = vunpack.c.h.b16 %v7321
    %v7437 = vunpack.c.l.b16 %v7322
    %v7438 = vunpack.c.h.b16 %v7322
    %v7439 = vpack.c.b16 %v7391, %v7389
    %v7440 = vpack.c.b16 %v7392, %v7390
    %v7441 = vpack.c.b16 %v7395, %v7393
    %v7442 = vpack.c.b16 %v7396, %v7394
    %v7443 = vpack.c.b16 %v7399, %v7397
    %v7444 = vpack.c.b16 %v7400, %v7398
    %v7445 = vpack.c.b16 %v7403, %v7401
    %v7446 = vpack.c.b16 %v7404, %v7402
    %v7447 = vpack.c.b16 %v7407, %v7405
    %v7448 = vpack.c.b16 %v7408, %v7406
    %v7449 = vpack.c.b16 %v7411, %v7409
    %v7450 = vpack.c.b16 %v7412, %v7410
    %v7451 = vpack.c.b16 %v7415, %v7413
    %v7452 = vpack.c.b16 %v7416, %v7414
    %v7453 = vpack.c.b16 %v7419, %v7417
    %v7454 = vpack.c.b16 %v7420, %v7418
    %v7455 = vpack.c.b16 %v7423, %v7421
    %v7456 = vpack.c.b16 %v7424, %v7422
    %v7457 = vpack.c.b16 %v7427, %v7425
    %v7458 = vpack.c.b16 %v7428, %v7426
    %v7459 = vpack.c.b16 %v7431, %v7429
    %v7460 = vpack.c.b16 %v7432, %v7430
    %v7461 = vpack.c.b16 %v7435, %v7433
    %v7462 = vpack.c.b16 %v7436, %v7434
    %v7463 = vpack.c.b16 %v7437, %v7437
    %v7464 = vpack.c.b16 %v7438, %v7438
    %v7490 = vsel %vm208, %v7463, 0
    %v7493 = vsel %vm208, %v7464, 0
    %7495 = vmatpush.bf16.msra.mxu0 %v7453
    %7496 = vmatpush.bf16.msra.mxu0 %v7451
    %7497 = vmatpush.bf16.msra.mxu0 %v7449
    %7498 = vmatpush.bf16.msra.mxu0 %v7447
    %7499 = vmatpush.bf16.msra.mxu0 %v7445
    %7500 = vmatpush.bf16.msra.mxu0 %v7443
    %7501 = vmatpush.bf16.msra.mxu0 %v7441
    %7502 = vmatpush.bf16.msra.mxu0 %v7439
    %7503 = vmatmul.bf16.gmra.mxu0 %v3937
    %v7504 = vpop.f32.mrf.mxu0
    %v7505 = vadd.f32 %v7348, %v7504
    %v7506 = vpop.f32.mrf.mxu0
    %7507 = vdwg.mxu0
    %7508 = vmatpush.bf16.msra.mxu0 0
    %7509 = vmatpush.bf16.msra.mxu0 0
    %7510 = vmatpush.bf16.msra.mxu0 0
    %7511 = vmatpush.bf16.msra.mxu0 %v7490
    %7512 = vmatpush.bf16.msra.mxu0 %v7461
    %7513 = vmatpush.bf16.msra.mxu0 %v7459
    %7514 = vmatpush.bf16.msra.mxu0 %v7457
    %7515 = vmatpush.bf16.msra.mxu0 %v7455
    %7516 = vmatmul.bf16.gmra.mxu0 %v4105
    %v7517 = vpop.f32.mrf.mxu0
    %v7518 = vadd.f32 %v7505, %v7517
    %v7519 = vpop.f32.mrf.mxu0
    %7520 = vdwg.mxu0
    %7521 = vmatpush.bf16.msra.mxu0 %v7454
    %7522 = vmatpush.bf16.msra.mxu0 %v7452
    %7523 = vmatpush.bf16.msra.mxu0 %v7450
    %7524 = vmatpush.bf16.msra.mxu0 %v7448
    %7525 = vmatpush.bf16.msra.mxu0 %v7446
    %7526 = vmatpush.bf16.msra.mxu0 %v7444
    %7527 = vmatpush.bf16.msra.mxu0 %v7442
    %7528 = vmatpush.bf16.msra.mxu0 %v7440
    %7529 = vmatmul.bf16.gmra.mxu0 %v3937
    %v7530 = vpop.f32.mrf.mxu0
    %v7531 = vadd.f32 %v7361, %v7530
    %v7532 = vpop.f32.mrf.mxu0
    %7533 = vdwg.mxu0
    %7534 = vmatpush.bf16.msra.mxu0 0
    %7535 = vmatpush.bf16.msra.mxu0 0
    %7536 = vmatpush.bf16.msra.mxu0 0
    %7537 = vmatpush.bf16.msra.mxu0 %v7493
    %7538 = vmatpush.bf16.msra.mxu0 %v7462
    %7539 = vmatpush.bf16.msra.mxu0 %v7460
    %7540 = vmatpush.bf16.msra.mxu0 %v7458
    %7541 = vmatpush.bf16.msra.mxu0 %v7456
    %7542 = vmatmul.bf16.gmra.mxu0 %v4105
    %v7543 = vpop.f32.mrf.mxu0
    %v7544 = vadd.f32 %v7531, %v7543
    %v7545 = vpop.f32.mrf.mxu0
    %7546 = vdwg.mxu0
    %s7547 = scalar_lea.vmem %s16, 4
    %v7548 = vld [vmem:[%s7547] sm:$0x3]
    %v7550 = vperm.slane %v7548, 0
    %v7551 = vperm.slane %v7548, 1
    %v7554 = vadd.f32 %v7518, %v7550
    %v7555 = vadd.f32 %v7544, %v7551
    %v7556 = vmax.f32 %v7554, 0.0
    %v7557 = vmax.f32 %v7555, 0.0
    %s7558 = scalar_lea.vmem [#allocation7], 800
    %v7559 = vld [vmem:[%s7558] sm:$0xff]
    %v7560 = vld [vmem:[%s7558 + $0x8] sm:$0xff]
    %v7561 = vld [vmem:[%s7558 + $0x10] sm:$0xff]
    %v7562 = vld [vmem:[%s7558 + $0x18] sm:$0xff]
    %v7563 = vld [vmem:[%s7558 + $0x20] sm:$0xff]
    %v7564 = vld [vmem:[%s7558 + $0x28] sm:$0xff]
    %v7565 = vld [vmem:[%s7558 + $0x30] sm:$0xff]
    %v7566 = vld [vmem:[%s7558 + $0x38] sm:$0xff]
    %v7567 = vld [vmem:[%s7558 + $0x40] sm:$0xff]
    %v7568 = vld [vmem:[%s7558 + $0x48] sm:$0xff]
    %v7569 = vld [vmem:[%s7558 + $0x50] sm:$0xff]
    %v7570 = vld [vmem:[%s7558 + $0x58] sm:$0xff]
    %v7571 = vld [vmem:[%s7558 + $0x60] sm:$0xff]
    %v7572 = vld [vmem:[%s7558 + $0x68] sm:$0xff]
    %v7573 = vld [vmem:[%s7558 + $0x70] sm:$0xff]
    %v7574 = vld [vmem:[%s7558 + $0x78] sm:$0xff]
    %v7575 = vld [vmem:[%s7558 + $0x80] sm:$0xff]
    %v7576 = vld [vmem:[%s7558 + $0x88] sm:$0xff]
    %v7577 = vld [vmem:[%s7558 + $0x90] sm:$0xff]
    %v7578 = vld [vmem:[%s7558 + $0x98] sm:$0xff]
    %v7579 = vld [vmem:[%s7558 + $0xa0] sm:$0xff]
    %v7580 = vld [vmem:[%s7558 + $0xa8] sm:$0xff]
    %v7581 = vld [vmem:[%s7558 + $0xb0] sm:$0xff]
    %v7582 = vld [vmem:[%s7558 + $0xb8] sm:$0xff]
    %v7583 = vld [vmem:[%s7558 + $0xc0] sm:$0xff]
    %v7584 = vpack.c.bf16 %v7556, %v7556
    %v7585 = vpack.c.bf16 %v7557, %v7557
    %s7586 = scalar_lea.vmem %s18, 8
    %v7587 = vld [vmem:[%s7586] sm:$0x3]
    %v7589 = vperm.slane %v7587, 0
    %v7590 = vperm.slane %v7587, 1
    %v7618 = vunpack.c.l.b16 %v7559
    %v7619 = vunpack.c.h.b16 %v7559
    %v7620 = vunpack.c.l.b16 %v7560
    %v7621 = vunpack.c.h.b16 %v7560
    %v7622 = vunpack.c.l.b16 %v7561
    %v7623 = vunpack.c.h.b16 %v7561
    %v7624 = vunpack.c.l.b16 %v7562
    %v7625 = vunpack.c.h.b16 %v7562
    %v7626 = vunpack.c.l.b16 %v7563
    %v7627 = vunpack.c.h.b16 %v7563
    %v7628 = vunpack.c.l.b16 %v7564
    %v7629 = vunpack.c.h.b16 %v7564
    %v7630 = vunpack.c.l.b16 %v7565
    %v7631 = vunpack.c.h.b16 %v7565
    %v7632 = vunpack.c.l.b16 %v7566
    %v7633 = vunpack.c.h.b16 %v7566
    %v7634 = vunpack.c.l.b16 %v7567
    %v7635 = vunpack.c.h.b16 %v7567
    %v7636 = vunpack.c.l.b16 %v7568
    %v7637 = vunpack.c.h.b16 %v7568
    %v7638 = vunpack.c.l.b16 %v7569
    %v7639 = vunpack.c.h.b16 %v7569
    %v7640 = vunpack.c.l.b16 %v7570
    %v7641 = vunpack.c.h.b16 %v7570
    %v7642 = vunpack.c.l.b16 %v7571
    %v7643 = vunpack.c.h.b16 %v7571
    %v7644 = vunpack.c.l.b16 %v7572
    %v7645 = vunpack.c.h.b16 %v7572
    %v7646 = vunpack.c.l.b16 %v7573
    %v7647 = vunpack.c.h.b16 %v7573
    %v7648 = vunpack.c.l.b16 %v7574
    %v7649 = vunpack.c.h.b16 %v7574
    %v7650 = vunpack.c.l.b16 %v7575
    %v7651 = vunpack.c.h.b16 %v7575
    %v7652 = vunpack.c.l.b16 %v7576
    %v7653 = vunpack.c.h.b16 %v7576
    %v7654 = vunpack.c.l.b16 %v7577
    %v7655 = vunpack.c.h.b16 %v7577
    %v7656 = vunpack.c.l.b16 %v7578
    %v7657 = vunpack.c.h.b16 %v7578
    %v7658 = vunpack.c.l.b16 %v7579
    %v7659 = vunpack.c.h.b16 %v7579
    %v7660 = vunpack.c.l.b16 %v7580
    %v7661 = vunpack.c.h.b16 %v7580
    %v7662 = vunpack.c.l.b16 %v7581
    %v7663 = vunpack.c.h.b16 %v7581
    %v7664 = vunpack.c.l.b16 %v7582
    %v7665 = vunpack.c.h.b16 %v7582
    %v7666 = vunpack.c.l.b16 %v7583
    %v7667 = vunpack.c.h.b16 %v7583
    %v7668 = vpack.c.b16 %v7620, %v7618
    %v7669 = vpack.c.b16 %v7621, %v7619
    %v7670 = vpack.c.b16 %v7624, %v7622
    %v7671 = vpack.c.b16 %v7625, %v7623
    %v7672 = vpack.c.b16 %v7628, %v7626
    %v7673 = vpack.c.b16 %v7629, %v7627
    %v7674 = vpack.c.b16 %v7632, %v7630
    %v7675 = vpack.c.b16 %v7633, %v7631
    %v7676 = vpack.c.b16 %v7636, %v7634
    %v7677 = vpack.c.b16 %v7637, %v7635
    %v7678 = vpack.c.b16 %v7640, %v7638
    %v7679 = vpack.c.b16 %v7641, %v7639
    %v7680 = vpack.c.b16 %v7644, %v7642
    %v7681 = vpack.c.b16 %v7645, %v7643
    %v7682 = vpack.c.b16 %v7648, %v7646
    %v7683 = vpack.c.b16 %v7649, %v7647
    %v7684 = vpack.c.b16 %v7652, %v7650
    %v7685 = vpack.c.b16 %v7653, %v7651
    %v7686 = vpack.c.b16 %v7656, %v7654
    %v7687 = vpack.c.b16 %v7657, %v7655
    %v7688 = vpack.c.b16 %v7660, %v7658
    %v7689 = vpack.c.b16 %v7661, %v7659
    %v7690 = vpack.c.b16 %v7664, %v7662
    %v7691 = vpack.c.b16 %v7665, %v7663
    %v7692 = vpack.c.b16 %v7666, %v7666
    %v7693 = vpack.c.b16 %v7667, %v7667
    %v7719 = vsel %vm558, %v7585, 0
    %v7722 = vsel %vm208, %v7692, 0
    %v7725 = vsel %vm208, %v7693, 0
    %7727 = vmatpush.bf16.msra.mxu0 %v7682
    %7728 = vmatpush.bf16.msra.mxu0 %v7680
    %7729 = vmatpush.bf16.msra.mxu0 %v7678
    %7730 = vmatpush.bf16.msra.mxu0 %v7676
    %7731 = vmatpush.bf16.msra.mxu0 %v7674
    %7732 = vmatpush.bf16.msra.mxu0 %v7672
    %7733 = vmatpush.bf16.msra.mxu0 %v7670
    %7734 = vmatpush.bf16.msra.mxu0 %v7668
    %7735 = vmatmul.bf16.gmra.mxu0 %v7584
    %v7736 = vpop.f32.mrf.mxu0
    %v7737 = vadd.f32 %v7589, %v7736
    %v7738 = vpop.f32.mrf.mxu0
    %7739 = vdwg.mxu0
    %7740 = vmatpush.bf16.msra.mxu0 0
    %7741 = vmatpush.bf16.msra.mxu0 0
    %7742 = vmatpush.bf16.msra.mxu0 0
    %7743 = vmatpush.bf16.msra.mxu0 %v7722
    %7744 = vmatpush.bf16.msra.mxu0 %v7690
    %7745 = vmatpush.bf16.msra.mxu0 %v7688
    %7746 = vmatpush.bf16.msra.mxu0 %v7686
    %7747 = vmatpush.bf16.msra.mxu0 %v7684
    %7748 = vmatmul.bf16.gmra.mxu0 %v7719
    %v7749 = vpop.f32.mrf.mxu0
    %v7750 = vadd.f32 %v7737, %v7749
    %v7751 = vpop.f32.mrf.mxu0
    %7752 = vdwg.mxu0
    %7753 = vmatpush.bf16.msra.mxu0 %v7683
    %7754 = vmatpush.bf16.msra.mxu0 %v7681
    %7755 = vmatpush.bf16.msra.mxu0 %v7679
    %7756 = vmatpush.bf16.msra.mxu0 %v7677
    %7757 = vmatpush.bf16.msra.mxu0 %v7675
    %7758 = vmatpush.bf16.msra.mxu0 %v7673
    %7759 = vmatpush.bf16.msra.mxu0 %v7671
    %7760 = vmatpush.bf16.msra.mxu0 %v7669
    %7761 = vmatmul.bf16.gmra.mxu0 %v7584
    %v7762 = vpop.f32.mrf.mxu0
    %v7763 = vadd.f32 %v7590, %v7762
    %v7764 = vpop.f32.mrf.mxu0
    %7765 = vdwg.mxu0
    %7766 = vmatpush.bf16.msra.mxu0 0
    %7767 = vmatpush.bf16.msra.mxu0 0
    %7768 = vmatpush.bf16.msra.mxu0 0
    %7769 = vmatpush.bf16.msra.mxu0 %v7725
    %7770 = vmatpush.bf16.msra.mxu0 %v7691
    %7771 = vmatpush.bf16.msra.mxu0 %v7689
    %7772 = vmatpush.bf16.msra.mxu0 %v7687
    %7773 = vmatpush.bf16.msra.mxu0 %v7685
    %7774 = vmatmul.bf16.gmra.mxu0 %v7719
    %v7775 = vpop.f32.mrf.mxu0
    %v7776 = vadd.f32 %v7763, %v7775
    %v7777 = vpop.f32.mrf.mxu0
    %7778 = vdwg.mxu0
    %v7779 = vmax.f32 %v7750, 0.0
    %v7780 = vmax.f32 %v7776, 0.0
    %s7781 = scalar_lea.vmem [#allocation7], 1000
    %v7782 = vld [vmem:[%s7781] sm:$0xff]
    %v7783 = vld [vmem:[%s7781 + $0x8] sm:$0xff]
    %v7784 = vld [vmem:[%s7781 + $0x10] sm:$0xff]
    %v7785 = vld [vmem:[%s7781 + $0x18] sm:$0xff]
    %v7786 = vld [vmem:[%s7781 + $0x20] sm:$0xff]
    %v7787 = vld [vmem:[%s7781 + $0x28] sm:$0xff]
    %v7788 = vld [vmem:[%s7781 + $0x30] sm:$0xff]
    %v7789 = vld [vmem:[%s7781 + $0x38] sm:$0xff]
    %v7790 = vld [vmem:[%s7781 + $0x40] sm:$0xff]
    %v7791 = vld [vmem:[%s7781 + $0x48] sm:$0xff]
    %v7792 = vld [vmem:[%s7781 + $0x50] sm:$0xff]
    %v7793 = vld [vmem:[%s7781 + $0x58] sm:$0xff]
    %v7794 = vld [vmem:[%s7781 + $0x60] sm:$0xff]
    %v7795 = vld [vmem:[%s7781 + $0x68] sm:$0xff]
    %v7796 = vld [vmem:[%s7781 + $0x70] sm:$0xff]
    %v7797 = vld [vmem:[%s7781 + $0x78] sm:$0xff]
    %v7798 = vld [vmem:[%s7781 + $0x80] sm:$0xff]
    %v7799 = vld [vmem:[%s7781 + $0x88] sm:$0xff]
    %v7800 = vld [vmem:[%s7781 + $0x90] sm:$0xff]
    %v7801 = vld [vmem:[%s7781 + $0x98] sm:$0xff]
    %v7802 = vld [vmem:[%s7781 + $0xa0] sm:$0xff]
    %v7803 = vld [vmem:[%s7781 + $0xa8] sm:$0xff]
    %v7804 = vld [vmem:[%s7781 + $0xb0] sm:$0xff]
    %v7805 = vld [vmem:[%s7781 + $0xb8] sm:$0xff]
    %v7806 = vld [vmem:[%s7781 + $0xc0] sm:$0xff]
    %v7807 = vpack.c.bf16 %v7779, %v7779
    %v7808 = vpack.c.bf16 %v7780, %v7780
    %s7809 = scalar_lea.vmem %s18, 10
    %v7810 = vld [vmem:[%s7809] sm:$0x3]
    %v7812 = vperm.slane %v7810, 0
    %v7813 = vperm.slane %v7810, 1
    %v7841 = vunpack.c.l.b16 %v7782
    %v7842 = vunpack.c.h.b16 %v7782
    %v7843 = vunpack.c.l.b16 %v7783
    %v7844 = vunpack.c.h.b16 %v7783
    %v7845 = vunpack.c.l.b16 %v7784
    %v7846 = vunpack.c.h.b16 %v7784
    %v7847 = vunpack.c.l.b16 %v7785
    %v7848 = vunpack.c.h.b16 %v7785
    %v7849 = vunpack.c.l.b16 %v7786
    %v7850 = vunpack.c.h.b16 %v7786
    %v7851 = vunpack.c.l.b16 %v7787
    %v7852 = vunpack.c.h.b16 %v7787
    %v7853 = vunpack.c.l.b16 %v7788
    %v7854 = vunpack.c.h.b16 %v7788
    %v7855 = vunpack.c.l.b16 %v7789
    %v7856 = vunpack.c.h.b16 %v7789
    %v7857 = vunpack.c.l.b16 %v7790
    %v7858 = vunpack.c.h.b16 %v7790
    %v7859 = vunpack.c.l.b16 %v7791
    %v7860 = vunpack.c.h.b16 %v7791
    %v7861 = vunpack.c.l.b16 %v7792
    %v7862 = vunpack.c.h.b16 %v7792
    %v7863 = vunpack.c.l.b16 %v7793
    %v7864 = vunpack.c.h.b16 %v7793
    %v7865 = vunpack.c.l.b16 %v7794
    %v7866 = vunpack.c.h.b16 %v7794
    %v7867 = vunpack.c.l.b16 %v7795
    %v7868 = vunpack.c.h.b16 %v7795
    %v7869 = vunpack.c.l.b16 %v7796
    %v7870 = vunpack.c.h.b16 %v7796
    %v7871 = vunpack.c.l.b16 %v7797
    %v7872 = vunpack.c.h.b16 %v7797
    %v7873 = vunpack.c.l.b16 %v7798
    %v7874 = vunpack.c.h.b16 %v7798
    %v7875 = vunpack.c.l.b16 %v7799
    %v7876 = vunpack.c.h.b16 %v7799
    %v7877 = vunpack.c.l.b16 %v7800
    %v7878 = vunpack.c.h.b16 %v7800
    %v7879 = vunpack.c.l.b16 %v7801
    %v7880 = vunpack.c.h.b16 %v7801
    %v7881 = vunpack.c.l.b16 %v7802
    %v7882 = vunpack.c.h.b16 %v7802
    %v7883 = vunpack.c.l.b16 %v7803
    %v7884 = vunpack.c.h.b16 %v7803
    %v7885 = vunpack.c.l.b16 %v7804
    %v7886 = vunpack.c.h.b16 %v7804
    %v7887 = vunpack.c.l.b16 %v7805
    %v7888 = vunpack.c.h.b16 %v7805
    %v7889 = vunpack.c.l.b16 %v7806
    %v7890 = vunpack.c.h.b16 %v7806
    %v7891 = vpack.c.b16 %v7843, %v7841
    %v7892 = vpack.c.b16 %v7844, %v7842
    %v7893 = vpack.c.b16 %v7847, %v7845
    %v7894 = vpack.c.b16 %v7848, %v7846
    %v7895 = vpack.c.b16 %v7851, %v7849
    %v7896 = vpack.c.b16 %v7852, %v7850
    %v7897 = vpack.c.b16 %v7855, %v7853
    %v7898 = vpack.c.b16 %v7856, %v7854
    %v7899 = vpack.c.b16 %v7859, %v7857
    %v7900 = vpack.c.b16 %v7860, %v7858
    %v7901 = vpack.c.b16 %v7863, %v7861
    %v7902 = vpack.c.b16 %v7864, %v7862
    %v7903 = vpack.c.b16 %v7867, %v7865
    %v7904 = vpack.c.b16 %v7868, %v7866
    %v7905 = vpack.c.b16 %v7871, %v7869
    %v7906 = vpack.c.b16 %v7872, %v7870
    %v7907 = vpack.c.b16 %v7875, %v7873
    %v7908 = vpack.c.b16 %v7876, %v7874
    %v7909 = vpack.c.b16 %v7879, %v7877
    %v7910 = vpack.c.b16 %v7880, %v7878
    %v7911 = vpack.c.b16 %v7883, %v7881
    %v7912 = vpack.c.b16 %v7884, %v7882
    %v7913 = vpack.c.b16 %v7887, %v7885
    %v7914 = vpack.c.b16 %v7888, %v7886
    %v7915 = vpack.c.b16 %v7889, %v7889
    %v7916 = vpack.c.b16 %v7890, %v7890
    %v7942 = vsel %vm558, %v7808, 0
    %v7945 = vsel %vm208, %v7915, 0
    %v7948 = vsel %vm208, %v7916, 0
    %7950 = vmatpush.bf16.msra.mxu0 %v7905
    %7951 = vmatpush.bf16.msra.mxu0 %v7903
    %7952 = vmatpush.bf16.msra.mxu0 %v7901
    %7953 = vmatpush.bf16.msra.mxu0 %v7899
    %7954 = vmatpush.bf16.msra.mxu0 %v7897
    %7955 = vmatpush.bf16.msra.mxu0 %v7895
    %7956 = vmatpush.bf16.msra.mxu0 %v7893
    %7957 = vmatpush.bf16.msra.mxu0 %v7891
    %7958 = vmatmul.bf16.gmra.mxu0 %v7807
    %v7959 = vpop.f32.mrf.mxu0
    %v7960 = vadd.f32 %v7812, %v7959
    %v7961 = vpop.f32.mrf.mxu0
    %7962 = vdwg.mxu0
    %7963 = vmatpush.bf16.msra.mxu0 0
    %7964 = vmatpush.bf16.msra.mxu0 0
    %7965 = vmatpush.bf16.msra.mxu0 0
    %7966 = vmatpush.bf16.msra.mxu0 %v7945
    %7967 = vmatpush.bf16.msra.mxu0 %v7913
    %7968 = vmatpush.bf16.msra.mxu0 %v7911
    %7969 = vmatpush.bf16.msra.mxu0 %v7909
    %7970 = vmatpush.bf16.msra.mxu0 %v7907
    %7971 = vmatmul.bf16.gmra.mxu0 %v7942
    %v7972 = vpop.f32.mrf.mxu0
    %v7973 = vadd.f32 %v7960, %v7972
    %v7974 = vpop.f32.mrf.mxu0
    %7975 = vdwg.mxu0
    %7976 = vmatpush.bf16.msra.mxu0 %v7906
    %7977 = vmatpush.bf16.msra.mxu0 %v7904
    %7978 = vmatpush.bf16.msra.mxu0 %v7902
    %7979 = vmatpush.bf16.msra.mxu0 %v7900
    %7980 = vmatpush.bf16.msra.mxu0 %v7898
    %7981 = vmatpush.bf16.msra.mxu0 %v7896
    %7982 = vmatpush.bf16.msra.mxu0 %v7894
    %7983 = vmatpush.bf16.msra.mxu0 %v7892
    %7984 = vmatmul.bf16.gmra.mxu0 %v7807
    %v7985 = vpop.f32.mrf.mxu0
    %v7986 = vadd.f32 %v7813, %v7985
    %v7987 = vpop.f32.mrf.mxu0
    %7988 = vdwg.mxu0
    %7989 = vmatpush.bf16.msra.mxu0 0
    %7990 = vmatpush.bf16.msra.mxu0 0
    %7991 = vmatpush.bf16.msra.mxu0 0
    %7992 = vmatpush.bf16.msra.mxu0 %v7948
    %7993 = vmatpush.bf16.msra.mxu0 %v7914
    %7994 = vmatpush.bf16.msra.mxu0 %v7912
    %7995 = vmatpush.bf16.msra.mxu0 %v7910
    %7996 = vmatpush.bf16.msra.mxu0 %v7908
    %7997 = vmatmul.bf16.gmra.mxu0 %v7942
    %v7998 = vpop.f32.mrf.mxu0
    %v7999 = vadd.f32 %v7986, %v7998
    %v8000 = vpop.f32.mrf.mxu0
    %8001 = vdwg.mxu0
    %v8002 = vmax.f32 %v7973, 0.0
    %v8003 = vmax.f32 %v7999, 0.0
    %s8004 = scalar_lea.vmem %s19, 200
    %v8005 = vld [vmem:[%s8004] sm:$0xf]
    %v8006 = vld [vmem:[%s8004 + $0x4] sm:$0xf]
    %v8007 = vld [vmem:[%s8004 + $0x8] sm:$0xf]
    %v8008 = vld [vmem:[%s8004 + $0xc] sm:$0xf]
    %v8009 = vld [vmem:[%s8004 + $0x10] sm:$0xf]
    %v8010 = vld [vmem:[%s8004 + $0x14] sm:$0xf]
    %v8011 = vld [vmem:[%s8004 + $0x18] sm:$0xf]
    %v8012 = vld [vmem:[%s8004 + $0x1c] sm:$0xf]
    %v8013 = vld [vmem:[%s8004 + $0x20] sm:$0xf]
    %v8014 = vld [vmem:[%s8004 + $0x24] sm:$0xf]
    %v8015 = vld [vmem:[%s8004 + $0x28] sm:$0xf]
    %v8016 = vld [vmem:[%s8004 + $0x2c] sm:$0xf]
    %v8017 = vld [vmem:[%s8004 + $0x30] sm:$0xf]
    %v8018 = vld [vmem:[%s8004 + $0x34] sm:$0xf]
    %v8019 = vld [vmem:[%s8004 + $0x38] sm:$0xf]
    %v8020 = vld [vmem:[%s8004 + $0x3c] sm:$0xf]
    %v8021 = vld [vmem:[%s8004 + $0x40] sm:$0xf]
    %v8022 = vld [vmem:[%s8004 + $0x44] sm:$0xf]
    %v8023 = vld [vmem:[%s8004 + $0x48] sm:$0xf]
    %v8024 = vld [vmem:[%s8004 + $0x4c] sm:$0xf]
    %v8025 = vld [vmem:[%s8004 + $0x50] sm:$0xf]
    %v8026 = vld [vmem:[%s8004 + $0x54] sm:$0xf]
    %v8027 = vld [vmem:[%s8004 + $0x58] sm:$0xf]
    %v8028 = vld [vmem:[%s8004 + $0x5c] sm:$0xf]
    %v8029 = vld [vmem:[%s8004 + $0x60] sm:$0xf]
    %v8030 = vpack.c.bf16 %v8002, %v8002
    %v8031 = vpack.c.bf16 %v8003, %v8003
    %s8032 = scalar_lea.vmem %s20, 2
    %v8033 = vld [vmem:[%s8032] sm:$0x1]
    %v8035 = vperm.slane %v8033, 0
    %v8062 = vunpack.c.l.b16 %v8005
    %v8063 = vunpack.c.l.b16 %v8006
    %v8064 = vunpack.c.l.b16 %v8007
    %v8065 = vunpack.c.l.b16 %v8008
    %v8066 = vunpack.c.l.b16 %v8009
    %v8067 = vunpack.c.l.b16 %v8010
    %v8068 = vunpack.c.l.b16 %v8011
    %v8069 = vunpack.c.l.b16 %v8012
    %v8070 = vunpack.c.l.b16 %v8013
    %v8071 = vunpack.c.l.b16 %v8014
    %v8072 = vunpack.c.l.b16 %v8015
    %v8073 = vunpack.c.l.b16 %v8016
    %v8074 = vunpack.c.l.b16 %v8017
    %v8075 = vunpack.c.l.b16 %v8018
    %v8076 = vunpack.c.l.b16 %v8019
    %v8077 = vunpack.c.l.b16 %v8020
    %v8078 = vunpack.c.l.b16 %v8021
    %v8079 = vunpack.c.l.b16 %v8022
    %v8080 = vunpack.c.l.b16 %v8023
    %v8081 = vunpack.c.l.b16 %v8024
    %v8082 = vunpack.c.l.b16 %v8025
    %v8083 = vunpack.c.l.b16 %v8026
    %v8084 = vunpack.c.l.b16 %v8027
    %v8085 = vunpack.c.l.b16 %v8028
    %v8086 = vunpack.c.l.b16 %v8029
    %v8087 = vpack.c.b16 %v8063, %v8062
    %v8088 = vpack.c.b16 %v8065, %v8064
    %v8089 = vpack.c.b16 %v8067, %v8066
    %v8090 = vpack.c.b16 %v8069, %v8068
    %v8091 = vpack.c.b16 %v8071, %v8070
    %v8092 = vpack.c.b16 %v8073, %v8072
    %v8093 = vpack.c.b16 %v8075, %v8074
    %v8094 = vpack.c.b16 %v8077, %v8076
    %v8095 = vpack.c.b16 %v8079, %v8078
    %v8096 = vpack.c.b16 %v8081, %v8080
    %v8097 = vpack.c.b16 %v8083, %v8082
    %v8098 = vpack.c.b16 %v8085, %v8084
    %v8099 = vpack.c.b16 %v8086, %v8086
    %v8113 = vsel %vm558, %v8031, 0
    %v8116 = vsel %vm208, %v8099, 0
    %8118 = vmatpush.bf16.msra.mxu0 %v8094
    %8119 = vmatpush.bf16.msra.mxu0 %v8093
    %8120 = vmatpush.bf16.msra.mxu0 %v8092
    %8121 = vmatpush.bf16.msra.mxu0 %v8091
    %8122 = vmatpush.bf16.msra.mxu0 %v8090
    %8123 = vmatpush.bf16.msra.mxu0 %v8089
    %8124 = vmatpush.bf16.msra.mxu0 %v8088
    %8125 = vmatpush.bf16.msra.mxu0 %v8087
    %8126 = vmatmul.bf16.gmra.mxu0 %v8030
    %v8127 = vpop.f32.mrf.mxu0
    %v8128 = vadd.f32 %v8035, %v8127
    %v8129 = vpop.f32.mrf.mxu0
    %8130 = vdwg.mxu0
    %8131 = vmatpush.bf16.msra.mxu0 0
    %8132 = vmatpush.bf16.msra.mxu0 0
    %8133 = vmatpush.bf16.msra.mxu0 0
    %8134 = vmatpush.bf16.msra.mxu0 %v8116
    %8135 = vmatpush.bf16.msra.mxu0 %v8098
    %8136 = vmatpush.bf16.msra.mxu0 %v8097
    %8137 = vmatpush.bf16.msra.mxu0 %v8096
    %8138 = vmatpush.bf16.msra.mxu0 %v8095
    %8139 = vmatmul.bf16.gmra.mxu0 %v8113
    %v8140 = vpop.f32.mrf.mxu0
    %v8141 = vadd.f32 %v8128, %v8140
    %v8142 = vpop.f32.mrf.mxu0
    %8143 = vdwg.mxu0
    %v8144 = vsub.f32 0.0, %v7296
    %v8145 = vrcp.pop %v8144
    %v8146 = vmul.f32 %v8144, %v8145
    %v8147 = vsub.f32 1.0, %v8146
    %v8148 = vmul.f32 %v8145, %v8147
    %v8149 = vadd.f32 %v8145, %v8148
    %vm8150 = vweird.f32 %v8144
    %vm8151 = vweird.f32 %v8145
    %vm8152 = vmor %vm8150, %vm8151
    %v8153 = vsel %vm8152, %v8145, %v8149
    %v8154 = vand.u32 2147483647, %v8144
    %vm8155 = vcmp.eq.f32.partialorder %v8154, 8.507059e+37
    %v8156 = vand.u32 %v8144, 2147483648
    %v8157 = vor.u32 1.1754944e-38, %v8156
    %v8158 = vsel %vm8155, %v8157, %v8153
    %v8159 = vsub.f32 %v8158, 1.0
    %v8160 = vadd.f32 %v8159, %v8141
    %v8161 = vsel %vm276, %v8160, -inf
    %8162 = vmax.xlane.f32.xlu0 %v8161
    %v8163 = vpop.xlane.xlu0 %8162
    %v8164 = vsub.f32 %v8160, %v8163
    %v8165 = vmul.f32 %v8164, 1.442695
    %v8166 = vpow.pop %v8165
    %v8167 = vsel %vm276, %v8166, 0.0
    %8168 = vadd.xlane.f32.xlu0 %v8167
    %v8169 = vpop.xlane.xlu0 %8168
    %v8170 = vrcp.pop %v8169
    %v8171 = vmul.f32 %v8166, %v8170
    %v8172 = vadd.f32 %v8171, 1e-14
    %s8173 = scalar_lea.vmem %s27, 16
    %8174 = vst.msk [vmem:[%s8173] sm:$0xff] %vm276, %v8172
    %s8175 = scalar_lea.vmem [#allocation9], 400
    %v8176 = vld [vmem:[%s8175] sm:$0xff]
    %v8177 = vld [vmem:[%s8175 + $0x8] sm:$0xff]
    %v8178 = vld [vmem:[%s8175 + $0x10] sm:$0xff]
    %v8179 = vld [vmem:[%s8175 + $0x18] sm:$0xff]
    %v8180 = vld [vmem:[%s8175 + $0x20] sm:$0xff]
    %v8181 = vld [vmem:[%s8175 + $0x28] sm:$0xff]
    %v8182 = vld [vmem:[%s8175 + $0x30] sm:$0xff]
    %v8183 = vld [vmem:[%s8175 + $0x38] sm:$0xff]
    %v8184 = vld [vmem:[%s8175 + $0x40] sm:$0xff]
    %v8185 = vld [vmem:[%s8175 + $0x48] sm:$0xff]
    %v8186 = vld [vmem:[%s8175 + $0x50] sm:$0xff]
    %v8187 = vld [vmem:[%s8175 + $0x58] sm:$0xff]
    %v8188 = vld [vmem:[%s8175 + $0x60] sm:$0xff]
    %v8189 = vld [vmem:[%s8175 + $0x68] sm:$0xff]
    %v8190 = vld [vmem:[%s8175 + $0x70] sm:$0xff]
    %v8191 = vld [vmem:[%s8175 + $0x78] sm:$0xff]
    %v8192 = vld [vmem:[%s8175 + $0x80] sm:$0xff]
    %v8193 = vld [vmem:[%s8175 + $0x88] sm:$0xff]
    %v8194 = vld [vmem:[%s8175 + $0x90] sm:$0xff]
    %v8195 = vld [vmem:[%s8175 + $0x98] sm:$0xff]
    %v8196 = vld [vmem:[%s8175 + $0xa0] sm:$0xff]
    %v8197 = vld [vmem:[%s8175 + $0xa8] sm:$0xff]
    %v8198 = vld [vmem:[%s8175 + $0xb0] sm:$0xff]
    %v8199 = vld [vmem:[%s8175 + $0xb8] sm:$0xff]
    %v8200 = vld [vmem:[%s8175 + $0xc0] sm:$0xff]
    %s8201 = scalar_lea.vmem %s22, 4
    %v8202 = vld [vmem:[%s8201] sm:$0x3]
    %v8204 = vperm.slane %v8202, 0
    %v8205 = vperm.slane %v8202, 1
    %v8233 = vunpack.c.l.b16 %v8176
    %v8234 = vunpack.c.h.b16 %v8176
    %v8235 = vunpack.c.l.b16 %v8177
    %v8236 = vunpack.c.h.b16 %v8177
    %v8237 = vunpack.c.l.b16 %v8178
    %v8238 = vunpack.c.h.b16 %v8178
    %v8239 = vunpack.c.l.b16 %v8179
    %v8240 = vunpack.c.h.b16 %v8179
    %v8241 = vunpack.c.l.b16 %v8180
    %v8242 = vunpack.c.h.b16 %v8180
    %v8243 = vunpack.c.l.b16 %v8181
    %v8244 = vunpack.c.h.b16 %v8181
    %v8245 = vunpack.c.l.b16 %v8182
    %v8246 = vunpack.c.h.b16 %v8182
    %v8247 = vunpack.c.l.b16 %v8183
    %v8248 = vunpack.c.h.b16 %v8183
    %v8249 = vunpack.c.l.b16 %v8184
    %v8250 = vunpack.c.h.b16 %v8184
    %v8251 = vunpack.c.l.b16 %v8185
    %v8252 = vunpack.c.h.b16 %v8185
    %v8253 = vunpack.c.l.b16 %v8186
    %v8254 = vunpack.c.h.b16 %v8186
    %v8255 = vunpack.c.l.b16 %v8187
    %v8256 = vunpack.c.h.b16 %v8187
    %v8257 = vunpack.c.l.b16 %v8188
    %v8258 = vunpack.c.h.b16 %v8188
    %v8259 = vunpack.c.l.b16 %v8189
    %v8260 = vunpack.c.h.b16 %v8189
    %v8261 = vunpack.c.l.b16 %v8190
    %v8262 = vunpack.c.h.b16 %v8190
    %v8263 = vunpack.c.l.b16 %v8191
    %v8264 = vunpack.c.h.b16 %v8191
    %v8265 = vunpack.c.l.b16 %v8192
    %v8266 = vunpack.c.h.b16 %v8192
    %v8267 = vunpack.c.l.b16 %v8193
    %v8268 = vunpack.c.h.b16 %v8193
    %v8269 = vunpack.c.l.b16 %v8194
    %v8270 = vunpack.c.h.b16 %v8194
    %v8271 = vunpack.c.l.b16 %v8195
    %v8272 = vunpack.c.h.b16 %v8195
    %v8273 = vunpack.c.l.b16 %v8196
    %v8274 = vunpack.c.h.b16 %v8196
    %v8275 = vunpack.c.l.b16 %v8197
    %v8276 = vunpack.c.h.b16 %v8197
    %v8277 = vunpack.c.l.b16 %v8198
    %v8278 = vunpack.c.h.b16 %v8198
    %v8279 = vunpack.c.l.b16 %v8199
    %v8280 = vunpack.c.h.b16 %v8199
    %v8281 = vunpack.c.l.b16 %v8200
    %v8282 = vunpack.c.h.b16 %v8200
    %v8283 = vpack.c.b16 %v8235, %v8233
    %v8284 = vpack.c.b16 %v8236, %v8234
    %v8285 = vpack.c.b16 %v8239, %v8237
    %v8286 = vpack.c.b16 %v8240, %v8238
    %v8287 = vpack.c.b16 %v8243, %v8241
    %v8288 = vpack.c.b16 %v8244, %v8242
    %v8289 = vpack.c.b16 %v8247, %v8245
    %v8290 = vpack.c.b16 %v8248, %v8246
    %v8291 = vpack.c.b16 %v8251, %v8249
    %v8292 = vpack.c.b16 %v8252, %v8250
    %v8293 = vpack.c.b16 %v8255, %v8253
    %v8294 = vpack.c.b16 %v8256, %v8254
    %v8295 = vpack.c.b16 %v8259, %v8257
    %v8296 = vpack.c.b16 %v8260, %v8258
    %v8297 = vpack.c.b16 %v8263, %v8261
    %v8298 = vpack.c.b16 %v8264, %v8262
    %v8299 = vpack.c.b16 %v8267, %v8265
    %v8300 = vpack.c.b16 %v8268, %v8266
    %v8301 = vpack.c.b16 %v8271, %v8269
    %v8302 = vpack.c.b16 %v8272, %v8270
    %v8303 = vpack.c.b16 %v8275, %v8273
    %v8304 = vpack.c.b16 %v8276, %v8274
    %v8305 = vpack.c.b16 %v8279, %v8277
    %v8306 = vpack.c.b16 %v8280, %v8278
    %v8307 = vpack.c.b16 %v8281, %v8281
    %v8308 = vpack.c.b16 %v8282, %v8282
    %v8334 = vsel %vm208, %v8307, 0
    %v8337 = vsel %vm208, %v8308, 0
    %8339 = vmatpush.bf16.msra.mxu0 %v8297
    %8340 = vmatpush.bf16.msra.mxu0 %v8295
    %8341 = vmatpush.bf16.msra.mxu0 %v8293
    %8342 = vmatpush.bf16.msra.mxu0 %v8291
    %8343 = vmatpush.bf16.msra.mxu0 %v8289
    %8344 = vmatpush.bf16.msra.mxu0 %v8287
    %8345 = vmatpush.bf16.msra.mxu0 %v8285
    %8346 = vmatpush.bf16.msra.mxu0 %v8283
    %8347 = vmatmul.bf16.gmra.mxu0 %v3937
    %v8348 = vpop.f32.mrf.mxu0
    %v8349 = vadd.f32 %v8204, %v8348
    %v8350 = vpop.f32.mrf.mxu0
    %8351 = vdwg.mxu0
    %8352 = vmatpush.bf16.msra.mxu0 0
    %8353 = vmatpush.bf16.msra.mxu0 0
    %8354 = vmatpush.bf16.msra.mxu0 0
    %8355 = vmatpush.bf16.msra.mxu0 %v8334
    %8356 = vmatpush.bf16.msra.mxu0 %v8305
    %8357 = vmatpush.bf16.msra.mxu0 %v8303
    %8358 = vmatpush.bf16.msra.mxu0 %v8301
    %8359 = vmatpush.bf16.msra.mxu0 %v8299
    %8360 = vmatmul.bf16.gmra.mxu0 %v4105
    %v8361 = vpop.f32.mrf.mxu0
    %v8362 = vadd.f32 %v8349, %v8361
    %v8363 = vpop.f32.mrf.mxu0
    %8364 = vdwg.mxu0
    %8365 = vmatpush.bf16.msra.mxu0 %v8298
    %8366 = vmatpush.bf16.msra.mxu0 %v8296
    %8367 = vmatpush.bf16.msra.mxu0 %v8294
    %8368 = vmatpush.bf16.msra.mxu0 %v8292
    %8369 = vmatpush.bf16.msra.mxu0 %v8290
    %8370 = vmatpush.bf16.msra.mxu0 %v8288
    %8371 = vmatpush.bf16.msra.mxu0 %v8286
    %8372 = vmatpush.bf16.msra.mxu0 %v8284
    %8373 = vmatmul.bf16.gmra.mxu0 %v3937
    %v8374 = vpop.f32.mrf.mxu0
    %v8375 = vadd.f32 %v8205, %v8374
    %v8376 = vpop.f32.mrf.mxu0
    %8377 = vdwg.mxu0
    %8378 = vmatpush.bf16.msra.mxu0 0
    %8379 = vmatpush.bf16.msra.mxu0 0
    %8380 = vmatpush.bf16.msra.mxu0 0
    %8381 = vmatpush.bf16.msra.mxu0 %v8337
    %8382 = vmatpush.bf16.msra.mxu0 %v8306
    %8383 = vmatpush.bf16.msra.mxu0 %v8304
    %8384 = vmatpush.bf16.msra.mxu0 %v8302
    %8385 = vmatpush.bf16.msra.mxu0 %v8300
    %8386 = vmatmul.bf16.gmra.mxu0 %v4105
    %v8387 = vpop.f32.mrf.mxu0
    %v8388 = vadd.f32 %v8375, %v8387
    %v8389 = vpop.f32.mrf.mxu0
    %8390 = vdwg.mxu0
    %v8391 = vmax.f32 %v8362, 0.0
    %v8392 = vmax.f32 %v8388, 0.0
    %s8393 = scalar_lea.vmem [#allocation10], 800
    %v8394 = vld [vmem:[%s8393] sm:$0xff]
    %v8395 = vld [vmem:[%s8393 + $0x8] sm:$0xff]
    %v8396 = vld [vmem:[%s8393 + $0x10] sm:$0xff]
    %v8397 = vld [vmem:[%s8393 + $0x18] sm:$0xff]
    %v8398 = vld [vmem:[%s8393 + $0x20] sm:$0xff]
    %v8399 = vld [vmem:[%s8393 + $0x28] sm:$0xff]
    %v8400 = vld [vmem:[%s8393 + $0x30] sm:$0xff]
    %v8401 = vld [vmem:[%s8393 + $0x38] sm:$0xff]
    %v8402 = vld [vmem:[%s8393 + $0x40] sm:$0xff]
    %v8403 = vld [vmem:[%s8393 + $0x48] sm:$0xff]
    %v8404 = vld [vmem:[%s8393 + $0x50] sm:$0xff]
    %v8405 = vld [vmem:[%s8393 + $0x58] sm:$0xff]
    %v8406 = vld [vmem:[%s8393 + $0x60] sm:$0xff]
    %v8407 = vld [vmem:[%s8393 + $0x68] sm:$0xff]
    %v8408 = vld [vmem:[%s8393 + $0x70] sm:$0xff]
    %v8409 = vld [vmem:[%s8393 + $0x78] sm:$0xff]
    %v8410 = vld [vmem:[%s8393 + $0x80] sm:$0xff]
    %v8411 = vld [vmem:[%s8393 + $0x88] sm:$0xff]
    %v8412 = vld [vmem:[%s8393 + $0x90] sm:$0xff]
    %v8413 = vld [vmem:[%s8393 + $0x98] sm:$0xff]
    %v8414 = vld [vmem:[%s8393 + $0xa0] sm:$0xff]
    %v8415 = vld [vmem:[%s8393 + $0xa8] sm:$0xff]
    %v8416 = vld [vmem:[%s8393 + $0xb0] sm:$0xff]
    %v8417 = vld [vmem:[%s8393 + $0xb8] sm:$0xff]
    %v8418 = vld [vmem:[%s8393 + $0xc0] sm:$0xff]
    %v8419 = vpack.c.bf16 %v8391, %v8391
    %v8420 = vpack.c.bf16 %v8392, %v8392
    %s8421 = scalar_lea.vmem %s24, 8
    %v8422 = vld [vmem:[%s8421] sm:$0x3]
    %v8424 = vperm.slane %v8422, 0
    %v8425 = vperm.slane %v8422, 1
    %v8453 = vunpack.c.l.b16 %v8394
    %v8454 = vunpack.c.h.b16 %v8394
    %v8455 = vunpack.c.l.b16 %v8395
    %v8456 = vunpack.c.h.b16 %v8395
    %v8457 = vunpack.c.l.b16 %v8396
    %v8458 = vunpack.c.h.b16 %v8396
    %v8459 = vunpack.c.l.b16 %v8397
    %v8460 = vunpack.c.h.b16 %v8397
    %v8461 = vunpack.c.l.b16 %v8398
    %v8462 = vunpack.c.h.b16 %v8398
    %v8463 = vunpack.c.l.b16 %v8399
    %v8464 = vunpack.c.h.b16 %v8399
    %v8465 = vunpack.c.l.b16 %v8400
    %v8466 = vunpack.c.h.b16 %v8400
    %v8467 = vunpack.c.l.b16 %v8401
    %v8468 = vunpack.c.h.b16 %v8401
    %v8469 = vunpack.c.l.b16 %v8402
    %v8470 = vunpack.c.h.b16 %v8402
    %v8471 = vunpack.c.l.b16 %v8403
    %v8472 = vunpack.c.h.b16 %v8403
    %v8473 = vunpack.c.l.b16 %v8404
    %v8474 = vunpack.c.h.b16 %v8404
    %v8475 = vunpack.c.l.b16 %v8405
    %v8476 = vunpack.c.h.b16 %v8405
    %v8477 = vunpack.c.l.b16 %v8406
    %v8478 = vunpack.c.h.b16 %v8406
    %v8479 = vunpack.c.l.b16 %v8407
    %v8480 = vunpack.c.h.b16 %v8407
    %v8481 = vunpack.c.l.b16 %v8408
    %v8482 = vunpack.c.h.b16 %v8408
    %v8483 = vunpack.c.l.b16 %v8409
    %v8484 = vunpack.c.h.b16 %v8409
    %v8485 = vunpack.c.l.b16 %v8410
    %v8486 = vunpack.c.h.b16 %v8410
    %v8487 = vunpack.c.l.b16 %v8411
    %v8488 = vunpack.c.h.b16 %v8411
    %v8489 = vunpack.c.l.b16 %v8412
    %v8490 = vunpack.c.h.b16 %v8412
    %v8491 = vunpack.c.l.b16 %v8413
    %v8492 = vunpack.c.h.b16 %v8413
    %v8493 = vunpack.c.l.b16 %v8414
    %v8494 = vunpack.c.h.b16 %v8414
    %v8495 = vunpack.c.l.b16 %v8415
    %v8496 = vunpack.c.h.b16 %v8415
    %v8497 = vunpack.c.l.b16 %v8416
    %v8498 = vunpack.c.h.b16 %v8416
    %v8499 = vunpack.c.l.b16 %v8417
    %v8500 = vunpack.c.h.b16 %v8417
    %v8501 = vunpack.c.l.b16 %v8418
    %v8502 = vunpack.c.h.b16 %v8418
    %v8503 = vpack.c.b16 %v8455, %v8453
    %v8504 = vpack.c.b16 %v8456, %v8454
    %v8505 = vpack.c.b16 %v8459, %v8457
    %v8506 = vpack.c.b16 %v8460, %v8458
    %v8507 = vpack.c.b16 %v8463, %v8461
    %v8508 = vpack.c.b16 %v8464, %v8462
    %v8509 = vpack.c.b16 %v8467, %v8465
    %v8510 = vpack.c.b16 %v8468, %v8466
    %v8511 = vpack.c.b16 %v8471, %v8469
    %v8512 = vpack.c.b16 %v8472, %v8470
    %v8513 = vpack.c.b16 %v8475, %v8473
    %v8514 = vpack.c.b16 %v8476, %v8474
    %v8515 = vpack.c.b16 %v8479, %v8477
    %v8516 = vpack.c.b16 %v8480, %v8478
    %v8517 = vpack.c.b16 %v8483, %v8481
    %v8518 = vpack.c.b16 %v8484, %v8482
    %v8519 = vpack.c.b16 %v8487, %v8485
    %v8520 = vpack.c.b16 %v8488, %v8486
    %v8521 = vpack.c.b16 %v8491, %v8489
    %v8522 = vpack.c.b16 %v8492, %v8490
    %v8523 = vpack.c.b16 %v8495, %v8493
    %v8524 = vpack.c.b16 %v8496, %v8494
    %v8525 = vpack.c.b16 %v8499, %v8497
    %v8526 = vpack.c.b16 %v8500, %v8498
    %v8527 = vpack.c.b16 %v8501, %v8501
    %v8528 = vpack.c.b16 %v8502, %v8502
    %v8554 = vsel %vm558, %v8420, 0
    %v8557 = vsel %vm208, %v8527, 0
    %v8560 = vsel %vm208, %v8528, 0
    %8562 = vmatpush.bf16.msra.mxu0 %v8517
    %8563 = vmatpush.bf16.msra.mxu0 %v8515
    %8564 = vmatpush.bf16.msra.mxu0 %v8513
    %8565 = vmatpush.bf16.msra.mxu0 %v8511
    %8566 = vmatpush.bf16.msra.mxu0 %v8509
    %8567 = vmatpush.bf16.msra.mxu0 %v8507
    %8568 = vmatpush.bf16.msra.mxu0 %v8505
    %8569 = vmatpush.bf16.msra.mxu0 %v8503
    %8570 = vmatmul.bf16.gmra.mxu0 %v8419
    %v8571 = vpop.f32.mrf.mxu0
    %v8572 = vadd.f32 %v8424, %v8571
    %v8573 = vpop.f32.mrf.mxu0
    %8574 = vdwg.mxu0
    %8575 = vmatpush.bf16.msra.mxu0 0
    %8576 = vmatpush.bf16.msra.mxu0 0
    %8577 = vmatpush.bf16.msra.mxu0 0
    %8578 = vmatpush.bf16.msra.mxu0 %v8557
    %8579 = vmatpush.bf16.msra.mxu0 %v8525
    %8580 = vmatpush.bf16.msra.mxu0 %v8523
    %8581 = vmatpush.bf16.msra.mxu0 %v8521
    %8582 = vmatpush.bf16.msra.mxu0 %v8519
    %8583 = vmatmul.bf16.gmra.mxu0 %v8554
    %v8584 = vpop.f32.mrf.mxu0
    %v8585 = vadd.f32 %v8572, %v8584
    %v8586 = vpop.f32.mrf.mxu0
    %8587 = vdwg.mxu0
    %8588 = vmatpush.bf16.msra.mxu0 %v8518
    %8589 = vmatpush.bf16.msra.mxu0 %v8516
    %8590 = vmatpush.bf16.msra.mxu0 %v8514
    %8591 = vmatpush.bf16.msra.mxu0 %v8512
    %8592 = vmatpush.bf16.msra.mxu0 %v8510
    %8593 = vmatpush.bf16.msra.mxu0 %v8508
    %8594 = vmatpush.bf16.msra.mxu0 %v8506
    %8595 = vmatpush.bf16.msra.mxu0 %v8504
    %8596 = vmatmul.bf16.gmra.mxu0 %v8419
    %v8597 = vpop.f32.mrf.mxu0
    %v8598 = vadd.f32 %v8425, %v8597
    %v8599 = vpop.f32.mrf.mxu0
    %8600 = vdwg.mxu0
    %8601 = vmatpush.bf16.msra.mxu0 0
    %8602 = vmatpush.bf16.msra.mxu0 0
    %8603 = vmatpush.bf16.msra.mxu0 0
    %8604 = vmatpush.bf16.msra.mxu0 %v8560
    %8605 = vmatpush.bf16.msra.mxu0 %v8526
    %8606 = vmatpush.bf16.msra.mxu0 %v8524
    %8607 = vmatpush.bf16.msra.mxu0 %v8522
    %8608 = vmatpush.bf16.msra.mxu0 %v8520
    %8609 = vmatmul.bf16.gmra.mxu0 %v8554
    %v8610 = vpop.f32.mrf.mxu0
    %v8611 = vadd.f32 %v8598, %v8610
    %v8612 = vpop.f32.mrf.mxu0
    %8613 = vdwg.mxu0
    %v8614 = vmax.f32 %v8585, 0.0
    %v8615 = vmax.f32 %v8611, 0.0
    %s8616 = scalar_lea.vmem [#allocation10], 1000
    %v8617 = vld [vmem:[%s8616] sm:$0xff]
    %v8618 = vld [vmem:[%s8616 + $0x8] sm:$0xff]
    %v8619 = vld [vmem:[%s8616 + $0x10] sm:$0xff]
    %v8620 = vld [vmem:[%s8616 + $0x18] sm:$0xff]
    %v8621 = vld [vmem:[%s8616 + $0x20] sm:$0xff]
    %v8622 = vld [vmem:[%s8616 + $0x28] sm:$0xff]
    %v8623 = vld [vmem:[%s8616 + $0x30] sm:$0xff]
    %v8624 = vld [vmem:[%s8616 + $0x38] sm:$0xff]
    %v8625 = vld [vmem:[%s8616 + $0x40] sm:$0xff]
    %v8626 = vld [vmem:[%s8616 + $0x48] sm:$0xff]
    %v8627 = vld [vmem:[%s8616 + $0x50] sm:$0xff]
    %v8628 = vld [vmem:[%s8616 + $0x58] sm:$0xff]
    %v8629 = vld [vmem:[%s8616 + $0x60] sm:$0xff]
    %v8630 = vld [vmem:[%s8616 + $0x68] sm:$0xff]
    %v8631 = vld [vmem:[%s8616 + $0x70] sm:$0xff]
    %v8632 = vld [vmem:[%s8616 + $0x78] sm:$0xff]
    %v8633 = vld [vmem:[%s8616 + $0x80] sm:$0xff]
    %v8634 = vld [vmem:[%s8616 + $0x88] sm:$0xff]
    %v8635 = vld [vmem:[%s8616 + $0x90] sm:$0xff]
    %v8636 = vld [vmem:[%s8616 + $0x98] sm:$0xff]
    %v8637 = vld [vmem:[%s8616 + $0xa0] sm:$0xff]
    %v8638 = vld [vmem:[%s8616 + $0xa8] sm:$0xff]
    %v8639 = vld [vmem:[%s8616 + $0xb0] sm:$0xff]
    %v8640 = vld [vmem:[%s8616 + $0xb8] sm:$0xff]
    %v8641 = vld [vmem:[%s8616 + $0xc0] sm:$0xff]
    %v8642 = vpack.c.bf16 %v8614, %v8614
    %v8643 = vpack.c.bf16 %v8615, %v8615
    %s8644 = scalar_lea.vmem %s24, 10
    %v8645 = vld [vmem:[%s8644] sm:$0x3]
    %v8647 = vperm.slane %v8645, 0
    %v8648 = vperm.slane %v8645, 1
    %v8676 = vunpack.c.l.b16 %v8617
    %v8677 = vunpack.c.h.b16 %v8617
    %v8678 = vunpack.c.l.b16 %v8618
    %v8679 = vunpack.c.h.b16 %v8618
    %v8680 = vunpack.c.l.b16 %v8619
    %v8681 = vunpack.c.h.b16 %v8619
    %v8682 = vunpack.c.l.b16 %v8620
    %v8683 = vunpack.c.h.b16 %v8620
    %v8684 = vunpack.c.l.b16 %v8621
    %v8685 = vunpack.c.h.b16 %v8621
    %v8686 = vunpack.c.l.b16 %v8622
    %v8687 = vunpack.c.h.b16 %v8622
    %v8688 = vunpack.c.l.b16 %v8623
    %v8689 = vunpack.c.h.b16 %v8623
    %v8690 = vunpack.c.l.b16 %v8624
    %v8691 = vunpack.c.h.b16 %v8624
    %v8692 = vunpack.c.l.b16 %v8625
    %v8693 = vunpack.c.h.b16 %v8625
    %v8694 = vunpack.c.l.b16 %v8626
    %v8695 = vunpack.c.h.b16 %v8626
    %v8696 = vunpack.c.l.b16 %v8627
    %v8697 = vunpack.c.h.b16 %v8627
    %v8698 = vunpack.c.l.b16 %v8628
    %v8699 = vunpack.c.h.b16 %v8628
    %v8700 = vunpack.c.l.b16 %v8629
    %v8701 = vunpack.c.h.b16 %v8629
    %v8702 = vunpack.c.l.b16 %v8630
    %v8703 = vunpack.c.h.b16 %v8630
    %v8704 = vunpack.c.l.b16 %v8631
    %v8705 = vunpack.c.h.b16 %v8631
    %v8706 = vunpack.c.l.b16 %v8632
    %v8707 = vunpack.c.h.b16 %v8632
    %v8708 = vunpack.c.l.b16 %v8633
    %v8709 = vunpack.c.h.b16 %v8633
    %v8710 = vunpack.c.l.b16 %v8634
    %v8711 = vunpack.c.h.b16 %v8634
    %v8712 = vunpack.c.l.b16 %v8635
    %v8713 = vunpack.c.h.b16 %v8635
    %v8714 = vunpack.c.l.b16 %v8636
    %v8715 = vunpack.c.h.b16 %v8636
    %v8716 = vunpack.c.l.b16 %v8637
    %v8717 = vunpack.c.h.b16 %v8637
    %v8718 = vunpack.c.l.b16 %v8638
    %v8719 = vunpack.c.h.b16 %v8638
    %v8720 = vunpack.c.l.b16 %v8639
    %v8721 = vunpack.c.h.b16 %v8639
    %v8722 = vunpack.c.l.b16 %v8640
    %v8723 = vunpack.c.h.b16 %v8640
    %v8724 = vunpack.c.l.b16 %v8641
    %v8725 = vunpack.c.h.b16 %v8641
    %v8726 = vpack.c.b16 %v8678, %v8676
    %v8727 = vpack.c.b16 %v8679, %v8677
    %v8728 = vpack.c.b16 %v8682, %v8680
    %v8729 = vpack.c.b16 %v8683, %v8681
    %v8730 = vpack.c.b16 %v8686, %v8684
    %v8731 = vpack.c.b16 %v8687, %v8685
    %v8732 = vpack.c.b16 %v8690, %v8688
    %v8733 = vpack.c.b16 %v8691, %v8689
    %v8734 = vpack.c.b16 %v8694, %v8692
    %v8735 = vpack.c.b16 %v8695, %v8693
    %v8736 = vpack.c.b16 %v8698, %v8696
    %v8737 = vpack.c.b16 %v8699, %v8697
    %v8738 = vpack.c.b16 %v8702, %v8700
    %v8739 = vpack.c.b16 %v8703, %v8701
    %v8740 = vpack.c.b16 %v8706, %v8704
    %v8741 = vpack.c.b16 %v8707, %v8705
    %v8742 = vpack.c.b16 %v8710, %v8708
    %v8743 = vpack.c.b16 %v8711, %v8709
    %v8744 = vpack.c.b16 %v8714, %v8712
    %v8745 = vpack.c.b16 %v8715, %v8713
    %v8746 = vpack.c.b16 %v8718, %v8716
    %v8747 = vpack.c.b16 %v8719, %v8717
    %v8748 = vpack.c.b16 %v8722, %v8720
    %v8749 = vpack.c.b16 %v8723, %v8721
    %v8750 = vpack.c.b16 %v8724, %v8724
    %v8751 = vpack.c.b16 %v8725, %v8725
    %v8777 = vsel %vm558, %v8643, 0
    %v8780 = vsel %vm208, %v8750, 0
    %v8783 = vsel %vm208, %v8751, 0
    %8785 = vmatpush.bf16.msra.mxu0 %v8740
    %8786 = vmatpush.bf16.msra.mxu0 %v8738
    %8787 = vmatpush.bf16.msra.mxu0 %v8736
    %8788 = vmatpush.bf16.msra.mxu0 %v8734
    %8789 = vmatpush.bf16.msra.mxu0 %v8732
    %8790 = vmatpush.bf16.msra.mxu0 %v8730
    %8791 = vmatpush.bf16.msra.mxu0 %v8728
    %8792 = vmatpush.bf16.msra.mxu0 %v8726
    %8793 = vmatmul.bf16.gmra.mxu0 %v8642
    %v8794 = vpop.f32.mrf.mxu0
    %v8795 = vadd.f32 %v8647, %v8794
    %v8796 = vpop.f32.mrf.mxu0
    %8797 = vdwg.mxu0
    %8798 = vmatpush.bf16.msra.mxu0 0
    %8799 = vmatpush.bf16.msra.mxu0 0
    %8800 = vmatpush.bf16.msra.mxu0 0
    %8801 = vmatpush.bf16.msra.mxu0 %v8780
    %8802 = vmatpush.bf16.msra.mxu0 %v8748
    %8803 = vmatpush.bf16.msra.mxu0 %v8746
    %8804 = vmatpush.bf16.msra.mxu0 %v8744
    %8805 = vmatpush.bf16.msra.mxu0 %v8742
    %8806 = vmatmul.bf16.gmra.mxu0 %v8777
    %v8807 = vpop.f32.mrf.mxu0
    %v8808 = vadd.f32 %v8795, %v8807
    %v8809 = vpop.f32.mrf.mxu0
    %8810 = vdwg.mxu0
    %8811 = vmatpush.bf16.msra.mxu0 %v8741
    %8812 = vmatpush.bf16.msra.mxu0 %v8739
    %8813 = vmatpush.bf16.msra.mxu0 %v8737
    %8814 = vmatpush.bf16.msra.mxu0 %v8735
    %8815 = vmatpush.bf16.msra.mxu0 %v8733
    %8816 = vmatpush.bf16.msra.mxu0 %v8731
    %8817 = vmatpush.bf16.msra.mxu0 %v8729
    %8818 = vmatpush.bf16.msra.mxu0 %v8727
    %8819 = vmatmul.bf16.gmra.mxu0 %v8642
    %v8820 = vpop.f32.mrf.mxu0
    %v8821 = vadd.f32 %v8648, %v8820
    %v8822 = vpop.f32.mrf.mxu0
    %8823 = vdwg.mxu0
    %8824 = vmatpush.bf16.msra.mxu0 0
    %8825 = vmatpush.bf16.msra.mxu0 0
    %8826 = vmatpush.bf16.msra.mxu0 0
    %8827 = vmatpush.bf16.msra.mxu0 %v8783
    %8828 = vmatpush.bf16.msra.mxu0 %v8749
    %8829 = vmatpush.bf16.msra.mxu0 %v8747
    %8830 = vmatpush.bf16.msra.mxu0 %v8745
    %8831 = vmatpush.bf16.msra.mxu0 %v8743
    %8832 = vmatmul.bf16.gmra.mxu0 %v8777
    %v8833 = vpop.f32.mrf.mxu0
    %v8834 = vadd.f32 %v8821, %v8833
    %v8835 = vpop.f32.mrf.mxu0
    %8836 = vdwg.mxu0
    %v8837 = vmax.f32 %v8808, 0.0
    %v8838 = vmax.f32 %v8834, 0.0
    %s8839 = scalar_lea.vmem %s25, 200
    %v8840 = vld [vmem:[%s8839] sm:$0xf]
    %v8841 = vld [vmem:[%s8839 + $0x4] sm:$0xf]
    %v8842 = vld [vmem:[%s8839 + $0x8] sm:$0xf]
    %v8843 = vld [vmem:[%s8839 + $0xc] sm:$0xf]
    %v8844 = vld [vmem:[%s8839 + $0x10] sm:$0xf]
    %v8845 = vld [vmem:[%s8839 + $0x14] sm:$0xf]
    %v8846 = vld [vmem:[%s8839 + $0x18] sm:$0xf]
    %v8847 = vld [vmem:[%s8839 + $0x1c] sm:$0xf]
    %v8848 = vld [vmem:[%s8839 + $0x20] sm:$0xf]
    %v8849 = vld [vmem:[%s8839 + $0x24] sm:$0xf]
    %v8850 = vld [vmem:[%s8839 + $0x28] sm:$0xf]
    %v8851 = vld [vmem:[%s8839 + $0x2c] sm:$0xf]
    %v8852 = vld [vmem:[%s8839 + $0x30] sm:$0xf]
    %v8853 = vld [vmem:[%s8839 + $0x34] sm:$0xf]
    %v8854 = vld [vmem:[%s8839 + $0x38] sm:$0xf]
    %v8855 = vld [vmem:[%s8839 + $0x3c] sm:$0xf]
    %v8856 = vld [vmem:[%s8839 + $0x40] sm:$0xf]
    %v8857 = vld [vmem:[%s8839 + $0x44] sm:$0xf]
    %v8858 = vld [vmem:[%s8839 + $0x48] sm:$0xf]
    %v8859 = vld [vmem:[%s8839 + $0x4c] sm:$0xf]
    %v8860 = vld [vmem:[%s8839 + $0x50] sm:$0xf]
    %v8861 = vld [vmem:[%s8839 + $0x54] sm:$0xf]
    %v8862 = vld [vmem:[%s8839 + $0x58] sm:$0xf]
    %v8863 = vld [vmem:[%s8839 + $0x5c] sm:$0xf]
    %v8864 = vld [vmem:[%s8839 + $0x60] sm:$0xf]
    %v8865 = vpack.c.bf16 %v8837, %v8837
    %v8866 = vpack.c.bf16 %v8838, %v8838
    %s8867 = scalar_lea.vmem %s26, 2
    %v8868 = vld [vmem:[%s8867] sm:$0x1]
    %v8870 = vperm.slane %v8868, 0
    %v8897 = vunpack.c.l.b16 %v8840
    %v8898 = vunpack.c.l.b16 %v8841
    %v8899 = vunpack.c.l.b16 %v8842
    %v8900 = vunpack.c.l.b16 %v8843
    %v8901 = vunpack.c.l.b16 %v8844
    %v8902 = vunpack.c.l.b16 %v8845
    %v8903 = vunpack.c.l.b16 %v8846
    %v8904 = vunpack.c.l.b16 %v8847
    %v8905 = vunpack.c.l.b16 %v8848
    %v8906 = vunpack.c.l.b16 %v8849
    %v8907 = vunpack.c.l.b16 %v8850
    %v8908 = vunpack.c.l.b16 %v8851
    %v8909 = vunpack.c.l.b16 %v8852
    %v8910 = vunpack.c.l.b16 %v8853
    %v8911 = vunpack.c.l.b16 %v8854
    %v8912 = vunpack.c.l.b16 %v8855
    %v8913 = vunpack.c.l.b16 %v8856
    %v8914 = vunpack.c.l.b16 %v8857
    %v8915 = vunpack.c.l.b16 %v8858
    %v8916 = vunpack.c.l.b16 %v8859
    %v8917 = vunpack.c.l.b16 %v8860
    %v8918 = vunpack.c.l.b16 %v8861
    %v8919 = vunpack.c.l.b16 %v8862
    %v8920 = vunpack.c.l.b16 %v8863
    %v8921 = vunpack.c.l.b16 %v8864
    %v8922 = vpack.c.b16 %v8898, %v8897
    %v8923 = vpack.c.b16 %v8900, %v8899
    %v8924 = vpack.c.b16 %v8902, %v8901
    %v8925 = vpack.c.b16 %v8904, %v8903
    %v8926 = vpack.c.b16 %v8906, %v8905
    %v8927 = vpack.c.b16 %v8908, %v8907
    %v8928 = vpack.c.b16 %v8910, %v8909
    %v8929 = vpack.c.b16 %v8912, %v8911
    %v8930 = vpack.c.b16 %v8914, %v8913
    %v8931 = vpack.c.b16 %v8916, %v8915
    %v8932 = vpack.c.b16 %v8918, %v8917
    %v8933 = vpack.c.b16 %v8920, %v8919
    %v8934 = vpack.c.b16 %v8921, %v8921
    %v8948 = vsel %vm558, %v8866, 0
    %v8951 = vsel %vm208, %v8934, 0
    %8953 = vmatpush.bf16.msra.mxu0 %v8929
    %8954 = vmatpush.bf16.msra.mxu0 %v8928
    %8955 = vmatpush.bf16.msra.mxu0 %v8927
    %8956 = vmatpush.bf16.msra.mxu0 %v8926
    %8957 = vmatpush.bf16.msra.mxu0 %v8925
    %8958 = vmatpush.bf16.msra.mxu0 %v8924
    %8959 = vmatpush.bf16.msra.mxu0 %v8923
    %8960 = vmatpush.bf16.msra.mxu0 %v8922
    %8961 = vmatmul.bf16.gmra.mxu0 %v8865
    %v8962 = vpop.f32.mrf.mxu0
    %v8963 = vadd.f32 %v8870, %v8962
    %v8964 = vpop.f32.mrf.mxu0
    %8965 = vdwg.mxu0
    %8966 = vmatpush.bf16.msra.mxu0 0
    %8967 = vmatpush.bf16.msra.mxu0 0
    %8968 = vmatpush.bf16.msra.mxu0 0
    %8969 = vmatpush.bf16.msra.mxu0 %v8951
    %8970 = vmatpush.bf16.msra.mxu0 %v8933
    %8971 = vmatpush.bf16.msra.mxu0 %v8932
    %8972 = vmatpush.bf16.msra.mxu0 %v8931
    %8973 = vmatpush.bf16.msra.mxu0 %v8930
    %8974 = vmatmul.bf16.gmra.mxu0 %v8948
    %v8975 = vpop.f32.mrf.mxu0
    %v8976 = vadd.f32 %v8963, %v8975
    %v8977 = vpop.f32.mrf.mxu0
    %8978 = vdwg.mxu0
    %v8979 = vsel %vm5585, %v8976, -inf
    %8980 = vmax.xlane.f32.xlu0 %v8979
    %v8981 = vpop.xlane.xlu0 %8980
    %v8982 = vsub.f32 %v8976, %v8981
    %v8983 = vmul.f32 %v8982, 1.442695
    %v8984 = vpow.pop %v8983
    %v8985 = vsel %vm5585, %v8984, 0.0
    %8986 = vadd.xlane.f32.xlu0 %v8985
    %v8987 = vpop.xlane.xlu0 %8986
    %v8988 = vrcp.pop %v8987
    %v8989 = vmul.f32 %v8984, %v8988
    %s8990 = scalar_lea.vmem %s28, 16
    %8991 = vst.msk [vmem:[%s8990] sm:$0xff] %vm5585, %v8989
    // Predicated region
    $region134: #{tpu_custom_call.1} parent=1 // pred_check
      _
    $region135: #{tpu_custom_call.1} parent=1 // pred_check_branch
      %8993 = sbr.rel (0) target = $region137
    $region136: #{tpu_custom_call.1} parent=1 // pred_region
      _
    $region137: #{tpu_custom_call.1} parent=1 // pred_fallthru
      _
    // Predicated region
    $region138: #{tpu_custom_call.1} parent=1 // pred_check
      _
    $region139: #{tpu_custom_call.1} parent=1 // pred_check_branch
      %8995 = sbr.rel (0) target = $region141
    $region140: #{tpu_custom_call.1} parent=1 // pred_region
      _
    $region141: #{tpu_custom_call.1} parent=1 // pred_fallthru
      _
    // Predicated region
    $region142: #{tpu_custom_call.1} parent=1 // pred_check
      _
    $region143: #{tpu_custom_call.1} parent=1 // pred_check_branch
      %8997 = sbr.rel (0) target = $region145
    $region144: #{tpu_custom_call.1} parent=1 // pred_region
      _
    $region145: #{tpu_custom_call.1} parent=1 // pred_fallthru
      _
    // Predicated region
    $region146: #{tpu_custom_call.1} parent=1 // pred_check
      _
    $region147: #{tpu_custom_call.1} parent=1 // pred_check_branch
      %8999 = sbr.rel (0) target = $region149
    $region148: #{tpu_custom_call.1} parent=1 // pred_region
      _
    $region149: #{tpu_custom_call.1} parent=1 // pred_fallthru
      _
    %9000 = vsyncpa [#allocation3], 1
    %9001 = vsyncpa [#allocation5], 1
    %9002 = vsyncpa [#allocation8], 1
    %9003 = vsyncpa [#allocation11], 1

</llo_original>
